<compile_context>
chip_gen: v7x
topology: tpu7x:2x2x1
jax: 0.10.0
libtpu: 0.0.40
codegen_flags: <defaults>
</compile_context>

<pallas_src>
import jax
import jax.numpy as jnp
from jax.experimental import pallas as pl
from jax.experimental.pallas import tpu as pltpu


# ----------------------------- Pallas kernel --------------------------------

def _make_chain_kernel(leaky_flags, Hp, Wp, ext, hw_valid, fuse_in, eps,
                       use_scratch):
    """Fused chain of 3x3 / stride-1 / pad-1 shift-convolutions.

    Refs (in order): x_ref (Cin, Lext), mask_ref (1, Hp*Wp),
    then per layer: w_ref (9, Cout, Cin), b_ref (Cout, 1);
    out ref (Cout_last, Hp*Wp); optional VMEM scratch (C_inter, Lext).
    """
    HpWp = Hp * Wp
    n_layers = len(leaky_flags)
    # Tap offsets in the flattened padded plane, ordered (ky, kx) row-major —
    # matches the (ky, kx, Cout, Cin) weight layout built in the wrapper.
    offs = [dy * Wp + dx for dy in (-1, 0, 1) for dx in (-1, 0, 1)]

    def kernel(*refs):
        if use_scratch:
            refs, buf = refs[:-1], refs[-1]
        else:
            buf = None
        x_ref, mask_ref = refs[0], refs[1]
        o_ref = refs[-1]
        wb_refs = refs[2:-1]

        mask = mask_ref[...]                        # (1, HpWp), 1.0 on interior

        if use_scratch:
            buf[...] = jnp.zeros_like(buf)          # zero border + extension

        y = None
        for li in range(n_layers):
            w_ref = wb_refs[2 * li]                 # (9, Cout, Cin)
            b_ref = wb_refs[2 * li + 1]             # (Cout, 1)
            if li > 0:
                # Stash the previous activation into the extended layout so the
                # 9 shifted reads of this layer are plain static lane slices.
                buf[:, pl.ds(ext, HpWp)] = y
            acc = None
            for t, off in enumerate(offs):
                if li == 0:
                    slab = x_ref[:, pl.ds(ext + off, HpWp)]    # (Cin, HpWp)
                else:
                    slab = buf[:, pl.ds(ext + off, HpWp)]
                part = jnp.dot(w_ref[t], slab,
                               preferred_element_type=jnp.float32)
                acc = part if acc is None else acc + part
            acc = acc + b_ref[...]                  # bias (zeros when absent)
            if leaky_flags[li]:
                acc = jnp.where(acc >= 0, acc, 0.1 * acc)   # LeakyReLU(0.1)
            y = acc * mask                          # re-zero the 1-px border

        if fuse_in:
            # InstanceNorm2d (affine=False, biased variance) fused in-kernel.
            inv_n = 1.0 / float(hw_valid)
            mean = jnp.sum(y, axis=1, keepdims=True) * inv_n
            yc = (y - mean) * mask
            var = jnp.sum(yc * yc, axis=1, keepdims=True) * inv_n
            y = yc * jax.lax.rsqrt(var + eps)

        o_ref[...] = y.astype(o_ref.dtype)

    return kernel


# ------------------------------ JAX wrapper ----------------------------------

def shift_conv_chain(x_dense, layers, *, fuse_instance_norm=False, eps=1e-5,
                     vmem_limit_bytes=32 * 1024 * 1024):
    """Fused chain of 3x3 stride-1 pad-1 convs (optionally + InstanceNorm).

    x_dense : (N, Cin, H, W) float32.
    layers  : list of (w_pt, bias_or_None, leaky) with w_pt in PyTorch
              (Cout, Cin, 3, 3) layout.
    Returns the stride-1 output (N, Cout_last, H, W); callers take a strided
    view for stride-2 layers.
    """
    N, C0, H, W = (int(s) for s in x_dense.shape)
    Hp, Wp = H + 2, W + 2
    HpWp = Hp * Wp
    ext = ((Wp + 1 + 127) // 128) * 128        # >= Wp+1, lane-aligned
    Lext = HpWp + 2 * ext

    # Extended, zero-padded, lane-flattened input: (N, C, Lext).
    xp = jnp.pad(x_dense.astype(jnp.float32), ((0, 0), (0, 0), (1, 1), (1, 1)))
    xf = jnp.pad(xp.reshape(N, C0, HpWp), ((0, 0), (0, 0), (ext, ext)))

    # Interior-of-plane mask (1, HpWp).
    ri = jnp.arange(Hp)
    ci = jnp.arange(Wp)
    m2 = (((ri >= 1) & (ri <= Hp - 2))[:, None]
          & ((ci >= 1) & (ci <= Wp - 2))[None, :])
    mask = m2.astype(jnp.float32).reshape(1, HpWp)

    ins = [xf, mask]
    in_specs = [
        pl.BlockSpec((None, C0, Lext), lambda n: (n, 0, 0)),
        pl.BlockSpec((1, HpWp), lambda n: (0, 0)),
    ]

    leaky_flags = []
    c_last = None
    for (w_pt, b, leaky) in layers:
        Cout, Cin = int(w_pt.shape[0]), int(w_pt.shape[1])
        # (Cout, Cin, 3, 3) -> (ky, kx, Cout, Cin) -> (9, Cout, Cin)
        w_taps = jnp.transpose(w_pt.astype(jnp.float32),
                               (2, 3, 0, 1)).reshape(9, Cout, Cin)
        b_col = jnp.zeros((Cout,), jnp.float32) if b is None else b
        b_col = b_col.astype(jnp.float32).reshape(Cout, 1)
        ins += [w_taps, b_col]
        in_specs += [
            pl.BlockSpec((9, Cout, Cin), lambda n: (0, 0, 0)),
            pl.BlockSpec((Cout, 1), lambda n: (0, 0)),
        ]
        leaky_flags.append(bool(leaky))
        c_last = Cout

    n_layers = len(layers)
    use_scratch = n_layers > 1
    c_inter = int(layers[0][0].shape[0])
    if use_scratch:
        for li in range(1, n_layers):
            assert int(layers[li][0].shape[1]) == c_inter
        for li in range(0, n_layers - 1):
            assert int(layers[li][0].shape[0]) == c_inter

    kernel = _make_chain_kernel(tuple(leaky_flags), Hp, Wp, ext, H * W,
                                fuse_instance_norm, eps, use_scratch)

    out = pl.pallas_call(
        kernel,
        out_shape=jax.ShapeDtypeStruct((N, c_last, HpWp), jnp.float32),
        grid=(N,),
        in_specs=in_specs,
        out_specs=pl.BlockSpec((None, c_last, HpWp), lambda n: (n, 0, 0)),
        scratch_shapes=([pltpu.VMEM((c_inter, Lext), jnp.float32)]
                        if use_scratch else []),
        compiler_params=pltpu.CompilerParams(
            dimension_semantics=("parallel",),
            vmem_limit_bytes=vmem_limit_bytes),
    )(*ins)

    # Drop the 1-pixel zero border -> dense (N, C, H, W) (still NCHW).
    return out.reshape(N, c_last, Hp, Wp)[:, :, 1:1 + H, 1:1 + W]


# --------------------------- parameters / forward ---------------------------

def _orthogonal(key, shape):
    """Deterministic orthogonal init (same spirit as torch.nn.init.orthogonal_)."""
    cout = shape[0]
    fan_in = shape[1] * shape[2] * shape[3]
    rows, cols = cout, fan_in
    a = jax.random.normal(key, (max(rows, cols), min(rows, cols)), jnp.float32)
    q, r = jnp.linalg.qr(a)
    q = q * jnp.sign(jnp.diagonal(r))[None, :]
    if rows < cols:
        q = q.T
    return q[:rows, :cols].reshape(shape).astype(jnp.float32)


def init_params(key, input_channels=4):
    c, c4 = input_channels, 4 * input_channels
    k = jax.random.split(key, 5)
    return {
        "w0": _orthogonal(k[0], (c4, c, 3, 3)),    # conv stride 2, no bias
        "w1": _orthogonal(k[1], (c4, c4, 3, 3)),   # conv stride 1, bias
        "b1": jnp.zeros((c4,), jnp.float32),
        "w2": _orthogonal(k[2], (c4, c4, 3, 3)),   # conv stride 2, no bias
        "w3": _orthogonal(k[3], (c4, c4, 3, 3)),   # conv stride 1, bias
        "b3": jnp.zeros((c4,), jnp.float32),
        "w4": _orthogonal(k[4], (c4, c4, 3, 3)),   # conv stride 1, bias
        "b4": jnp.zeros((c4,), jnp.float32),
    }


def cnn_downsampling_forward(x_nchw, params):
    """Forward pass equivalent to CNN_downsampling.simple_block (NCHW in/out)."""
    x = x_nchw.astype(jnp.float32)

    # Conv0: 3x3 stride 2, no bias.  Computed as a stride-1 shift-conv inside
    # the kernel; the stride-2 subsample is a strided view in XLA glue.
    y = shift_conv_chain(x, [(params["w0"], None, False)])
    y = y[:, :, ::2, ::2]

    # Conv1 (+bias, LeakyReLU 0.1) fused with Conv2 (stride 2, no bias):
    # the intermediate activation never leaves VMEM.
    y = shift_conv_chain(y, [(params["w1"], params["b1"], True),
                             (params["w2"], None, False)])
    y = y[:, :, ::2, ::2]

    # Conv3 (+bias, LeakyReLU) + Conv4 (+bias) + InstanceNorm2d, fully fused.
    y = shift_conv_chain(y, [(params["w3"], params["b3"], True),
                             (params["w4"], params["b4"], False)],
                         fuse_instance_norm=True)
    return y


# ------------------------------ reference ------------------------------------

def _ref_forward(x_nchw, params):
    """Pure-JAX reference (lax.conv) for a silent correctness check."""
    def conv(x, w, b, stride, leaky):
        y = jax.lax.conv_general_dilated(
            x, w, (stride, stride), ((1, 1), (1, 1)),
            dimension_numbers=("NCHW", "OIHW", "NCHW"))
        y = y + b.reshape(1, -1, 1, 1)
        return jnp.where(y >= 0, y, 0.1 * y) if leaky else y
    c4 = params["w0"].shape[0]
    zero = jnp.zeros((c4,), jnp.float32)
    x = conv(x_nchw, params["w0"], zero, 2, False)
    x = conv(x, params["w1"], params["b1"], 1, True)
    x = conv(x, params["w2"], zero, 2, False)
    x = conv(x, params["w3"], params["b3"], 1, True)
    x = conv(x, params["w4"], params["b4"], 1, False)
    mean = jnp.mean(x, axis=(2, 3), keepdims=True)
    var = jnp.mean((x - mean) ** 2, axis=(2, 3), keepdims=True)
    return (x - mean) * jax.lax.rsqrt(var + 1e-5)


if __name__ == "__main__":
    key = jax.random.PRNGKey(0)
    kx, kp = jax.random.split(key)

    N, C, H, W = 2, 4, 16, 16
    x = jax.random.normal(kx, (N, C, H, W), jnp.float32)
    params = init_params(kp, input_channels=C)

    out = jax.jit(cnn_downsampling_forward)(x, params)
    out = jax.block_until_ready(out)

    assert out.shape == (N, 4 * C, H // 4, W // 4), out.shape

    ref = jax.block_until_ready(_ref_forward(x, params))
    err = float(jnp.max(jnp.abs(out - ref)))
    assert jnp.allclose(out, ref, atol=2e-3, rtol=2e-3), err

    print("KERNEL_OK")
</pallas_src>

<mosaic_0001>
module attributes {stable_mosaic.version = 11 : i64} {
  func.func @kernel(%arg0: i32, %arg1: memref<1x4x580xf32, #tpu.memory_space<vmem>>, %arg2: memref<1x324xf32, #tpu.memory_space<vmem>>, %arg3: memref<9x16x4xf32, #tpu.memory_space<vmem>>, %arg4: memref<16x1xf32, #tpu.memory_space<vmem>>, %arg5: memref<1x16x324xf32, #tpu.memory_space<vmem>>) attributes {dimension_semantics = [#tpu.dimension_semantics<parallel>], iteration_bounds = array<i64: 2>, scalar_prefetch = 0 : i64, scratch_operands = 0 : i64, tpu.core_type = #tpu.core_type<tc>, window_params = [{transform_indices = @transform_0, window_bounds = array<i64: 1, 4, 580>}, {pipeline_mode = #tpu.pipeline_mode<synchronous>, transform_indices = @transform_1, window_bounds = array<i64: 1, 324>}, {pipeline_mode = #tpu.pipeline_mode<synchronous>, transform_indices = @transform_2, window_bounds = array<i64: 9, 16, 4>}, {pipeline_mode = #tpu.pipeline_mode<synchronous>, transform_indices = @transform_3, window_bounds = array<i64: 16, 1>}, {transform_indices = @transform_4, window_bounds = array<i64: 1, 16, 324>}]} {
    %c0 = arith.constant 0 : index
    %c0_0 = arith.constant 0 : index
    %0 = vector.load %arg2[%c0, %c0_0] : memref<1x324xf32, #tpu.memory_space<vmem>>, vector<1x324xf32>
    %c0_1 = arith.constant 0 : index
    %c0_2 = arith.constant 0 : index
    %c109 = arith.constant 109 : index
    %1 = vector.load %arg1[%c0_1, %c0_2, %c109] : memref<1x4x580xf32, #tpu.memory_space<vmem>>, vector<1x4x324xf32>
    %2 = vector.shape_cast %1 : vector<1x4x324xf32> to vector<4x324xf32>
    %c0_3 = arith.constant 0 : index
    %c0_4 = arith.constant 0 : index
    %c0_5 = arith.constant 0 : index
    %3 = vector.load %arg3[%c0_3, %c0_4, %c0_5] : memref<9x16x4xf32, #tpu.memory_space<vmem>>, vector<1x16x4xf32>
    %4 = vector.shape_cast %3 : vector<1x16x4xf32> to vector<16x4xf32>
    %cst = arith.constant dense<0.000000e+00> : vector<16x324xf32>
    %5 = tpu.matmul %4, %2, %cst {dimension_numbers = #tpu.dot_dimension_numbers<[1], [0], [0], [1], [0, 0, 1, 1], [], []>} : vector<16x4xf32>, vector<4x324xf32>, vector<16x324xf32> -> vector<16x324xf32>
    %c0_6 = arith.constant 0 : index
    %c0_7 = arith.constant 0 : index
    %c110 = arith.constant 110 : index
    %6 = vector.load %arg1[%c0_6, %c0_7, %c110] : memref<1x4x580xf32, #tpu.memory_space<vmem>>, vector<1x4x324xf32>
    %7 = vector.shape_cast %6 : vector<1x4x324xf32> to vector<4x324xf32>
    %c1 = arith.constant 1 : index
    %c0_8 = arith.constant 0 : index
    %c0_9 = arith.constant 0 : index
    %8 = vector.load %arg3[%c1, %c0_8, %c0_9] : memref<9x16x4xf32, #tpu.memory_space<vmem>>, vector<1x16x4xf32>
    %9 = vector.shape_cast %8 : vector<1x16x4xf32> to vector<16x4xf32>
    %cst_10 = arith.constant dense<0.000000e+00> : vector<16x324xf32>
    %10 = tpu.matmul %9, %7, %cst_10 {dimension_numbers = #tpu.dot_dimension_numbers<[1], [0], [0], [1], [0, 0, 1, 1], [], []>} : vector<16x4xf32>, vector<4x324xf32>, vector<16x324xf32> -> vector<16x324xf32>
    %11 = arith.addf %5, %10 : vector<16x324xf32>
    %c0_11 = arith.constant 0 : index
    %c0_12 = arith.constant 0 : index
    %c111 = arith.constant 111 : index
    %12 = vector.load %arg1[%c0_11, %c0_12, %c111] : memref<1x4x580xf32, #tpu.memory_space<vmem>>, vector<1x4x324xf32>
    %13 = vector.shape_cast %12 : vector<1x4x324xf32> to vector<4x324xf32>
    %c2 = arith.constant 2 : index
    %c0_13 = arith.constant 0 : index
    %c0_14 = arith.constant 0 : index
    %14 = vector.load %arg3[%c2, %c0_13, %c0_14] : memref<9x16x4xf32, #tpu.memory_space<vmem>>, vector<1x16x4xf32>
    %15 = vector.shape_cast %14 : vector<1x16x4xf32> to vector<16x4xf32>
    %cst_15 = arith.constant dense<0.000000e+00> : vector<16x324xf32>
    %16 = tpu.matmul %15, %13, %cst_15 {dimension_numbers = #tpu.dot_dimension_numbers<[1], [0], [0], [1], [0, 0, 1, 1], [], []>} : vector<16x4xf32>, vector<4x324xf32>, vector<16x324xf32> -> vector<16x324xf32>
    %17 = arith.addf %11, %16 : vector<16x324xf32>
    %c0_16 = arith.constant 0 : index
    %c0_17 = arith.constant 0 : index
    %c127 = arith.constant 127 : index
    %18 = vector.load %arg1[%c0_16, %c0_17, %c127] : memref<1x4x580xf32, #tpu.memory_space<vmem>>, vector<1x4x324xf32>
    %19 = vector.shape_cast %18 : vector<1x4x324xf32> to vector<4x324xf32>
    %c3 = arith.constant 3 : index
    %c0_18 = arith.constant 0 : index
    %c0_19 = arith.constant 0 : index
    %20 = vector.load %arg3[%c3, %c0_18, %c0_19] : memref<9x16x4xf32, #tpu.memory_space<vmem>>, vector<1x16x4xf32>
    %21 = vector.shape_cast %20 : vector<1x16x4xf32> to vector<16x4xf32>
    %cst_20 = arith.constant dense<0.000000e+00> : vector<16x324xf32>
    %22 = tpu.matmul %21, %19, %cst_20 {dimension_numbers = #tpu.dot_dimension_numbers<[1], [0], [0], [1], [0, 0, 1, 1], [], []>} : vector<16x4xf32>, vector<4x324xf32>, vector<16x324xf32> -> vector<16x324xf32>
    %23 = arith.addf %17, %22 : vector<16x324xf32>
    %c0_21 = arith.constant 0 : index
    %c0_22 = arith.constant 0 : index
    %c128 = arith.constant 128 : index
    %24 = vector.load %arg1[%c0_21, %c0_22, %c128] : memref<1x4x580xf32, #tpu.memory_space<vmem>>, vector<1x4x324xf32>
    %25 = vector.shape_cast %24 : vector<1x4x324xf32> to vector<4x324xf32>
    %c4 = arith.constant 4 : index
    %c0_23 = arith.constant 0 : index
    %c0_24 = arith.constant 0 : index
    %26 = vector.load %arg3[%c4, %c0_23, %c0_24] : memref<9x16x4xf32, #tpu.memory_space<vmem>>, vector<1x16x4xf32>
    %27 = vector.shape_cast %26 : vector<1x16x4xf32> to vector<16x4xf32>
    %cst_25 = arith.constant dense<0.000000e+00> : vector<16x324xf32>
    %28 = tpu.matmul %27, %25, %cst_25 {dimension_numbers = #tpu.dot_dimension_numbers<[1], [0], [0], [1], [0, 0, 1, 1], [], []>} : vector<16x4xf32>, vector<4x324xf32>, vector<16x324xf32> -> vector<16x324xf32>
    %29 = arith.addf %23, %28 : vector<16x324xf32>
    %c0_26 = arith.constant 0 : index
    %c0_27 = arith.constant 0 : index
    %c129 = arith.constant 129 : index
    %30 = vector.load %arg1[%c0_26, %c0_27, %c129] : memref<1x4x580xf32, #tpu.memory_space<vmem>>, vector<1x4x324xf32>
    %31 = vector.shape_cast %30 : vector<1x4x324xf32> to vector<4x324xf32>
    %c5 = arith.constant 5 : index
    %c0_28 = arith.constant 0 : index
    %c0_29 = arith.constant 0 : index
    %32 = vector.load %arg3[%c5, %c0_28, %c0_29] : memref<9x16x4xf32, #tpu.memory_space<vmem>>, vector<1x16x4xf32>
    %33 = vector.shape_cast %32 : vector<1x16x4xf32> to vector<16x4xf32>
    %cst_30 = arith.constant dense<0.000000e+00> : vector<16x324xf32>
    %34 = tpu.matmul %33, %31, %cst_30 {dimension_numbers = #tpu.dot_dimension_numbers<[1], [0], [0], [1], [0, 0, 1, 1], [], []>} : vector<16x4xf32>, vector<4x324xf32>, vector<16x324xf32> -> vector<16x324xf32>
    %35 = arith.addf %29, %34 : vector<16x324xf32>
    %c0_31 = arith.constant 0 : index
    %c0_32 = arith.constant 0 : index
    %c145 = arith.constant 145 : index
    %36 = vector.load %arg1[%c0_31, %c0_32, %c145] : memref<1x4x580xf32, #tpu.memory_space<vmem>>, vector<1x4x324xf32>
    %37 = vector.shape_cast %36 : vector<1x4x324xf32> to vector<4x324xf32>
    %c6 = arith.constant 6 : index
    %c0_33 = arith.constant 0 : index
    %c0_34 = arith.constant 0 : index
    %38 = vector.load %arg3[%c6, %c0_33, %c0_34] : memref<9x16x4xf32, #tpu.memory_space<vmem>>, vector<1x16x4xf32>
    %39 = vector.shape_cast %38 : vector<1x16x4xf32> to vector<16x4xf32>
    %cst_35 = arith.constant dense<0.000000e+00> : vector<16x324xf32>
    %40 = tpu.matmul %39, %37, %cst_35 {dimension_numbers = #tpu.dot_dimension_numbers<[1], [0], [0], [1], [0, 0, 1, 1], [], []>} : vector<16x4xf32>, vector<4x324xf32>, vector<16x324xf32> -> vector<16x324xf32>
    %41 = arith.addf %35, %40 : vector<16x324xf32>
    %c0_36 = arith.constant 0 : index
    %c0_37 = arith.constant 0 : index
    %c146 = arith.constant 146 : index
    %42 = vector.load %arg1[%c0_36, %c0_37, %c146] : memref<1x4x580xf32, #tpu.memory_space<vmem>>, vector<1x4x324xf32>
    %43 = vector.shape_cast %42 : vector<1x4x324xf32> to vector<4x324xf32>
    %c7 = arith.constant 7 : index
    %c0_38 = arith.constant 0 : index
    %c0_39 = arith.constant 0 : index
    %44 = vector.load %arg3[%c7, %c0_38, %c0_39] : memref<9x16x4xf32, #tpu.memory_space<vmem>>, vector<1x16x4xf32>
    %45 = vector.shape_cast %44 : vector<1x16x4xf32> to vector<16x4xf32>
    %cst_40 = arith.constant dense<0.000000e+00> : vector<16x324xf32>
    %46 = tpu.matmul %45, %43, %cst_40 {dimension_numbers = #tpu.dot_dimension_numbers<[1], [0], [0], [1], [0, 0, 1, 1], [], []>} : vector<16x4xf32>, vector<4x324xf32>, vector<16x324xf32> -> vector<16x324xf32>
    %47 = arith.addf %41, %46 : vector<16x324xf32>
    %c0_41 = arith.constant 0 : index
    %c0_42 = arith.constant 0 : index
    %c147 = arith.constant 147 : index
    %48 = vector.load %arg1[%c0_41, %c0_42, %c147] : memref<1x4x580xf32, #tpu.memory_space<vmem>>, vector<1x4x324xf32>
    %49 = vector.shape_cast %48 : vector<1x4x324xf32> to vector<4x324xf32>
    %c8 = arith.constant 8 : index
    %c0_43 = arith.constant 0 : index
    %c0_44 = arith.constant 0 : index
    %50 = vector.load %arg3[%c8, %c0_43, %c0_44] : memref<9x16x4xf32, #tpu.memory_space<vmem>>, vector<1x16x4xf32>
    %51 = vector.shape_cast %50 : vector<1x16x4xf32> to vector<16x4xf32>
    %cst_45 = arith.constant dense<0.000000e+00> : vector<16x324xf32>
    %52 = tpu.matmul %51, %49, %cst_45 {dimension_numbers = #tpu.dot_dimension_numbers<[1], [0], [0], [1], [0, 0, 1, 1], [], []>} : vector<16x4xf32>, vector<4x324xf32>, vector<16x324xf32> -> vector<16x324xf32>
    %53 = arith.addf %47, %52 : vector<16x324xf32>
    %c0_46 = arith.constant 0 : index
    %c0_47 = arith.constant 0 : index
    %54 = vector.load %arg4[%c0_46, %c0_47] : memref<16x1xf32, #tpu.memory_space<vmem>>, vector<16x1xf32>
    %55 = vector.broadcast %54 : vector<16x1xf32> to vector<16x324xf32>
    %56 = arith.addf %53, %55 : vector<16x324xf32>
    %57 = vector.broadcast %0 : vector<1x324xf32> to vector<16x324xf32>
    %58 = arith.mulf %56, %57 : vector<16x324xf32>
    %c0_48 = arith.constant 0 : index
    %c0_49 = arith.constant 0 : index
    %c0_50 = arith.constant 0 : index
    %59 = vector.load %arg5[%c0_48, %c0_49, %c0_50] : memref<1x16x324xf32, #tpu.memory_space<vmem>>, vector<1x16x324xf32>
    %60 = vector.shape_cast %59 : vector<1x16x324xf32> to vector<16x324xf32>
    %61 = vector.shape_cast %58 : vector<16x324xf32> to vector<1x16x324xf32>
    tpu.vector_store %arg5[%c0_48, %c0_49, %c0_50], %61 {strides = array<i32>} : memref<1x16x324xf32, #tpu.memory_space<vmem>>, vector<1x16x324xf32>,
    return
  }
  func.func @transform_0(%arg0: i32) -> (i32, i32, i32) {
    %c0_i32 = arith.constant 0 : i32
    %c0_i32_0 = arith.constant 0 : i32
    %c0_i32_1 = arith.constant 0 : i32
    return %arg0, %c0_i32, %c0_i32_0 : i32, i32, i32
  }
  func.func @transform_1(%arg0: i32) -> (i32, i32) {
    %c0_i32 = arith.constant 0 : i32
    %c0_i32_0 = arith.constant 0 : i32
    %c0_i32_1 = arith.constant 0 : i32
    return %c0_i32, %c0_i32_0 : i32, i32
  }
  func.func @transform_2(%arg0: i32) -> (i32, i32, i32) {
    %c0_i32 = arith.constant 0 : i32
    %c0_i32_0 = arith.constant 0 : i32
    %c0_i32_1 = arith.constant 0 : i32
    %c0_i32_2 = arith.constant 0 : i32
    return %c0_i32, %c0_i32_0, %c0_i32_1 : i32, i32, i32
  }
  func.func @transform_3(%arg0: i32) -> (i32, i32) {
    %c0_i32 = arith.constant 0 : i32
    %c0_i32_0 = arith.constant 0 : i32
    %c0_i32_1 = arith.constant 0 : i32
    return %c0_i32, %c0_i32_0 : i32, i32
  }
  func.func @transform_4(%arg0: i32) -> (i32, i32, i32) {
    %c0_i32 = arith.constant 0 : i32
    %c0_i32_0 = arith.constant 0 : i32
    %c0_i32_1 = arith.constant 0 : i32
    return %arg0, %c0_i32, %c0_i32_0 : i32, i32, i32
  }
}

module attributes {stable_mosaic.version = 11 : i64} {
  func.func @kernel(%arg0: i32, %arg1: memref<1x16x356xf32, #tpu.memory_space<vmem>>, %arg2: memref<1x100xf32, #tpu.memory_space<vmem>>, %arg3: memref<9x16x16xf32, #tpu.memory_space<vmem>>, %arg4: memref<16x1xf32, #tpu.memory_space<vmem>>, %arg5: memref<9x16x16xf32, #tpu.memory_space<vmem>>, %arg6: memref<16x1xf32, #tpu.memory_space<vmem>>, %arg7: memref<1x16x100xf32, #tpu.memory_space<vmem>>, %arg8: memref<16x356xf32, #tpu.memory_space<vmem>>) attributes {dimension_semantics = [#tpu.dimension_semantics<parallel>], iteration_bounds = array<i64: 2>, scalar_prefetch = 0 : i64, scratch_operands = 1 : i64, tpu.core_type = #tpu.core_type<tc>, window_params = [{transform_indices = @transform_0, window_bounds = array<i64: 1, 16, 356>}, {pipeline_mode = #tpu.pipeline_mode<synchronous>, transform_indices = @transform_1, window_bounds = array<i64: 1, 100>}, {pipeline_mode = #tpu.pipeline_mode<synchronous>, transform_indices = @transform_2, window_bounds = array<i64: 9, 16, 16>}, {pipeline_mode = #tpu.pipeline_mode<synchronous>, transform_indices = @transform_3, window_bounds = array<i64: 16, 1>}, {pipeline_mode = #tpu.pipeline_mode<synchronous>, transform_indices = @transform_4, window_bounds = array<i64: 9, 16, 16>}, {pipeline_mode = #tpu.pipeline_mode<synchronous>, transform_indices = @transform_5, window_bounds = array<i64: 16, 1>}, {transform_indices = @transform_6, window_bounds = array<i64: 1, 16, 100>}]} {
    %c0 = arith.constant 0 : index
    %c0_0 = arith.constant 0 : index
    %0 = vector.load %arg2[%c0, %c0_0] : memref<1x100xf32, #tpu.memory_space<vmem>>, vector<1x100xf32>
    %cst = arith.constant 0.000000e+00 : f32
    %1 = vector.broadcast %cst : f32 to vector<16x356xf32>
    %c0_1 = arith.constant 0 : index
    %c0_2 = arith.constant 0 : index
    %2 = vector.load %arg8[%c0_1, %c0_2] : memref<16x356xf32, #tpu.memory_space<vmem>>, vector<16x356xf32>
    tpu.vector_store %arg8[%c0_1, %c0_2], %1 {strides = array<i32>} : memref<16x356xf32, #tpu.memory_space<vmem>>, vector<16x356xf32>,
    %c0_3 = arith.constant 0 : index
    %c0_4 = arith.constant 0 : index
    %c117 = arith.constant 117 : index
    %3 = vector.load %arg1[%c0_3, %c0_4, %c117] : memref<1x16x356xf32, #tpu.memory_space<vmem>>, vector<1x16x100xf32>
    %4 = vector.shape_cast %3 : vector<1x16x100xf32> to vector<16x100xf32>
    %c0_5 = arith.constant 0 : index
    %c0_6 = arith.constant 0 : index
    %c0_7 = arith.constant 0 : index
    %5 = vector.load %arg3[%c0_5, %c0_6, %c0_7] : memref<9x16x16xf32, #tpu.memory_space<vmem>>, vector<1x16x16xf32>
    %6 = vector.shape_cast %5 : vector<1x16x16xf32> to vector<16x16xf32>
    %cst_8 = arith.constant dense<0.000000e+00> : vector<16x100xf32>
    %7 = tpu.matmul %6, %4, %cst_8 {dimension_numbers = #tpu.dot_dimension_numbers<[1], [0], [0], [1], [0, 0, 1, 1], [], []>} : vector<16x16xf32>, vector<16x100xf32>, vector<16x100xf32> -> vector<16x100xf32>
    %c0_9 = arith.constant 0 : index
    %c0_10 = arith.constant 0 : index
    %c118 = arith.constant 118 : index
    %8 = vector.load %arg1[%c0_9, %c0_10, %c118] : memref<1x16x356xf32, #tpu.memory_space<vmem>>, vector<1x16x100xf32>
    %9 = vector.shape_cast %8 : vector<1x16x100xf32> to vector<16x100xf32>
    %c1 = arith.constant 1 : index
    %c0_11 = arith.constant 0 : index
    %c0_12 = arith.constant 0 : index
    %10 = vector.load %arg3[%c1, %c0_11, %c0_12] : memref<9x16x16xf32, #tpu.memory_space<vmem>>, vector<1x16x16xf32>
    %11 = vector.shape_cast %10 : vector<1x16x16xf32> to vector<16x16xf32>
    %cst_13 = arith.constant dense<0.000000e+00> : vector<16x100xf32>
    %12 = tpu.matmul %11, %9, %cst_13 {dimension_numbers = #tpu.dot_dimension_numbers<[1], [0], [0], [1], [0, 0, 1, 1], [], []>} : vector<16x16xf32>, vector<16x100xf32>, vector<16x100xf32> -> vector<16x100xf32>
    %13 = arith.addf %7, %12 : vector<16x100xf32>
    %c0_14 = arith.constant 0 : index
    %c0_15 = arith.constant 0 : index
    %c119 = arith.constant 119 : index
    %14 = vector.load %arg1[%c0_14, %c0_15, %c119] : memref<1x16x356xf32, #tpu.memory_space<vmem>>, vector<1x16x100xf32>
    %15 = vector.shape_cast %14 : vector<1x16x100xf32> to vector<16x100xf32>
    %c2 = arith.constant 2 : index
    %c0_16 = arith.constant 0 : index
    %c0_17 = arith.constant 0 : index
    %16 = vector.load %arg3[%c2, %c0_16, %c0_17] : memref<9x16x16xf32, #tpu.memory_space<vmem>>, vector<1x16x16xf32>
    %17 = vector.shape_cast %16 : vector<1x16x16xf32> to vector<16x16xf32>
    %cst_18 = arith.constant dense<0.000000e+00> : vector<16x100xf32>
    %18 = tpu.matmul %17, %15, %cst_18 {dimension_numbers = #tpu.dot_dimension_numbers<[1], [0], [0], [1], [0, 0, 1, 1], [], []>} : vector<16x16xf32>, vector<16x100xf32>, vector<16x100xf32> -> vector<16x100xf32>
    %19 = arith.addf %13, %18 : vector<16x100xf32>
    %c0_19 = arith.constant 0 : index
    %c0_20 = arith.constant 0 : index
    %c127 = arith.constant 127 : index
    %20 = vector.load %arg1[%c0_19, %c0_20, %c127] : memref<1x16x356xf32, #tpu.memory_space<vmem>>, vector<1x16x100xf32>
    %21 = vector.shape_cast %20 : vector<1x16x100xf32> to vector<16x100xf32>
    %c3 = arith.constant 3 : index
    %c0_21 = arith.constant 0 : index
    %c0_22 = arith.constant 0 : index
    %22 = vector.load %arg3[%c3, %c0_21, %c0_22] : memref<9x16x16xf32, #tpu.memory_space<vmem>>, vector<1x16x16xf32>
    %23 = vector.shape_cast %22 : vector<1x16x16xf32> to vector<16x16xf32>
    %cst_23 = arith.constant dense<0.000000e+00> : vector<16x100xf32>
    %24 = tpu.matmul %23, %21, %cst_23 {dimension_numbers = #tpu.dot_dimension_numbers<[1], [0], [0], [1], [0, 0, 1, 1], [], []>} : vector<16x16xf32>, vector<16x100xf32>, vector<16x100xf32> -> vector<16x100xf32>
    %25 = arith.addf %19, %24 : vector<16x100xf32>
    %c0_24 = arith.constant 0 : index
    %c0_25 = arith.constant 0 : index
    %c128 = arith.constant 128 : index
    %26 = vector.load %arg1[%c0_24, %c0_25, %c128] : memref<1x16x356xf32, #tpu.memory_space<vmem>>, vector<1x16x100xf32>
    %27 = vector.shape_cast %26 : vector<1x16x100xf32> to vector<16x100xf32>
    %c4 = arith.constant 4 : index
    %c0_26 = arith.constant 0 : index
    %c0_27 = arith.constant 0 : index
    %28 = vector.load %arg3[%c4, %c0_26, %c0_27] : memref<9x16x16xf32, #tpu.memory_space<vmem>>, vector<1x16x16xf32>
    %29 = vector.shape_cast %28 : vector<1x16x16xf32> to vector<16x16xf32>
    %cst_28 = arith.constant dense<0.000000e+00> : vector<16x100xf32>
    %30 = tpu.matmul %29, %27, %cst_28 {dimension_numbers = #tpu.dot_dimension_numbers<[1], [0], [0], [1], [0, 0, 1, 1], [], []>} : vector<16x16xf32>, vector<16x100xf32>, vector<16x100xf32> -> vector<16x100xf32>
    %31 = arith.addf %25, %30 : vector<16x100xf32>
    %c0_29 = arith.constant 0 : index
    %c0_30 = arith.constant 0 : index
    %c129 = arith.constant 129 : index
    %32 = vector.load %arg1[%c0_29, %c0_30, %c129] : memref<1x16x356xf32, #tpu.memory_space<vmem>>, vector<1x16x100xf32>
    %33 = vector.shape_cast %32 : vector<1x16x100xf32> to vector<16x100xf32>
    %c5 = arith.constant 5 : index
    %c0_31 = arith.constant 0 : index
    %c0_32 = arith.constant 0 : index
    %34 = vector.load %arg3[%c5, %c0_31, %c0_32] : memref<9x16x16xf32, #tpu.memory_space<vmem>>, vector<1x16x16xf32>
    %35 = vector.shape_cast %34 : vector<1x16x16xf32> to vector<16x16xf32>
    %cst_33 = arith.constant dense<0.000000e+00> : vector<16x100xf32>
    %36 = tpu.matmul %35, %33, %cst_33 {dimension_numbers = #tpu.dot_dimension_numbers<[1], [0], [0], [1], [0, 0, 1, 1], [], []>} : vector<16x16xf32>, vector<16x100xf32>, vector<16x100xf32> -> vector<16x100xf32>
    %37 = arith.addf %31, %36 : vector<16x100xf32>
    %c0_34 = arith.constant 0 : index
    %c0_35 = arith.constant 0 : index
    %c137 = arith.constant 137 : index
    %38 = vector.load %arg1[%c0_34, %c0_35, %c137] : memref<1x16x356xf32, #tpu.memory_space<vmem>>, vector<1x16x100xf32>
    %39 = vector.shape_cast %38 : vector<1x16x100xf32> to vector<16x100xf32>
    %c6 = arith.constant 6 : index
    %c0_36 = arith.constant 0 : index
    %c0_37 = arith.constant 0 : index
    %40 = vector.load %arg3[%c6, %c0_36, %c0_37] : memref<9x16x16xf32, #tpu.memory_space<vmem>>, vector<1x16x16xf32>
    %41 = vector.shape_cast %40 : vector<1x16x16xf32> to vector<16x16xf32>
    %cst_38 = arith.constant dense<0.000000e+00> : vector<16x100xf32>
    %42 = tpu.matmul %41, %39, %cst_38 {dimension_numbers = #tpu.dot_dimension_numbers<[1], [0], [0], [1], [0, 0, 1, 1], [], []>} : vector<16x16xf32>, vector<16x100xf32>, vector<16x100xf32> -> vector<16x100xf32>
    %43 = arith.addf %37, %42 : vector<16x100xf32>
    %c0_39 = arith.constant 0 : index
    %c0_40 = arith.constant 0 : index
    %c138 = arith.constant 138 : index
    %44 = vector.load %arg1[%c0_39, %c0_40, %c138] : memref<1x16x356xf32, #tpu.memory_space<vmem>>, vector<1x16x100xf32>
    %45 = vector.shape_cast %44 : vector<1x16x100xf32> to vector<16x100xf32>
    %c7 = arith.constant 7 : index
    %c0_41 = arith.constant 0 : index
    %c0_42 = arith.constant 0 : index
    %46 = vector.load %arg3[%c7, %c0_41, %c0_42] : memref<9x16x16xf32, #tpu.memory_space<vmem>>, vector<1x16x16xf32>
    %47 = vector.shape_cast %46 : vector<1x16x16xf32> to vector<16x16xf32>
    %cst_43 = arith.constant dense<0.000000e+00> : vector<16x100xf32>
    %48 = tpu.matmul %47, %45, %cst_43 {dimension_numbers = #tpu.dot_dimension_numbers<[1], [0], [0], [1], [0, 0, 1, 1], [], []>} : vector<16x16xf32>, vector<16x100xf32>, vector<16x100xf32> -> vector<16x100xf32>
    %49 = arith.addf %43, %48 : vector<16x100xf32>
    %c0_44 = arith.constant 0 : index
    %c0_45 = arith.constant 0 : index
    %c139 = arith.constant 139 : index
    %50 = vector.load %arg1[%c0_44, %c0_45, %c139] : memref<1x16x356xf32, #tpu.memory_space<vmem>>, vector<1x16x100xf32>
    %51 = vector.shape_cast %50 : vector<1x16x100xf32> to vector<16x100xf32>
    %c8 = arith.constant 8 : index
    %c0_46 = arith.constant 0 : index
    %c0_47 = arith.constant 0 : index
    %52 = vector.load %arg3[%c8, %c0_46, %c0_47] : memref<9x16x16xf32, #tpu.memory_space<vmem>>, vector<1x16x16xf32>
    %53 = vector.shape_cast %52 : vector<1x16x16xf32> to vector<16x16xf32>
    %cst_48 = arith.constant dense<0.000000e+00> : vector<16x100xf32>
    %54 = tpu.matmul %53, %51, %cst_48 {dimension_numbers = #tpu.dot_dimension_numbers<[1], [0], [0], [1], [0, 0, 1, 1], [], []>} : vector<16x16xf32>, vector<16x100xf32>, vector<16x100xf32> -> vector<16x100xf32>
    %55 = arith.addf %49, %54 : vector<16x100xf32>
    %c0_49 = arith.constant 0 : index
    %c0_50 = arith.constant 0 : index
    %56 = vector.load %arg4[%c0_49, %c0_50] : memref<16x1xf32, #tpu.memory_space<vmem>>, vector<16x1xf32>
    %57 = vector.broadcast %56 : vector<16x1xf32> to vector<16x100xf32>
    %58 = arith.addf %55, %57 : vector<16x100xf32>
    %cst_51 = arith.constant 0.000000e+00 : f32
    %59 = vector.broadcast %cst_51 : f32 to vector<16x100xf32>
    %60 = arith.cmpf oge, %58, %59 : vector<16x100xf32>
    %cst_52 = arith.constant 1.000000e-01 : f32
    %61 = vector.broadcast %cst_52 : f32 to vector<16x100xf32>
    %62 = arith.mulf %61, %58 : vector<16x100xf32>
    %63 = arith.select %60, %58, %62 : vector<16x100xi1>, vector<16x100xf32>
    %64 = vector.broadcast %0 : vector<1x100xf32> to vector<16x100xf32>
    %65 = arith.mulf %63, %64 : vector<16x100xf32>
    %c0_53 = arith.constant 0 : index
    %c128_54 = arith.constant 128 : index
    %66 = vector.load %arg8[%c0_53, %c128_54] : memref<16x356xf32, #tpu.memory_space<vmem>>, vector<16x100xf32>
    tpu.vector_store %arg8[%c0_53, %c128_54], %65 {strides = array<i32>} : memref<16x356xf32, #tpu.memory_space<vmem>>, vector<16x100xf32>,
    %c0_55 = arith.constant 0 : index
    %c117_56 = arith.constant 117 : index
    %67 = vector.load %arg8[%c0_55, %c117_56] : memref<16x356xf32, #tpu.memory_space<vmem>>, vector<16x100xf32>
    %c0_57 = arith.constant 0 : index
    %c0_58 = arith.constant 0 : index
    %c0_59 = arith.constant 0 : index
    %68 = vector.load %arg5[%c0_57, %c0_58, %c0_59] : memref<9x16x16xf32, #tpu.memory_space<vmem>>, vector<1x16x16xf32>
    %69 = vector.shape_cast %68 : vector<1x16x16xf32> to vector<16x16xf32>
    %cst_60 = arith.constant dense<0.000000e+00> : vector<16x100xf32>
    %70 = tpu.matmul %69, %67, %cst_60 {dimension_numbers = #tpu.dot_dimension_numbers<[1], [0], [0], [1], [0, 0, 1, 1], [], []>} : vector<16x16xf32>, vector<16x100xf32>, vector<16x100xf32> -> vector<16x100xf32>
    %c0_61 = arith.constant 0 : index
    %c118_62 = arith.constant 118 : index
    %71 = vector.load %arg8[%c0_61, %c118_62] : memref<16x356xf32, #tpu.memory_space<vmem>>, vector<16x100xf32>
    %c1_63 = arith.constant 1 : index
    %c0_64 = arith.constant 0 : index
    %c0_65 = arith.constant 0 : index
    %72 = vector.load %arg5[%c1_63, %c0_64, %c0_65] : memref<9x16x16xf32, #tpu.memory_space<vmem>>, vector<1x16x16xf32>
    %73 = vector.shape_cast %72 : vector<1x16x16xf32> to vector<16x16xf32>
    %cst_66 = arith.constant dense<0.000000e+00> : vector<16x100xf32>
    %74 = tpu.matmul %73, %71, %cst_66 {dimension_numbers = #tpu.dot_dimension_numbers<[1], [0], [0], [1], [0, 0, 1, 1], [], []>} : vector<16x16xf32>, vector<16x100xf32>, vector<16x100xf32> -> vector<16x100xf32>
    %75 = arith.addf %70, %74 : vector<16x100xf32>
    %c0_67 = arith.constant 0 : index
    %c119_68 = arith.constant 119 : index
    %76 = vector.load %arg8[%c0_67, %c119_68] : memref<16x356xf32, #tpu.memory_space<vmem>>, vector<16x100xf32>
    %c2_69 = arith.constant 2 : index
    %c0_70 = arith.constant 0 : index
    %c0_71 = arith.constant 0 : index
    %77 = vector.load %arg5[%c2_69, %c0_70, %c0_71] : memref<9x16x16xf32, #tpu.memory_space<vmem>>, vector<1x16x16xf32>
    %78 = vector.shape_cast %77 : vector<1x16x16xf32> to vector<16x16xf32>
    %cst_72 = arith.constant dense<0.000000e+00> : vector<16x100xf32>
    %79 = tpu.matmul %78, %76, %cst_72 {dimension_numbers = #tpu.dot_dimension_numbers<[1], [0], [0], [1], [0, 0, 1, 1], [], []>} : vector<16x16xf32>, vector<16x100xf32>, vector<16x100xf32> -> vector<16x100xf32>
    %80 = arith.addf %75, %79 : vector<16x100xf32>
    %c0_73 = arith.constant 0 : index
    %c127_74 = arith.constant 127 : index
    %81 = vector.load %arg8[%c0_73, %c127_74] : memref<16x356xf32, #tpu.memory_space<vmem>>, vector<16x100xf32>
    %c3_75 = arith.constant 3 : index
    %c0_76 = arith.constant 0 : index
    %c0_77 = arith.constant 0 : index
    %82 = vector.load %arg5[%c3_75, %c0_76, %c0_77] : memref<9x16x16xf32, #tpu.memory_space<vmem>>, vector<1x16x16xf32>
    %83 = vector.shape_cast %82 : vector<1x16x16xf32> to vector<16x16xf32>
    %cst_78 = arith.constant dense<0.000000e+00> : vector<16x100xf32>
    %84 = tpu.matmul %83, %81, %cst_78 {dimension_numbers = #tpu.dot_dimension_numbers<[1], [0], [0], [1], [0, 0, 1, 1], [], []>} : vector<16x16xf32>, vector<16x100xf32>, vector<16x100xf32> -> vector<16x100xf32>
    %85 = arith.addf %80, %84 : vector<16x100xf32>
    %c0_79 = arith.constant 0 : index
    %c128_80 = arith.constant 128 : index
    %86 = vector.load %arg8[%c0_79, %c128_80] : memref<16x356xf32, #tpu.memory_space<vmem>>, vector<16x100xf32>
    %c4_81 = arith.constant 4 : index
    %c0_82 = arith.constant 0 : index
    %c0_83 = arith.constant 0 : index
    %87 = vector.load %arg5[%c4_81, %c0_82, %c0_83] : memref<9x16x16xf32, #tpu.memory_space<vmem>>, vector<1x16x16xf32>
    %88 = vector.shape_cast %87 : vector<1x16x16xf32> to vector<16x16xf32>
    %cst_84 = arith.constant dense<0.000000e+00> : vector<16x100xf32>
    %89 = tpu.matmul %88, %86, %cst_84 {dimension_numbers = #tpu.dot_dimension_numbers<[1], [0], [0], [1], [0, 0, 1, 1], [], []>} : vector<16x16xf32>, vector<16x100xf32>, vector<16x100xf32> -> vector<16x100xf32>
    %90 = arith.addf %85, %89 : vector<16x100xf32>
    %c0_85 = arith.constant 0 : index
    %c129_86 = arith.constant 129 : index
    %91 = vector.load %arg8[%c0_85, %c129_86] : memref<16x356xf32, #tpu.memory_space<vmem>>, vector<16x100xf32>
    %c5_87 = arith.constant 5 : index
    %c0_88 = arith.constant 0 : index
    %c0_89 = arith.constant 0 : index
    %92 = vector.load %arg5[%c5_87, %c0_88, %c0_89] : memref<9x16x16xf32, #tpu.memory_space<vmem>>, vector<1x16x16xf32>
    %93 = vector.shape_cast %92 : vector<1x16x16xf32> to vector<16x16xf32>
    %cst_90 = arith.constant dense<0.000000e+00> : vector<16x100xf32>
    %94 = tpu.matmul %93, %91, %cst_90 {dimension_numbers = #tpu.dot_dimension_numbers<[1], [0], [0], [1], [0, 0, 1, 1], [], []>} : vector<16x16xf32>, vector<16x100xf32>, vector<16x100xf32> -> vector<16x100xf32>
    %95 = arith.addf %90, %94 : vector<16x100xf32>
    %c0_91 = arith.constant 0 : index
    %c137_92 = arith.constant 137 : index
    %96 = vector.load %arg8[%c0_91, %c137_92] : memref<16x356xf32, #tpu.memory_space<vmem>>, vector<16x100xf32>
    %c6_93 = arith.constant 6 : index
    %c0_94 = arith.constant 0 : index
    %c0_95 = arith.constant 0 : index
    %97 = vector.load %arg5[%c6_93, %c0_94, %c0_95] : memref<9x16x16xf32, #tpu.memory_space<vmem>>, vector<1x16x16xf32>
    %98 = vector.shape_cast %97 : vector<1x16x16xf32> to vector<16x16xf32>
    %cst_96 = arith.constant dense<0.000000e+00> : vector<16x100xf32>
    %99 = tpu.matmul %98, %96, %cst_96 {dimension_numbers = #tpu.dot_dimension_numbers<[1], [0], [0], [1], [0, 0, 1, 1], [], []>} : vector<16x16xf32>, vector<16x100xf32>, vector<16x100xf32> -> vector<16x100xf32>
    %100 = arith.addf %95, %99 : vector<16x100xf32>
    %c0_97 = arith.constant 0 : index
    %c138_98 = arith.constant 138 : index
    %101 = vector.load %arg8[%c0_97, %c138_98] : memref<16x356xf32, #tpu.memory_space<vmem>>, vector<16x100xf32>
    %c7_99 = arith.constant 7 : index
    %c0_100 = arith.constant 0 : index
    %c0_101 = arith.constant 0 : index
    %102 = vector.load %arg5[%c7_99, %c0_100, %c0_101] : memref<9x16x16xf32, #tpu.memory_space<vmem>>, vector<1x16x16xf32>
    %103 = vector.shape_cast %102 : vector<1x16x16xf32> to vector<16x16xf32>
    %cst_102 = arith.constant dense<0.000000e+00> : vector<16x100xf32>
    %104 = tpu.matmul %103, %101, %cst_102 {dimension_numbers = #tpu.dot_dimension_numbers<[1], [0], [0], [1], [0, 0, 1, 1], [], []>} : vector<16x16xf32>, vector<16x100xf32>, vector<16x100xf32> -> vector<16x100xf32>
    %105 = arith.addf %100, %104 : vector<16x100xf32>
    %c0_103 = arith.constant 0 : index
    %c139_104 = arith.constant 139 : index
    %106 = vector.load %arg8[%c0_103, %c139_104] : memref<16x356xf32, #tpu.memory_space<vmem>>, vector<16x100xf32>
    %c8_105 = arith.constant 8 : index
    %c0_106 = arith.constant 0 : index
    %c0_107 = arith.constant 0 : index
    %107 = vector.load %arg5[%c8_105, %c0_106, %c0_107] : memref<9x16x16xf32, #tpu.memory_space<vmem>>, vector<1x16x16xf32>
    %108 = vector.shape_cast %107 : vector<1x16x16xf32> to vector<16x16xf32>
    %cst_108 = arith.constant dense<0.000000e+00> : vector<16x100xf32>
    %109 = tpu.matmul %108, %106, %cst_108 {dimension_numbers = #tpu.dot_dimension_numbers<[1], [0], [0], [1], [0, 0, 1, 1], [], []>} : vector<16x16xf32>, vector<16x100xf32>, vector<16x100xf32> -> vector<16x100xf32>
    %110 = arith.addf %105, %109 : vector<16x100xf32>
    %c0_109 = arith.constant 0 : index
    %c0_110 = arith.constant 0 : index
    %111 = vector.load %arg6[%c0_109, %c0_110] : memref<16x1xf32, #tpu.memory_space<vmem>>, vector<16x1xf32>
    %112 = vector.broadcast %111 : vector<16x1xf32> to vector<16x100xf32>
    %113 = arith.addf %110, %112 : vector<16x100xf32>
    %114 = vector.broadcast %0 : vector<1x100xf32> to vector<16x100xf32>
    %115 = arith.mulf %113, %114 : vector<16x100xf32>
    %c0_111 = arith.constant 0 : index
    %c0_112 = arith.constant 0 : index
    %c0_113 = arith.constant 0 : index
    %116 = vector.load %arg7[%c0_111, %c0_112, %c0_113] : memref<1x16x100xf32, #tpu.memory_space<vmem>>, vector<1x16x100xf32>
    %117 = vector.shape_cast %116 : vector<1x16x100xf32> to vector<16x100xf32>
    %118 = vector.shape_cast %115 : vector<16x100xf32> to vector<1x16x100xf32>
    tpu.vector_store %arg7[%c0_111, %c0_112, %c0_113], %118 {strides = array<i32>} : memref<1x16x100xf32, #tpu.memory_space<vmem>>, vector<1x16x100xf32>,
    return
  }
  func.func @transform_0(%arg0: i32) -> (i32, i32, i32) {
    %c0_i32 = arith.constant 0 : i32
    %c0_i32_0 = arith.constant 0 : i32
    %c0_i32_1 = arith.constant 0 : i32
    return %arg0, %c0_i32, %c0_i32_0 : i32, i32, i32
  }
  func.func @transform_1(%arg0: i32) -> (i32, i32) {
    %c0_i32 = arith.constant 0 : i32
    %c0_i32_0 = arith.constant 0 : i32
    %c0_i32_1 = arith.constant 0 : i32
    return %c0_i32, %c0_i32_0 : i32, i32
  }
  func.func @transform_2(%arg0: i32) -> (i32, i32, i32) {
    %c0_i32 = arith.constant 0 : i32
    %c0_i32_0 = arith.constant 0 : i32
    %c0_i32_1 = arith.constant 0 : i32
    %c0_i32_2 = arith.constant 0 : i32
    return %c0_i32, %c0_i32_0, %c0_i32_1 : i32, i32, i32
  }
  func.func @transform_3(%arg0: i32) -> (i32, i32) {
    %c0_i32 = arith.constant 0 : i32
    %c0_i32_0 = arith.constant 0 : i32
    %c0_i32_1 = arith.constant 0 : i32
    return %c0_i32, %c0_i32_0 : i32, i32
  }
  func.func @transform_4(%arg0: i32) -> (i32, i32, i32) {
    %c0_i32 = arith.constant 0 : i32
    %c0_i32_0 = arith.constant 0 : i32
    %c0_i32_1 = arith.constant 0 : i32
    %c0_i32_2 = arith.constant 0 : i32
    return %c0_i32, %c0_i32_0, %c0_i32_1 : i32, i32, i32
  }
  func.func @transform_5(%arg0: i32) -> (i32, i32) {
    %c0_i32 = arith.constant 0 : i32
    %c0_i32_0 = arith.constant 0 : i32
    %c0_i32_1 = arith.constant 0 : i32
    return %c0_i32, %c0_i32_0 : i32, i32
  }
  func.func @transform_6(%arg0: i32) -> (i32, i32, i32) {
    %c0_i32 = arith.constant 0 : i32
    %c0_i32_0 = arith.constant 0 : i32
    %c0_i32_1 = arith.constant 0 : i32
    return %arg0, %c0_i32, %c0_i32_0 : i32, i32, i32
  }
}

module attributes {stable_mosaic.version = 11 : i64} {
  func.func @kernel(%arg0: i32, %arg1: memref<1x16x292xf32, #tpu.memory_space<vmem>>, %arg2: memref<1x36xf32, #tpu.memory_space<vmem>>, %arg3: memref<9x16x16xf32, #tpu.memory_space<vmem>>, %arg4: memref<16x1xf32, #tpu.memory_space<vmem>>, %arg5: memref<9x16x16xf32, #tpu.memory_space<vmem>>, %arg6: memref<16x1xf32, #tpu.memory_space<vmem>>, %arg7: memref<1x16x36xf32, #tpu.memory_space<vmem>>, %arg8: memref<16x292xf32, #tpu.memory_space<vmem>>) attributes {dimension_semantics = [#tpu.dimension_semantics<parallel>], iteration_bounds = array<i64: 2>, scalar_prefetch = 0 : i64, scratch_operands = 1 : i64, tpu.core_type = #tpu.core_type<tc>, window_params = [{transform_indices = @transform_0, window_bounds = array<i64: 1, 16, 292>}, {pipeline_mode = #tpu.pipeline_mode<synchronous>, transform_indices = @transform_1, window_bounds = array<i64: 1, 36>}, {pipeline_mode = #tpu.pipeline_mode<synchronous>, transform_indices = @transform_2, window_bounds = array<i64: 9, 16, 16>}, {pipeline_mode = #tpu.pipeline_mode<synchronous>, transform_indices = @transform_3, window_bounds = array<i64: 16, 1>}, {pipeline_mode = #tpu.pipeline_mode<synchronous>, transform_indices = @transform_4, window_bounds = array<i64: 9, 16, 16>}, {pipeline_mode = #tpu.pipeline_mode<synchronous>, transform_indices = @transform_5, window_bounds = array<i64: 16, 1>}, {transform_indices = @transform_6, window_bounds = array<i64: 1, 16, 36>}]} {
    %c0 = arith.constant 0 : index
    %c0_0 = arith.constant 0 : index
    %0 = vector.load %arg2[%c0, %c0_0] : memref<1x36xf32, #tpu.memory_space<vmem>>, vector<1x36xf32>
    %cst = arith.constant 0.000000e+00 : f32
    %1 = vector.broadcast %cst : f32 to vector<16x292xf32>
    %c0_1 = arith.constant 0 : index
    %c0_2 = arith.constant 0 : index
    %2 = vector.load %arg8[%c0_1, %c0_2] : memref<16x292xf32, #tpu.memory_space<vmem>>, vector<16x292xf32>
    tpu.vector_store %arg8[%c0_1, %c0_2], %1 {strides = array<i32>} : memref<16x292xf32, #tpu.memory_space<vmem>>, vector<16x292xf32>,
    %c0_3 = arith.constant 0 : index
    %c0_4 = arith.constant 0 : index
    %c121 = arith.constant 121 : index
    %3 = vector.load %arg1[%c0_3, %c0_4, %c121] : memref<1x16x292xf32, #tpu.memory_space<vmem>>, vector<1x16x36xf32>
    %4 = vector.shape_cast %3 : vector<1x16x36xf32> to vector<16x36xf32>
    %c0_5 = arith.constant 0 : index
    %c0_6 = arith.constant 0 : index
    %c0_7 = arith.constant 0 : index
    %5 = vector.load %arg3[%c0_5, %c0_6, %c0_7] : memref<9x16x16xf32, #tpu.memory_space<vmem>>, vector<1x16x16xf32>
    %6 = vector.shape_cast %5 : vector<1x16x16xf32> to vector<16x16xf32>
    %cst_8 = arith.constant dense<0.000000e+00> : vector<16x36xf32>
    %7 = tpu.matmul %6, %4, %cst_8 {dimension_numbers = #tpu.dot_dimension_numbers<[1], [0], [0], [1], [0, 0, 1, 1], [], []>} : vector<16x16xf32>, vector<16x36xf32>, vector<16x36xf32> -> vector<16x36xf32>
    %c0_9 = arith.constant 0 : index
    %c0_10 = arith.constant 0 : index
    %c122 = arith.constant 122 : index
    %8 = vector.load %arg1[%c0_9, %c0_10, %c122] : memref<1x16x292xf32, #tpu.memory_space<vmem>>, vector<1x16x36xf32>
    %9 = vector.shape_cast %8 : vector<1x16x36xf32> to vector<16x36xf32>
    %c1 = arith.constant 1 : index
    %c0_11 = arith.constant 0 : index
    %c0_12 = arith.constant 0 : index
    %10 = vector.load %arg3[%c1, %c0_11, %c0_12] : memref<9x16x16xf32, #tpu.memory_space<vmem>>, vector<1x16x16xf32>
    %11 = vector.shape_cast %10 : vector<1x16x16xf32> to vector<16x16xf32>
    %cst_13 = arith.constant dense<0.000000e+00> : vector<16x36xf32>
    %12 = tpu.matmul %11, %9, %cst_13 {dimension_numbers = #tpu.dot_dimension_numbers<[1], [0], [0], [1], [0, 0, 1, 1], [], []>} : vector<16x16xf32>, vector<16x36xf32>, vector<16x36xf32> -> vector<16x36xf32>
    %13 = arith.addf %7, %12 : vector<16x36xf32>
    %c0_14 = arith.constant 0 : index
    %c0_15 = arith.constant 0 : index
    %c123 = arith.constant 123 : index
    %14 = vector.load %arg1[%c0_14, %c0_15, %c123] : memref<1x16x292xf32, #tpu.memory_space<vmem>>, vector<1x16x36xf32>
    %15 = vector.shape_cast %14 : vector<1x16x36xf32> to vector<16x36xf32>
    %c2 = arith.constant 2 : index
    %c0_16 = arith.constant 0 : index
    %c0_17 = arith.constant 0 : index
    %16 = vector.load %arg3[%c2, %c0_16, %c0_17] : memref<9x16x16xf32, #tpu.memory_space<vmem>>, vector<1x16x16xf32>
    %17 = vector.shape_cast %16 : vector<1x16x16xf32> to vector<16x16xf32>
    %cst_18 = arith.constant dense<0.000000e+00> : vector<16x36xf32>
    %18 = tpu.matmul %17, %15, %cst_18 {dimension_numbers = #tpu.dot_dimension_numbers<[1], [0], [0], [1], [0, 0, 1, 1], [], []>} : vector<16x16xf32>, vector<16x36xf32>, vector<16x36xf32> -> vector<16x36xf32>
    %19 = arith.addf %13, %18 : vector<16x36xf32>
    %c0_19 = arith.constant 0 : index
    %c0_20 = arith.constant 0 : index
    %c127 = arith.constant 127 : index
    %20 = vector.load %arg1[%c0_19, %c0_20, %c127] : memref<1x16x292xf32, #tpu.memory_space<vmem>>, vector<1x16x36xf32>
    %21 = vector.shape_cast %20 : vector<1x16x36xf32> to vector<16x36xf32>
    %c3 = arith.constant 3 : index
    %c0_21 = arith.constant 0 : index
    %c0_22 = arith.constant 0 : index
    %22 = vector.load %arg3[%c3, %c0_21, %c0_22] : memref<9x16x16xf32, #tpu.memory_space<vmem>>, vector<1x16x16xf32>
    %23 = vector.shape_cast %22 : vector<1x16x16xf32> to vector<16x16xf32>
    %cst_23 = arith.constant dense<0.000000e+00> : vector<16x36xf32>
    %24 = tpu.matmul %23, %21, %cst_23 {dimension_numbers = #tpu.dot_dimension_numbers<[1], [0], [0], [1], [0, 0, 1, 1], [], []>} : vector<16x16xf32>, vector<16x36xf32>, vector<16x36xf32> -> vector<16x36xf32>
    %25 = arith.addf %19, %24 : vector<16x36xf32>
    %c0_24 = arith.constant 0 : index
    %c0_25 = arith.constant 0 : index
    %c128 = arith.constant 128 : index
    %26 = vector.load %arg1[%c0_24, %c0_25, %c128] : memref<1x16x292xf32, #tpu.memory_space<vmem>>, vector<1x16x36xf32>
    %27 = vector.shape_cast %26 : vector<1x16x36xf32> to vector<16x36xf32>
    %c4 = arith.constant 4 : index
    %c0_26 = arith.constant 0 : index
    %c0_27 = arith.constant 0 : index
    %28 = vector.load %arg3[%c4, %c0_26, %c0_27] : memref<9x16x16xf32, #tpu.memory_space<vmem>>, vector<1x16x16xf32>
    %29 = vector.shape_cast %28 : vector<1x16x16xf32> to vector<16x16xf32>
    %cst_28 = arith.constant dense<0.000000e+00> : vector<16x36xf32>
    %30 = tpu.matmul %29, %27, %cst_28 {dimension_numbers = #tpu.dot_dimension_numbers<[1], [0], [0], [1], [0, 0, 1, 1], [], []>} : vector<16x16xf32>, vector<16x36xf32>, vector<16x36xf32> -> vector<16x36xf32>
    %31 = arith.addf %25, %30 : vector<16x36xf32>
    %c0_29 = arith.constant 0 : index
    %c0_30 = arith.constant 0 : index
    %c129 = arith.constant 129 : index
    %32 = vector.load %arg1[%c0_29, %c0_30, %c129] : memref<1x16x292xf32, #tpu.memory_space<vmem>>, vector<1x16x36xf32>
    %33 = vector.shape_cast %32 : vector<1x16x36xf32> to vector<16x36xf32>
    %c5 = arith.constant 5 : index
    %c0_31 = arith.constant 0 : index
    %c0_32 = arith.constant 0 : index
    %34 = vector.load %arg3[%c5, %c0_31, %c0_32] : memref<9x16x16xf32, #tpu.memory_space<vmem>>, vector<1x16x16xf32>
    %35 = vector.shape_cast %34 : vector<1x16x16xf32> to vector<16x16xf32>
    %cst_33 = arith.constant dense<0.000000e+00> : vector<16x36xf32>
    %36 = tpu.matmul %35, %33, %cst_33 {dimension_numbers = #tpu.dot_dimension_numbers<[1], [0], [0], [1], [0, 0, 1, 1], [], []>} : vector<16x16xf32>, vector<16x36xf32>, vector<16x36xf32> -> vector<16x36xf32>
    %37 = arith.addf %31, %36 : vector<16x36xf32>
    %c0_34 = arith.constant 0 : index
    %c0_35 = arith.constant 0 : index
    %c133 = arith.constant 133 : index
    %38 = vector.load %arg1[%c0_34, %c0_35, %c133] : memref<1x16x292xf32, #tpu.memory_space<vmem>>, vector<1x16x36xf32>
    %39 = vector.shape_cast %38 : vector<1x16x36xf32> to vector<16x36xf32>
    %c6 = arith.constant 6 : index
    %c0_36 = arith.constant 0 : index
    %c0_37 = arith.constant 0 : index
    %40 = vector.load %arg3[%c6, %c0_36, %c0_37] : memref<9x16x16xf32, #tpu.memory_space<vmem>>, vector<1x16x16xf32>
    %41 = vector.shape_cast %40 : vector<1x16x16xf32> to vector<16x16xf32>
    %cst_38 = arith.constant dense<0.000000e+00> : vector<16x36xf32>
    %42 = tpu.matmul %41, %39, %cst_38 {dimension_numbers = #tpu.dot_dimension_numbers<[1], [0], [0], [1], [0, 0, 1, 1], [], []>} : vector<16x16xf32>, vector<16x36xf32>, vector<16x36xf32> -> vector<16x36xf32>
    %43 = arith.addf %37, %42 : vector<16x36xf32>
    %c0_39 = arith.constant 0 : index
    %c0_40 = arith.constant 0 : index
    %c134 = arith.constant 134 : index
    %44 = vector.load %arg1[%c0_39, %c0_40, %c134] : memref<1x16x292xf32, #tpu.memory_space<vmem>>, vector<1x16x36xf32>
    %45 = vector.shape_cast %44 : vector<1x16x36xf32> to vector<16x36xf32>
    %c7 = arith.constant 7 : index
    %c0_41 = arith.constant 0 : index
    %c0_42 = arith.constant 0 : index
    %46 = vector.load %arg3[%c7, %c0_41, %c0_42] : memref<9x16x16xf32, #tpu.memory_space<vmem>>, vector<1x16x16xf32>
    %47 = vector.shape_cast %46 : vector<1x16x16xf32> to vector<16x16xf32>
    %cst_43 = arith.constant dense<0.000000e+00> : vector<16x36xf32>
    %48 = tpu.matmul %47, %45, %cst_43 {dimension_numbers = #tpu.dot_dimension_numbers<[1], [0], [0], [1], [0, 0, 1, 1], [], []>} : vector<16x16xf32>, vector<16x36xf32>, vector<16x36xf32> -> vector<16x36xf32>
    %49 = arith.addf %43, %48 : vector<16x36xf32>
    %c0_44 = arith.constant 0 : index
    %c0_45 = arith.constant 0 : index
    %c135 = arith.constant 135 : index
    %50 = vector.load %arg1[%c0_44, %c0_45, %c135] : memref<1x16x292xf32, #tpu.memory_space<vmem>>, vector<1x16x36xf32>
    %51 = vector.shape_cast %50 : vector<1x16x36xf32> to vector<16x36xf32>
    %c8 = arith.constant 8 : index
    %c0_46 = arith.constant 0 : index
    %c0_47 = arith.constant 0 : index
    %52 = vector.load %arg3[%c8, %c0_46, %c0_47] : memref<9x16x16xf32, #tpu.memory_space<vmem>>, vector<1x16x16xf32>
    %53 = vector.shape_cast %52 : vector<1x16x16xf32> to vector<16x16xf32>
    %cst_48 = arith.constant dense<0.000000e+00> : vector<16x36xf32>
    %54 = tpu.matmul %53, %51, %cst_48 {dimension_numbers = #tpu.dot_dimension_numbers<[1], [0], [0], [1], [0, 0, 1, 1], [], []>} : vector<16x16xf32>, vector<16x36xf32>, vector<16x36xf32> -> vector<16x36xf32>
    %55 = arith.addf %49, %54 : vector<16x36xf32>
    %c0_49 = arith.constant 0 : index
    %c0_50 = arith.constant 0 : index
    %56 = vector.load %arg4[%c0_49, %c0_50] : memref<16x1xf32, #tpu.memory_space<vmem>>, vector<16x1xf32>
    %57 = vector.broadcast %56 : vector<16x1xf32> to vector<16x36xf32>
    %58 = arith.addf %55, %57 : vector<16x36xf32>
    %cst_51 = arith.constant 0.000000e+00 : f32
    %59 = vector.broadcast %cst_51 : f32 to vector<16x36xf32>
    %60 = arith.cmpf oge, %58, %59 : vector<16x36xf32>
    %cst_52 = arith.constant 1.000000e-01 : f32
    %61 = vector.broadcast %cst_52 : f32 to vector<16x36xf32>
    %62 = arith.mulf %61, %58 : vector<16x36xf32>
    %63 = arith.select %60, %58, %62 : vector<16x36xi1>, vector<16x36xf32>
    %64 = vector.broadcast %0 : vector<1x36xf32> to vector<16x36xf32>
    %65 = arith.mulf %63, %64 : vector<16x36xf32>
    %c0_53 = arith.constant 0 : index
    %c128_54 = arith.constant 128 : index
    %66 = vector.load %arg8[%c0_53, %c128_54] : memref<16x292xf32, #tpu.memory_space<vmem>>, vector<16x36xf32>
    tpu.vector_store %arg8[%c0_53, %c128_54], %65 {strides = array<i32>} : memref<16x292xf32, #tpu.memory_space<vmem>>, vector<16x36xf32>,
    %c0_55 = arith.constant 0 : index
    %c121_56 = arith.constant 121 : index
    %67 = vector.load %arg8[%c0_55, %c121_56] : memref<16x292xf32, #tpu.memory_space<vmem>>, vector<16x36xf32>
    %c0_57 = arith.constant 0 : index
    %c0_58 = arith.constant 0 : index
    %c0_59 = arith.constant 0 : index
    %68 = vector.load %arg5[%c0_57, %c0_58, %c0_59] : memref<9x16x16xf32, #tpu.memory_space<vmem>>, vector<1x16x16xf32>
    %69 = vector.shape_cast %68 : vector<1x16x16xf32> to vector<16x16xf32>
    %cst_60 = arith.constant dense<0.000000e+00> : vector<16x36xf32>
    %70 = tpu.matmul %69, %67, %cst_60 {dimension_numbers = #tpu.dot_dimension_numbers<[1], [0], [0], [1], [0, 0, 1, 1], [], []>} : vector<16x16xf32>, vector<16x36xf32>, vector<16x36xf32> -> vector<16x36xf32>
    %c0_61 = arith.constant 0 : index
    %c122_62 = arith.constant 122 : index
    %71 = vector.load %arg8[%c0_61, %c122_62] : memref<16x292xf32, #tpu.memory_space<vmem>>, vector<16x36xf32>
    %c1_63 = arith.constant 1 : index
    %c0_64 = arith.constant 0 : index
    %c0_65 = arith.constant 0 : index
    %72 = vector.load %arg5[%c1_63, %c0_64, %c0_65] : memref<9x16x16xf32, #tpu.memory_space<vmem>>, vector<1x16x16xf32>
    %73 = vector.shape_cast %72 : vector<1x16x16xf32> to vector<16x16xf32>
    %cst_66 = arith.constant dense<0.000000e+00> : vector<16x36xf32>
    %74 = tpu.matmul %73, %71, %cst_66 {dimension_numbers = #tpu.dot_dimension_numbers<[1], [0], [0], [1], [0, 0, 1, 1], [], []>} : vector<16x16xf32>, vector<16x36xf32>, vector<16x36xf32> -> vector<16x36xf32>
    %75 = arith.addf %70, %74 : vector<16x36xf32>
    %c0_67 = arith.constant 0 : index
    %c123_68 = arith.constant 123 : index
    %76 = vector.load %arg8[%c0_67, %c123_68] : memref<16x292xf32, #tpu.memory_space<vmem>>, vector<16x36xf32>
    %c2_69 = arith.constant 2 : index
    %c0_70 = arith.constant 0 : index
    %c0_71 = arith.constant 0 : index
    %77 = vector.load %arg5[%c2_69, %c0_70, %c0_71] : memref<9x16x16xf32, #tpu.memory_space<vmem>>, vector<1x16x16xf32>
    %78 = vector.shape_cast %77 : vector<1x16x16xf32> to vector<16x16xf32>
    %cst_72 = arith.constant dense<0.000000e+00> : vector<16x36xf32>
    %79 = tpu.matmul %78, %76, %cst_72 {dimension_numbers = #tpu.dot_dimension_numbers<[1], [0], [0], [1], [0, 0, 1, 1], [], []>} : vector<16x16xf32>, vector<16x36xf32>, vector<16x36xf32> -> vector<16x36xf32>
    %80 = arith.addf %75, %79 : vector<16x36xf32>
    %c0_73 = arith.constant 0 : index
    %c127_74 = arith.constant 127 : index
    %81 = vector.load %arg8[%c0_73, %c127_74] : memref<16x292xf32, #tpu.memory_space<vmem>>, vector<16x36xf32>
    %c3_75 = arith.constant 3 : index
    %c0_76 = arith.constant 0 : index
    %c0_77 = arith.constant 0 : index
    %82 = vector.load %arg5[%c3_75, %c0_76, %c0_77] : memref<9x16x16xf32, #tpu.memory_space<vmem>>, vector<1x16x16xf32>
    %83 = vector.shape_cast %82 : vector<1x16x16xf32> to vector<16x16xf32>
    %cst_78 = arith.constant dense<0.000000e+00> : vector<16x36xf32>
    %84 = tpu.matmul %83, %81, %cst_78 {dimension_numbers = #tpu.dot_dimension_numbers<[1], [0], [0], [1], [0, 0, 1, 1], [], []>} : vector<16x16xf32>, vector<16x36xf32>, vector<16x36xf32> -> vector<16x36xf32>
    %85 = arith.addf %80, %84 : vector<16x36xf32>
    %c0_79 = arith.constant 0 : index
    %c128_80 = arith.constant 128 : index
    %86 = vector.load %arg8[%c0_79, %c128_80] : memref<16x292xf32, #tpu.memory_space<vmem>>, vector<16x36xf32>
    %c4_81 = arith.constant 4 : index
    %c0_82 = arith.constant 0 : index
    %c0_83 = arith.constant 0 : index
    %87 = vector.load %arg5[%c4_81, %c0_82, %c0_83] : memref<9x16x16xf32, #tpu.memory_space<vmem>>, vector<1x16x16xf32>
    %88 = vector.shape_cast %87 : vector<1x16x16xf32> to vector<16x16xf32>
    %cst_84 = arith.constant dense<0.000000e+00> : vector<16x36xf32>
    %89 = tpu.matmul %88, %86, %cst_84 {dimension_numbers = #tpu.dot_dimension_numbers<[1], [0], [0], [1], [0, 0, 1, 1], [], []>} : vector<16x16xf32>, vector<16x36xf32>, vector<16x36xf32> -> vector<16x36xf32>
    %90 = arith.addf %85, %89 : vector<16x36xf32>
    %c0_85 = arith.constant 0 : index
    %c129_86 = arith.constant 129 : index
    %91 = vector.load %arg8[%c0_85, %c129_86] : memref<16x292xf32, #tpu.memory_space<vmem>>, vector<16x36xf32>
    %c5_87 = arith.constant 5 : index
    %c0_88 = arith.constant 0 : index
    %c0_89 = arith.constant 0 : index
    %92 = vector.load %arg5[%c5_87, %c0_88, %c0_89] : memref<9x16x16xf32, #tpu.memory_space<vmem>>, vector<1x16x16xf32>
    %93 = vector.shape_cast %92 : vector<1x16x16xf32> to vector<16x16xf32>
    %cst_90 = arith.constant dense<0.000000e+00> : vector<16x36xf32>
    %94 = tpu.matmul %93, %91, %cst_90 {dimension_numbers = #tpu.dot_dimension_numbers<[1], [0], [0], [1], [0, 0, 1, 1], [], []>} : vector<16x16xf32>, vector<16x36xf32>, vector<16x36xf32> -> vector<16x36xf32>
    %95 = arith.addf %90, %94 : vector<16x36xf32>
    %c0_91 = arith.constant 0 : index
    %c133_92 = arith.constant 133 : index
    %96 = vector.load %arg8[%c0_91, %c133_92] : memref<16x292xf32, #tpu.memory_space<vmem>>, vector<16x36xf32>
    %c6_93 = arith.constant 6 : index
    %c0_94 = arith.constant 0 : index
    %c0_95 = arith.constant 0 : index
    %97 = vector.load %arg5[%c6_93, %c0_94, %c0_95] : memref<9x16x16xf32, #tpu.memory_space<vmem>>, vector<1x16x16xf32>
    %98 = vector.shape_cast %97 : vector<1x16x16xf32> to vector<16x16xf32>
    %cst_96 = arith.constant dense<0.000000e+00> : vector<16x36xf32>
    %99 = tpu.matmul %98, %96, %cst_96 {dimension_numbers = #tpu.dot_dimension_numbers<[1], [0], [0], [1], [0, 0, 1, 1], [], []>} : vector<16x16xf32>, vector<16x36xf32>, vector<16x36xf32> -> vector<16x36xf32>
    %100 = arith.addf %95, %99 : vector<16x36xf32>
    %c0_97 = arith.constant 0 : index
    %c134_98 = arith.constant 134 : index
    %101 = vector.load %arg8[%c0_97, %c134_98] : memref<16x292xf32, #tpu.memory_space<vmem>>, vector<16x36xf32>
    %c7_99 = arith.constant 7 : index
    %c0_100 = arith.constant 0 : index
    %c0_101 = arith.constant 0 : index
    %102 = vector.load %arg5[%c7_99, %c0_100, %c0_101] : memref<9x16x16xf32, #tpu.memory_space<vmem>>, vector<1x16x16xf32>
    %103 = vector.shape_cast %102 : vector<1x16x16xf32> to vector<16x16xf32>
    %cst_102 = arith.constant dense<0.000000e+00> : vector<16x36xf32>
    %104 = tpu.matmul %103, %101, %cst_102 {dimension_numbers = #tpu.dot_dimension_numbers<[1], [0], [0], [1], [0, 0, 1, 1], [], []>} : vector<16x16xf32>, vector<16x36xf32>, vector<16x36xf32> -> vector<16x36xf32>
    %105 = arith.addf %100, %104 : vector<16x36xf32>
    %c0_103 = arith.constant 0 : index
    %c135_104 = arith.constant 135 : index
    %106 = vector.load %arg8[%c0_103, %c135_104] : memref<16x292xf32, #tpu.memory_space<vmem>>, vector<16x36xf32>
    %c8_105 = arith.constant 8 : index
    %c0_106 = arith.constant 0 : index
    %c0_107 = arith.constant 0 : index
    %107 = vector.load %arg5[%c8_105, %c0_106, %c0_107] : memref<9x16x16xf32, #tpu.memory_space<vmem>>, vector<1x16x16xf32>
    %108 = vector.shape_cast %107 : vector<1x16x16xf32> to vector<16x16xf32>
    %cst_108 = arith.constant dense<0.000000e+00> : vector<16x36xf32>
    %109 = tpu.matmul %108, %106, %cst_108 {dimension_numbers = #tpu.dot_dimension_numbers<[1], [0], [0], [1], [0, 0, 1, 1], [], []>} : vector<16x16xf32>, vector<16x36xf32>, vector<16x36xf32> -> vector<16x36xf32>
    %110 = arith.addf %105, %109 : vector<16x36xf32>
    %c0_109 = arith.constant 0 : index
    %c0_110 = arith.constant 0 : index
    %111 = vector.load %arg6[%c0_109, %c0_110] : memref<16x1xf32, #tpu.memory_space<vmem>>, vector<16x1xf32>
    %112 = vector.broadcast %111 : vector<16x1xf32> to vector<16x36xf32>
    %113 = arith.addf %110, %112 : vector<16x36xf32>
    %114 = vector.broadcast %0 : vector<1x36xf32> to vector<16x36xf32>
    %115 = arith.mulf %113, %114 : vector<16x36xf32>
    %cst_111 = arith.constant dense<0.000000e+00> : vector<16xf32>
    %116 = vector.multi_reduction <add>, %115, %cst_111 [1] : vector<16x36xf32> to vector<16xf32>
    %117 = vector.shape_cast %116 : vector<16xf32> to vector<16x1xf32>
    %cst_112 = arith.constant 6.250000e-02 : f32
    %118 = vector.broadcast %cst_112 : f32 to vector<16x1xf32>
    %119 = arith.mulf %117, %118 : vector<16x1xf32>
    %120 = vector.broadcast %119 : vector<16x1xf32> to vector<16x36xf32>
    %121 = arith.subf %115, %120 : vector<16x36xf32>
    %122 = vector.broadcast %0 : vector<1x36xf32> to vector<16x36xf32>
    %123 = arith.mulf %121, %122 : vector<16x36xf32>
    %124 = arith.mulf %123, %123 : vector<16x36xf32>
    %cst_113 = arith.constant dense<0.000000e+00> : vector<16xf32>
    %125 = vector.multi_reduction <add>, %124, %cst_113 [1] : vector<16x36xf32> to vector<16xf32>
    %126 = vector.shape_cast %125 : vector<16xf32> to vector<16x1xf32>
    %cst_114 = arith.constant 6.250000e-02 : f32
    %127 = vector.broadcast %cst_114 : f32 to vector<16x1xf32>
    %128 = arith.mulf %126, %127 : vector<16x1xf32>
    %cst_115 = arith.constant 9.99999974E-6 : f32
    %129 = vector.broadcast %cst_115 : f32 to vector<16x1xf32>
    %130 = arith.addf %128, %129 : vector<16x1xf32>
    %131 = math.rsqrt %130 : vector<16x1xf32>
    %132 = vector.broadcast %131 : vector<16x1xf32> to vector<16x36xf32>
    %133 = arith.mulf %123, %132 : vector<16x36xf32>
    %c0_116 = arith.constant 0 : index
    %c0_117 = arith.constant 0 : index
    %c0_118 = arith.constant 0 : index
    %134 = vector.load %arg7[%c0_116, %c0_117, %c0_118] : memref<1x16x36xf32, #tpu.memory_space<vmem>>, vector<1x16x36xf32>
    %135 = vector.shape_cast %134 : vector<1x16x36xf32> to vector<16x36xf32>
    %136 = vector.shape_cast %133 : vector<16x36xf32> to vector<1x16x36xf32>
    tpu.vector_store %arg7[%c0_116, %c0_117, %c0_118], %136 {strides = array<i32>} : memref<1x16x36xf32, #tpu.memory_space<vmem>>, vector<1x16x36xf32>,
    return
  }
  func.func @transform_0(%arg0: i32) -> (i32, i32, i32) {
    %c0_i32 = arith.constant 0 : i32
    %c0_i32_0 = arith.constant 0 : i32
    %c0_i32_1 = arith.constant 0 : i32
    return %arg0, %c0_i32, %c0_i32_0 : i32, i32, i32
  }
  func.func @transform_1(%arg0: i32) -> (i32, i32) {
    %c0_i32 = arith.constant 0 : i32
    %c0_i32_0 = arith.constant 0 : i32
    %c0_i32_1 = arith.constant 0 : i32
    return %c0_i32, %c0_i32_0 : i32, i32
  }
  func.func @transform_2(%arg0: i32) -> (i32, i32, i32) {
    %c0_i32 = arith.constant 0 : i32
    %c0_i32_0 = arith.constant 0 : i32
    %c0_i32_1 = arith.constant 0 : i32
    %c0_i32_2 = arith.constant 0 : i32
    return %c0_i32, %c0_i32_0, %c0_i32_1 : i32, i32, i32
  }
  func.func @transform_3(%arg0: i32) -> (i32, i32) {
    %c0_i32 = arith.constant 0 : i32
    %c0_i32_0 = arith.constant 0 : i32
    %c0_i32_1 = arith.constant 0 : i32
    return %c0_i32, %c0_i32_0 : i32, i32
  }
  func.func @transform_4(%arg0: i32) -> (i32, i32, i32) {
    %c0_i32 = arith.constant 0 : i32
    %c0_i32_0 = arith.constant 0 : i32
    %c0_i32_1 = arith.constant 0 : i32
    %c0_i32_2 = arith.constant 0 : i32
    return %c0_i32, %c0_i32_0, %c0_i32_1 : i32, i32, i32
  }
  func.func @transform_5(%arg0: i32) -> (i32, i32) {
    %c0_i32 = arith.constant 0 : i32
    %c0_i32_0 = arith.constant 0 : i32
    %c0_i32_1 = arith.constant 0 : i32
    return %c0_i32, %c0_i32_0 : i32, i32
  }
  func.func @transform_6(%arg0: i32) -> (i32, i32, i32) {
    %c0_i32 = arith.constant 0 : i32
    %c0_i32_0 = arith.constant 0 : i32
    %c0_i32_1 = arith.constant 0 : i32
    return %arg0, %c0_i32, %c0_i32_0 : i32, i32, i32
  }
}

</mosaic_0001>

<llo_original>
// kernel: cnn_downsampling_forward.3
$region0: #{cnn_downsampling_forward.3}
  #allocation0 [shape = 'u32[]', space=smem, size = 0x4, offset = 0x4, fixed_abs, tag = 'smem constant byte address 0x4 - core index']
  #allocation1 [shape = 'u32[144,128]{1,0:T(1,128)}', space=vmem, size = 0x12000, scoped, tag = 'internal scratch']
  %s0 = inlined_call_operand.vmem [shape: f32[2,4,580], index: 0, kind: input, shape index: {}]
  %s1 = inlined_call_operand.vmem [shape: f32[1,324], index: 1, kind: input, shape index: {}]
  %s2 = inlined_call_operand.vmem [shape: f32[9,16,4], index: 2, kind: input, shape index: {}]
  %s3 = inlined_call_operand.vmem [shape: f32[16,1], index: 3, kind: input, shape index: {}]
  %s4 = inlined_call_operand.vmem [shape: f32[2,16,324], index: 4, kind: output, shape index: {}]
  %s5 = sld [smem:[#allocation0]]
  $region49: #{cnn_downsampling_forward.3} parent=0
    _
  %s7 = ssub.s32 1, %s5
  %s8 = scalar_select 0, %s7, %s5
  loop: start=0, step=1, limit=4
  $region2: #{cnn_downsampling_forward.3} parent=0 // loop_pre_header
    _
  $region3: #{cnn_downsampling_forward.3} parent=0 // loop_header
    %s10 = sphi 0, %s14
    %p11 = scmp.ge.s32.totalorder %s10, 4
    %s20 = sphi 0, %s22
    %s23 = sphi 0, %s20
    %s24 = sphi 0, %s23
    %s40 = sphi 0, %s24
    %s44 = sphi 0, %s44
    %s46 = sphi 0, %s44
    %s47 = sphi 0, %s46
    %s61 = sphi 0, %s47
    %s65 = sphi 0, %s65
    %s67 = sphi 0, %s65
    %s68 = sphi 0, %s67
    %s82 = sphi 0, %s68
    %s86 = sphi 0, %s86
    %s88 = sphi 0, %s86
    %s89 = sphi 0, %s88
    %s103 = sphi 0, %s89
    %s109 = sphi 0, %s111
    %s112 = sphi 0, %s109
    %s113 = sphi 0, %s112
    %s129 = sphi 0, %s113
  $region4: #{cnn_downsampling_forward.3} parent=0 // loop_header_branch
    %13 = sbr.rel (%p11) target = $region8
  $region5: #{cnn_downsampling_forward.3} parent=0 // loop_body
    %s15 = ssub.s32 %s10, 1
    %s16 = ssub.s32 %s10, 2
    %s17 = sadd.s32 %s10, 1
    %s18 = ssub.s32 %s10, %s17
    %p19 = scmp.eq.s32.totalorder %s18, 0
    %s21 = sadd.s32 %s20, 1
    %s22 = scalar_select %p19, %s20, %s21
    %p25 = pneg %p19
    %p26 = scmp.eq.s32.totalorder %s10, 1
    %p27 = por %p25, %p26
    %p28 = scmp.ne.s32.totalorder %s20, %s23
    %p29 = scmp.eq.s32.totalorder %s10, 0
    %p30 = por %p28, %p29
    %p31 = scmp.ne.s32.totalorder %s20, %s23
    %p32 = scmp.eq.s32.totalorder %s15, 1
    %p33 = por %p31, %p32
    %p34 = scmp.ne.s32.totalorder %s23, %s24
    %p35 = scmp.eq.s32.totalorder %s15, 0
    %p36 = por %p34, %p35
    %p37 = scmp.ne.s32.totalorder %s23, %s24
    %p38 = scmp.eq.s32.totalorder %s16, 1
    %p39 = por %p37, %p38
    %p41 = scmp.ne.s32.totalorder %s24, %s40
    %p42 = scmp.eq.s32.totalorder %s16, 0
    %p43 = por %p41, %p42
    %s45 = sadd.s32 %s44, 1
    %p48 = scmp.eq.s32.totalorder %s10, 1
    %p49 = scmp.ne.s32.totalorder %s44, %s46
    %p50 = scmp.eq.s32.totalorder %s10, 0
    %p51 = por %p49, %p50
    %p52 = scmp.ne.s32.totalorder %s44, %s46
    %p53 = scmp.eq.s32.totalorder %s15, 1
    %p54 = por %p52, %p53
    %p55 = scmp.ne.s32.totalorder %s46, %s47
    %p56 = scmp.eq.s32.totalorder %s15, 0
    %p57 = por %p55, %p56
    %p58 = scmp.ne.s32.totalorder %s46, %s47
    %p59 = scmp.eq.s32.totalorder %s16, 1
    %p60 = por %p58, %p59
    %p62 = scmp.ne.s32.totalorder %s47, %s61
    %p63 = scmp.eq.s32.totalorder %s16, 0
    %p64 = por %p62, %p63
    %s66 = sadd.s32 %s65, 1
    %p69 = scmp.eq.s32.totalorder %s10, 1
    %p70 = scmp.ne.s32.totalorder %s65, %s67
    %p71 = scmp.eq.s32.totalorder %s10, 0
    %p72 = por %p70, %p71
    %p73 = scmp.ne.s32.totalorder %s65, %s67
    %p74 = scmp.eq.s32.totalorder %s15, 1
    %p75 = por %p73, %p74
    %p76 = scmp.ne.s32.totalorder %s67, %s68
    %p77 = scmp.eq.s32.totalorder %s15, 0
    %p78 = por %p76, %p77
    %p79 = scmp.ne.s32.totalorder %s67, %s68
    %p80 = scmp.eq.s32.totalorder %s16, 1
    %p81 = por %p79, %p80
    %p83 = scmp.ne.s32.totalorder %s68, %s82
    %p84 = scmp.eq.s32.totalorder %s16, 0
    %p85 = por %p83, %p84
    %s87 = sadd.s32 %s86, 1
    %p90 = scmp.eq.s32.totalorder %s10, 1
    %p91 = scmp.ne.s32.totalorder %s86, %s88
    %p92 = scmp.eq.s32.totalorder %s10, 0
    %p93 = por %p91, %p92
    %p94 = scmp.ne.s32.totalorder %s86, %s88
    %p95 = scmp.eq.s32.totalorder %s15, 1
    %p96 = por %p94, %p95
    %p97 = scmp.ne.s32.totalorder %s88, %s89
    %p98 = scmp.eq.s32.totalorder %s15, 0
    %p99 = por %p97, %p98
    %p100 = scmp.ne.s32.totalorder %s88, %s89
    %p101 = scmp.eq.s32.totalorder %s16, 1
    %p102 = por %p100, %p101
    %p104 = scmp.ne.s32.totalorder %s89, %s103
    %p105 = scmp.eq.s32.totalorder %s16, 0
    %p106 = por %p104, %p105
    %s107 = ssub.s32 %s10, %s17
    %p108 = scmp.eq.s32.totalorder %s107, 0
    %s110 = sadd.s32 %s109, 1
    %s111 = scalar_select %p108, %s109, %s110
    %p114 = pneg %p108
    %p115 = scmp.eq.s32.totalorder %s10, 1
    %p116 = por %p114, %p115
    %p117 = scmp.ne.s32.totalorder %s109, %s112
    %p118 = scmp.eq.s32.totalorder %s10, 0
    %p119 = por %p117, %p118
    %p120 = scmp.ne.s32.totalorder %s109, %s112
    %p121 = scmp.eq.s32.totalorder %s15, 1
    %p122 = por %p120, %p121
    %p123 = scmp.ne.s32.totalorder %s112, %s113
    %p124 = scmp.eq.s32.totalorder %s15, 0
    %p125 = por %p123, %p124
    %p126 = scmp.ne.s32.totalorder %s112, %s113
    %p127 = scmp.eq.s32.totalorder %s16, 1
    %p128 = por %p126, %p127
    %p130 = scmp.ne.s32.totalorder %s113, %s129
    %p131 = scmp.eq.s32.totalorder %s16, 0
    %p132 = por %p130, %p131
    %p133 = scmp.le.s32.totalorder 1, %s10
    %p134 = scmp.lt.s32.totalorder %s10, 3
    %p135 = pnand %p133, %p134
    %p136 = pneg %p135
    // Predicated region
    $region9: #{cnn_downsampling_forward.3} parent=5 // pred_check
      _
    $region10: #{cnn_downsampling_forward.3} parent=5 // pred_check_branch
      %138 = sbr.rel (%p135) target = $region12
    $region11: #{cnn_downsampling_forward.3} parent=5 // pred_region
      %s139 = ssub.s32 %s10, 1
      // Predicated region
      $region13: #{cnn_downsampling_forward.3} parent=11 // pred_check
        %p140 = pneg %p57
      $region14: #{cnn_downsampling_forward.3} parent=11 // pred_check_branch
        %142 = sbr.rel (%p140) target = $region16
      $region15: #{cnn_downsampling_forward.3} parent=11 // pred_region
        _
      $region16: #{cnn_downsampling_forward.3} parent=11 // pred_fallthru
        _
      // Predicated region
      $region17: #{cnn_downsampling_forward.3} parent=11 // pred_check
        %p143 = pneg %p78
      $region18: #{cnn_downsampling_forward.3} parent=11 // pred_check_branch
        %145 = sbr.rel (%p143) target = $region20
      $region19: #{cnn_downsampling_forward.3} parent=11 // pred_region
        _
      $region20: #{cnn_downsampling_forward.3} parent=11 // pred_fallthru
        _
      // Predicated region
      $region21: #{cnn_downsampling_forward.3} parent=11 // pred_check
        %p146 = pneg %p99
      $region22: #{cnn_downsampling_forward.3} parent=11 // pred_check_branch
        %148 = sbr.rel (%p146) target = $region24
      $region23: #{cnn_downsampling_forward.3} parent=11 // pred_region
        _
      $region24: #{cnn_downsampling_forward.3} parent=11 // pred_fallthru
        _
    $region12: #{cnn_downsampling_forward.3} parent=5 // pred_fallthru
      _
    %p149 = scmp.lt.s32.totalorder %s10, 2
    // Predicated region
    $region25: #{cnn_downsampling_forward.3} parent=5 // pred_check
      %p150 = pneg %p149
    $region26: #{cnn_downsampling_forward.3} parent=5 // pred_check_branch
      %152 = sbr.rel (%p150) target = $region28
    $region27: #{cnn_downsampling_forward.3} parent=5 // pred_region
      // Predicated region
      $region29: #{cnn_downsampling_forward.3} parent=27 // pred_check
        %p153 = pneg %p30
      $region30: #{cnn_downsampling_forward.3} parent=27 // pred_check_branch
        %155 = sbr.rel (%p153) target = $region32
      $region31: #{cnn_downsampling_forward.3} parent=27 // pred_region
        %p156 = scmp.lt.s32.totalorder %s10, 1
        %s157 = scalar_select %p156, %s10, 1
        %s158 = smul.addr %s157, 5
        %s159 = smul.addr %s158, 4
        %s160 = scalar_lea.vmem %s0, %s159
      $region32: #{cnn_downsampling_forward.3} parent=27 // pred_fallthru
        _
    $region28: #{cnn_downsampling_forward.3} parent=5 // pred_fallthru
      _
    %p161 = scmp.le.s32.totalorder 1, %s10
    %p162 = scmp.lt.s32.totalorder %s10, 3
    %p163 = pnand %p161, %p162
    %p164 = pneg %p163
    // Predicated region
    $region33: #{cnn_downsampling_forward.3} parent=5 // pred_check
      _
    $region34: #{cnn_downsampling_forward.3} parent=5 // pred_check_branch
      %166 = sbr.rel (%p163) target = $region36
    $region35: #{cnn_downsampling_forward.3} parent=5 // pred_region
      %s167 = ssub.s32 %s10, 1
      %p168 = scmp.lt.s32.totalorder %s15, 1
      %s169 = scalar_select %p168, %s15, 1
      %s170 = smul.addr %s169, 5
      %s171 = smul.addr %s170, 4
      %s172 = scalar_lea.vmem %s0, %s171
      %p173 = pneg %p36
      %p174 = pneg %p33
      %p175 = pneg %p57
      %p176 = pneg %p54
      %p177 = pneg %p78
      %p178 = pneg %p75
      %p179 = pneg %p99
      %p180 = pneg %p96
      %p181 = pneg %p125
      %p182 = pneg %p122
      %p183 = scmp.lt.s32.totalorder %s15, 1
      %s184 = scalar_select %p183, %s15, 1
      %s185 = smul.addr %s184, 6
      %s186 = smul.addr %s185, 8
      %s187 = scalar_lea.vmem %s4, %s186
      %p188 = scmp.lt.s32.totalorder %s15, 1
      %s189 = scalar_select %p188, %s15, 1
      %s190 = smul.addr %s189, 5
      %s191 = smul.addr %s190, 4
      %s192 = scalar_lea.vmem %s0, %s191
      %p193 = scmp.lt.s32.totalorder %s15, 1
      %s194 = scalar_select %p193, %s15, 1
      %s195 = smul.addr %s194, 6
      %s196 = smul.addr %s195, 8
      %s197 = scalar_lea.vmem %s4, %s196
      %v198 = vld [vmem:[%s1] sm:$0x7]
      %v199 = vld [vmem:[%s192] sm:$0xff]
      %v200 = vld [vmem:[%s192 + $0x8] sm:$0xff]
      %v201 = vld [vmem:[%s2] sm:$0xff]
      %v202 = vld [vmem:[%s2 + $0x8] sm:$0xff]
      %s203 = scalar_lea.vmem %s2, 16
      %v204 = vld [vmem:[%s203] sm:$0xff]
      %v205 = vld [vmem:[%s203 + $0x8] sm:$0xff]
      %v208 = vcombine.high %v199, %v199
      %v209 = vcombine.high %v200, %v200
      %210 = vrot.lane.b32.xlu0 %v199, 18
      %v211 = vpop.permute.xlu0 %210
      %212 = vrot.lane.b32.xlu0 %v208, 18
      %v213 = vpop.permute.xlu0 %212
      %214 = vrot.lane.b32.xlu0 %v200, 18
      %v215 = vpop.permute.xlu0 %214
      %216 = vrot.lane.b32.xlu0 %v209, 18
      %v217 = vpop.permute.xlu0 %216
      %vm218 = vcmask 146432
      %v219 = vsel %vm218, %v211, %v213
      %v220 = vsel %vm218, %v213, %v215
      %v221 = vsel %vm218, %v215, %v217
      %vm222 = vcmask 31744
      %v224 = vsel %vm222, %v204, 0
      %v227 = vsel %vm222, %v205, 0
      %vm229 = vcmask 1043456
      %v230 = vsel %vm229, %v219, 0
      %v232 = vsel %vm229, %v220, 0
      %v234 = vsel %vm229, %v221, 0
      %236 = vmatprep.subr.mxu0 %v232
      %237 = vmatpush1.msra.mxu0 %v230
      %238 = vmatprep.subr.mxu0 0.0
      %239 = vmatpush1.msra.mxu0 0.0
      %240 = vmatprep.subr.mxu0 0.0
      %241 = vmatpush1.msra.mxu0 0.0
      %242 = vmatprep.subr.mxu0 0.0
      %243 = vmatpush1.msra.mxu0 0.0
      %244 = vmatprep.subr.mxu0 0.0
      %245 = vmatpush1.msra.mxu0 0.0
      %246 = vmatprep.subr.mxu0 0.0
      %247 = vmatpush1.msra.mxu0 0.0
      %248 = vmatprep.subr.mxu0 0.0
      %249 = vmatpush1.msra.mxu0 0.0
      %250 = vmatprep.subr.mxu0 0.0
      %251 = vmatpush1.msra.mxu0 0.0
      %252 = vmatprep.subr.mxu0 0.0
      %253 = vmatpush1.msra.mxu0 0.0
      %254 = vmatprep.subr.mxu0 0.0
      %255 = vmatpush1.msra.mxu0 0.0
      %256 = vmatprep.subr.mxu0 0.0
      %257 = vmatpush1.msra.mxu0 0.0
      %258 = vmatprep.subr.mxu0 0.0
      %259 = vmatpush1.msra.mxu0 0.0
      %260 = vmatprep.subr.mxu0 0.0
      %261 = vmatpush1.msra.mxu0 0.0
      %262 = vmatprep.subr.mxu0 0.0
      %263 = vmatpush1.msra.mxu0 0.0
      %264 = vmatprep.subr.mxu0 0.0
      %265 = vmatpush1.msra.mxu0 0.0
      %266 = vmatprep.subr.mxu0 0.0
      %267 = vmatpush1.msra.mxu0 0.0
      %268 = vmatprep.subr.mxu0 0.0
      %269 = vmatpush1.msra.mxu0 0.0
      %270 = vmatprep.subr.mxu0 0.0
      %271 = vmatpush1.msra.mxu0 0.0
      %272 = vmatprep.subr.mxu0 0.0
      %273 = vmatpush1.msra.mxu0 0.0
      %274 = vmatprep.subr.mxu0 0.0
      %275 = vmatpush1.msra.mxu0 0.0
      %276 = vmatprep.subr.mxu0 0.0
      %277 = vmatpush1.msra.mxu0 0.0
      %278 = vmatprep.subr.mxu0 0.0
      %279 = vmatpush1.msra.mxu0 0.0
      %280 = vmatprep.subr.mxu0 0.0
      %281 = vmatpush1.msra.mxu0 0.0
      %282 = vmatprep.subr.mxu0 0.0
      %283 = vmatpush1.msra.mxu0 0.0
      %284 = vmatprep.subr.mxu0 0.0
      %285 = vmatpush1.msra.mxu0 0.0
      %286 = vmatprep.subr.mxu0 0.0
      %287 = vmatpush1.msra.mxu0 0.0
      %288 = vmatprep.subr.mxu0 0.0
      %289 = vmatpush1.msra.mxu0 0.0
      %290 = vmatprep.subr.mxu0 0.0
      %291 = vmatpush1.msra.mxu0 0.0
      %292 = vmatprep.subr.mxu0 0.0
      %293 = vmatpush1.msra.mxu0 0.0
      %294 = vmatprep.subr.mxu0 0.0
      %295 = vmatpush1.msra.mxu0 0.0
      %296 = vmatprep.subr.mxu0 0.0
      %297 = vmatpush1.msra.mxu0 0.0
      %298 = vmatprep.subr.mxu0 0.0
      %299 = vmatpush1.msra.mxu0 0.0
      %300 = vmatprep.mubr.f32.mxu0 0.0
      %301 = vmatmul.mubr.f32.gmra.mrb[0].mxu0 %v224
      %v302 = vpop.f32.mrb[0].mxu0
      %v303 = vadd.f32 0.0, %v302
      %v304 = vpop.f32.mrb[0].mxu0
      %v305 = vadd.f32 0.0, %v304
      %306 = vmatprep.mubr.f32.mxu0 0.0
      %307 = vmatmul.mubr.f32.gmra.mrb[0].mxu0 %v227
      %v308 = vpop.f32.mrb[0].mxu0
      %v309 = vadd.f32 0.0, %v308
      %v310 = vpop.f32.mrb[0].mxu0
      %v311 = vadd.f32 0.0, %v310
      %312 = vdwg.mxu0
      %313 = vmatprep.subr.mxu0 0.0
      %314 = vmatpush1.msra.mxu0 %v234
      %315 = vmatprep.subr.mxu0 0.0
      %316 = vmatpush1.msra.mxu0 0.0
      %317 = vmatprep.subr.mxu0 0.0
      %318 = vmatpush1.msra.mxu0 0.0
      %319 = vmatprep.subr.mxu0 0.0
      %320 = vmatpush1.msra.mxu0 0.0
      %321 = vmatprep.subr.mxu0 0.0
      %322 = vmatpush1.msra.mxu0 0.0
      %323 = vmatprep.subr.mxu0 0.0
      %324 = vmatpush1.msra.mxu0 0.0
      %325 = vmatprep.subr.mxu0 0.0
      %326 = vmatpush1.msra.mxu0 0.0
      %327 = vmatprep.subr.mxu0 0.0
      %328 = vmatpush1.msra.mxu0 0.0
      %329 = vmatprep.subr.mxu0 0.0
      %330 = vmatpush1.msra.mxu0 0.0
      %331 = vmatprep.subr.mxu0 0.0
      %332 = vmatpush1.msra.mxu0 0.0
      %333 = vmatprep.subr.mxu0 0.0
      %334 = vmatpush1.msra.mxu0 0.0
      %335 = vmatprep.subr.mxu0 0.0
      %336 = vmatpush1.msra.mxu0 0.0
      %337 = vmatprep.subr.mxu0 0.0
      %338 = vmatpush1.msra.mxu0 0.0
      %339 = vmatprep.subr.mxu0 0.0
      %340 = vmatpush1.msra.mxu0 0.0
      %341 = vmatprep.subr.mxu0 0.0
      %342 = vmatpush1.msra.mxu0 0.0
      %343 = vmatprep.subr.mxu0 0.0
      %344 = vmatpush1.msra.mxu0 0.0
      %345 = vmatprep.subr.mxu0 0.0
      %346 = vmatpush1.msra.mxu0 0.0
      %347 = vmatprep.subr.mxu0 0.0
      %348 = vmatpush1.msra.mxu0 0.0
      %349 = vmatprep.subr.mxu0 0.0
      %350 = vmatpush1.msra.mxu0 0.0
      %351 = vmatprep.subr.mxu0 0.0
      %352 = vmatpush1.msra.mxu0 0.0
      %353 = vmatprep.subr.mxu0 0.0
      %354 = vmatpush1.msra.mxu0 0.0
      %355 = vmatprep.subr.mxu0 0.0
      %356 = vmatpush1.msra.mxu0 0.0
      %357 = vmatprep.subr.mxu0 0.0
      %358 = vmatpush1.msra.mxu0 0.0
      %359 = vmatprep.subr.mxu0 0.0
      %360 = vmatpush1.msra.mxu0 0.0
      %361 = vmatprep.subr.mxu0 0.0
      %362 = vmatpush1.msra.mxu0 0.0
      %363 = vmatprep.subr.mxu0 0.0
      %364 = vmatpush1.msra.mxu0 0.0
      %365 = vmatprep.subr.mxu0 0.0
      %366 = vmatpush1.msra.mxu0 0.0
      %367 = vmatprep.subr.mxu0 0.0
      %368 = vmatpush1.msra.mxu0 0.0
      %369 = vmatprep.subr.mxu0 0.0
      %370 = vmatpush1.msra.mxu0 0.0
      %371 = vmatprep.subr.mxu0 0.0
      %372 = vmatpush1.msra.mxu0 0.0
      %373 = vmatprep.subr.mxu0 0.0
      %374 = vmatpush1.msra.mxu0 0.0
      %375 = vmatprep.subr.mxu0 0.0
      %376 = vmatpush1.msra.mxu0 0.0
      %377 = vmatprep.mubr.f32.mxu0 0.0
      %378 = vmatmul.mubr.f32.gmra.mrb[0].mxu0 %v224
      %v379 = vpop.f32.mrb[0].mxu0
      %v380 = vadd.f32 0.0, %v379
      %v381 = vpop.f32.mrb[0].mxu0
      %382 = vmatprep.mubr.f32.mxu0 0.0
      %383 = vmatmul.mubr.f32.gmra.mrb[0].mxu0 %v227
      %v384 = vpop.f32.mrb[0].mxu0
      %v385 = vadd.f32 0.0, %v384
      %v386 = vpop.f32.mrb[0].mxu0
      %387 = vdwg.mxu0
      %388 = vrot.lane.b32.xlu0 %v199, 19
      %v389 = vpop.permute.xlu0 %388
      %390 = vrot.lane.b32.xlu0 %v208, 19
      %v391 = vpop.permute.xlu0 %390
      %392 = vrot.lane.b32.xlu0 %v200, 19
      %v393 = vpop.permute.xlu0 %392
      %394 = vrot.lane.b32.xlu0 %v209, 19
      %v395 = vpop.permute.xlu0 %394
      %vm396 = vcmask 154624
      %v397 = vsel %vm396, %v389, %v391
      %v398 = vsel %vm396, %v391, %v393
      %v399 = vsel %vm396, %v393, %v395
      %v401 = vsel %vm222, %v201, 0
      %v404 = vsel %vm222, %v202, 0
      %v406 = vsel %vm229, %v397, 0
      %v408 = vsel %vm229, %v398, 0
      %v410 = vsel %vm229, %v399, 0
      %412 = vmatprep.subr.mxu0 %v408
      %413 = vmatpush1.msra.mxu0 %v406
      %414 = vmatprep.subr.mxu0 0.0
      %415 = vmatpush1.msra.mxu0 0.0
      %416 = vmatprep.subr.mxu0 0.0
      %417 = vmatpush1.msra.mxu0 0.0
      %418 = vmatprep.subr.mxu0 0.0
      %419 = vmatpush1.msra.mxu0 0.0
      %420 = vmatprep.subr.mxu0 0.0
      %421 = vmatpush1.msra.mxu0 0.0
      %422 = vmatprep.subr.mxu0 0.0
      %423 = vmatpush1.msra.mxu0 0.0
      %424 = vmatprep.subr.mxu0 0.0
      %425 = vmatpush1.msra.mxu0 0.0
      %426 = vmatprep.subr.mxu0 0.0
      %427 = vmatpush1.msra.mxu0 0.0
      %428 = vmatprep.subr.mxu0 0.0
      %429 = vmatpush1.msra.mxu0 0.0
      %430 = vmatprep.subr.mxu0 0.0
      %431 = vmatpush1.msra.mxu0 0.0
      %432 = vmatprep.subr.mxu0 0.0
      %433 = vmatpush1.msra.mxu0 0.0
      %434 = vmatprep.subr.mxu0 0.0
      %435 = vmatpush1.msra.mxu0 0.0
      %436 = vmatprep.subr.mxu0 0.0
      %437 = vmatpush1.msra.mxu0 0.0
      %438 = vmatprep.subr.mxu0 0.0
      %439 = vmatpush1.msra.mxu0 0.0
      %440 = vmatprep.subr.mxu0 0.0
      %441 = vmatpush1.msra.mxu0 0.0
      %442 = vmatprep.subr.mxu0 0.0
      %443 = vmatpush1.msra.mxu0 0.0
      %444 = vmatprep.subr.mxu0 0.0
      %445 = vmatpush1.msra.mxu0 0.0
      %446 = vmatprep.subr.mxu0 0.0
      %447 = vmatpush1.msra.mxu0 0.0
      %448 = vmatprep.subr.mxu0 0.0
      %449 = vmatpush1.msra.mxu0 0.0
      %450 = vmatprep.subr.mxu0 0.0
      %451 = vmatpush1.msra.mxu0 0.0
      %452 = vmatprep.subr.mxu0 0.0
      %453 = vmatpush1.msra.mxu0 0.0
      %454 = vmatprep.subr.mxu0 0.0
      %455 = vmatpush1.msra.mxu0 0.0
      %456 = vmatprep.subr.mxu0 0.0
      %457 = vmatpush1.msra.mxu0 0.0
      %458 = vmatprep.subr.mxu0 0.0
      %459 = vmatpush1.msra.mxu0 0.0
      %460 = vmatprep.subr.mxu0 0.0
      %461 = vmatpush1.msra.mxu0 0.0
      %462 = vmatprep.subr.mxu0 0.0
      %463 = vmatpush1.msra.mxu0 0.0
      %464 = vmatprep.subr.mxu0 0.0
      %465 = vmatpush1.msra.mxu0 0.0
      %466 = vmatprep.subr.mxu0 0.0
      %467 = vmatpush1.msra.mxu0 0.0
      %468 = vmatprep.subr.mxu0 0.0
      %469 = vmatpush1.msra.mxu0 0.0
      %470 = vmatprep.subr.mxu0 0.0
      %471 = vmatpush1.msra.mxu0 0.0
      %472 = vmatprep.subr.mxu0 0.0
      %473 = vmatpush1.msra.mxu0 0.0
      %474 = vmatprep.subr.mxu0 0.0
      %475 = vmatpush1.msra.mxu0 0.0
      %476 = vmatprep.mubr.f32.mxu0 0.0
      %477 = vmatmul.mubr.f32.gmra.mrb[0].mxu0 %v401
      %v478 = vpop.f32.mrb[0].mxu0
      %v479 = vadd.f32 %v303, %v478
      %v480 = vpop.f32.mrb[0].mxu0
      %v481 = vadd.f32 %v305, %v480
      %482 = vmatprep.mubr.f32.mxu0 0.0
      %483 = vmatmul.mubr.f32.gmra.mrb[0].mxu0 %v404
      %v484 = vpop.f32.mrb[0].mxu0
      %v485 = vadd.f32 %v309, %v484
      %v486 = vpop.f32.mrb[0].mxu0
      %v487 = vadd.f32 %v311, %v486
      %488 = vdwg.mxu0
      %489 = vmatprep.subr.mxu0 0.0
      %490 = vmatpush1.msra.mxu0 %v410
      %491 = vmatprep.subr.mxu0 0.0
      %492 = vmatpush1.msra.mxu0 0.0
      %493 = vmatprep.subr.mxu0 0.0
      %494 = vmatpush1.msra.mxu0 0.0
      %495 = vmatprep.subr.mxu0 0.0
      %496 = vmatpush1.msra.mxu0 0.0
      %497 = vmatprep.subr.mxu0 0.0
      %498 = vmatpush1.msra.mxu0 0.0
      %499 = vmatprep.subr.mxu0 0.0
      %500 = vmatpush1.msra.mxu0 0.0
      %501 = vmatprep.subr.mxu0 0.0
      %502 = vmatpush1.msra.mxu0 0.0
      %503 = vmatprep.subr.mxu0 0.0
      %504 = vmatpush1.msra.mxu0 0.0
      %505 = vmatprep.subr.mxu0 0.0
      %506 = vmatpush1.msra.mxu0 0.0
      %507 = vmatprep.subr.mxu0 0.0
      %508 = vmatpush1.msra.mxu0 0.0
      %509 = vmatprep.subr.mxu0 0.0
      %510 = vmatpush1.msra.mxu0 0.0
      %511 = vmatprep.subr.mxu0 0.0
      %512 = vmatpush1.msra.mxu0 0.0
      %513 = vmatprep.subr.mxu0 0.0
      %514 = vmatpush1.msra.mxu0 0.0
      %515 = vmatprep.subr.mxu0 0.0
      %516 = vmatpush1.msra.mxu0 0.0
      %517 = vmatprep.subr.mxu0 0.0
      %518 = vmatpush1.msra.mxu0 0.0
      %519 = vmatprep.subr.mxu0 0.0
      %520 = vmatpush1.msra.mxu0 0.0
      %521 = vmatprep.subr.mxu0 0.0
      %522 = vmatpush1.msra.mxu0 0.0
      %523 = vmatprep.subr.mxu0 0.0
      %524 = vmatpush1.msra.mxu0 0.0
      %525 = vmatprep.subr.mxu0 0.0
      %526 = vmatpush1.msra.mxu0 0.0
      %527 = vmatprep.subr.mxu0 0.0
      %528 = vmatpush1.msra.mxu0 0.0
      %529 = vmatprep.subr.mxu0 0.0
      %530 = vmatpush1.msra.mxu0 0.0
      %531 = vmatprep.subr.mxu0 0.0
      %532 = vmatpush1.msra.mxu0 0.0
      %533 = vmatprep.subr.mxu0 0.0
      %534 = vmatpush1.msra.mxu0 0.0
      %535 = vmatprep.subr.mxu0 0.0
      %536 = vmatpush1.msra.mxu0 0.0
      %537 = vmatprep.subr.mxu0 0.0
      %538 = vmatpush1.msra.mxu0 0.0
      %539 = vmatprep.subr.mxu0 0.0
      %540 = vmatpush1.msra.mxu0 0.0
      %541 = vmatprep.subr.mxu0 0.0
      %542 = vmatpush1.msra.mxu0 0.0
      %543 = vmatprep.subr.mxu0 0.0
      %544 = vmatpush1.msra.mxu0 0.0
      %545 = vmatprep.subr.mxu0 0.0
      %546 = vmatpush1.msra.mxu0 0.0
      %547 = vmatprep.subr.mxu0 0.0
      %548 = vmatpush1.msra.mxu0 0.0
      %549 = vmatprep.subr.mxu0 0.0
      %550 = vmatpush1.msra.mxu0 0.0
      %551 = vmatprep.subr.mxu0 0.0
      %552 = vmatpush1.msra.mxu0 0.0
      %553 = vmatprep.mubr.f32.mxu0 0.0
      %554 = vmatmul.mubr.f32.gmra.mrb[0].mxu0 %v401
      %v555 = vpop.f32.mrb[0].mxu0
      %v556 = vadd.f32 %v380, %v555
      %v557 = vpop.f32.mrb[0].mxu0
      %558 = vmatprep.mubr.f32.mxu0 0.0
      %559 = vmatmul.mubr.f32.gmra.mrb[0].mxu0 %v404
      %v560 = vpop.f32.mrb[0].mxu0
      %v561 = vadd.f32 %v385, %v560
      %v562 = vpop.f32.mrb[0].mxu0
      %563 = vdwg.mxu0
      %v564 = vld [vmem:[%s192] sm:$0xff]
      %v565 = vld [vmem:[%s192 + $0x8] sm:$0xff]
      %s566 = scalar_lea.vmem %s2, 32
      %v567 = vld [vmem:[%s566] sm:$0xff]
      %v568 = vld [vmem:[%s566 + $0x8] sm:$0xff]
      %v571 = vcombine.high %v564, %v564
      %v572 = vcombine.high %v565, %v565
      %573 = vrot.lane.b32.xlu0 %v564, 17
      %v574 = vpop.permute.xlu0 %573
      %575 = vrot.lane.b32.xlu0 %v571, 17
      %v576 = vpop.permute.xlu0 %575
      %577 = vrot.lane.b32.xlu0 %v565, 17
      %v578 = vpop.permute.xlu0 %577
      %579 = vrot.lane.b32.xlu0 %v572, 17
      %v580 = vpop.permute.xlu0 %579
      %vm581 = vcmask 138240
      %v582 = vsel %vm581, %v574, %v576
      %v583 = vsel %vm581, %v576, %v578
      %v584 = vsel %vm581, %v578, %v580
      %v586 = vsel %vm222, %v567, 0
      %v589 = vsel %vm222, %v568, 0
      %v591 = vsel %vm229, %v582, 0
      %v593 = vsel %vm229, %v583, 0
      %v595 = vsel %vm229, %v584, 0
      %597 = vmatprep.subr.mxu0 %v593
      %598 = vmatpush1.msra.mxu0 %v591
      %599 = vmatprep.subr.mxu0 0.0
      %600 = vmatpush1.msra.mxu0 0.0
      %601 = vmatprep.subr.mxu0 0.0
      %602 = vmatpush1.msra.mxu0 0.0
      %603 = vmatprep.subr.mxu0 0.0
      %604 = vmatpush1.msra.mxu0 0.0
      %605 = vmatprep.subr.mxu0 0.0
      %606 = vmatpush1.msra.mxu0 0.0
      %607 = vmatprep.subr.mxu0 0.0
      %608 = vmatpush1.msra.mxu0 0.0
      %609 = vmatprep.subr.mxu0 0.0
      %610 = vmatpush1.msra.mxu0 0.0
      %611 = vmatprep.subr.mxu0 0.0
      %612 = vmatpush1.msra.mxu0 0.0
      %613 = vmatprep.subr.mxu0 0.0
      %614 = vmatpush1.msra.mxu0 0.0
      %615 = vmatprep.subr.mxu0 0.0
      %616 = vmatpush1.msra.mxu0 0.0
      %617 = vmatprep.subr.mxu0 0.0
      %618 = vmatpush1.msra.mxu0 0.0
      %619 = vmatprep.subr.mxu0 0.0
      %620 = vmatpush1.msra.mxu0 0.0
      %621 = vmatprep.subr.mxu0 0.0
      %622 = vmatpush1.msra.mxu0 0.0
      %623 = vmatprep.subr.mxu0 0.0
      %624 = vmatpush1.msra.mxu0 0.0
      %625 = vmatprep.subr.mxu0 0.0
      %626 = vmatpush1.msra.mxu0 0.0
      %627 = vmatprep.subr.mxu0 0.0
      %628 = vmatpush1.msra.mxu0 0.0
      %629 = vmatprep.subr.mxu0 0.0
      %630 = vmatpush1.msra.mxu0 0.0
      %631 = vmatprep.subr.mxu0 0.0
      %632 = vmatpush1.msra.mxu0 0.0
      %633 = vmatprep.subr.mxu0 0.0
      %634 = vmatpush1.msra.mxu0 0.0
      %635 = vmatprep.subr.mxu0 0.0
      %636 = vmatpush1.msra.mxu0 0.0
      %637 = vmatprep.subr.mxu0 0.0
      %638 = vmatpush1.msra.mxu0 0.0
      %639 = vmatprep.subr.mxu0 0.0
      %640 = vmatpush1.msra.mxu0 0.0
      %641 = vmatprep.subr.mxu0 0.0
      %642 = vmatpush1.msra.mxu0 0.0
      %643 = vmatprep.subr.mxu0 0.0
      %644 = vmatpush1.msra.mxu0 0.0
      %645 = vmatprep.subr.mxu0 0.0
      %646 = vmatpush1.msra.mxu0 0.0
      %647 = vmatprep.subr.mxu0 0.0
      %648 = vmatpush1.msra.mxu0 0.0
      %649 = vmatprep.subr.mxu0 0.0
      %650 = vmatpush1.msra.mxu0 0.0
      %651 = vmatprep.subr.mxu0 0.0
      %652 = vmatpush1.msra.mxu0 0.0
      %653 = vmatprep.subr.mxu0 0.0
      %654 = vmatpush1.msra.mxu0 0.0
      %655 = vmatprep.subr.mxu0 0.0
      %656 = vmatpush1.msra.mxu0 0.0
      %657 = vmatprep.subr.mxu0 0.0
      %658 = vmatpush1.msra.mxu0 0.0
      %659 = vmatprep.subr.mxu0 0.0
      %660 = vmatpush1.msra.mxu0 0.0
      %661 = vmatprep.mubr.f32.mxu0 0.0
      %662 = vmatmul.mubr.f32.gmra.mrb[0].mxu0 %v586
      %v663 = vpop.f32.mrb[0].mxu0
      %v664 = vadd.f32 0.0, %v663
      %v665 = vpop.f32.mrb[0].mxu0
      %v666 = vadd.f32 0.0, %v665
      %667 = vmatprep.mubr.f32.mxu0 0.0
      %668 = vmatmul.mubr.f32.gmra.mrb[0].mxu0 %v589
      %v669 = vpop.f32.mrb[0].mxu0
      %v670 = vadd.f32 0.0, %v669
      %v671 = vpop.f32.mrb[0].mxu0
      %v672 = vadd.f32 0.0, %v671
      %673 = vdwg.mxu0
      %674 = vmatprep.subr.mxu0 0.0
      %675 = vmatpush1.msra.mxu0 %v595
      %676 = vmatprep.subr.mxu0 0.0
      %677 = vmatpush1.msra.mxu0 0.0
      %678 = vmatprep.subr.mxu0 0.0
      %679 = vmatpush1.msra.mxu0 0.0
      %680 = vmatprep.subr.mxu0 0.0
      %681 = vmatpush1.msra.mxu0 0.0
      %682 = vmatprep.subr.mxu0 0.0
      %683 = vmatpush1.msra.mxu0 0.0
      %684 = vmatprep.subr.mxu0 0.0
      %685 = vmatpush1.msra.mxu0 0.0
      %686 = vmatprep.subr.mxu0 0.0
      %687 = vmatpush1.msra.mxu0 0.0
      %688 = vmatprep.subr.mxu0 0.0
      %689 = vmatpush1.msra.mxu0 0.0
      %690 = vmatprep.subr.mxu0 0.0
      %691 = vmatpush1.msra.mxu0 0.0
      %692 = vmatprep.subr.mxu0 0.0
      %693 = vmatpush1.msra.mxu0 0.0
      %694 = vmatprep.subr.mxu0 0.0
      %695 = vmatpush1.msra.mxu0 0.0
      %696 = vmatprep.subr.mxu0 0.0
      %697 = vmatpush1.msra.mxu0 0.0
      %698 = vmatprep.subr.mxu0 0.0
      %699 = vmatpush1.msra.mxu0 0.0
      %700 = vmatprep.subr.mxu0 0.0
      %701 = vmatpush1.msra.mxu0 0.0
      %702 = vmatprep.subr.mxu0 0.0
      %703 = vmatpush1.msra.mxu0 0.0
      %704 = vmatprep.subr.mxu0 0.0
      %705 = vmatpush1.msra.mxu0 0.0
      %706 = vmatprep.subr.mxu0 0.0
      %707 = vmatpush1.msra.mxu0 0.0
      %708 = vmatprep.subr.mxu0 0.0
      %709 = vmatpush1.msra.mxu0 0.0
      %710 = vmatprep.subr.mxu0 0.0
      %711 = vmatpush1.msra.mxu0 0.0
      %712 = vmatprep.subr.mxu0 0.0
      %713 = vmatpush1.msra.mxu0 0.0
      %714 = vmatprep.subr.mxu0 0.0
      %715 = vmatpush1.msra.mxu0 0.0
      %716 = vmatprep.subr.mxu0 0.0
      %717 = vmatpush1.msra.mxu0 0.0
      %718 = vmatprep.subr.mxu0 0.0
      %719 = vmatpush1.msra.mxu0 0.0
      %720 = vmatprep.subr.mxu0 0.0
      %721 = vmatpush1.msra.mxu0 0.0
      %722 = vmatprep.subr.mxu0 0.0
      %723 = vmatpush1.msra.mxu0 0.0
      %724 = vmatprep.subr.mxu0 0.0
      %725 = vmatpush1.msra.mxu0 0.0
      %726 = vmatprep.subr.mxu0 0.0
      %727 = vmatpush1.msra.mxu0 0.0
      %728 = vmatprep.subr.mxu0 0.0
      %729 = vmatpush1.msra.mxu0 0.0
      %730 = vmatprep.subr.mxu0 0.0
      %731 = vmatpush1.msra.mxu0 0.0
      %732 = vmatprep.subr.mxu0 0.0
      %733 = vmatpush1.msra.mxu0 0.0
      %734 = vmatprep.subr.mxu0 0.0
      %735 = vmatpush1.msra.mxu0 0.0
      %736 = vmatprep.subr.mxu0 0.0
      %737 = vmatpush1.msra.mxu0 0.0
      %738 = vmatprep.mubr.f32.mxu0 0.0
      %739 = vmatmul.mubr.f32.gmra.mrb[0].mxu0 %v586
      %v740 = vpop.f32.mrb[0].mxu0
      %v741 = vadd.f32 0.0, %v740
      %v742 = vpop.f32.mrb[0].mxu0
      %743 = vmatprep.mubr.f32.mxu0 0.0
      %744 = vmatmul.mubr.f32.gmra.mrb[0].mxu0 %v589
      %v745 = vpop.f32.mrb[0].mxu0
      %v746 = vadd.f32 0.0, %v745
      %v747 = vpop.f32.mrb[0].mxu0
      %748 = vdwg.mxu0
      %v749 = vadd.f32 %v479, %v664
      %v750 = vadd.f32 %v481, %v666
      %v751 = vadd.f32 %v556, %v741
      %v752 = vadd.f32 %v485, %v670
      %v753 = vadd.f32 %v487, %v672
      %v754 = vadd.f32 %v561, %v746
      %v755 = vld [vmem:[%s192] sm:$0xff]
      %v756 = vld [vmem:[%s192 + $0x8] sm:$0xff]
      %s757 = scalar_lea.vmem %s2, 48
      %v758 = vld [vmem:[%s757] sm:$0xff]
      %v759 = vld [vmem:[%s757 + $0x8] sm:$0xff]
      %v762 = vcombine.high %v755, %v755
      %v763 = vcombine.high %v756, %v756
      %764 = vrot.lane.b32.xlu0 %v755, 1
      %v765 = vpop.permute.xlu0 %764
      %766 = vrot.lane.b32.xlu0 %v762, 1
      %v767 = vpop.permute.xlu0 %766
      %768 = vrot.lane.b32.xlu0 %v756, 1
      %v769 = vpop.permute.xlu0 %768
      %770 = vrot.lane.b32.xlu0 %v763, 1
      %v771 = vpop.permute.xlu0 %770
      %vm772 = vcmask 7168
      %v773 = vsel %vm772, %v765, %v767
      %v774 = vsel %vm772, %v767, %v769
      %v775 = vsel %vm772, %v769, %v771
      %v777 = vsel %vm222, %v758, 0
      %v780 = vsel %vm222, %v759, 0
      %v782 = vsel %vm229, %v773, 0
      %v784 = vsel %vm229, %v774, 0
      %v786 = vsel %vm229, %v775, 0
      %788 = vmatprep.subr.mxu0 %v784
      %789 = vmatpush1.msra.mxu0 %v782
      %790 = vmatprep.subr.mxu0 0.0
      %791 = vmatpush1.msra.mxu0 0.0
      %792 = vmatprep.subr.mxu0 0.0
      %793 = vmatpush1.msra.mxu0 0.0
      %794 = vmatprep.subr.mxu0 0.0
      %795 = vmatpush1.msra.mxu0 0.0
      %796 = vmatprep.subr.mxu0 0.0
      %797 = vmatpush1.msra.mxu0 0.0
      %798 = vmatprep.subr.mxu0 0.0
      %799 = vmatpush1.msra.mxu0 0.0
      %800 = vmatprep.subr.mxu0 0.0
      %801 = vmatpush1.msra.mxu0 0.0
      %802 = vmatprep.subr.mxu0 0.0
      %803 = vmatpush1.msra.mxu0 0.0
      %804 = vmatprep.subr.mxu0 0.0
      %805 = vmatpush1.msra.mxu0 0.0
      %806 = vmatprep.subr.mxu0 0.0
      %807 = vmatpush1.msra.mxu0 0.0
      %808 = vmatprep.subr.mxu0 0.0
      %809 = vmatpush1.msra.mxu0 0.0
      %810 = vmatprep.subr.mxu0 0.0
      %811 = vmatpush1.msra.mxu0 0.0
      %812 = vmatprep.subr.mxu0 0.0
      %813 = vmatpush1.msra.mxu0 0.0
      %814 = vmatprep.subr.mxu0 0.0
      %815 = vmatpush1.msra.mxu0 0.0
      %816 = vmatprep.subr.mxu0 0.0
      %817 = vmatpush1.msra.mxu0 0.0
      %818 = vmatprep.subr.mxu0 0.0
      %819 = vmatpush1.msra.mxu0 0.0
      %820 = vmatprep.subr.mxu0 0.0
      %821 = vmatpush1.msra.mxu0 0.0
      %822 = vmatprep.subr.mxu0 0.0
      %823 = vmatpush1.msra.mxu0 0.0
      %824 = vmatprep.subr.mxu0 0.0
      %825 = vmatpush1.msra.mxu0 0.0
      %826 = vmatprep.subr.mxu0 0.0
      %827 = vmatpush1.msra.mxu0 0.0
      %828 = vmatprep.subr.mxu0 0.0
      %829 = vmatpush1.msra.mxu0 0.0
      %830 = vmatprep.subr.mxu0 0.0
      %831 = vmatpush1.msra.mxu0 0.0
      %832 = vmatprep.subr.mxu0 0.0
      %833 = vmatpush1.msra.mxu0 0.0
      %834 = vmatprep.subr.mxu0 0.0
      %835 = vmatpush1.msra.mxu0 0.0
      %836 = vmatprep.subr.mxu0 0.0
      %837 = vmatpush1.msra.mxu0 0.0
      %838 = vmatprep.subr.mxu0 0.0
      %839 = vmatpush1.msra.mxu0 0.0
      %840 = vmatprep.subr.mxu0 0.0
      %841 = vmatpush1.msra.mxu0 0.0
      %842 = vmatprep.subr.mxu0 0.0
      %843 = vmatpush1.msra.mxu0 0.0
      %844 = vmatprep.subr.mxu0 0.0
      %845 = vmatpush1.msra.mxu0 0.0
      %846 = vmatprep.subr.mxu0 0.0
      %847 = vmatpush1.msra.mxu0 0.0
      %848 = vmatprep.subr.mxu0 0.0
      %849 = vmatpush1.msra.mxu0 0.0
      %850 = vmatprep.subr.mxu0 0.0
      %851 = vmatpush1.msra.mxu0 0.0
      %852 = vmatprep.mubr.f32.mxu0 0.0
      %853 = vmatmul.mubr.f32.gmra.mrb[0].mxu0 %v777
      %v854 = vpop.f32.mrb[0].mxu0
      %v855 = vadd.f32 0.0, %v854
      %v856 = vpop.f32.mrb[0].mxu0
      %v857 = vadd.f32 0.0, %v856
      %858 = vmatprep.mubr.f32.mxu0 0.0
      %859 = vmatmul.mubr.f32.gmra.mrb[0].mxu0 %v780
      %v860 = vpop.f32.mrb[0].mxu0
      %v861 = vadd.f32 0.0, %v860
      %v862 = vpop.f32.mrb[0].mxu0
      %v863 = vadd.f32 0.0, %v862
      %864 = vdwg.mxu0
      %865 = vmatprep.subr.mxu0 0.0
      %866 = vmatpush1.msra.mxu0 %v786
      %867 = vmatprep.subr.mxu0 0.0
      %868 = vmatpush1.msra.mxu0 0.0
      %869 = vmatprep.subr.mxu0 0.0
      %870 = vmatpush1.msra.mxu0 0.0
      %871 = vmatprep.subr.mxu0 0.0
      %872 = vmatpush1.msra.mxu0 0.0
      %873 = vmatprep.subr.mxu0 0.0
      %874 = vmatpush1.msra.mxu0 0.0
      %875 = vmatprep.subr.mxu0 0.0
      %876 = vmatpush1.msra.mxu0 0.0
      %877 = vmatprep.subr.mxu0 0.0
      %878 = vmatpush1.msra.mxu0 0.0
      %879 = vmatprep.subr.mxu0 0.0
      %880 = vmatpush1.msra.mxu0 0.0
      %881 = vmatprep.subr.mxu0 0.0
      %882 = vmatpush1.msra.mxu0 0.0
      %883 = vmatprep.subr.mxu0 0.0
      %884 = vmatpush1.msra.mxu0 0.0
      %885 = vmatprep.subr.mxu0 0.0
      %886 = vmatpush1.msra.mxu0 0.0
      %887 = vmatprep.subr.mxu0 0.0
      %888 = vmatpush1.msra.mxu0 0.0
      %889 = vmatprep.subr.mxu0 0.0
      %890 = vmatpush1.msra.mxu0 0.0
      %891 = vmatprep.subr.mxu0 0.0
      %892 = vmatpush1.msra.mxu0 0.0
      %893 = vmatprep.subr.mxu0 0.0
      %894 = vmatpush1.msra.mxu0 0.0
      %895 = vmatprep.subr.mxu0 0.0
      %896 = vmatpush1.msra.mxu0 0.0
      %897 = vmatprep.subr.mxu0 0.0
      %898 = vmatpush1.msra.mxu0 0.0
      %899 = vmatprep.subr.mxu0 0.0
      %900 = vmatpush1.msra.mxu0 0.0
      %901 = vmatprep.subr.mxu0 0.0
      %902 = vmatpush1.msra.mxu0 0.0
      %903 = vmatprep.subr.mxu0 0.0
      %904 = vmatpush1.msra.mxu0 0.0
      %905 = vmatprep.subr.mxu0 0.0
      %906 = vmatpush1.msra.mxu0 0.0
      %907 = vmatprep.subr.mxu0 0.0
      %908 = vmatpush1.msra.mxu0 0.0
      %909 = vmatprep.subr.mxu0 0.0
      %910 = vmatpush1.msra.mxu0 0.0
      %911 = vmatprep.subr.mxu0 0.0
      %912 = vmatpush1.msra.mxu0 0.0
      %913 = vmatprep.subr.mxu0 0.0
      %914 = vmatpush1.msra.mxu0 0.0
      %915 = vmatprep.subr.mxu0 0.0
      %916 = vmatpush1.msra.mxu0 0.0
      %917 = vmatprep.subr.mxu0 0.0
      %918 = vmatpush1.msra.mxu0 0.0
      %919 = vmatprep.subr.mxu0 0.0
      %920 = vmatpush1.msra.mxu0 0.0
      %921 = vmatprep.subr.mxu0 0.0
      %922 = vmatpush1.msra.mxu0 0.0
      %923 = vmatprep.subr.mxu0 0.0
      %924 = vmatpush1.msra.mxu0 0.0
      %925 = vmatprep.subr.mxu0 0.0
      %926 = vmatpush1.msra.mxu0 0.0
      %927 = vmatprep.subr.mxu0 0.0
      %928 = vmatpush1.msra.mxu0 0.0
      %929 = vmatprep.mubr.f32.mxu0 0.0
      %930 = vmatmul.mubr.f32.gmra.mrb[0].mxu0 %v777
      %v931 = vpop.f32.mrb[0].mxu0
      %v932 = vadd.f32 0.0, %v931
      %v933 = vpop.f32.mrb[0].mxu0
      %934 = vmatprep.mubr.f32.mxu0 0.0
      %935 = vmatmul.mubr.f32.gmra.mrb[0].mxu0 %v780
      %v936 = vpop.f32.mrb[0].mxu0
      %v937 = vadd.f32 0.0, %v936
      %v938 = vpop.f32.mrb[0].mxu0
      %939 = vdwg.mxu0
      %v940 = vadd.f32 %v749, %v855
      %v941 = vadd.f32 %v750, %v857
      %v942 = vadd.f32 %v751, %v932
      %v943 = vadd.f32 %v752, %v861
      %v944 = vadd.f32 %v753, %v863
      %v945 = vadd.f32 %v754, %v937
      %v946 = vld [vmem:[%s192 + $0x4] sm:$0xff]
      %v947 = vld [vmem:[%s192 + $0xc] sm:$0xf]
      %s948 = scalar_lea.vmem %s2, 64
      %v949 = vld [vmem:[%s948] sm:$0xff]
      %v950 = vld [vmem:[%s948 + $0x8] sm:$0xff]
      %v953 = vcombine.high %v946, %v946
      %v955 = vsel %vm222, %v949, 0
      %v958 = vsel %vm222, %v950, 0
      %v960 = vsel %vm229, %v946, 0
      %v962 = vsel %vm229, %v953, 0
      %v964 = vsel %vm229, %v947, 0
      %966 = vmatprep.subr.mxu0 %v962
      %967 = vmatpush1.msra.mxu0 %v960
      %968 = vmatprep.subr.mxu0 0.0
      %969 = vmatpush1.msra.mxu0 0.0
      %970 = vmatprep.subr.mxu0 0.0
      %971 = vmatpush1.msra.mxu0 0.0
      %972 = vmatprep.subr.mxu0 0.0
      %973 = vmatpush1.msra.mxu0 0.0
      %974 = vmatprep.subr.mxu0 0.0
      %975 = vmatpush1.msra.mxu0 0.0
      %976 = vmatprep.subr.mxu0 0.0
      %977 = vmatpush1.msra.mxu0 0.0
      %978 = vmatprep.subr.mxu0 0.0
      %979 = vmatpush1.msra.mxu0 0.0
      %980 = vmatprep.subr.mxu0 0.0
      %981 = vmatpush1.msra.mxu0 0.0
      %982 = vmatprep.subr.mxu0 0.0
      %983 = vmatpush1.msra.mxu0 0.0
      %984 = vmatprep.subr.mxu0 0.0
      %985 = vmatpush1.msra.mxu0 0.0
      %986 = vmatprep.subr.mxu0 0.0
      %987 = vmatpush1.msra.mxu0 0.0
      %988 = vmatprep.subr.mxu0 0.0
      %989 = vmatpush1.msra.mxu0 0.0
      %990 = vmatprep.subr.mxu0 0.0
      %991 = vmatpush1.msra.mxu0 0.0
      %992 = vmatprep.subr.mxu0 0.0
      %993 = vmatpush1.msra.mxu0 0.0
      %994 = vmatprep.subr.mxu0 0.0
      %995 = vmatpush1.msra.mxu0 0.0
      %996 = vmatprep.subr.mxu0 0.0
      %997 = vmatpush1.msra.mxu0 0.0
      %998 = vmatprep.subr.mxu0 0.0
      %999 = vmatpush1.msra.mxu0 0.0
      %1000 = vmatprep.subr.mxu0 0.0
      %1001 = vmatpush1.msra.mxu0 0.0
      %1002 = vmatprep.subr.mxu0 0.0
      %1003 = vmatpush1.msra.mxu0 0.0
      %1004 = vmatprep.subr.mxu0 0.0
      %1005 = vmatpush1.msra.mxu0 0.0
      %1006 = vmatprep.subr.mxu0 0.0
      %1007 = vmatpush1.msra.mxu0 0.0
      %1008 = vmatprep.subr.mxu0 0.0
      %1009 = vmatpush1.msra.mxu0 0.0
      %1010 = vmatprep.subr.mxu0 0.0
      %1011 = vmatpush1.msra.mxu0 0.0
      %1012 = vmatprep.subr.mxu0 0.0
      %1013 = vmatpush1.msra.mxu0 0.0
      %1014 = vmatprep.subr.mxu0 0.0
      %1015 = vmatpush1.msra.mxu0 0.0
      %1016 = vmatprep.subr.mxu0 0.0
      %1017 = vmatpush1.msra.mxu0 0.0
      %1018 = vmatprep.subr.mxu0 0.0
      %1019 = vmatpush1.msra.mxu0 0.0
      %1020 = vmatprep.subr.mxu0 0.0
      %1021 = vmatpush1.msra.mxu0 0.0
      %1022 = vmatprep.subr.mxu0 0.0
      %1023 = vmatpush1.msra.mxu0 0.0
      %1024 = vmatprep.subr.mxu0 0.0
      %1025 = vmatpush1.msra.mxu0 0.0
      %1026 = vmatprep.subr.mxu0 0.0
      %1027 = vmatpush1.msra.mxu0 0.0
      %1028 = vmatprep.subr.mxu0 0.0
      %1029 = vmatpush1.msra.mxu0 0.0
      %1030 = vmatprep.mubr.f32.mxu0 0.0
      %1031 = vmatmul.mubr.f32.gmra.mrb[0].mxu0 %v955
      %v1032 = vpop.f32.mrb[0].mxu0
      %v1033 = vadd.f32 0.0, %v1032
      %v1034 = vpop.f32.mrb[0].mxu0
      %v1035 = vadd.f32 0.0, %v1034
      %1036 = vmatprep.mubr.f32.mxu0 0.0
      %1037 = vmatmul.mubr.f32.gmra.mrb[0].mxu0 %v958
      %v1038 = vpop.f32.mrb[0].mxu0
      %v1039 = vadd.f32 0.0, %v1038
      %v1040 = vpop.f32.mrb[0].mxu0
      %v1041 = vadd.f32 0.0, %v1040
      %1042 = vdwg.mxu0
      %1043 = vmatprep.subr.mxu0 0.0
      %1044 = vmatpush1.msra.mxu0 %v964
      %1045 = vmatprep.subr.mxu0 0.0
      %1046 = vmatpush1.msra.mxu0 0.0
      %1047 = vmatprep.subr.mxu0 0.0
      %1048 = vmatpush1.msra.mxu0 0.0
      %1049 = vmatprep.subr.mxu0 0.0
      %1050 = vmatpush1.msra.mxu0 0.0
      %1051 = vmatprep.subr.mxu0 0.0
      %1052 = vmatpush1.msra.mxu0 0.0
      %1053 = vmatprep.subr.mxu0 0.0
      %1054 = vmatpush1.msra.mxu0 0.0
      %1055 = vmatprep.subr.mxu0 0.0
      %1056 = vmatpush1.msra.mxu0 0.0
      %1057 = vmatprep.subr.mxu0 0.0
      %1058 = vmatpush1.msra.mxu0 0.0
      %1059 = vmatprep.subr.mxu0 0.0
      %1060 = vmatpush1.msra.mxu0 0.0
      %1061 = vmatprep.subr.mxu0 0.0
      %1062 = vmatpush1.msra.mxu0 0.0
      %1063 = vmatprep.subr.mxu0 0.0
      %1064 = vmatpush1.msra.mxu0 0.0
      %1065 = vmatprep.subr.mxu0 0.0
      %1066 = vmatpush1.msra.mxu0 0.0
      %1067 = vmatprep.subr.mxu0 0.0
      %1068 = vmatpush1.msra.mxu0 0.0
      %1069 = vmatprep.subr.mxu0 0.0
      %1070 = vmatpush1.msra.mxu0 0.0
      %1071 = vmatprep.subr.mxu0 0.0
      %1072 = vmatpush1.msra.mxu0 0.0
      %1073 = vmatprep.subr.mxu0 0.0
      %1074 = vmatpush1.msra.mxu0 0.0
      %1075 = vmatprep.subr.mxu0 0.0
      %1076 = vmatpush1.msra.mxu0 0.0
      %1077 = vmatprep.subr.mxu0 0.0
      %1078 = vmatpush1.msra.mxu0 0.0
      %1079 = vmatprep.subr.mxu0 0.0
      %1080 = vmatpush1.msra.mxu0 0.0
      %1081 = vmatprep.subr.mxu0 0.0
      %1082 = vmatpush1.msra.mxu0 0.0
      %1083 = vmatprep.subr.mxu0 0.0
      %1084 = vmatpush1.msra.mxu0 0.0
      %1085 = vmatprep.subr.mxu0 0.0
      %1086 = vmatpush1.msra.mxu0 0.0
      %1087 = vmatprep.subr.mxu0 0.0
      %1088 = vmatpush1.msra.mxu0 0.0
      %1089 = vmatprep.subr.mxu0 0.0
      %1090 = vmatpush1.msra.mxu0 0.0
      %1091 = vmatprep.subr.mxu0 0.0
      %1092 = vmatpush1.msra.mxu0 0.0
      %1093 = vmatprep.subr.mxu0 0.0
      %1094 = vmatpush1.msra.mxu0 0.0
      %1095 = vmatprep.subr.mxu0 0.0
      %1096 = vmatpush1.msra.mxu0 0.0
      %1097 = vmatprep.subr.mxu0 0.0
      %1098 = vmatpush1.msra.mxu0 0.0
      %1099 = vmatprep.subr.mxu0 0.0
      %1100 = vmatpush1.msra.mxu0 0.0
      %1101 = vmatprep.subr.mxu0 0.0
      %1102 = vmatpush1.msra.mxu0 0.0
      %1103 = vmatprep.subr.mxu0 0.0
      %1104 = vmatpush1.msra.mxu0 0.0
      %1105 = vmatprep.subr.mxu0 0.0
      %1106 = vmatpush1.msra.mxu0 0.0
      %1107 = vmatprep.mubr.f32.mxu0 0.0
      %1108 = vmatmul.mubr.f32.gmra.mrb[0].mxu0 %v955
      %v1109 = vpop.f32.mrb[0].mxu0
      %v1110 = vadd.f32 0.0, %v1109
      %v1111 = vpop.f32.mrb[0].mxu0
      %1112 = vmatprep.mubr.f32.mxu0 0.0
      %1113 = vmatmul.mubr.f32.gmra.mrb[0].mxu0 %v958
      %v1114 = vpop.f32.mrb[0].mxu0
      %v1115 = vadd.f32 0.0, %v1114
      %v1116 = vpop.f32.mrb[0].mxu0
      %1117 = vdwg.mxu0
      %v1118 = vadd.f32 %v940, %v1033
      %v1119 = vadd.f32 %v941, %v1035
      %v1120 = vadd.f32 %v942, %v1110
      %v1121 = vadd.f32 %v943, %v1039
      %v1122 = vadd.f32 %v944, %v1041
      %v1123 = vadd.f32 %v945, %v1115
      %v1124 = vld [vmem:[%s192 + $0x4] sm:$0xff]
      %v1125 = vld [vmem:[%s192 + $0xc] sm:$0xf]
      %s1126 = scalar_lea.vmem %s2, 80
      %v1127 = vld [vmem:[%s1126] sm:$0xff]
      %v1128 = vld [vmem:[%s1126 + $0x8] sm:$0xff]
      %v1131 = vcombine.high %v1124, %v1124
      %1132 = vrot.lane.b32.xlu0 %v1124, 127
      %v1133 = vpop.permute.xlu0 %1132
      %1134 = vrot.lane.b32.xlu0 %v1131, 127
      %v1135 = vpop.permute.xlu0 %1134
      %1136 = vrot.lane.b32.xlu0 %v1125, 127
      %v1137 = vpop.permute.xlu0 %1136
      %vm1138 = vcmask 1039360
      %v1139 = vsel %vm1138, %v1133, %v1135
      %v1140 = vsel %vm1138, %v1135, %v1137
      %v1142 = vsel %vm222, %v1127, 0
      %v1145 = vsel %vm222, %v1128, 0
      %v1147 = vsel %vm229, %v1139, 0
      %v1149 = vsel %vm229, %v1140, 0
      %v1151 = vsel %vm229, %v1137, 0
      %1153 = vmatprep.subr.mxu0 %v1149
      %1154 = vmatpush1.msra.mxu0 %v1147
      %1155 = vmatprep.subr.mxu0 0.0
      %1156 = vmatpush1.msra.mxu0 0.0
      %1157 = vmatprep.subr.mxu0 0.0
      %1158 = vmatpush1.msra.mxu0 0.0
      %1159 = vmatprep.subr.mxu0 0.0
      %1160 = vmatpush1.msra.mxu0 0.0
      %1161 = vmatprep.subr.mxu0 0.0
      %1162 = vmatpush1.msra.mxu0 0.0
      %1163 = vmatprep.subr.mxu0 0.0
      %1164 = vmatpush1.msra.mxu0 0.0
      %1165 = vmatprep.subr.mxu0 0.0
      %1166 = vmatpush1.msra.mxu0 0.0
      %1167 = vmatprep.subr.mxu0 0.0
      %1168 = vmatpush1.msra.mxu0 0.0
      %1169 = vmatprep.subr.mxu0 0.0
      %1170 = vmatpush1.msra.mxu0 0.0
      %1171 = vmatprep.subr.mxu0 0.0
      %1172 = vmatpush1.msra.mxu0 0.0
      %1173 = vmatprep.subr.mxu0 0.0
      %1174 = vmatpush1.msra.mxu0 0.0
      %1175 = vmatprep.subr.mxu0 0.0
      %1176 = vmatpush1.msra.mxu0 0.0
      %1177 = vmatprep.subr.mxu0 0.0
      %1178 = vmatpush1.msra.mxu0 0.0
      %1179 = vmatprep.subr.mxu0 0.0
      %1180 = vmatpush1.msra.mxu0 0.0
      %1181 = vmatprep.subr.mxu0 0.0
      %1182 = vmatpush1.msra.mxu0 0.0
      %1183 = vmatprep.subr.mxu0 0.0
      %1184 = vmatpush1.msra.mxu0 0.0
      %1185 = vmatprep.subr.mxu0 0.0
      %1186 = vmatpush1.msra.mxu0 0.0
      %1187 = vmatprep.subr.mxu0 0.0
      %1188 = vmatpush1.msra.mxu0 0.0
      %1189 = vmatprep.subr.mxu0 0.0
      %1190 = vmatpush1.msra.mxu0 0.0
      %1191 = vmatprep.subr.mxu0 0.0
      %1192 = vmatpush1.msra.mxu0 0.0
      %1193 = vmatprep.subr.mxu0 0.0
      %1194 = vmatpush1.msra.mxu0 0.0
      %1195 = vmatprep.subr.mxu0 0.0
      %1196 = vmatpush1.msra.mxu0 0.0
      %1197 = vmatprep.subr.mxu0 0.0
      %1198 = vmatpush1.msra.mxu0 0.0
      %1199 = vmatprep.subr.mxu0 0.0
      %1200 = vmatpush1.msra.mxu0 0.0
      %1201 = vmatprep.subr.mxu0 0.0
      %1202 = vmatpush1.msra.mxu0 0.0
      %1203 = vmatprep.subr.mxu0 0.0
      %1204 = vmatpush1.msra.mxu0 0.0
      %1205 = vmatprep.subr.mxu0 0.0
      %1206 = vmatpush1.msra.mxu0 0.0
      %1207 = vmatprep.subr.mxu0 0.0
      %1208 = vmatpush1.msra.mxu0 0.0
      %1209 = vmatprep.subr.mxu0 0.0
      %1210 = vmatpush1.msra.mxu0 0.0
      %1211 = vmatprep.subr.mxu0 0.0
      %1212 = vmatpush1.msra.mxu0 0.0
      %1213 = vmatprep.subr.mxu0 0.0
      %1214 = vmatpush1.msra.mxu0 0.0
      %1215 = vmatprep.subr.mxu0 0.0
      %1216 = vmatpush1.msra.mxu0 0.0
      %1217 = vmatprep.mubr.f32.mxu0 0.0
      %1218 = vmatmul.mubr.f32.gmra.mrb[0].mxu0 %v1142
      %v1219 = vpop.f32.mrb[0].mxu0
      %v1220 = vadd.f32 0.0, %v1219
      %v1221 = vpop.f32.mrb[0].mxu0
      %v1222 = vadd.f32 0.0, %v1221
      %1223 = vmatprep.mubr.f32.mxu0 0.0
      %1224 = vmatmul.mubr.f32.gmra.mrb[0].mxu0 %v1145
      %v1225 = vpop.f32.mrb[0].mxu0
      %v1226 = vadd.f32 0.0, %v1225
      %v1227 = vpop.f32.mrb[0].mxu0
      %v1228 = vadd.f32 0.0, %v1227
      %1229 = vdwg.mxu0
      %1230 = vmatprep.subr.mxu0 0.0
      %1231 = vmatpush1.msra.mxu0 %v1151
      %1232 = vmatprep.subr.mxu0 0.0
      %1233 = vmatpush1.msra.mxu0 0.0
      %1234 = vmatprep.subr.mxu0 0.0
      %1235 = vmatpush1.msra.mxu0 0.0
      %1236 = vmatprep.subr.mxu0 0.0
      %1237 = vmatpush1.msra.mxu0 0.0
      %1238 = vmatprep.subr.mxu0 0.0
      %1239 = vmatpush1.msra.mxu0 0.0
      %1240 = vmatprep.subr.mxu0 0.0
      %1241 = vmatpush1.msra.mxu0 0.0
      %1242 = vmatprep.subr.mxu0 0.0
      %1243 = vmatpush1.msra.mxu0 0.0
      %1244 = vmatprep.subr.mxu0 0.0
      %1245 = vmatpush1.msra.mxu0 0.0
      %1246 = vmatprep.subr.mxu0 0.0
      %1247 = vmatpush1.msra.mxu0 0.0
      %1248 = vmatprep.subr.mxu0 0.0
      %1249 = vmatpush1.msra.mxu0 0.0
      %1250 = vmatprep.subr.mxu0 0.0
      %1251 = vmatpush1.msra.mxu0 0.0
      %1252 = vmatprep.subr.mxu0 0.0
      %1253 = vmatpush1.msra.mxu0 0.0
      %1254 = vmatprep.subr.mxu0 0.0
      %1255 = vmatpush1.msra.mxu0 0.0
      %1256 = vmatprep.subr.mxu0 0.0
      %1257 = vmatpush1.msra.mxu0 0.0
      %1258 = vmatprep.subr.mxu0 0.0
      %1259 = vmatpush1.msra.mxu0 0.0
      %1260 = vmatprep.subr.mxu0 0.0
      %1261 = vmatpush1.msra.mxu0 0.0
      %1262 = vmatprep.subr.mxu0 0.0
      %1263 = vmatpush1.msra.mxu0 0.0
      %1264 = vmatprep.subr.mxu0 0.0
      %1265 = vmatpush1.msra.mxu0 0.0
      %1266 = vmatprep.subr.mxu0 0.0
      %1267 = vmatpush1.msra.mxu0 0.0
      %1268 = vmatprep.subr.mxu0 0.0
      %1269 = vmatpush1.msra.mxu0 0.0
      %1270 = vmatprep.subr.mxu0 0.0
      %1271 = vmatpush1.msra.mxu0 0.0
      %1272 = vmatprep.subr.mxu0 0.0
      %1273 = vmatpush1.msra.mxu0 0.0
      %1274 = vmatprep.subr.mxu0 0.0
      %1275 = vmatpush1.msra.mxu0 0.0
      %1276 = vmatprep.subr.mxu0 0.0
      %1277 = vmatpush1.msra.mxu0 0.0
      %1278 = vmatprep.subr.mxu0 0.0
      %1279 = vmatpush1.msra.mxu0 0.0
      %1280 = vmatprep.subr.mxu0 0.0
      %1281 = vmatpush1.msra.mxu0 0.0
      %1282 = vmatprep.subr.mxu0 0.0
      %1283 = vmatpush1.msra.mxu0 0.0
      %1284 = vmatprep.subr.mxu0 0.0
      %1285 = vmatpush1.msra.mxu0 0.0
      %1286 = vmatprep.subr.mxu0 0.0
      %1287 = vmatpush1.msra.mxu0 0.0
      %1288 = vmatprep.subr.mxu0 0.0
      %1289 = vmatpush1.msra.mxu0 0.0
      %1290 = vmatprep.subr.mxu0 0.0
      %1291 = vmatpush1.msra.mxu0 0.0
      %1292 = vmatprep.subr.mxu0 0.0
      %1293 = vmatpush1.msra.mxu0 0.0
      %1294 = vmatprep.mubr.f32.mxu0 0.0
      %1295 = vmatmul.mubr.f32.gmra.mrb[0].mxu0 %v1142
      %v1296 = vpop.f32.mrb[0].mxu0
      %v1297 = vadd.f32 0.0, %v1296
      %v1298 = vpop.f32.mrb[0].mxu0
      %1299 = vmatprep.mubr.f32.mxu0 0.0
      %1300 = vmatmul.mubr.f32.gmra.mrb[0].mxu0 %v1145
      %v1301 = vpop.f32.mrb[0].mxu0
      %v1302 = vadd.f32 0.0, %v1301
      %v1303 = vpop.f32.mrb[0].mxu0
      %1304 = vdwg.mxu0
      %v1305 = vadd.f32 %v1118, %v1220
      %v1306 = vadd.f32 %v1119, %v1222
      %v1307 = vadd.f32 %v1120, %v1297
      %v1308 = vadd.f32 %v1121, %v1226
      %v1309 = vadd.f32 %v1122, %v1228
      %v1310 = vadd.f32 %v1123, %v1302
      %v1311 = vld [vmem:[%s192 + $0x4] sm:$0xff]
      %v1312 = vld [vmem:[%s192 + $0xc] sm:$0xf]
      %s1313 = scalar_lea.vmem %s2, 96
      %v1314 = vld [vmem:[%s1313] sm:$0xff]
      %v1315 = vld [vmem:[%s1313 + $0x8] sm:$0xff]
      %v1318 = vcombine.high %v1311, %v1311
      %1319 = vrot.lane.b32.xlu0 %v1311, 111
      %v1320 = vpop.permute.xlu0 %1319
      %1321 = vrot.lane.b32.xlu0 %v1318, 111
      %v1322 = vpop.permute.xlu0 %1321
      %1323 = vrot.lane.b32.xlu0 %v1312, 111
      %v1324 = vpop.permute.xlu0 %1323
      %vm1325 = vcmask 908288
      %v1326 = vsel %vm1325, %v1320, %v1322
      %v1327 = vsel %vm1325, %v1322, %v1324
      %v1329 = vsel %vm222, %v1314, 0
      %v1332 = vsel %vm222, %v1315, 0
      %v1334 = vsel %vm229, %v1326, 0
      %v1336 = vsel %vm229, %v1327, 0
      %v1338 = vsel %vm229, %v1324, 0
      %1340 = vmatprep.subr.mxu0 %v1336
      %1341 = vmatpush1.msra.mxu0 %v1334
      %1342 = vmatprep.subr.mxu0 0.0
      %1343 = vmatpush1.msra.mxu0 0.0
      %1344 = vmatprep.subr.mxu0 0.0
      %1345 = vmatpush1.msra.mxu0 0.0
      %1346 = vmatprep.subr.mxu0 0.0
      %1347 = vmatpush1.msra.mxu0 0.0
      %1348 = vmatprep.subr.mxu0 0.0
      %1349 = vmatpush1.msra.mxu0 0.0
      %1350 = vmatprep.subr.mxu0 0.0
      %1351 = vmatpush1.msra.mxu0 0.0
      %1352 = vmatprep.subr.mxu0 0.0
      %1353 = vmatpush1.msra.mxu0 0.0
      %1354 = vmatprep.subr.mxu0 0.0
      %1355 = vmatpush1.msra.mxu0 0.0
      %1356 = vmatprep.subr.mxu0 0.0
      %1357 = vmatpush1.msra.mxu0 0.0
      %1358 = vmatprep.subr.mxu0 0.0
      %1359 = vmatpush1.msra.mxu0 0.0
      %1360 = vmatprep.subr.mxu0 0.0
      %1361 = vmatpush1.msra.mxu0 0.0
      %1362 = vmatprep.subr.mxu0 0.0
      %1363 = vmatpush1.msra.mxu0 0.0
      %1364 = vmatprep.subr.mxu0 0.0
      %1365 = vmatpush1.msra.mxu0 0.0
      %1366 = vmatprep.subr.mxu0 0.0
      %1367 = vmatpush1.msra.mxu0 0.0
      %1368 = vmatprep.subr.mxu0 0.0
      %1369 = vmatpush1.msra.mxu0 0.0
      %1370 = vmatprep.subr.mxu0 0.0
      %1371 = vmatpush1.msra.mxu0 0.0
      %1372 = vmatprep.subr.mxu0 0.0
      %1373 = vmatpush1.msra.mxu0 0.0
      %1374 = vmatprep.subr.mxu0 0.0
      %1375 = vmatpush1.msra.mxu0 0.0
      %1376 = vmatprep.subr.mxu0 0.0
      %1377 = vmatpush1.msra.mxu0 0.0
      %1378 = vmatprep.subr.mxu0 0.0
      %1379 = vmatpush1.msra.mxu0 0.0
      %1380 = vmatprep.subr.mxu0 0.0
      %1381 = vmatpush1.msra.mxu0 0.0
      %1382 = vmatprep.subr.mxu0 0.0
      %1383 = vmatpush1.msra.mxu0 0.0
      %1384 = vmatprep.subr.mxu0 0.0
      %1385 = vmatpush1.msra.mxu0 0.0
      %1386 = vmatprep.subr.mxu0 0.0
      %1387 = vmatpush1.msra.mxu0 0.0
      %1388 = vmatprep.subr.mxu0 0.0
      %1389 = vmatpush1.msra.mxu0 0.0
      %1390 = vmatprep.subr.mxu0 0.0
      %1391 = vmatpush1.msra.mxu0 0.0
      %1392 = vmatprep.subr.mxu0 0.0
      %1393 = vmatpush1.msra.mxu0 0.0
      %1394 = vmatprep.subr.mxu0 0.0
      %1395 = vmatpush1.msra.mxu0 0.0
      %1396 = vmatprep.subr.mxu0 0.0
      %1397 = vmatpush1.msra.mxu0 0.0
      %1398 = vmatprep.subr.mxu0 0.0
      %1399 = vmatpush1.msra.mxu0 0.0
      %1400 = vmatprep.subr.mxu0 0.0
      %1401 = vmatpush1.msra.mxu0 0.0
      %1402 = vmatprep.subr.mxu0 0.0
      %1403 = vmatpush1.msra.mxu0 0.0
      %1404 = vmatprep.mubr.f32.mxu0 0.0
      %1405 = vmatmul.mubr.f32.gmra.mrb[0].mxu0 %v1329
      %v1406 = vpop.f32.mrb[0].mxu0
      %v1407 = vadd.f32 0.0, %v1406
      %v1408 = vpop.f32.mrb[0].mxu0
      %v1409 = vadd.f32 0.0, %v1408
      %1410 = vmatprep.mubr.f32.mxu0 0.0
      %1411 = vmatmul.mubr.f32.gmra.mrb[0].mxu0 %v1332
      %v1412 = vpop.f32.mrb[0].mxu0
      %v1413 = vadd.f32 0.0, %v1412
      %v1414 = vpop.f32.mrb[0].mxu0
      %v1415 = vadd.f32 0.0, %v1414
      %1416 = vdwg.mxu0
      %1417 = vmatprep.subr.mxu0 0.0
      %1418 = vmatpush1.msra.mxu0 %v1338
      %1419 = vmatprep.subr.mxu0 0.0
      %1420 = vmatpush1.msra.mxu0 0.0
      %1421 = vmatprep.subr.mxu0 0.0
      %1422 = vmatpush1.msra.mxu0 0.0
      %1423 = vmatprep.subr.mxu0 0.0
      %1424 = vmatpush1.msra.mxu0 0.0
      %1425 = vmatprep.subr.mxu0 0.0
      %1426 = vmatpush1.msra.mxu0 0.0
      %1427 = vmatprep.subr.mxu0 0.0
      %1428 = vmatpush1.msra.mxu0 0.0
      %1429 = vmatprep.subr.mxu0 0.0
      %1430 = vmatpush1.msra.mxu0 0.0
      %1431 = vmatprep.subr.mxu0 0.0
      %1432 = vmatpush1.msra.mxu0 0.0
      %1433 = vmatprep.subr.mxu0 0.0
      %1434 = vmatpush1.msra.mxu0 0.0
      %1435 = vmatprep.subr.mxu0 0.0
      %1436 = vmatpush1.msra.mxu0 0.0
      %1437 = vmatprep.subr.mxu0 0.0
      %1438 = vmatpush1.msra.mxu0 0.0
      %1439 = vmatprep.subr.mxu0 0.0
      %1440 = vmatpush1.msra.mxu0 0.0
      %1441 = vmatprep.subr.mxu0 0.0
      %1442 = vmatpush1.msra.mxu0 0.0
      %1443 = vmatprep.subr.mxu0 0.0
      %1444 = vmatpush1.msra.mxu0 0.0
      %1445 = vmatprep.subr.mxu0 0.0
      %1446 = vmatpush1.msra.mxu0 0.0
      %1447 = vmatprep.subr.mxu0 0.0
      %1448 = vmatpush1.msra.mxu0 0.0
      %1449 = vmatprep.subr.mxu0 0.0
      %1450 = vmatpush1.msra.mxu0 0.0
      %1451 = vmatprep.subr.mxu0 0.0
      %1452 = vmatpush1.msra.mxu0 0.0
      %1453 = vmatprep.subr.mxu0 0.0
      %1454 = vmatpush1.msra.mxu0 0.0
      %1455 = vmatprep.subr.mxu0 0.0
      %1456 = vmatpush1.msra.mxu0 0.0
      %1457 = vmatprep.subr.mxu0 0.0
      %1458 = vmatpush1.msra.mxu0 0.0
      %1459 = vmatprep.subr.mxu0 0.0
      %1460 = vmatpush1.msra.mxu0 0.0
      %1461 = vmatprep.subr.mxu0 0.0
      %1462 = vmatpush1.msra.mxu0 0.0
      %1463 = vmatprep.subr.mxu0 0.0
      %1464 = vmatpush1.msra.mxu0 0.0
      %1465 = vmatprep.subr.mxu0 0.0
      %1466 = vmatpush1.msra.mxu0 0.0
      %1467 = vmatprep.subr.mxu0 0.0
      %1468 = vmatpush1.msra.mxu0 0.0
      %1469 = vmatprep.subr.mxu0 0.0
      %1470 = vmatpush1.msra.mxu0 0.0
      %1471 = vmatprep.subr.mxu0 0.0
      %1472 = vmatpush1.msra.mxu0 0.0
      %1473 = vmatprep.subr.mxu0 0.0
      %1474 = vmatpush1.msra.mxu0 0.0
      %1475 = vmatprep.subr.mxu0 0.0
      %1476 = vmatpush1.msra.mxu0 0.0
      %1477 = vmatprep.subr.mxu0 0.0
      %1478 = vmatpush1.msra.mxu0 0.0
      %1479 = vmatprep.subr.mxu0 0.0
      %1480 = vmatpush1.msra.mxu0 0.0
      %1481 = vmatprep.mubr.f32.mxu0 0.0
      %1482 = vmatmul.mubr.f32.gmra.mrb[0].mxu0 %v1329
      %v1483 = vpop.f32.mrb[0].mxu0
      %v1484 = vadd.f32 0.0, %v1483
      %v1485 = vpop.f32.mrb[0].mxu0
      %1486 = vmatprep.mubr.f32.mxu0 0.0
      %1487 = vmatmul.mubr.f32.gmra.mrb[0].mxu0 %v1332
      %v1488 = vpop.f32.mrb[0].mxu0
      %v1489 = vadd.f32 0.0, %v1488
      %v1490 = vpop.f32.mrb[0].mxu0
      %1491 = vdwg.mxu0
      %v1492 = vadd.f32 %v1305, %v1407
      %v1493 = vadd.f32 %v1306, %v1409
      %v1494 = vadd.f32 %v1307, %v1484
      %v1495 = vadd.f32 %v1308, %v1413
      %v1496 = vadd.f32 %v1309, %v1415
      %v1497 = vadd.f32 %v1310, %v1489
      %v1498 = vld [vmem:[%s192 + $0x4] sm:$0xff]
      %v1499 = vld [vmem:[%s192 + $0xc] sm:$0xf]
      %s1500 = scalar_lea.vmem %s2, 112
      %v1501 = vld [vmem:[%s1500] sm:$0xff]
      %v1502 = vld [vmem:[%s1500 + $0x8] sm:$0xff]
      %v1505 = vcombine.high %v1498, %v1498
      %1506 = vrot.lane.b32.xlu0 %v1498, 110
      %v1507 = vpop.permute.xlu0 %1506
      %1508 = vrot.lane.b32.xlu0 %v1505, 110
      %v1509 = vpop.permute.xlu0 %1508
      %1510 = vrot.lane.b32.xlu0 %v1499, 110
      %v1511 = vpop.permute.xlu0 %1510
      %vm1512 = vcmask 900096
      %v1513 = vsel %vm1512, %v1507, %v1509
      %v1514 = vsel %vm1512, %v1509, %v1511
      %v1516 = vsel %vm222, %v1501, 0
      %v1519 = vsel %vm222, %v1502, 0
      %v1521 = vsel %vm229, %v1513, 0
      %v1523 = vsel %vm229, %v1514, 0
      %v1525 = vsel %vm229, %v1511, 0
      %1527 = vmatprep.subr.mxu0 %v1523
      %1528 = vmatpush1.msra.mxu0 %v1521
      %1529 = vmatprep.subr.mxu0 0.0
      %1530 = vmatpush1.msra.mxu0 0.0
      %1531 = vmatprep.subr.mxu0 0.0
      %1532 = vmatpush1.msra.mxu0 0.0
      %1533 = vmatprep.subr.mxu0 0.0
      %1534 = vmatpush1.msra.mxu0 0.0
      %1535 = vmatprep.subr.mxu0 0.0
      %1536 = vmatpush1.msra.mxu0 0.0
      %1537 = vmatprep.subr.mxu0 0.0
      %1538 = vmatpush1.msra.mxu0 0.0
      %1539 = vmatprep.subr.mxu0 0.0
      %1540 = vmatpush1.msra.mxu0 0.0
      %1541 = vmatprep.subr.mxu0 0.0
      %1542 = vmatpush1.msra.mxu0 0.0
      %1543 = vmatprep.subr.mxu0 0.0
      %1544 = vmatpush1.msra.mxu0 0.0
      %1545 = vmatprep.subr.mxu0 0.0
      %1546 = vmatpush1.msra.mxu0 0.0
      %1547 = vmatprep.subr.mxu0 0.0
      %1548 = vmatpush1.msra.mxu0 0.0
      %1549 = vmatprep.subr.mxu0 0.0
      %1550 = vmatpush1.msra.mxu0 0.0
      %1551 = vmatprep.subr.mxu0 0.0
      %1552 = vmatpush1.msra.mxu0 0.0
      %1553 = vmatprep.subr.mxu0 0.0
      %1554 = vmatpush1.msra.mxu0 0.0
      %1555 = vmatprep.subr.mxu0 0.0
      %1556 = vmatpush1.msra.mxu0 0.0
      %1557 = vmatprep.subr.mxu0 0.0
      %1558 = vmatpush1.msra.mxu0 0.0
      %1559 = vmatprep.subr.mxu0 0.0
      %1560 = vmatpush1.msra.mxu0 0.0
      %1561 = vmatprep.subr.mxu0 0.0
      %1562 = vmatpush1.msra.mxu0 0.0
      %1563 = vmatprep.subr.mxu0 0.0
      %1564 = vmatpush1.msra.mxu0 0.0
      %1565 = vmatprep.subr.mxu0 0.0
      %1566 = vmatpush1.msra.mxu0 0.0
      %1567 = vmatprep.subr.mxu0 0.0
      %1568 = vmatpush1.msra.mxu0 0.0
      %1569 = vmatprep.subr.mxu0 0.0
      %1570 = vmatpush1.msra.mxu0 0.0
      %1571 = vmatprep.subr.mxu0 0.0
      %1572 = vmatpush1.msra.mxu0 0.0
      %1573 = vmatprep.subr.mxu0 0.0
      %1574 = vmatpush1.msra.mxu0 0.0
      %1575 = vmatprep.subr.mxu0 0.0
      %1576 = vmatpush1.msra.mxu0 0.0
      %1577 = vmatprep.subr.mxu0 0.0
      %1578 = vmatpush1.msra.mxu0 0.0
      %1579 = vmatprep.subr.mxu0 0.0
      %1580 = vmatpush1.msra.mxu0 0.0
      %1581 = vmatprep.subr.mxu0 0.0
      %1582 = vmatpush1.msra.mxu0 0.0
      %1583 = vmatprep.subr.mxu0 0.0
      %1584 = vmatpush1.msra.mxu0 0.0
      %1585 = vmatprep.subr.mxu0 0.0
      %1586 = vmatpush1.msra.mxu0 0.0
      %1587 = vmatprep.subr.mxu0 0.0
      %1588 = vmatpush1.msra.mxu0 0.0
      %1589 = vmatprep.subr.mxu0 0.0
      %1590 = vmatpush1.msra.mxu0 0.0
      %1591 = vmatprep.mubr.f32.mxu0 0.0
      %1592 = vmatmul.mubr.f32.gmra.mrb[0].mxu0 %v1516
      %v1593 = vpop.f32.mrb[0].mxu0
      %v1594 = vadd.f32 0.0, %v1593
      %v1595 = vpop.f32.mrb[0].mxu0
      %v1596 = vadd.f32 0.0, %v1595
      %1597 = vmatprep.mubr.f32.mxu0 0.0
      %1598 = vmatmul.mubr.f32.gmra.mrb[0].mxu0 %v1519
      %v1599 = vpop.f32.mrb[0].mxu0
      %v1600 = vadd.f32 0.0, %v1599
      %v1601 = vpop.f32.mrb[0].mxu0
      %v1602 = vadd.f32 0.0, %v1601
      %1603 = vdwg.mxu0
      %1604 = vmatprep.subr.mxu0 0.0
      %1605 = vmatpush1.msra.mxu0 %v1525
      %1606 = vmatprep.subr.mxu0 0.0
      %1607 = vmatpush1.msra.mxu0 0.0
      %1608 = vmatprep.subr.mxu0 0.0
      %1609 = vmatpush1.msra.mxu0 0.0
      %1610 = vmatprep.subr.mxu0 0.0
      %1611 = vmatpush1.msra.mxu0 0.0
      %1612 = vmatprep.subr.mxu0 0.0
      %1613 = vmatpush1.msra.mxu0 0.0
      %1614 = vmatprep.subr.mxu0 0.0
      %1615 = vmatpush1.msra.mxu0 0.0
      %1616 = vmatprep.subr.mxu0 0.0
      %1617 = vmatpush1.msra.mxu0 0.0
      %1618 = vmatprep.subr.mxu0 0.0
      %1619 = vmatpush1.msra.mxu0 0.0
      %1620 = vmatprep.subr.mxu0 0.0
      %1621 = vmatpush1.msra.mxu0 0.0
      %1622 = vmatprep.subr.mxu0 0.0
      %1623 = vmatpush1.msra.mxu0 0.0
      %1624 = vmatprep.subr.mxu0 0.0
      %1625 = vmatpush1.msra.mxu0 0.0
      %1626 = vmatprep.subr.mxu0 0.0
      %1627 = vmatpush1.msra.mxu0 0.0
      %1628 = vmatprep.subr.mxu0 0.0
      %1629 = vmatpush1.msra.mxu0 0.0
      %1630 = vmatprep.subr.mxu0 0.0
      %1631 = vmatpush1.msra.mxu0 0.0
      %1632 = vmatprep.subr.mxu0 0.0
      %1633 = vmatpush1.msra.mxu0 0.0
      %1634 = vmatprep.subr.mxu0 0.0
      %1635 = vmatpush1.msra.mxu0 0.0
      %1636 = vmatprep.subr.mxu0 0.0
      %1637 = vmatpush1.msra.mxu0 0.0
      %1638 = vmatprep.subr.mxu0 0.0
      %1639 = vmatpush1.msra.mxu0 0.0
      %1640 = vmatprep.subr.mxu0 0.0
      %1641 = vmatpush1.msra.mxu0 0.0
      %1642 = vmatprep.subr.mxu0 0.0
      %1643 = vmatpush1.msra.mxu0 0.0
      %1644 = vmatprep.subr.mxu0 0.0
      %1645 = vmatpush1.msra.mxu0 0.0
      %1646 = vmatprep.subr.mxu0 0.0
      %1647 = vmatpush1.msra.mxu0 0.0
      %1648 = vmatprep.subr.mxu0 0.0
      %1649 = vmatpush1.msra.mxu0 0.0
      %1650 = vmatprep.subr.mxu0 0.0
      %1651 = vmatpush1.msra.mxu0 0.0
      %1652 = vmatprep.subr.mxu0 0.0
      %1653 = vmatpush1.msra.mxu0 0.0
      %1654 = vmatprep.subr.mxu0 0.0
      %1655 = vmatpush1.msra.mxu0 0.0
      %1656 = vmatprep.subr.mxu0 0.0
      %1657 = vmatpush1.msra.mxu0 0.0
      %1658 = vmatprep.subr.mxu0 0.0
      %1659 = vmatpush1.msra.mxu0 0.0
      %1660 = vmatprep.subr.mxu0 0.0
      %1661 = vmatpush1.msra.mxu0 0.0
      %1662 = vmatprep.subr.mxu0 0.0
      %1663 = vmatpush1.msra.mxu0 0.0
      %1664 = vmatprep.subr.mxu0 0.0
      %1665 = vmatpush1.msra.mxu0 0.0
      %1666 = vmatprep.subr.mxu0 0.0
      %1667 = vmatpush1.msra.mxu0 0.0
      %1668 = vmatprep.mubr.f32.mxu0 0.0
      %1669 = vmatmul.mubr.f32.gmra.mrb[0].mxu0 %v1516
      %v1670 = vpop.f32.mrb[0].mxu0
      %v1671 = vadd.f32 0.0, %v1670
      %v1672 = vpop.f32.mrb[0].mxu0
      %1673 = vmatprep.mubr.f32.mxu0 0.0
      %1674 = vmatmul.mubr.f32.gmra.mrb[0].mxu0 %v1519
      %v1675 = vpop.f32.mrb[0].mxu0
      %v1676 = vadd.f32 0.0, %v1675
      %v1677 = vpop.f32.mrb[0].mxu0
      %1678 = vdwg.mxu0
      %v1679 = vadd.f32 %v1492, %v1594
      %v1680 = vadd.f32 %v1493, %v1596
      %v1681 = vadd.f32 %v1494, %v1671
      %v1682 = vadd.f32 %v1495, %v1600
      %v1683 = vadd.f32 %v1496, %v1602
      %v1684 = vadd.f32 %v1497, %v1676
      %v1685 = vld [vmem:[%s192 + $0x4] sm:$0xff]
      %v1686 = vld [vmem:[%s192 + $0xc] sm:$0xf]
      %s1687 = scalar_lea.vmem %s2, 128
      %v1688 = vld [vmem:[%s1687] sm:$0xff]
      %v1689 = vld [vmem:[%s1687 + $0x8] sm:$0xff]
      %v1692 = vcombine.high %v1685, %v1685
      %1693 = vrot.lane.b32.xlu0 %v1685, 109
      %v1694 = vpop.permute.xlu0 %1693
      %1695 = vrot.lane.b32.xlu0 %v1692, 109
      %v1696 = vpop.permute.xlu0 %1695
      %1697 = vrot.lane.b32.xlu0 %v1686, 109
      %v1698 = vpop.permute.xlu0 %1697
      %vm1699 = vcmask 891904
      %v1700 = vsel %vm1699, %v1694, %v1696
      %v1701 = vsel %vm1699, %v1696, %v1698
      %v1703 = vsel %vm222, %v1688, 0
      %v1706 = vsel %vm222, %v1689, 0
      %v1708 = vsel %vm229, %v1700, 0
      %v1710 = vsel %vm229, %v1701, 0
      %v1712 = vsel %vm229, %v1698, 0
      %1714 = vmatprep.subr.mxu0 %v1710
      %1715 = vmatpush1.msra.mxu0 %v1708
      %1716 = vmatprep.subr.mxu0 0.0
      %1717 = vmatpush1.msra.mxu0 0.0
      %1718 = vmatprep.subr.mxu0 0.0
      %1719 = vmatpush1.msra.mxu0 0.0
      %1720 = vmatprep.subr.mxu0 0.0
      %1721 = vmatpush1.msra.mxu0 0.0
      %1722 = vmatprep.subr.mxu0 0.0
      %1723 = vmatpush1.msra.mxu0 0.0
      %1724 = vmatprep.subr.mxu0 0.0
      %1725 = vmatpush1.msra.mxu0 0.0
      %1726 = vmatprep.subr.mxu0 0.0
      %1727 = vmatpush1.msra.mxu0 0.0
      %1728 = vmatprep.subr.mxu0 0.0
      %1729 = vmatpush1.msra.mxu0 0.0
      %1730 = vmatprep.subr.mxu0 0.0
      %1731 = vmatpush1.msra.mxu0 0.0
      %1732 = vmatprep.subr.mxu0 0.0
      %1733 = vmatpush1.msra.mxu0 0.0
      %1734 = vmatprep.subr.mxu0 0.0
      %1735 = vmatpush1.msra.mxu0 0.0
      %1736 = vmatprep.subr.mxu0 0.0
      %1737 = vmatpush1.msra.mxu0 0.0
      %1738 = vmatprep.subr.mxu0 0.0
      %1739 = vmatpush1.msra.mxu0 0.0
      %1740 = vmatprep.subr.mxu0 0.0
      %1741 = vmatpush1.msra.mxu0 0.0
      %1742 = vmatprep.subr.mxu0 0.0
      %1743 = vmatpush1.msra.mxu0 0.0
      %1744 = vmatprep.subr.mxu0 0.0
      %1745 = vmatpush1.msra.mxu0 0.0
      %1746 = vmatprep.subr.mxu0 0.0
      %1747 = vmatpush1.msra.mxu0 0.0
      %1748 = vmatprep.subr.mxu0 0.0
      %1749 = vmatpush1.msra.mxu0 0.0
      %1750 = vmatprep.subr.mxu0 0.0
      %1751 = vmatpush1.msra.mxu0 0.0
      %1752 = vmatprep.subr.mxu0 0.0
      %1753 = vmatpush1.msra.mxu0 0.0
      %1754 = vmatprep.subr.mxu0 0.0
      %1755 = vmatpush1.msra.mxu0 0.0
      %1756 = vmatprep.subr.mxu0 0.0
      %1757 = vmatpush1.msra.mxu0 0.0
      %1758 = vmatprep.subr.mxu0 0.0
      %1759 = vmatpush1.msra.mxu0 0.0
      %1760 = vmatprep.subr.mxu0 0.0
      %1761 = vmatpush1.msra.mxu0 0.0
      %1762 = vmatprep.subr.mxu0 0.0
      %1763 = vmatpush1.msra.mxu0 0.0
      %1764 = vmatprep.subr.mxu0 0.0
      %1765 = vmatpush1.msra.mxu0 0.0
      %1766 = vmatprep.subr.mxu0 0.0
      %1767 = vmatpush1.msra.mxu0 0.0
      %1768 = vmatprep.subr.mxu0 0.0
      %1769 = vmatpush1.msra.mxu0 0.0
      %1770 = vmatprep.subr.mxu0 0.0
      %1771 = vmatpush1.msra.mxu0 0.0
      %1772 = vmatprep.subr.mxu0 0.0
      %1773 = vmatpush1.msra.mxu0 0.0
      %1774 = vmatprep.subr.mxu0 0.0
      %1775 = vmatpush1.msra.mxu0 0.0
      %1776 = vmatprep.subr.mxu0 0.0
      %1777 = vmatpush1.msra.mxu0 0.0
      %1778 = vmatprep.mubr.f32.mxu0 0.0
      %1779 = vmatmul.mubr.f32.gmra.mrb[0].mxu0 %v1703
      %v1780 = vpop.f32.mrb[0].mxu0
      %v1781 = vadd.f32 0.0, %v1780
      %v1782 = vpop.f32.mrb[0].mxu0
      %v1783 = vadd.f32 0.0, %v1782
      %1784 = vmatprep.mubr.f32.mxu0 0.0
      %1785 = vmatmul.mubr.f32.gmra.mrb[0].mxu0 %v1706
      %v1786 = vpop.f32.mrb[0].mxu0
      %v1787 = vadd.f32 0.0, %v1786
      %v1788 = vpop.f32.mrb[0].mxu0
      %v1789 = vadd.f32 0.0, %v1788
      %1790 = vdwg.mxu0
      %1791 = vmatprep.subr.mxu0 0.0
      %1792 = vmatpush1.msra.mxu0 %v1712
      %1793 = vmatprep.subr.mxu0 0.0
      %1794 = vmatpush1.msra.mxu0 0.0
      %1795 = vmatprep.subr.mxu0 0.0
      %1796 = vmatpush1.msra.mxu0 0.0
      %1797 = vmatprep.subr.mxu0 0.0
      %1798 = vmatpush1.msra.mxu0 0.0
      %1799 = vmatprep.subr.mxu0 0.0
      %1800 = vmatpush1.msra.mxu0 0.0
      %1801 = vmatprep.subr.mxu0 0.0
      %1802 = vmatpush1.msra.mxu0 0.0
      %1803 = vmatprep.subr.mxu0 0.0
      %1804 = vmatpush1.msra.mxu0 0.0
      %1805 = vmatprep.subr.mxu0 0.0
      %1806 = vmatpush1.msra.mxu0 0.0
      %1807 = vmatprep.subr.mxu0 0.0
      %1808 = vmatpush1.msra.mxu0 0.0
      %1809 = vmatprep.subr.mxu0 0.0
      %1810 = vmatpush1.msra.mxu0 0.0
      %1811 = vmatprep.subr.mxu0 0.0
      %1812 = vmatpush1.msra.mxu0 0.0
      %1813 = vmatprep.subr.mxu0 0.0
      %1814 = vmatpush1.msra.mxu0 0.0
      %1815 = vmatprep.subr.mxu0 0.0
      %1816 = vmatpush1.msra.mxu0 0.0
      %1817 = vmatprep.subr.mxu0 0.0
      %1818 = vmatpush1.msra.mxu0 0.0
      %1819 = vmatprep.subr.mxu0 0.0
      %1820 = vmatpush1.msra.mxu0 0.0
      %1821 = vmatprep.subr.mxu0 0.0
      %1822 = vmatpush1.msra.mxu0 0.0
      %1823 = vmatprep.subr.mxu0 0.0
      %1824 = vmatpush1.msra.mxu0 0.0
      %1825 = vmatprep.subr.mxu0 0.0
      %1826 = vmatpush1.msra.mxu0 0.0
      %1827 = vmatprep.subr.mxu0 0.0
      %1828 = vmatpush1.msra.mxu0 0.0
      %1829 = vmatprep.subr.mxu0 0.0
      %1830 = vmatpush1.msra.mxu0 0.0
      %1831 = vmatprep.subr.mxu0 0.0
      %1832 = vmatpush1.msra.mxu0 0.0
      %1833 = vmatprep.subr.mxu0 0.0
      %1834 = vmatpush1.msra.mxu0 0.0
      %1835 = vmatprep.subr.mxu0 0.0
      %1836 = vmatpush1.msra.mxu0 0.0
      %1837 = vmatprep.subr.mxu0 0.0
      %1838 = vmatpush1.msra.mxu0 0.0
      %1839 = vmatprep.subr.mxu0 0.0
      %1840 = vmatpush1.msra.mxu0 0.0
      %1841 = vmatprep.subr.mxu0 0.0
      %1842 = vmatpush1.msra.mxu0 0.0
      %1843 = vmatprep.subr.mxu0 0.0
      %1844 = vmatpush1.msra.mxu0 0.0
      %1845 = vmatprep.subr.mxu0 0.0
      %1846 = vmatpush1.msra.mxu0 0.0
      %1847 = vmatprep.subr.mxu0 0.0
      %1848 = vmatpush1.msra.mxu0 0.0
      %1849 = vmatprep.subr.mxu0 0.0
      %1850 = vmatpush1.msra.mxu0 0.0
      %1851 = vmatprep.subr.mxu0 0.0
      %1852 = vmatpush1.msra.mxu0 0.0
      %1853 = vmatprep.subr.mxu0 0.0
      %1854 = vmatpush1.msra.mxu0 0.0
      %1855 = vmatprep.mubr.f32.mxu0 0.0
      %1856 = vmatmul.mubr.f32.gmra.mrb[0].mxu0 %v1703
      %v1857 = vpop.f32.mrb[0].mxu0
      %v1858 = vadd.f32 0.0, %v1857
      %v1859 = vpop.f32.mrb[0].mxu0
      %1860 = vmatprep.mubr.f32.mxu0 0.0
      %1861 = vmatmul.mubr.f32.gmra.mrb[0].mxu0 %v1706
      %v1862 = vpop.f32.mrb[0].mxu0
      %v1863 = vadd.f32 0.0, %v1862
      %v1864 = vpop.f32.mrb[0].mxu0
      %1865 = vdwg.mxu0
      %v1866 = vadd.f32 %v1679, %v1781
      %v1867 = vadd.f32 %v1680, %v1783
      %v1868 = vadd.f32 %v1681, %v1858
      %v1869 = vadd.f32 %v1682, %v1787
      %v1870 = vadd.f32 %v1683, %v1789
      %v1871 = vadd.f32 %v1684, %v1863
      %v1872 = vld [vmem:[%s3] sm:$0xff]
      %v1873 = vld [vmem:[%s3 + $0x8] sm:$0xff]
      %1875 = vset.pattern.permute.xlu0 0
      %1876 = vperm.xlu0 %1875, %v1872
      %v1877 = vpop.permute.xlu0 %1876
      %1880 = vset.pattern.permute.xlu0 0
      %1881 = vperm.xlu0 %1880, %v1873
      %v1882 = vpop.permute.xlu0 %1881
      %v1884 = vadd.f32 %v1866, %v1877
      %v1885 = vadd.f32 %v1867, %v1877
      %v1886 = vadd.f32 %v1868, %v1877
      %v1887 = vadd.f32 %v1869, %v1882
      %v1888 = vadd.f32 %v1870, %v1882
      %v1889 = vadd.f32 %v1871, %v1882
      %v1891 = vlaneseq
      %v1892 = vshrl.u32 %v1891, 7
      %v1893 = vsub.s32 0, %v1892
      %v1894 = vrot.slane %v198, %v1893
      %v1895 = vlaneseq
      %v1896 = vshrl.u32 %v1895, 7
      %v1897 = vsub.s32 1, %v1896
      %v1898 = vrot.slane %v198, %v1897
      %v1899 = vlaneseq
      %v1900 = vshrl.u32 %v1899, 7
      %v1901 = vsub.s32 2, %v1900
      %v1902 = vrot.slane %v198, %v1901
      %v1906 = vmul.f32 %v1884, %v1894
      %v1907 = vmul.f32 %v1885, %v1898
      %v1908 = vmul.f32 %v1886, %v1902
      %v1909 = vmul.f32 %v1887, %v1894
      %v1910 = vmul.f32 %v1888, %v1898
      %v1911 = vmul.f32 %v1889, %v1902
      %1912 = vst [vmem:[%s197] sm:$0xff] %v1906
      %1913 = vst [vmem:[%s197 + $0x8] sm:$0xff] %v1907
      %vm1914 = vcmask 556032
      %1915 = vst.msk [vmem:[%s197 + $0x10] sm:$0xff] %vm1914, %v1908
      %1916 = vst [vmem:[%s197 + $0x18] sm:$0xff] %v1909
      %1917 = vst [vmem:[%s197 + $0x20] sm:$0xff] %v1910
      %1918 = vst.msk [vmem:[%s197 + $0x28] sm:$0xff] %vm1914, %v1911
      %p1919 = scmp.lt.s32.totalorder %s15, 1
      %s1920 = scalar_select %p1919, %s15, 1
      %s1921 = smul.addr %s1920, 6
      %s1922 = smul.addr %s1921, 8
      %s1923 = scalar_lea.vmem %s4, %s1922
      // Predicated region
      $region37: #{cnn_downsampling_forward.3} parent=35 // pred_check
        %p1924 = pneg %p122
      $region38: #{cnn_downsampling_forward.3} parent=35 // pred_check_branch
        %1926 = sbr.rel (%p1924) target = $region40
      $region39: #{cnn_downsampling_forward.3} parent=35 // pred_region
        _
      $region40: #{cnn_downsampling_forward.3} parent=35 // pred_fallthru
        _
    $region36: #{cnn_downsampling_forward.3} parent=5 // pred_fallthru
      _
    %p1927 = scmp.le.s32.totalorder 2, %s10
    // Predicated region
    $region41: #{cnn_downsampling_forward.3} parent=5 // pred_check
      %p1928 = pneg %p1927
    $region42: #{cnn_downsampling_forward.3} parent=5 // pred_check_branch
      %1930 = sbr.rel (%p1928) target = $region44
    $region43: #{cnn_downsampling_forward.3} parent=5 // pred_region
      %s1931 = ssub.s32 %s10, 2
      // Predicated region
      $region45: #{cnn_downsampling_forward.3} parent=43 // pred_check
        %p1932 = pneg %p128
      $region46: #{cnn_downsampling_forward.3} parent=43 // pred_check_branch
        %1934 = sbr.rel (%p1932) target = $region48
      $region47: #{cnn_downsampling_forward.3} parent=43 // pred_region
        %p1935 = scmp.lt.s32.totalorder %s16, 1
        %s1936 = scalar_select %p1935, %s16, 1
        %s1937 = smul.addr %s1936, 6
        %s1938 = smul.addr %s1937, 8
        %s1939 = scalar_lea.vmem %s4, %s1938
      $region48: #{cnn_downsampling_forward.3} parent=43 // pred_fallthru
        _
    $region44: #{cnn_downsampling_forward.3} parent=5 // pred_fallthru
      _
  $region6: #{cnn_downsampling_forward.3} parent=0 // loop_footer
    %s14 = sadd.s32 1, %s10
  $region7: #{cnn_downsampling_forward.3} parent=0 // loop_footer_branch
    %9 = sbr.rel target = $region3
  $region8: #{cnn_downsampling_forward.3} parent=0 // loop_exit
    _

// kernel: cnn_downsampling_forward.4
$region0: #{cnn_downsampling_forward.4}
  #allocation0 [shape = 'u32[]', space=smem, size = 0x4, offset = 0x4, fixed_abs, tag = 'smem constant byte address 0x4 - core index']
  #allocation1 [shape = 'u32[144,128]{1,0:T(1,128)}', space=vmem, size = 0x12000, scoped, tag = 'internal scratch']
  #allocation2 [shape = 'f32[16,356]{1,0:T(8,128)}', space=vmem, size = 0x6000, scoped, tag = 'scratch operand']
  %s0 = inlined_call_operand.vmem [shape: f32[2,16,356], index: 0, kind: input, shape index: {}]
  %s1 = inlined_call_operand.vmem [shape: f32[1,100], index: 1, kind: input, shape index: {}]
  %s2 = inlined_call_operand.vmem [shape: f32[9,16,16], index: 2, kind: input, shape index: {}]
  %s3 = inlined_call_operand.vmem [shape: f32[16,1], index: 3, kind: input, shape index: {}]
  %s4 = inlined_call_operand.vmem [shape: f32[9,16,16], index: 4, kind: input, shape index: {}]
  %s5 = inlined_call_operand.vmem [shape: f32[16,1], index: 5, kind: input, shape index: {}]
  %s6 = inlined_call_operand.vmem [shape: f32[2,16,100], index: 6, kind: output, shape index: {}]
  %s7 = sld [smem:[#allocation0]]
  $region57: #{cnn_downsampling_forward.4} parent=0
    _
  %s9 = ssub.s32 1, %s7
  %s10 = scalar_select 0, %s9, %s7
  loop: start=0, step=1, limit=4
  $region2: #{cnn_downsampling_forward.4} parent=0 // loop_pre_header
    _
  $region3: #{cnn_downsampling_forward.4} parent=0 // loop_header
    %s12 = sphi 0, %s16
    %p13 = scmp.ge.s32.totalorder %s12, 4
    %s22 = sphi 0, %s24
    %s25 = sphi 0, %s22
    %s26 = sphi 0, %s25
    %s42 = sphi 0, %s26
    %s46 = sphi 0, %s46
    %s48 = sphi 0, %s46
    %s49 = sphi 0, %s48
    %s63 = sphi 0, %s49
    %s67 = sphi 0, %s67
    %s69 = sphi 0, %s67
    %s70 = sphi 0, %s69
    %s84 = sphi 0, %s70
    %s88 = sphi 0, %s88
    %s90 = sphi 0, %s88
    %s91 = sphi 0, %s90
    %s105 = sphi 0, %s91
    %s109 = sphi 0, %s109
    %s111 = sphi 0, %s109
    %s112 = sphi 0, %s111
    %s126 = sphi 0, %s112
    %s130 = sphi 0, %s130
    %s132 = sphi 0, %s130
    %s133 = sphi 0, %s132
    %s147 = sphi 0, %s133
    %s153 = sphi 0, %s155
    %s156 = sphi 0, %s153
    %s157 = sphi 0, %s156
    %s173 = sphi 0, %s157
  $region4: #{cnn_downsampling_forward.4} parent=0 // loop_header_branch
    %15 = sbr.rel (%p13) target = $region8
  $region5: #{cnn_downsampling_forward.4} parent=0 // loop_body
    %s17 = ssub.s32 %s12, 1
    %s18 = ssub.s32 %s12, 2
    %s19 = sadd.s32 %s12, 1
    %s20 = ssub.s32 %s12, %s19
    %p21 = scmp.eq.s32.totalorder %s20, 0
    %s23 = sadd.s32 %s22, 1
    %s24 = scalar_select %p21, %s22, %s23
    %p27 = pneg %p21
    %p28 = scmp.eq.s32.totalorder %s12, 1
    %p29 = por %p27, %p28
    %p30 = scmp.ne.s32.totalorder %s22, %s25
    %p31 = scmp.eq.s32.totalorder %s12, 0
    %p32 = por %p30, %p31
    %p33 = scmp.ne.s32.totalorder %s22, %s25
    %p34 = scmp.eq.s32.totalorder %s17, 1
    %p35 = por %p33, %p34
    %p36 = scmp.ne.s32.totalorder %s25, %s26
    %p37 = scmp.eq.s32.totalorder %s17, 0
    %p38 = por %p36, %p37
    %p39 = scmp.ne.s32.totalorder %s25, %s26
    %p40 = scmp.eq.s32.totalorder %s18, 1
    %p41 = por %p39, %p40
    %p43 = scmp.ne.s32.totalorder %s26, %s42
    %p44 = scmp.eq.s32.totalorder %s18, 0
    %p45 = por %p43, %p44
    %s47 = sadd.s32 %s46, 1
    %p50 = scmp.eq.s32.totalorder %s12, 1
    %p51 = scmp.ne.s32.totalorder %s46, %s48
    %p52 = scmp.eq.s32.totalorder %s12, 0
    %p53 = por %p51, %p52
    %p54 = scmp.ne.s32.totalorder %s46, %s48
    %p55 = scmp.eq.s32.totalorder %s17, 1
    %p56 = por %p54, %p55
    %p57 = scmp.ne.s32.totalorder %s48, %s49
    %p58 = scmp.eq.s32.totalorder %s17, 0
    %p59 = por %p57, %p58
    %p60 = scmp.ne.s32.totalorder %s48, %s49
    %p61 = scmp.eq.s32.totalorder %s18, 1
    %p62 = por %p60, %p61
    %p64 = scmp.ne.s32.totalorder %s49, %s63
    %p65 = scmp.eq.s32.totalorder %s18, 0
    %p66 = por %p64, %p65
    %s68 = sadd.s32 %s67, 1
    %p71 = scmp.eq.s32.totalorder %s12, 1
    %p72 = scmp.ne.s32.totalorder %s67, %s69
    %p73 = scmp.eq.s32.totalorder %s12, 0
    %p74 = por %p72, %p73
    %p75 = scmp.ne.s32.totalorder %s67, %s69
    %p76 = scmp.eq.s32.totalorder %s17, 1
    %p77 = por %p75, %p76
    %p78 = scmp.ne.s32.totalorder %s69, %s70
    %p79 = scmp.eq.s32.totalorder %s17, 0
    %p80 = por %p78, %p79
    %p81 = scmp.ne.s32.totalorder %s69, %s70
    %p82 = scmp.eq.s32.totalorder %s18, 1
    %p83 = por %p81, %p82
    %p85 = scmp.ne.s32.totalorder %s70, %s84
    %p86 = scmp.eq.s32.totalorder %s18, 0
    %p87 = por %p85, %p86
    %s89 = sadd.s32 %s88, 1
    %p92 = scmp.eq.s32.totalorder %s12, 1
    %p93 = scmp.ne.s32.totalorder %s88, %s90
    %p94 = scmp.eq.s32.totalorder %s12, 0
    %p95 = por %p93, %p94
    %p96 = scmp.ne.s32.totalorder %s88, %s90
    %p97 = scmp.eq.s32.totalorder %s17, 1
    %p98 = por %p96, %p97
    %p99 = scmp.ne.s32.totalorder %s90, %s91
    %p100 = scmp.eq.s32.totalorder %s17, 0
    %p101 = por %p99, %p100
    %p102 = scmp.ne.s32.totalorder %s90, %s91
    %p103 = scmp.eq.s32.totalorder %s18, 1
    %p104 = por %p102, %p103
    %p106 = scmp.ne.s32.totalorder %s91, %s105
    %p107 = scmp.eq.s32.totalorder %s18, 0
    %p108 = por %p106, %p107
    %s110 = sadd.s32 %s109, 1
    %p113 = scmp.eq.s32.totalorder %s12, 1
    %p114 = scmp.ne.s32.totalorder %s109, %s111
    %p115 = scmp.eq.s32.totalorder %s12, 0
    %p116 = por %p114, %p115
    %p117 = scmp.ne.s32.totalorder %s109, %s111
    %p118 = scmp.eq.s32.totalorder %s17, 1
    %p119 = por %p117, %p118
    %p120 = scmp.ne.s32.totalorder %s111, %s112
    %p121 = scmp.eq.s32.totalorder %s17, 0
    %p122 = por %p120, %p121
    %p123 = scmp.ne.s32.totalorder %s111, %s112
    %p124 = scmp.eq.s32.totalorder %s18, 1
    %p125 = por %p123, %p124
    %p127 = scmp.ne.s32.totalorder %s112, %s126
    %p128 = scmp.eq.s32.totalorder %s18, 0
    %p129 = por %p127, %p128
    %s131 = sadd.s32 %s130, 1
    %p134 = scmp.eq.s32.totalorder %s12, 1
    %p135 = scmp.ne.s32.totalorder %s130, %s132
    %p136 = scmp.eq.s32.totalorder %s12, 0
    %p137 = por %p135, %p136
    %p138 = scmp.ne.s32.totalorder %s130, %s132
    %p139 = scmp.eq.s32.totalorder %s17, 1
    %p140 = por %p138, %p139
    %p141 = scmp.ne.s32.totalorder %s132, %s133
    %p142 = scmp.eq.s32.totalorder %s17, 0
    %p143 = por %p141, %p142
    %p144 = scmp.ne.s32.totalorder %s132, %s133
    %p145 = scmp.eq.s32.totalorder %s18, 1
    %p146 = por %p144, %p145
    %p148 = scmp.ne.s32.totalorder %s133, %s147
    %p149 = scmp.eq.s32.totalorder %s18, 0
    %p150 = por %p148, %p149
    %s151 = ssub.s32 %s12, %s19
    %p152 = scmp.eq.s32.totalorder %s151, 0
    %s154 = sadd.s32 %s153, 1
    %s155 = scalar_select %p152, %s153, %s154
    %p158 = pneg %p152
    %p159 = scmp.eq.s32.totalorder %s12, 1
    %p160 = por %p158, %p159
    %p161 = scmp.ne.s32.totalorder %s153, %s156
    %p162 = scmp.eq.s32.totalorder %s12, 0
    %p163 = por %p161, %p162
    %p164 = scmp.ne.s32.totalorder %s153, %s156
    %p165 = scmp.eq.s32.totalorder %s17, 1
    %p166 = por %p164, %p165
    %p167 = scmp.ne.s32.totalorder %s156, %s157
    %p168 = scmp.eq.s32.totalorder %s17, 0
    %p169 = por %p167, %p168
    %p170 = scmp.ne.s32.totalorder %s156, %s157
    %p171 = scmp.eq.s32.totalorder %s18, 1
    %p172 = por %p170, %p171
    %p174 = scmp.ne.s32.totalorder %s157, %s173
    %p175 = scmp.eq.s32.totalorder %s18, 0
    %p176 = por %p174, %p175
    %p177 = scmp.le.s32.totalorder 1, %s12
    %p178 = scmp.lt.s32.totalorder %s12, 3
    %p179 = pnand %p177, %p178
    %p180 = pneg %p179
    // Predicated region
    $region9: #{cnn_downsampling_forward.4} parent=5 // pred_check
      _
    $region10: #{cnn_downsampling_forward.4} parent=5 // pred_check_branch
      %182 = sbr.rel (%p179) target = $region12
    $region11: #{cnn_downsampling_forward.4} parent=5 // pred_region
      %s183 = ssub.s32 %s12, 1
      // Predicated region
      $region13: #{cnn_downsampling_forward.4} parent=11 // pred_check
        %p184 = pneg %p59
      $region14: #{cnn_downsampling_forward.4} parent=11 // pred_check_branch
        %186 = sbr.rel (%p184) target = $region16
      $region15: #{cnn_downsampling_forward.4} parent=11 // pred_region
        _
      $region16: #{cnn_downsampling_forward.4} parent=11 // pred_fallthru
        _
      // Predicated region
      $region17: #{cnn_downsampling_forward.4} parent=11 // pred_check
        %p187 = pneg %p80
      $region18: #{cnn_downsampling_forward.4} parent=11 // pred_check_branch
        %189 = sbr.rel (%p187) target = $region20
      $region19: #{cnn_downsampling_forward.4} parent=11 // pred_region
        _
      $region20: #{cnn_downsampling_forward.4} parent=11 // pred_fallthru
        _
      // Predicated region
      $region21: #{cnn_downsampling_forward.4} parent=11 // pred_check
        %p190 = pneg %p101
      $region22: #{cnn_downsampling_forward.4} parent=11 // pred_check_branch
        %192 = sbr.rel (%p190) target = $region24
      $region23: #{cnn_downsampling_forward.4} parent=11 // pred_region
        _
      $region24: #{cnn_downsampling_forward.4} parent=11 // pred_fallthru
        _
      // Predicated region
      $region25: #{cnn_downsampling_forward.4} parent=11 // pred_check
        %p193 = pneg %p122
      $region26: #{cnn_downsampling_forward.4} parent=11 // pred_check_branch
        %195 = sbr.rel (%p193) target = $region28
      $region27: #{cnn_downsampling_forward.4} parent=11 // pred_region
        _
      $region28: #{cnn_downsampling_forward.4} parent=11 // pred_fallthru
        _
      // Predicated region
      $region29: #{cnn_downsampling_forward.4} parent=11 // pred_check
        %p196 = pneg %p143
      $region30: #{cnn_downsampling_forward.4} parent=11 // pred_check_branch
        %198 = sbr.rel (%p196) target = $region32
      $region31: #{cnn_downsampling_forward.4} parent=11 // pred_region
        _
      $region32: #{cnn_downsampling_forward.4} parent=11 // pred_fallthru
        _
    $region12: #{cnn_downsampling_forward.4} parent=5 // pred_fallthru
      _
    %p199 = scmp.lt.s32.totalorder %s12, 2
    // Predicated region
    $region33: #{cnn_downsampling_forward.4} parent=5 // pred_check
      %p200 = pneg %p199
    $region34: #{cnn_downsampling_forward.4} parent=5 // pred_check_branch
      %202 = sbr.rel (%p200) target = $region36
    $region35: #{cnn_downsampling_forward.4} parent=5 // pred_region
      // Predicated region
      $region37: #{cnn_downsampling_forward.4} parent=35 // pred_check
        %p203 = pneg %p32
      $region38: #{cnn_downsampling_forward.4} parent=35 // pred_check_branch
        %205 = sbr.rel (%p203) target = $region40
      $region39: #{cnn_downsampling_forward.4} parent=35 // pred_region
        %p206 = scmp.lt.s32.totalorder %s12, 1
        %s207 = scalar_select %p206, %s12, 1
        %s208 = smul.addr %s207, 6
        %s209 = smul.addr %s208, 8
        %s210 = scalar_lea.vmem %s0, %s209
      $region40: #{cnn_downsampling_forward.4} parent=35 // pred_fallthru
        _
    $region36: #{cnn_downsampling_forward.4} parent=5 // pred_fallthru
      _
    %p211 = scmp.le.s32.totalorder 1, %s12
    %p212 = scmp.lt.s32.totalorder %s12, 3
    %p213 = pnand %p211, %p212
    %p214 = pneg %p213
    // Predicated region
    $region41: #{cnn_downsampling_forward.4} parent=5 // pred_check
      _
    $region42: #{cnn_downsampling_forward.4} parent=5 // pred_check_branch
      %216 = sbr.rel (%p213) target = $region44
    $region43: #{cnn_downsampling_forward.4} parent=5 // pred_region
      %s217 = ssub.s32 %s12, 1
      %p218 = scmp.lt.s32.totalorder %s17, 1
      %s219 = scalar_select %p218, %s17, 1
      %s220 = smul.addr %s219, 6
      %s221 = smul.addr %s220, 8
      %s222 = scalar_lea.vmem %s0, %s221
      %p223 = pneg %p38
      %p224 = pneg %p35
      %p225 = pneg %p59
      %p226 = pneg %p56
      %p227 = pneg %p80
      %p228 = pneg %p77
      %p229 = pneg %p101
      %p230 = pneg %p98
      %p231 = pneg %p122
      %p232 = pneg %p119
      %p233 = pneg %p143
      %p234 = pneg %p140
      %p235 = pneg %p169
      %p236 = pneg %p166
      %p237 = scmp.lt.s32.totalorder %s17, 1
      %s238 = scalar_select %p237, %s17, 1
      %s239 = smul.addr %s238, 2
      %s240 = smul.addr %s239, 8
      %s241 = scalar_lea.vmem %s6, %s240
      %p242 = scmp.lt.s32.totalorder %s17, 1
      %s243 = scalar_select %p242, %s17, 1
      %s244 = smul.addr %s243, 6
      %s245 = smul.addr %s244, 8
      %s246 = scalar_lea.vmem %s0, %s245
      %p247 = scmp.lt.s32.totalorder %s17, 1
      %s248 = scalar_select %p247, %s17, 1
      %s249 = smul.addr %s248, 2
      %s250 = smul.addr %s249, 8
      %s251 = scalar_lea.vmem %s6, %s250
      %v252 = vld [vmem:[%s1] sm:$0x1]
      %253 = vst [vmem:[#allocation2] sm:$0xff] 0.0
      %254 = vst [vmem:[#allocation2 + $0x8] sm:$0xff] 0.0
      %vm255 = vcmask 818176
      %256 = vst.msk [vmem:[#allocation2 + $0x10] sm:$0xff] %vm255, 0.0
      %257 = vst [vmem:[#allocation2 + $0x18] sm:$0xff] 0.0
      %258 = vst [vmem:[#allocation2 + $0x20] sm:$0xff] 0.0
      %259 = vst.msk [vmem:[#allocation2 + $0x28] sm:$0xff] %vm255, 0.0
      %v260 = vld [vmem:[%s246] sm:$0xff]
      %v261 = vld [vmem:[%s246 + $0x8] sm:$0xff]
      %v262 = vld [vmem:[%s246 + $0x18] sm:$0xff]
      %v263 = vld [vmem:[%s246 + $0x20] sm:$0xff]
      %v264 = vld [vmem:[%s2] sm:$0xff]
      %v265 = vld [vmem:[%s2 + $0x8] sm:$0xff]
      %s266 = scalar_lea.vmem %s2, 16
      %v267 = vld [vmem:[%s266] sm:$0xff]
      %v268 = vld [vmem:[%s266 + $0x8] sm:$0xff]
      %273 = vrot.lane.b32.xlu0 %v260, 10
      %v274 = vpop.permute.xlu0 %273
      %275 = vrot.lane.b32.xlu0 %v261, 10
      %v276 = vpop.permute.xlu0 %275
      %277 = vrot.lane.b32.xlu0 %v262, 10
      %v278 = vpop.permute.xlu0 %277
      %279 = vrot.lane.b32.xlu0 %v263, 10
      %v280 = vpop.permute.xlu0 %279
      %vm281 = vcmask 80896
      %v282 = vsel %vm281, %v274, %v276
      %v283 = vsel %vm281, %v278, %v280
      %vm286 = vcmask 130048
      %v288 = vsel %vm286, %v267, 0
      %v291 = vsel %vm286, %v268, 0
      %293 = vmatprep.subr.mxu0 0.0
      %294 = vmatpush1.msra.mxu0 %v282
      %295 = vmatprep.subr.mxu0 0.0
      %296 = vmatpush1.msra.mxu0 %v283
      %297 = vmatprep.subr.mxu0 0.0
      %298 = vmatpush1.msra.mxu0 0.0
      %299 = vmatprep.subr.mxu0 0.0
      %300 = vmatpush1.msra.mxu0 0.0
      %301 = vmatprep.subr.mxu0 0.0
      %302 = vmatpush1.msra.mxu0 0.0
      %303 = vmatprep.subr.mxu0 0.0
      %304 = vmatpush1.msra.mxu0 0.0
      %305 = vmatprep.subr.mxu0 0.0
      %306 = vmatpush1.msra.mxu0 0.0
      %307 = vmatprep.subr.mxu0 0.0
      %308 = vmatpush1.msra.mxu0 0.0
      %309 = vmatprep.subr.mxu0 0.0
      %310 = vmatpush1.msra.mxu0 0.0
      %311 = vmatprep.subr.mxu0 0.0
      %312 = vmatpush1.msra.mxu0 0.0
      %313 = vmatprep.subr.mxu0 0.0
      %314 = vmatpush1.msra.mxu0 0.0
      %315 = vmatprep.subr.mxu0 0.0
      %316 = vmatpush1.msra.mxu0 0.0
      %317 = vmatprep.subr.mxu0 0.0
      %318 = vmatpush1.msra.mxu0 0.0
      %319 = vmatprep.subr.mxu0 0.0
      %320 = vmatpush1.msra.mxu0 0.0
      %321 = vmatprep.subr.mxu0 0.0
      %322 = vmatpush1.msra.mxu0 0.0
      %323 = vmatprep.subr.mxu0 0.0
      %324 = vmatpush1.msra.mxu0 0.0
      %325 = vmatprep.subr.mxu0 0.0
      %326 = vmatpush1.msra.mxu0 0.0
      %327 = vmatprep.subr.mxu0 0.0
      %328 = vmatpush1.msra.mxu0 0.0
      %329 = vmatprep.subr.mxu0 0.0
      %330 = vmatpush1.msra.mxu0 0.0
      %331 = vmatprep.subr.mxu0 0.0
      %332 = vmatpush1.msra.mxu0 0.0
      %333 = vmatprep.subr.mxu0 0.0
      %334 = vmatpush1.msra.mxu0 0.0
      %335 = vmatprep.subr.mxu0 0.0
      %336 = vmatpush1.msra.mxu0 0.0
      %337 = vmatprep.subr.mxu0 0.0
      %338 = vmatpush1.msra.mxu0 0.0
      %339 = vmatprep.subr.mxu0 0.0
      %340 = vmatpush1.msra.mxu0 0.0
      %341 = vmatprep.subr.mxu0 0.0
      %342 = vmatpush1.msra.mxu0 0.0
      %343 = vmatprep.subr.mxu0 0.0
      %344 = vmatpush1.msra.mxu0 0.0
      %345 = vmatprep.subr.mxu0 0.0
      %346 = vmatpush1.msra.mxu0 0.0
      %347 = vmatprep.subr.mxu0 0.0
      %348 = vmatpush1.msra.mxu0 0.0
      %349 = vmatprep.subr.mxu0 0.0
      %350 = vmatpush1.msra.mxu0 0.0
      %351 = vmatprep.subr.mxu0 0.0
      %352 = vmatpush1.msra.mxu0 0.0
      %353 = vmatprep.subr.mxu0 0.0
      %354 = vmatpush1.msra.mxu0 0.0
      %355 = vmatprep.subr.mxu0 0.0
      %356 = vmatpush1.msra.mxu0 0.0
      %357 = vmatprep.mubr.f32.mxu0 0.0
      %358 = vmatmul.mubr.f32.gmra.mrb[0].mxu0 %v288
      %v359 = vpop.f32.mrb[0].mxu0
      %v360 = vadd.f32 0.0, %v359
      %v361 = vpop.f32.mrb[0].mxu0
      %362 = vmatprep.mubr.f32.mxu0 0.0
      %363 = vmatmul.mubr.f32.gmra.mrb[0].mxu0 %v291
      %v364 = vpop.f32.mrb[0].mxu0
      %v365 = vadd.f32 0.0, %v364
      %v366 = vpop.f32.mrb[0].mxu0
      %367 = vdwg.mxu0
      %368 = vrot.lane.b32.xlu0 %v260, 11
      %v369 = vpop.permute.xlu0 %368
      %370 = vrot.lane.b32.xlu0 %v261, 11
      %v371 = vpop.permute.xlu0 %370
      %372 = vrot.lane.b32.xlu0 %v262, 11
      %v373 = vpop.permute.xlu0 %372
      %374 = vrot.lane.b32.xlu0 %v263, 11
      %v375 = vpop.permute.xlu0 %374
      %vm376 = vcmask 89088
      %v377 = vsel %vm376, %v369, %v371
      %v378 = vsel %vm376, %v373, %v375
      %v382 = vsel %vm286, %v264, 0
      %v385 = vsel %vm286, %v265, 0
      %387 = vmatprep.subr.mxu0 0.0
      %388 = vmatpush1.msra.mxu0 %v377
      %389 = vmatprep.subr.mxu0 0.0
      %390 = vmatpush1.msra.mxu0 %v378
      %391 = vmatprep.subr.mxu0 0.0
      %392 = vmatpush1.msra.mxu0 0.0
      %393 = vmatprep.subr.mxu0 0.0
      %394 = vmatpush1.msra.mxu0 0.0
      %395 = vmatprep.subr.mxu0 0.0
      %396 = vmatpush1.msra.mxu0 0.0
      %397 = vmatprep.subr.mxu0 0.0
      %398 = vmatpush1.msra.mxu0 0.0
      %399 = vmatprep.subr.mxu0 0.0
      %400 = vmatpush1.msra.mxu0 0.0
      %401 = vmatprep.subr.mxu0 0.0
      %402 = vmatpush1.msra.mxu0 0.0
      %403 = vmatprep.subr.mxu0 0.0
      %404 = vmatpush1.msra.mxu0 0.0
      %405 = vmatprep.subr.mxu0 0.0
      %406 = vmatpush1.msra.mxu0 0.0
      %407 = vmatprep.subr.mxu0 0.0
      %408 = vmatpush1.msra.mxu0 0.0
      %409 = vmatprep.subr.mxu0 0.0
      %410 = vmatpush1.msra.mxu0 0.0
      %411 = vmatprep.subr.mxu0 0.0
      %412 = vmatpush1.msra.mxu0 0.0
      %413 = vmatprep.subr.mxu0 0.0
      %414 = vmatpush1.msra.mxu0 0.0
      %415 = vmatprep.subr.mxu0 0.0
      %416 = vmatpush1.msra.mxu0 0.0
      %417 = vmatprep.subr.mxu0 0.0
      %418 = vmatpush1.msra.mxu0 0.0
      %419 = vmatprep.subr.mxu0 0.0
      %420 = vmatpush1.msra.mxu0 0.0
      %421 = vmatprep.subr.mxu0 0.0
      %422 = vmatpush1.msra.mxu0 0.0
      %423 = vmatprep.subr.mxu0 0.0
      %424 = vmatpush1.msra.mxu0 0.0
      %425 = vmatprep.subr.mxu0 0.0
      %426 = vmatpush1.msra.mxu0 0.0
      %427 = vmatprep.subr.mxu0 0.0
      %428 = vmatpush1.msra.mxu0 0.0
      %429 = vmatprep.subr.mxu0 0.0
      %430 = vmatpush1.msra.mxu0 0.0
      %431 = vmatprep.subr.mxu0 0.0
      %432 = vmatpush1.msra.mxu0 0.0
      %433 = vmatprep.subr.mxu0 0.0
      %434 = vmatpush1.msra.mxu0 0.0
      %435 = vmatprep.subr.mxu0 0.0
      %436 = vmatpush1.msra.mxu0 0.0
      %437 = vmatprep.subr.mxu0 0.0
      %438 = vmatpush1.msra.mxu0 0.0
      %439 = vmatprep.subr.mxu0 0.0
      %440 = vmatpush1.msra.mxu0 0.0
      %441 = vmatprep.subr.mxu0 0.0
      %442 = vmatpush1.msra.mxu0 0.0
      %443 = vmatprep.subr.mxu0 0.0
      %444 = vmatpush1.msra.mxu0 0.0
      %445 = vmatprep.subr.mxu0 0.0
      %446 = vmatpush1.msra.mxu0 0.0
      %447 = vmatprep.subr.mxu0 0.0
      %448 = vmatpush1.msra.mxu0 0.0
      %449 = vmatprep.subr.mxu0 0.0
      %450 = vmatpush1.msra.mxu0 0.0
      %451 = vmatprep.mubr.f32.mxu0 0.0
      %452 = vmatmul.mubr.f32.gmra.mrb[0].mxu0 %v382
      %v453 = vpop.f32.mrb[0].mxu0
      %v454 = vadd.f32 %v360, %v453
      %v455 = vpop.f32.mrb[0].mxu0
      %456 = vmatprep.mubr.f32.mxu0 0.0
      %457 = vmatmul.mubr.f32.gmra.mrb[0].mxu0 %v385
      %v458 = vpop.f32.mrb[0].mxu0
      %v459 = vadd.f32 %v365, %v458
      %v460 = vpop.f32.mrb[0].mxu0
      %461 = vdwg.mxu0
      %s462 = scalar_lea.vmem %s2, 32
      %v463 = vld [vmem:[%s462] sm:$0xff]
      %v464 = vld [vmem:[%s462 + $0x8] sm:$0xff]
      %465 = vrot.lane.b32.xlu0 %v260, 9
      %v466 = vpop.permute.xlu0 %465
      %467 = vrot.lane.b32.xlu0 %v261, 9
      %v468 = vpop.permute.xlu0 %467
      %469 = vrot.lane.b32.xlu0 %v262, 9
      %v470 = vpop.permute.xlu0 %469
      %471 = vrot.lane.b32.xlu0 %v263, 9
      %v472 = vpop.permute.xlu0 %471
      %vm473 = vcmask 72704
      %v474 = vsel %vm473, %v466, %v468
      %v475 = vsel %vm473, %v470, %v472
      %v479 = vsel %vm286, %v463, 0
      %v482 = vsel %vm286, %v464, 0
      %484 = vmatprep.subr.mxu0 0.0
      %485 = vmatpush1.msra.mxu0 %v474
      %486 = vmatprep.subr.mxu0 0.0
      %487 = vmatpush1.msra.mxu0 %v475
      %488 = vmatprep.subr.mxu0 0.0
      %489 = vmatpush1.msra.mxu0 0.0
      %490 = vmatprep.subr.mxu0 0.0
      %491 = vmatpush1.msra.mxu0 0.0
      %492 = vmatprep.subr.mxu0 0.0
      %493 = vmatpush1.msra.mxu0 0.0
      %494 = vmatprep.subr.mxu0 0.0
      %495 = vmatpush1.msra.mxu0 0.0
      %496 = vmatprep.subr.mxu0 0.0
      %497 = vmatpush1.msra.mxu0 0.0
      %498 = vmatprep.subr.mxu0 0.0
      %499 = vmatpush1.msra.mxu0 0.0
      %500 = vmatprep.subr.mxu0 0.0
      %501 = vmatpush1.msra.mxu0 0.0
      %502 = vmatprep.subr.mxu0 0.0
      %503 = vmatpush1.msra.mxu0 0.0
      %504 = vmatprep.subr.mxu0 0.0
      %505 = vmatpush1.msra.mxu0 0.0
      %506 = vmatprep.subr.mxu0 0.0
      %507 = vmatpush1.msra.mxu0 0.0
      %508 = vmatprep.subr.mxu0 0.0
      %509 = vmatpush1.msra.mxu0 0.0
      %510 = vmatprep.subr.mxu0 0.0
      %511 = vmatpush1.msra.mxu0 0.0
      %512 = vmatprep.subr.mxu0 0.0
      %513 = vmatpush1.msra.mxu0 0.0
      %514 = vmatprep.subr.mxu0 0.0
      %515 = vmatpush1.msra.mxu0 0.0
      %516 = vmatprep.subr.mxu0 0.0
      %517 = vmatpush1.msra.mxu0 0.0
      %518 = vmatprep.subr.mxu0 0.0
      %519 = vmatpush1.msra.mxu0 0.0
      %520 = vmatprep.subr.mxu0 0.0
      %521 = vmatpush1.msra.mxu0 0.0
      %522 = vmatprep.subr.mxu0 0.0
      %523 = vmatpush1.msra.mxu0 0.0
      %524 = vmatprep.subr.mxu0 0.0
      %525 = vmatpush1.msra.mxu0 0.0
      %526 = vmatprep.subr.mxu0 0.0
      %527 = vmatpush1.msra.mxu0 0.0
      %528 = vmatprep.subr.mxu0 0.0
      %529 = vmatpush1.msra.mxu0 0.0
      %530 = vmatprep.subr.mxu0 0.0
      %531 = vmatpush1.msra.mxu0 0.0
      %532 = vmatprep.subr.mxu0 0.0
      %533 = vmatpush1.msra.mxu0 0.0
      %534 = vmatprep.subr.mxu0 0.0
      %535 = vmatpush1.msra.mxu0 0.0
      %536 = vmatprep.subr.mxu0 0.0
      %537 = vmatpush1.msra.mxu0 0.0
      %538 = vmatprep.subr.mxu0 0.0
      %539 = vmatpush1.msra.mxu0 0.0
      %540 = vmatprep.subr.mxu0 0.0
      %541 = vmatpush1.msra.mxu0 0.0
      %542 = vmatprep.subr.mxu0 0.0
      %543 = vmatpush1.msra.mxu0 0.0
      %544 = vmatprep.subr.mxu0 0.0
      %545 = vmatpush1.msra.mxu0 0.0
      %546 = vmatprep.subr.mxu0 0.0
      %547 = vmatpush1.msra.mxu0 0.0
      %548 = vmatprep.mubr.f32.mxu0 0.0
      %549 = vmatmul.mubr.f32.gmra.mrb[0].mxu0 %v479
      %v550 = vpop.f32.mrb[0].mxu0
      %v551 = vadd.f32 0.0, %v550
      %v552 = vpop.f32.mrb[0].mxu0
      %553 = vmatprep.mubr.f32.mxu0 0.0
      %554 = vmatmul.mubr.f32.gmra.mrb[0].mxu0 %v482
      %v555 = vpop.f32.mrb[0].mxu0
      %v556 = vadd.f32 0.0, %v555
      %v557 = vpop.f32.mrb[0].mxu0
      %558 = vdwg.mxu0
      %v559 = vadd.f32 %v454, %v551
      %v560 = vadd.f32 %v459, %v556
      %s561 = scalar_lea.vmem %s2, 48
      %v562 = vld [vmem:[%s561] sm:$0xff]
      %v563 = vld [vmem:[%s561 + $0x8] sm:$0xff]
      %564 = vrot.lane.b32.xlu0 %v260, 1
      %v565 = vpop.permute.xlu0 %564
      %566 = vrot.lane.b32.xlu0 %v261, 1
      %v567 = vpop.permute.xlu0 %566
      %568 = vrot.lane.b32.xlu0 %v262, 1
      %v569 = vpop.permute.xlu0 %568
      %570 = vrot.lane.b32.xlu0 %v263, 1
      %v571 = vpop.permute.xlu0 %570
      %vm572 = vcmask 7168
      %v573 = vsel %vm572, %v565, %v567
      %v574 = vsel %vm572, %v569, %v571
      %v578 = vsel %vm286, %v562, 0
      %v581 = vsel %vm286, %v563, 0
      %583 = vmatprep.subr.mxu0 0.0
      %584 = vmatpush1.msra.mxu0 %v573
      %585 = vmatprep.subr.mxu0 0.0
      %586 = vmatpush1.msra.mxu0 %v574
      %587 = vmatprep.subr.mxu0 0.0
      %588 = vmatpush1.msra.mxu0 0.0
      %589 = vmatprep.subr.mxu0 0.0
      %590 = vmatpush1.msra.mxu0 0.0
      %591 = vmatprep.subr.mxu0 0.0
      %592 = vmatpush1.msra.mxu0 0.0
      %593 = vmatprep.subr.mxu0 0.0
      %594 = vmatpush1.msra.mxu0 0.0
      %595 = vmatprep.subr.mxu0 0.0
      %596 = vmatpush1.msra.mxu0 0.0
      %597 = vmatprep.subr.mxu0 0.0
      %598 = vmatpush1.msra.mxu0 0.0
      %599 = vmatprep.subr.mxu0 0.0
      %600 = vmatpush1.msra.mxu0 0.0
      %601 = vmatprep.subr.mxu0 0.0
      %602 = vmatpush1.msra.mxu0 0.0
      %603 = vmatprep.subr.mxu0 0.0
      %604 = vmatpush1.msra.mxu0 0.0
      %605 = vmatprep.subr.mxu0 0.0
      %606 = vmatpush1.msra.mxu0 0.0
      %607 = vmatprep.subr.mxu0 0.0
      %608 = vmatpush1.msra.mxu0 0.0
      %609 = vmatprep.subr.mxu0 0.0
      %610 = vmatpush1.msra.mxu0 0.0
      %611 = vmatprep.subr.mxu0 0.0
      %612 = vmatpush1.msra.mxu0 0.0
      %613 = vmatprep.subr.mxu0 0.0
      %614 = vmatpush1.msra.mxu0 0.0
      %615 = vmatprep.subr.mxu0 0.0
      %616 = vmatpush1.msra.mxu0 0.0
      %617 = vmatprep.subr.mxu0 0.0
      %618 = vmatpush1.msra.mxu0 0.0
      %619 = vmatprep.subr.mxu0 0.0
      %620 = vmatpush1.msra.mxu0 0.0
      %621 = vmatprep.subr.mxu0 0.0
      %622 = vmatpush1.msra.mxu0 0.0
      %623 = vmatprep.subr.mxu0 0.0
      %624 = vmatpush1.msra.mxu0 0.0
      %625 = vmatprep.subr.mxu0 0.0
      %626 = vmatpush1.msra.mxu0 0.0
      %627 = vmatprep.subr.mxu0 0.0
      %628 = vmatpush1.msra.mxu0 0.0
      %629 = vmatprep.subr.mxu0 0.0
      %630 = vmatpush1.msra.mxu0 0.0
      %631 = vmatprep.subr.mxu0 0.0
      %632 = vmatpush1.msra.mxu0 0.0
      %633 = vmatprep.subr.mxu0 0.0
      %634 = vmatpush1.msra.mxu0 0.0
      %635 = vmatprep.subr.mxu0 0.0
      %636 = vmatpush1.msra.mxu0 0.0
      %637 = vmatprep.subr.mxu0 0.0
      %638 = vmatpush1.msra.mxu0 0.0
      %639 = vmatprep.subr.mxu0 0.0
      %640 = vmatpush1.msra.mxu0 0.0
      %641 = vmatprep.subr.mxu0 0.0
      %642 = vmatpush1.msra.mxu0 0.0
      %643 = vmatprep.subr.mxu0 0.0
      %644 = vmatpush1.msra.mxu0 0.0
      %645 = vmatprep.subr.mxu0 0.0
      %646 = vmatpush1.msra.mxu0 0.0
      %647 = vmatprep.mubr.f32.mxu0 0.0
      %648 = vmatmul.mubr.f32.gmra.mrb[0].mxu0 %v578
      %v649 = vpop.f32.mrb[0].mxu0
      %v650 = vadd.f32 0.0, %v649
      %v651 = vpop.f32.mrb[0].mxu0
      %652 = vmatprep.mubr.f32.mxu0 0.0
      %653 = vmatmul.mubr.f32.gmra.mrb[0].mxu0 %v581
      %v654 = vpop.f32.mrb[0].mxu0
      %v655 = vadd.f32 0.0, %v654
      %v656 = vpop.f32.mrb[0].mxu0
      %657 = vdwg.mxu0
      %v658 = vadd.f32 %v559, %v650
      %v659 = vadd.f32 %v560, %v655
      %s660 = scalar_lea.vmem %s2, 64
      %v661 = vld [vmem:[%s660] sm:$0xff]
      %v662 = vld [vmem:[%s660 + $0x8] sm:$0xff]
      %v664 = vsel %vm286, %v661, 0
      %v667 = vsel %vm286, %v662, 0
      %669 = vmatprep.subr.mxu0 0.0
      %670 = vmatpush1.msra.mxu0 %v261
      %671 = vmatprep.subr.mxu0 0.0
      %672 = vmatpush1.msra.mxu0 %v263
      %673 = vmatprep.subr.mxu0 0.0
      %674 = vmatpush1.msra.mxu0 0.0
      %675 = vmatprep.subr.mxu0 0.0
      %676 = vmatpush1.msra.mxu0 0.0
      %677 = vmatprep.subr.mxu0 0.0
      %678 = vmatpush1.msra.mxu0 0.0
      %679 = vmatprep.subr.mxu0 0.0
      %680 = vmatpush1.msra.mxu0 0.0
      %681 = vmatprep.subr.mxu0 0.0
      %682 = vmatpush1.msra.mxu0 0.0
      %683 = vmatprep.subr.mxu0 0.0
      %684 = vmatpush1.msra.mxu0 0.0
      %685 = vmatprep.subr.mxu0 0.0
      %686 = vmatpush1.msra.mxu0 0.0
      %687 = vmatprep.subr.mxu0 0.0
      %688 = vmatpush1.msra.mxu0 0.0
      %689 = vmatprep.subr.mxu0 0.0
      %690 = vmatpush1.msra.mxu0 0.0
      %691 = vmatprep.subr.mxu0 0.0
      %692 = vmatpush1.msra.mxu0 0.0
      %693 = vmatprep.subr.mxu0 0.0
      %694 = vmatpush1.msra.mxu0 0.0
      %695 = vmatprep.subr.mxu0 0.0
      %696 = vmatpush1.msra.mxu0 0.0
      %697 = vmatprep.subr.mxu0 0.0
      %698 = vmatpush1.msra.mxu0 0.0
      %699 = vmatprep.subr.mxu0 0.0
      %700 = vmatpush1.msra.mxu0 0.0
      %701 = vmatprep.subr.mxu0 0.0
      %702 = vmatpush1.msra.mxu0 0.0
      %703 = vmatprep.subr.mxu0 0.0
      %704 = vmatpush1.msra.mxu0 0.0
      %705 = vmatprep.subr.mxu0 0.0
      %706 = vmatpush1.msra.mxu0 0.0
      %707 = vmatprep.subr.mxu0 0.0
      %708 = vmatpush1.msra.mxu0 0.0
      %709 = vmatprep.subr.mxu0 0.0
      %710 = vmatpush1.msra.mxu0 0.0
      %711 = vmatprep.subr.mxu0 0.0
      %712 = vmatpush1.msra.mxu0 0.0
      %713 = vmatprep.subr.mxu0 0.0
      %714 = vmatpush1.msra.mxu0 0.0
      %715 = vmatprep.subr.mxu0 0.0
      %716 = vmatpush1.msra.mxu0 0.0
      %717 = vmatprep.subr.mxu0 0.0
      %718 = vmatpush1.msra.mxu0 0.0
      %719 = vmatprep.subr.mxu0 0.0
      %720 = vmatpush1.msra.mxu0 0.0
      %721 = vmatprep.subr.mxu0 0.0
      %722 = vmatpush1.msra.mxu0 0.0
      %723 = vmatprep.subr.mxu0 0.0
      %724 = vmatpush1.msra.mxu0 0.0
      %725 = vmatprep.subr.mxu0 0.0
      %726 = vmatpush1.msra.mxu0 0.0
      %727 = vmatprep.subr.mxu0 0.0
      %728 = vmatpush1.msra.mxu0 0.0
      %729 = vmatprep.subr.mxu0 0.0
      %730 = vmatpush1.msra.mxu0 0.0
      %731 = vmatprep.subr.mxu0 0.0
      %732 = vmatpush1.msra.mxu0 0.0
      %733 = vmatprep.mubr.f32.mxu0 0.0
      %734 = vmatmul.mubr.f32.gmra.mrb[0].mxu0 %v664
      %v735 = vpop.f32.mrb[0].mxu0
      %v736 = vadd.f32 0.0, %v735
      %v737 = vpop.f32.mrb[0].mxu0
      %738 = vmatprep.mubr.f32.mxu0 0.0
      %739 = vmatmul.mubr.f32.gmra.mrb[0].mxu0 %v667
      %v740 = vpop.f32.mrb[0].mxu0
      %v741 = vadd.f32 0.0, %v740
      %v742 = vpop.f32.mrb[0].mxu0
      %743 = vdwg.mxu0
      %v744 = vadd.f32 %v658, %v736
      %v745 = vadd.f32 %v659, %v741
      %s746 = scalar_lea.vmem %s2, 80
      %v747 = vld [vmem:[%s746] sm:$0xff]
      %v748 = vld [vmem:[%s746 + $0x8] sm:$0xff]
      %749 = vrot.lane.b32.xlu0 %v261, 127
      %v750 = vpop.permute.xlu0 %749
      %751 = vrot.lane.b32.xlu0 %v263, 127
      %v752 = vpop.permute.xlu0 %751
      %v756 = vsel %vm286, %v747, 0
      %v759 = vsel %vm286, %v748, 0
      %761 = vmatprep.subr.mxu0 0.0
      %762 = vmatpush1.msra.mxu0 %v750
      %763 = vmatprep.subr.mxu0 0.0
      %764 = vmatpush1.msra.mxu0 %v752
      %765 = vmatprep.subr.mxu0 0.0
      %766 = vmatpush1.msra.mxu0 0.0
      %767 = vmatprep.subr.mxu0 0.0
      %768 = vmatpush1.msra.mxu0 0.0
      %769 = vmatprep.subr.mxu0 0.0
      %770 = vmatpush1.msra.mxu0 0.0
      %771 = vmatprep.subr.mxu0 0.0
      %772 = vmatpush1.msra.mxu0 0.0
      %773 = vmatprep.subr.mxu0 0.0
      %774 = vmatpush1.msra.mxu0 0.0
      %775 = vmatprep.subr.mxu0 0.0
      %776 = vmatpush1.msra.mxu0 0.0
      %777 = vmatprep.subr.mxu0 0.0
      %778 = vmatpush1.msra.mxu0 0.0
      %779 = vmatprep.subr.mxu0 0.0
      %780 = vmatpush1.msra.mxu0 0.0
      %781 = vmatprep.subr.mxu0 0.0
      %782 = vmatpush1.msra.mxu0 0.0
      %783 = vmatprep.subr.mxu0 0.0
      %784 = vmatpush1.msra.mxu0 0.0
      %785 = vmatprep.subr.mxu0 0.0
      %786 = vmatpush1.msra.mxu0 0.0
      %787 = vmatprep.subr.mxu0 0.0
      %788 = vmatpush1.msra.mxu0 0.0
      %789 = vmatprep.subr.mxu0 0.0
      %790 = vmatpush1.msra.mxu0 0.0
      %791 = vmatprep.subr.mxu0 0.0
      %792 = vmatpush1.msra.mxu0 0.0
      %793 = vmatprep.subr.mxu0 0.0
      %794 = vmatpush1.msra.mxu0 0.0
      %795 = vmatprep.subr.mxu0 0.0
      %796 = vmatpush1.msra.mxu0 0.0
      %797 = vmatprep.subr.mxu0 0.0
      %798 = vmatpush1.msra.mxu0 0.0
      %799 = vmatprep.subr.mxu0 0.0
      %800 = vmatpush1.msra.mxu0 0.0
      %801 = vmatprep.subr.mxu0 0.0
      %802 = vmatpush1.msra.mxu0 0.0
      %803 = vmatprep.subr.mxu0 0.0
      %804 = vmatpush1.msra.mxu0 0.0
      %805 = vmatprep.subr.mxu0 0.0
      %806 = vmatpush1.msra.mxu0 0.0
      %807 = vmatprep.subr.mxu0 0.0
      %808 = vmatpush1.msra.mxu0 0.0
      %809 = vmatprep.subr.mxu0 0.0
      %810 = vmatpush1.msra.mxu0 0.0
      %811 = vmatprep.subr.mxu0 0.0
      %812 = vmatpush1.msra.mxu0 0.0
      %813 = vmatprep.subr.mxu0 0.0
      %814 = vmatpush1.msra.mxu0 0.0
      %815 = vmatprep.subr.mxu0 0.0
      %816 = vmatpush1.msra.mxu0 0.0
      %817 = vmatprep.subr.mxu0 0.0
      %818 = vmatpush1.msra.mxu0 0.0
      %819 = vmatprep.subr.mxu0 0.0
      %820 = vmatpush1.msra.mxu0 0.0
      %821 = vmatprep.subr.mxu0 0.0
      %822 = vmatpush1.msra.mxu0 0.0
      %823 = vmatprep.subr.mxu0 0.0
      %824 = vmatpush1.msra.mxu0 0.0
      %825 = vmatprep.mubr.f32.mxu0 0.0
      %826 = vmatmul.mubr.f32.gmra.mrb[0].mxu0 %v756
      %v827 = vpop.f32.mrb[0].mxu0
      %v828 = vadd.f32 0.0, %v827
      %v829 = vpop.f32.mrb[0].mxu0
      %830 = vmatprep.mubr.f32.mxu0 0.0
      %831 = vmatmul.mubr.f32.gmra.mrb[0].mxu0 %v759
      %v832 = vpop.f32.mrb[0].mxu0
      %v833 = vadd.f32 0.0, %v832
      %v834 = vpop.f32.mrb[0].mxu0
      %835 = vdwg.mxu0
      %v836 = vadd.f32 %v744, %v828
      %v837 = vadd.f32 %v745, %v833
      %s838 = scalar_lea.vmem %s2, 96
      %v839 = vld [vmem:[%s838] sm:$0xff]
      %v840 = vld [vmem:[%s838 + $0x8] sm:$0xff]
      %841 = vrot.lane.b32.xlu0 %v261, 119
      %v842 = vpop.permute.xlu0 %841
      %843 = vrot.lane.b32.xlu0 %v263, 119
      %v844 = vpop.permute.xlu0 %843
      %v848 = vsel %vm286, %v839, 0
      %v851 = vsel %vm286, %v840, 0
      %853 = vmatprep.subr.mxu0 0.0
      %854 = vmatpush1.msra.mxu0 %v842
      %855 = vmatprep.subr.mxu0 0.0
      %856 = vmatpush1.msra.mxu0 %v844
      %857 = vmatprep.subr.mxu0 0.0
      %858 = vmatpush1.msra.mxu0 0.0
      %859 = vmatprep.subr.mxu0 0.0
      %860 = vmatpush1.msra.mxu0 0.0
      %861 = vmatprep.subr.mxu0 0.0
      %862 = vmatpush1.msra.mxu0 0.0
      %863 = vmatprep.subr.mxu0 0.0
      %864 = vmatpush1.msra.mxu0 0.0
      %865 = vmatprep.subr.mxu0 0.0
      %866 = vmatpush1.msra.mxu0 0.0
      %867 = vmatprep.subr.mxu0 0.0
      %868 = vmatpush1.msra.mxu0 0.0
      %869 = vmatprep.subr.mxu0 0.0
      %870 = vmatpush1.msra.mxu0 0.0
      %871 = vmatprep.subr.mxu0 0.0
      %872 = vmatpush1.msra.mxu0 0.0
      %873 = vmatprep.subr.mxu0 0.0
      %874 = vmatpush1.msra.mxu0 0.0
      %875 = vmatprep.subr.mxu0 0.0
      %876 = vmatpush1.msra.mxu0 0.0
      %877 = vmatprep.subr.mxu0 0.0
      %878 = vmatpush1.msra.mxu0 0.0
      %879 = vmatprep.subr.mxu0 0.0
      %880 = vmatpush1.msra.mxu0 0.0
      %881 = vmatprep.subr.mxu0 0.0
      %882 = vmatpush1.msra.mxu0 0.0
      %883 = vmatprep.subr.mxu0 0.0
      %884 = vmatpush1.msra.mxu0 0.0
      %885 = vmatprep.subr.mxu0 0.0
      %886 = vmatpush1.msra.mxu0 0.0
      %887 = vmatprep.subr.mxu0 0.0
      %888 = vmatpush1.msra.mxu0 0.0
      %889 = vmatprep.subr.mxu0 0.0
      %890 = vmatpush1.msra.mxu0 0.0
      %891 = vmatprep.subr.mxu0 0.0
      %892 = vmatpush1.msra.mxu0 0.0
      %893 = vmatprep.subr.mxu0 0.0
      %894 = vmatpush1.msra.mxu0 0.0
      %895 = vmatprep.subr.mxu0 0.0
      %896 = vmatpush1.msra.mxu0 0.0
      %897 = vmatprep.subr.mxu0 0.0
      %898 = vmatpush1.msra.mxu0 0.0
      %899 = vmatprep.subr.mxu0 0.0
      %900 = vmatpush1.msra.mxu0 0.0
      %901 = vmatprep.subr.mxu0 0.0
      %902 = vmatpush1.msra.mxu0 0.0
      %903 = vmatprep.subr.mxu0 0.0
      %904 = vmatpush1.msra.mxu0 0.0
      %905 = vmatprep.subr.mxu0 0.0
      %906 = vmatpush1.msra.mxu0 0.0
      %907 = vmatprep.subr.mxu0 0.0
      %908 = vmatpush1.msra.mxu0 0.0
      %909 = vmatprep.subr.mxu0 0.0
      %910 = vmatpush1.msra.mxu0 0.0
      %911 = vmatprep.subr.mxu0 0.0
      %912 = vmatpush1.msra.mxu0 0.0
      %913 = vmatprep.subr.mxu0 0.0
      %914 = vmatpush1.msra.mxu0 0.0
      %915 = vmatprep.subr.mxu0 0.0
      %916 = vmatpush1.msra.mxu0 0.0
      %917 = vmatprep.mubr.f32.mxu0 0.0
      %918 = vmatmul.mubr.f32.gmra.mrb[0].mxu0 %v848
      %v919 = vpop.f32.mrb[0].mxu0
      %v920 = vadd.f32 0.0, %v919
      %v921 = vpop.f32.mrb[0].mxu0
      %922 = vmatprep.mubr.f32.mxu0 0.0
      %923 = vmatmul.mubr.f32.gmra.mrb[0].mxu0 %v851
      %v924 = vpop.f32.mrb[0].mxu0
      %v925 = vadd.f32 0.0, %v924
      %v926 = vpop.f32.mrb[0].mxu0
      %927 = vdwg.mxu0
      %v928 = vadd.f32 %v836, %v920
      %v929 = vadd.f32 %v837, %v925
      %s930 = scalar_lea.vmem %s2, 112
      %v931 = vld [vmem:[%s930] sm:$0xff]
      %v932 = vld [vmem:[%s930 + $0x8] sm:$0xff]
      %933 = vrot.lane.b32.xlu0 %v261, 118
      %v934 = vpop.permute.xlu0 %933
      %935 = vrot.lane.b32.xlu0 %v263, 118
      %v936 = vpop.permute.xlu0 %935
      %v940 = vsel %vm286, %v931, 0
      %v943 = vsel %vm286, %v932, 0
      %945 = vmatprep.subr.mxu0 0.0
      %946 = vmatpush1.msra.mxu0 %v934
      %947 = vmatprep.subr.mxu0 0.0
      %948 = vmatpush1.msra.mxu0 %v936
      %949 = vmatprep.subr.mxu0 0.0
      %950 = vmatpush1.msra.mxu0 0.0
      %951 = vmatprep.subr.mxu0 0.0
      %952 = vmatpush1.msra.mxu0 0.0
      %953 = vmatprep.subr.mxu0 0.0
      %954 = vmatpush1.msra.mxu0 0.0
      %955 = vmatprep.subr.mxu0 0.0
      %956 = vmatpush1.msra.mxu0 0.0
      %957 = vmatprep.subr.mxu0 0.0
      %958 = vmatpush1.msra.mxu0 0.0
      %959 = vmatprep.subr.mxu0 0.0
      %960 = vmatpush1.msra.mxu0 0.0
      %961 = vmatprep.subr.mxu0 0.0
      %962 = vmatpush1.msra.mxu0 0.0
      %963 = vmatprep.subr.mxu0 0.0
      %964 = vmatpush1.msra.mxu0 0.0
      %965 = vmatprep.subr.mxu0 0.0
      %966 = vmatpush1.msra.mxu0 0.0
      %967 = vmatprep.subr.mxu0 0.0
      %968 = vmatpush1.msra.mxu0 0.0
      %969 = vmatprep.subr.mxu0 0.0
      %970 = vmatpush1.msra.mxu0 0.0
      %971 = vmatprep.subr.mxu0 0.0
      %972 = vmatpush1.msra.mxu0 0.0
      %973 = vmatprep.subr.mxu0 0.0
      %974 = vmatpush1.msra.mxu0 0.0
      %975 = vmatprep.subr.mxu0 0.0
      %976 = vmatpush1.msra.mxu0 0.0
      %977 = vmatprep.subr.mxu0 0.0
      %978 = vmatpush1.msra.mxu0 0.0
      %979 = vmatprep.subr.mxu0 0.0
      %980 = vmatpush1.msra.mxu0 0.0
      %981 = vmatprep.subr.mxu0 0.0
      %982 = vmatpush1.msra.mxu0 0.0
      %983 = vmatprep.subr.mxu0 0.0
      %984 = vmatpush1.msra.mxu0 0.0
      %985 = vmatprep.subr.mxu0 0.0
      %986 = vmatpush1.msra.mxu0 0.0
      %987 = vmatprep.subr.mxu0 0.0
      %988 = vmatpush1.msra.mxu0 0.0
      %989 = vmatprep.subr.mxu0 0.0
      %990 = vmatpush1.msra.mxu0 0.0
      %991 = vmatprep.subr.mxu0 0.0
      %992 = vmatpush1.msra.mxu0 0.0
      %993 = vmatprep.subr.mxu0 0.0
      %994 = vmatpush1.msra.mxu0 0.0
      %995 = vmatprep.subr.mxu0 0.0
      %996 = vmatpush1.msra.mxu0 0.0
      %997 = vmatprep.subr.mxu0 0.0
      %998 = vmatpush1.msra.mxu0 0.0
      %999 = vmatprep.subr.mxu0 0.0
      %1000 = vmatpush1.msra.mxu0 0.0
      %1001 = vmatprep.subr.mxu0 0.0
      %1002 = vmatpush1.msra.mxu0 0.0
      %1003 = vmatprep.subr.mxu0 0.0
      %1004 = vmatpush1.msra.mxu0 0.0
      %1005 = vmatprep.subr.mxu0 0.0
      %1006 = vmatpush1.msra.mxu0 0.0
      %1007 = vmatprep.subr.mxu0 0.0
      %1008 = vmatpush1.msra.mxu0 0.0
      %1009 = vmatprep.mubr.f32.mxu0 0.0
      %1010 = vmatmul.mubr.f32.gmra.mrb[0].mxu0 %v940
      %v1011 = vpop.f32.mrb[0].mxu0
      %v1012 = vadd.f32 0.0, %v1011
      %v1013 = vpop.f32.mrb[0].mxu0
      %1014 = vmatprep.mubr.f32.mxu0 0.0
      %1015 = vmatmul.mubr.f32.gmra.mrb[0].mxu0 %v943
      %v1016 = vpop.f32.mrb[0].mxu0
      %v1017 = vadd.f32 0.0, %v1016
      %v1018 = vpop.f32.mrb[0].mxu0
      %1019 = vdwg.mxu0
      %v1020 = vadd.f32 %v928, %v1012
      %v1021 = vadd.f32 %v929, %v1017
      %s1022 = scalar_lea.vmem %s2, 128
      %v1023 = vld [vmem:[%s1022] sm:$0xff]
      %v1024 = vld [vmem:[%s1022 + $0x8] sm:$0xff]
      %1025 = vrot.lane.b32.xlu0 %v261, 117
      %v1026 = vpop.permute.xlu0 %1025
      %1027 = vrot.lane.b32.xlu0 %v263, 117
      %v1028 = vpop.permute.xlu0 %1027
      %v1032 = vsel %vm286, %v1023, 0
      %v1035 = vsel %vm286, %v1024, 0
      %1037 = vmatprep.subr.mxu0 0.0
      %1038 = vmatpush1.msra.mxu0 %v1026
      %1039 = vmatprep.subr.mxu0 0.0
      %1040 = vmatpush1.msra.mxu0 %v1028
      %1041 = vmatprep.subr.mxu0 0.0
      %1042 = vmatpush1.msra.mxu0 0.0
      %1043 = vmatprep.subr.mxu0 0.0
      %1044 = vmatpush1.msra.mxu0 0.0
      %1045 = vmatprep.subr.mxu0 0.0
      %1046 = vmatpush1.msra.mxu0 0.0
      %1047 = vmatprep.subr.mxu0 0.0
      %1048 = vmatpush1.msra.mxu0 0.0
      %1049 = vmatprep.subr.mxu0 0.0
      %1050 = vmatpush1.msra.mxu0 0.0
      %1051 = vmatprep.subr.mxu0 0.0
      %1052 = vmatpush1.msra.mxu0 0.0
      %1053 = vmatprep.subr.mxu0 0.0
      %1054 = vmatpush1.msra.mxu0 0.0
      %1055 = vmatprep.subr.mxu0 0.0
      %1056 = vmatpush1.msra.mxu0 0.0
      %1057 = vmatprep.subr.mxu0 0.0
      %1058 = vmatpush1.msra.mxu0 0.0
      %1059 = vmatprep.subr.mxu0 0.0
      %1060 = vmatpush1.msra.mxu0 0.0
      %1061 = vmatprep.subr.mxu0 0.0
      %1062 = vmatpush1.msra.mxu0 0.0
      %1063 = vmatprep.subr.mxu0 0.0
      %1064 = vmatpush1.msra.mxu0 0.0
      %1065 = vmatprep.subr.mxu0 0.0
      %1066 = vmatpush1.msra.mxu0 0.0
      %1067 = vmatprep.subr.mxu0 0.0
      %1068 = vmatpush1.msra.mxu0 0.0
      %1069 = vmatprep.subr.mxu0 0.0
      %1070 = vmatpush1.msra.mxu0 0.0
      %1071 = vmatprep.subr.mxu0 0.0
      %1072 = vmatpush1.msra.mxu0 0.0
      %1073 = vmatprep.subr.mxu0 0.0
      %1074 = vmatpush1.msra.mxu0 0.0
      %1075 = vmatprep.subr.mxu0 0.0
      %1076 = vmatpush1.msra.mxu0 0.0
      %1077 = vmatprep.subr.mxu0 0.0
      %1078 = vmatpush1.msra.mxu0 0.0
      %1079 = vmatprep.subr.mxu0 0.0
      %1080 = vmatpush1.msra.mxu0 0.0
      %1081 = vmatprep.subr.mxu0 0.0
      %1082 = vmatpush1.msra.mxu0 0.0
      %1083 = vmatprep.subr.mxu0 0.0
      %1084 = vmatpush1.msra.mxu0 0.0
      %1085 = vmatprep.subr.mxu0 0.0
      %1086 = vmatpush1.msra.mxu0 0.0
      %1087 = vmatprep.subr.mxu0 0.0
      %1088 = vmatpush1.msra.mxu0 0.0
      %1089 = vmatprep.subr.mxu0 0.0
      %1090 = vmatpush1.msra.mxu0 0.0
      %1091 = vmatprep.subr.mxu0 0.0
      %1092 = vmatpush1.msra.mxu0 0.0
      %1093 = vmatprep.subr.mxu0 0.0
      %1094 = vmatpush1.msra.mxu0 0.0
      %1095 = vmatprep.subr.mxu0 0.0
      %1096 = vmatpush1.msra.mxu0 0.0
      %1097 = vmatprep.subr.mxu0 0.0
      %1098 = vmatpush1.msra.mxu0 0.0
      %1099 = vmatprep.subr.mxu0 0.0
      %1100 = vmatpush1.msra.mxu0 0.0
      %1101 = vmatprep.mubr.f32.mxu0 0.0
      %1102 = vmatmul.mubr.f32.gmra.mrb[0].mxu0 %v1032
      %v1103 = vpop.f32.mrb[0].mxu0
      %v1104 = vadd.f32 0.0, %v1103
      %v1105 = vpop.f32.mrb[0].mxu0
      %1106 = vmatprep.mubr.f32.mxu0 0.0
      %1107 = vmatmul.mubr.f32.gmra.mrb[0].mxu0 %v1035
      %v1108 = vpop.f32.mrb[0].mxu0
      %v1109 = vadd.f32 0.0, %v1108
      %v1110 = vpop.f32.mrb[0].mxu0
      %1111 = vdwg.mxu0
      %v1112 = vadd.f32 %v1020, %v1104
      %v1113 = vadd.f32 %v1021, %v1109
      %v1114 = vld [vmem:[%s3] sm:$0xff]
      %v1115 = vld [vmem:[%s3 + $0x8] sm:$0xff]
      %1117 = vset.pattern.permute.xlu0 0
      %1118 = vperm.xlu0 %1117, %v1114
      %v1119 = vpop.permute.xlu0 %1118
      %1122 = vset.pattern.permute.xlu0 0
      %1123 = vperm.xlu0 %1122, %v1115
      %v1124 = vpop.permute.xlu0 %1123
      %v1126 = vadd.f32 %v1112, %v1119
      %v1127 = vadd.f32 %v1113, %v1124
      %vm1128 = vcmp.ge.f32.partialorder %v1126, 0.0
      %vm1129 = vcmp.ge.f32.partialorder %v1127, 0.0
      %v1130 = vmul.f32 %v1126, 0.1
      %v1131 = vmul.f32 %v1127, 0.1
      %v1132 = vsel %vm1128, %v1126, %v1130
      %v1133 = vsel %vm1129, %v1127, %v1131
      %v1135 = vlaneseq
      %v1136 = vshrl.u32 %v1135, 7
      %v1137 = vsub.s32 0, %v1136
      %v1138 = vrot.slane %v252, %v1137
      %v1140 = vmul.f32 %v1132, %v1138
      %v1141 = vmul.f32 %v1133, %v1138
      %1142 = vst.msk [vmem:[#allocation2 + $0x8] sm:$0xff] %vm255, %v1140
      %1143 = vst.msk [vmem:[#allocation2 + $0x20] sm:$0xff] %vm255, %v1141
      %v1144 = vld [vmem:[#allocation2] sm:$0xff]
      %v1145 = vld [vmem:[#allocation2 + $0x8] sm:$0xff]
      %v1146 = vld [vmem:[#allocation2 + $0x18] sm:$0xff]
      %v1147 = vld [vmem:[#allocation2 + $0x20] sm:$0xff]
      %v1148 = vld [vmem:[%s4] sm:$0xff]
      %v1149 = vld [vmem:[%s4 + $0x8] sm:$0xff]
      %s1150 = scalar_lea.vmem %s4, 16
      %v1151 = vld [vmem:[%s1150] sm:$0xff]
      %v1152 = vld [vmem:[%s1150 + $0x8] sm:$0xff]
      %1157 = vrot.lane.b32.xlu0 %v1144, 10
      %v1158 = vpop.permute.xlu0 %1157
      %1159 = vrot.lane.b32.xlu0 %v1145, 10
      %v1160 = vpop.permute.xlu0 %1159
      %1161 = vrot.lane.b32.xlu0 %v1146, 10
      %v1162 = vpop.permute.xlu0 %1161
      %1163 = vrot.lane.b32.xlu0 %v1147, 10
      %v1164 = vpop.permute.xlu0 %1163
      %v1165 = vsel %vm281, %v1158, %v1160
      %v1166 = vsel %vm281, %v1162, %v1164
      %v1170 = vsel %vm286, %v1151, 0
      %v1173 = vsel %vm286, %v1152, 0
      %1175 = vmatprep.subr.mxu0 0.0
      %1176 = vmatpush1.msra.mxu0 %v1165
      %1177 = vmatprep.subr.mxu0 0.0
      %1178 = vmatpush1.msra.mxu0 %v1166
      %1179 = vmatprep.subr.mxu0 0.0
      %1180 = vmatpush1.msra.mxu0 0.0
      %1181 = vmatprep.subr.mxu0 0.0
      %1182 = vmatpush1.msra.mxu0 0.0
      %1183 = vmatprep.subr.mxu0 0.0
      %1184 = vmatpush1.msra.mxu0 0.0
      %1185 = vmatprep.subr.mxu0 0.0
      %1186 = vmatpush1.msra.mxu0 0.0
      %1187 = vmatprep.subr.mxu0 0.0
      %1188 = vmatpush1.msra.mxu0 0.0
      %1189 = vmatprep.subr.mxu0 0.0
      %1190 = vmatpush1.msra.mxu0 0.0
      %1191 = vmatprep.subr.mxu0 0.0
      %1192 = vmatpush1.msra.mxu0 0.0
      %1193 = vmatprep.subr.mxu0 0.0
      %1194 = vmatpush1.msra.mxu0 0.0
      %1195 = vmatprep.subr.mxu0 0.0
      %1196 = vmatpush1.msra.mxu0 0.0
      %1197 = vmatprep.subr.mxu0 0.0
      %1198 = vmatpush1.msra.mxu0 0.0
      %1199 = vmatprep.subr.mxu0 0.0
      %1200 = vmatpush1.msra.mxu0 0.0
      %1201 = vmatprep.subr.mxu0 0.0
      %1202 = vmatpush1.msra.mxu0 0.0
      %1203 = vmatprep.subr.mxu0 0.0
      %1204 = vmatpush1.msra.mxu0 0.0
      %1205 = vmatprep.subr.mxu0 0.0
      %1206 = vmatpush1.msra.mxu0 0.0
      %1207 = vmatprep.subr.mxu0 0.0
      %1208 = vmatpush1.msra.mxu0 0.0
      %1209 = vmatprep.subr.mxu0 0.0
      %1210 = vmatpush1.msra.mxu0 0.0
      %1211 = vmatprep.subr.mxu0 0.0
      %1212 = vmatpush1.msra.mxu0 0.0
      %1213 = vmatprep.subr.mxu0 0.0
      %1214 = vmatpush1.msra.mxu0 0.0
      %1215 = vmatprep.subr.mxu0 0.0
      %1216 = vmatpush1.msra.mxu0 0.0
      %1217 = vmatprep.subr.mxu0 0.0
      %1218 = vmatpush1.msra.mxu0 0.0
      %1219 = vmatprep.subr.mxu0 0.0
      %1220 = vmatpush1.msra.mxu0 0.0
      %1221 = vmatprep.subr.mxu0 0.0
      %1222 = vmatpush1.msra.mxu0 0.0
      %1223 = vmatprep.subr.mxu0 0.0
      %1224 = vmatpush1.msra.mxu0 0.0
      %1225 = vmatprep.subr.mxu0 0.0
      %1226 = vmatpush1.msra.mxu0 0.0
      %1227 = vmatprep.subr.mxu0 0.0
      %1228 = vmatpush1.msra.mxu0 0.0
      %1229 = vmatprep.subr.mxu0 0.0
      %1230 = vmatpush1.msra.mxu0 0.0
      %1231 = vmatprep.subr.mxu0 0.0
      %1232 = vmatpush1.msra.mxu0 0.0
      %1233 = vmatprep.subr.mxu0 0.0
      %1234 = vmatpush1.msra.mxu0 0.0
      %1235 = vmatprep.subr.mxu0 0.0
      %1236 = vmatpush1.msra.mxu0 0.0
      %1237 = vmatprep.subr.mxu0 0.0
      %1238 = vmatpush1.msra.mxu0 0.0
      %1239 = vmatprep.mubr.f32.mxu0 0.0
      %1240 = vmatmul.mubr.f32.gmra.mrb[0].mxu0 %v1170
      %v1241 = vpop.f32.mrb[0].mxu0
      %v1242 = vadd.f32 0.0, %v1241
      %v1243 = vpop.f32.mrb[0].mxu0
      %1244 = vmatprep.mubr.f32.mxu0 0.0
      %1245 = vmatmul.mubr.f32.gmra.mrb[0].mxu0 %v1173
      %v1246 = vpop.f32.mrb[0].mxu0
      %v1247 = vadd.f32 0.0, %v1246
      %v1248 = vpop.f32.mrb[0].mxu0
      %1249 = vdwg.mxu0
      %1250 = vrot.lane.b32.xlu0 %v1144, 11
      %v1251 = vpop.permute.xlu0 %1250
      %1252 = vrot.lane.b32.xlu0 %v1145, 11
      %v1253 = vpop.permute.xlu0 %1252
      %1254 = vrot.lane.b32.xlu0 %v1146, 11
      %v1255 = vpop.permute.xlu0 %1254
      %1256 = vrot.lane.b32.xlu0 %v1147, 11
      %v1257 = vpop.permute.xlu0 %1256
      %v1258 = vsel %vm376, %v1251, %v1253
      %v1259 = vsel %vm376, %v1255, %v1257
      %v1263 = vsel %vm286, %v1148, 0
      %v1266 = vsel %vm286, %v1149, 0
      %1268 = vmatprep.subr.mxu0 0.0
      %1269 = vmatpush1.msra.mxu0 %v1258
      %1270 = vmatprep.subr.mxu0 0.0
      %1271 = vmatpush1.msra.mxu0 %v1259
      %1272 = vmatprep.subr.mxu0 0.0
      %1273 = vmatpush1.msra.mxu0 0.0
      %1274 = vmatprep.subr.mxu0 0.0
      %1275 = vmatpush1.msra.mxu0 0.0
      %1276 = vmatprep.subr.mxu0 0.0
      %1277 = vmatpush1.msra.mxu0 0.0
      %1278 = vmatprep.subr.mxu0 0.0
      %1279 = vmatpush1.msra.mxu0 0.0
      %1280 = vmatprep.subr.mxu0 0.0
      %1281 = vmatpush1.msra.mxu0 0.0
      %1282 = vmatprep.subr.mxu0 0.0
      %1283 = vmatpush1.msra.mxu0 0.0
      %1284 = vmatprep.subr.mxu0 0.0
      %1285 = vmatpush1.msra.mxu0 0.0
      %1286 = vmatprep.subr.mxu0 0.0
      %1287 = vmatpush1.msra.mxu0 0.0
      %1288 = vmatprep.subr.mxu0 0.0
      %1289 = vmatpush1.msra.mxu0 0.0
      %1290 = vmatprep.subr.mxu0 0.0
      %1291 = vmatpush1.msra.mxu0 0.0
      %1292 = vmatprep.subr.mxu0 0.0
      %1293 = vmatpush1.msra.mxu0 0.0
      %1294 = vmatprep.subr.mxu0 0.0
      %1295 = vmatpush1.msra.mxu0 0.0
      %1296 = vmatprep.subr.mxu0 0.0
      %1297 = vmatpush1.msra.mxu0 0.0
      %1298 = vmatprep.subr.mxu0 0.0
      %1299 = vmatpush1.msra.mxu0 0.0
      %1300 = vmatprep.subr.mxu0 0.0
      %1301 = vmatpush1.msra.mxu0 0.0
      %1302 = vmatprep.subr.mxu0 0.0
      %1303 = vmatpush1.msra.mxu0 0.0
      %1304 = vmatprep.subr.mxu0 0.0
      %1305 = vmatpush1.msra.mxu0 0.0
      %1306 = vmatprep.subr.mxu0 0.0
      %1307 = vmatpush1.msra.mxu0 0.0
      %1308 = vmatprep.subr.mxu0 0.0
      %1309 = vmatpush1.msra.mxu0 0.0
      %1310 = vmatprep.subr.mxu0 0.0
      %1311 = vmatpush1.msra.mxu0 0.0
      %1312 = vmatprep.subr.mxu0 0.0
      %1313 = vmatpush1.msra.mxu0 0.0
      %1314 = vmatprep.subr.mxu0 0.0
      %1315 = vmatpush1.msra.mxu0 0.0
      %1316 = vmatprep.subr.mxu0 0.0
      %1317 = vmatpush1.msra.mxu0 0.0
      %1318 = vmatprep.subr.mxu0 0.0
      %1319 = vmatpush1.msra.mxu0 0.0
      %1320 = vmatprep.subr.mxu0 0.0
      %1321 = vmatpush1.msra.mxu0 0.0
      %1322 = vmatprep.subr.mxu0 0.0
      %1323 = vmatpush1.msra.mxu0 0.0
      %1324 = vmatprep.subr.mxu0 0.0
      %1325 = vmatpush1.msra.mxu0 0.0
      %1326 = vmatprep.subr.mxu0 0.0
      %1327 = vmatpush1.msra.mxu0 0.0
      %1328 = vmatprep.subr.mxu0 0.0
      %1329 = vmatpush1.msra.mxu0 0.0
      %1330 = vmatprep.subr.mxu0 0.0
      %1331 = vmatpush1.msra.mxu0 0.0
      %1332 = vmatprep.mubr.f32.mxu0 0.0
      %1333 = vmatmul.mubr.f32.gmra.mrb[0].mxu0 %v1263
      %v1334 = vpop.f32.mrb[0].mxu0
      %v1335 = vadd.f32 %v1242, %v1334
      %v1336 = vpop.f32.mrb[0].mxu0
      %1337 = vmatprep.mubr.f32.mxu0 0.0
      %1338 = vmatmul.mubr.f32.gmra.mrb[0].mxu0 %v1266
      %v1339 = vpop.f32.mrb[0].mxu0
      %v1340 = vadd.f32 %v1247, %v1339
      %v1341 = vpop.f32.mrb[0].mxu0
      %1342 = vdwg.mxu0
      %s1343 = scalar_lea.vmem %s4, 32
      %v1344 = vld [vmem:[%s1343] sm:$0xff]
      %v1345 = vld [vmem:[%s1343 + $0x8] sm:$0xff]
      %1346 = vrot.lane.b32.xlu0 %v1144, 9
      %v1347 = vpop.permute.xlu0 %1346
      %1348 = vrot.lane.b32.xlu0 %v1145, 9
      %v1349 = vpop.permute.xlu0 %1348
      %1350 = vrot.lane.b32.xlu0 %v1146, 9
      %v1351 = vpop.permute.xlu0 %1350
      %1352 = vrot.lane.b32.xlu0 %v1147, 9
      %v1353 = vpop.permute.xlu0 %1352
      %v1354 = vsel %vm473, %v1347, %v1349
      %v1355 = vsel %vm473, %v1351, %v1353
      %v1359 = vsel %vm286, %v1344, 0
      %v1362 = vsel %vm286, %v1345, 0
      %1364 = vmatprep.subr.mxu0 0.0
      %1365 = vmatpush1.msra.mxu0 %v1354
      %1366 = vmatprep.subr.mxu0 0.0
      %1367 = vmatpush1.msra.mxu0 %v1355
      %1368 = vmatprep.subr.mxu0 0.0
      %1369 = vmatpush1.msra.mxu0 0.0
      %1370 = vmatprep.subr.mxu0 0.0
      %1371 = vmatpush1.msra.mxu0 0.0
      %1372 = vmatprep.subr.mxu0 0.0
      %1373 = vmatpush1.msra.mxu0 0.0
      %1374 = vmatprep.subr.mxu0 0.0
      %1375 = vmatpush1.msra.mxu0 0.0
      %1376 = vmatprep.subr.mxu0 0.0
      %1377 = vmatpush1.msra.mxu0 0.0
      %1378 = vmatprep.subr.mxu0 0.0
      %1379 = vmatpush1.msra.mxu0 0.0
      %1380 = vmatprep.subr.mxu0 0.0
      %1381 = vmatpush1.msra.mxu0 0.0
      %1382 = vmatprep.subr.mxu0 0.0
      %1383 = vmatpush1.msra.mxu0 0.0
      %1384 = vmatprep.subr.mxu0 0.0
      %1385 = vmatpush1.msra.mxu0 0.0
      %1386 = vmatprep.subr.mxu0 0.0
      %1387 = vmatpush1.msra.mxu0 0.0
      %1388 = vmatprep.subr.mxu0 0.0
      %1389 = vmatpush1.msra.mxu0 0.0
      %1390 = vmatprep.subr.mxu0 0.0
      %1391 = vmatpush1.msra.mxu0 0.0
      %1392 = vmatprep.subr.mxu0 0.0
      %1393 = vmatpush1.msra.mxu0 0.0
      %1394 = vmatprep.subr.mxu0 0.0
      %1395 = vmatpush1.msra.mxu0 0.0
      %1396 = vmatprep.subr.mxu0 0.0
      %1397 = vmatpush1.msra.mxu0 0.0
      %1398 = vmatprep.subr.mxu0 0.0
      %1399 = vmatpush1.msra.mxu0 0.0
      %1400 = vmatprep.subr.mxu0 0.0
      %1401 = vmatpush1.msra.mxu0 0.0
      %1402 = vmatprep.subr.mxu0 0.0
      %1403 = vmatpush1.msra.mxu0 0.0
      %1404 = vmatprep.subr.mxu0 0.0
      %1405 = vmatpush1.msra.mxu0 0.0
      %1406 = vmatprep.subr.mxu0 0.0
      %1407 = vmatpush1.msra.mxu0 0.0
      %1408 = vmatprep.subr.mxu0 0.0
      %1409 = vmatpush1.msra.mxu0 0.0
      %1410 = vmatprep.subr.mxu0 0.0
      %1411 = vmatpush1.msra.mxu0 0.0
      %1412 = vmatprep.subr.mxu0 0.0
      %1413 = vmatpush1.msra.mxu0 0.0
      %1414 = vmatprep.subr.mxu0 0.0
      %1415 = vmatpush1.msra.mxu0 0.0
      %1416 = vmatprep.subr.mxu0 0.0
      %1417 = vmatpush1.msra.mxu0 0.0
      %1418 = vmatprep.subr.mxu0 0.0
      %1419 = vmatpush1.msra.mxu0 0.0
      %1420 = vmatprep.subr.mxu0 0.0
      %1421 = vmatpush1.msra.mxu0 0.0
      %1422 = vmatprep.subr.mxu0 0.0
      %1423 = vmatpush1.msra.mxu0 0.0
      %1424 = vmatprep.subr.mxu0 0.0
      %1425 = vmatpush1.msra.mxu0 0.0
      %1426 = vmatprep.subr.mxu0 0.0
      %1427 = vmatpush1.msra.mxu0 0.0
      %1428 = vmatprep.mubr.f32.mxu0 0.0
      %1429 = vmatmul.mubr.f32.gmra.mrb[0].mxu0 %v1359
      %v1430 = vpop.f32.mrb[0].mxu0
      %v1431 = vadd.f32 0.0, %v1430
      %v1432 = vpop.f32.mrb[0].mxu0
      %1433 = vmatprep.mubr.f32.mxu0 0.0
      %1434 = vmatmul.mubr.f32.gmra.mrb[0].mxu0 %v1362
      %v1435 = vpop.f32.mrb[0].mxu0
      %v1436 = vadd.f32 0.0, %v1435
      %v1437 = vpop.f32.mrb[0].mxu0
      %1438 = vdwg.mxu0
      %v1439 = vadd.f32 %v1335, %v1431
      %v1440 = vadd.f32 %v1340, %v1436
      %s1441 = scalar_lea.vmem %s4, 48
      %v1442 = vld [vmem:[%s1441] sm:$0xff]
      %v1443 = vld [vmem:[%s1441 + $0x8] sm:$0xff]
      %1444 = vrot.lane.b32.xlu0 %v1144, 1
      %v1445 = vpop.permute.xlu0 %1444
      %1446 = vrot.lane.b32.xlu0 %v1145, 1
      %v1447 = vpop.permute.xlu0 %1446
      %1448 = vrot.lane.b32.xlu0 %v1146, 1
      %v1449 = vpop.permute.xlu0 %1448
      %1450 = vrot.lane.b32.xlu0 %v1147, 1
      %v1451 = vpop.permute.xlu0 %1450
      %v1452 = vsel %vm572, %v1445, %v1447
      %v1453 = vsel %vm572, %v1449, %v1451
      %v1457 = vsel %vm286, %v1442, 0
      %v1460 = vsel %vm286, %v1443, 0
      %1462 = vmatprep.subr.mxu0 0.0
      %1463 = vmatpush1.msra.mxu0 %v1452
      %1464 = vmatprep.subr.mxu0 0.0
      %1465 = vmatpush1.msra.mxu0 %v1453
      %1466 = vmatprep.subr.mxu0 0.0
      %1467 = vmatpush1.msra.mxu0 0.0
      %1468 = vmatprep.subr.mxu0 0.0
      %1469 = vmatpush1.msra.mxu0 0.0
      %1470 = vmatprep.subr.mxu0 0.0
      %1471 = vmatpush1.msra.mxu0 0.0
      %1472 = vmatprep.subr.mxu0 0.0
      %1473 = vmatpush1.msra.mxu0 0.0
      %1474 = vmatprep.subr.mxu0 0.0
      %1475 = vmatpush1.msra.mxu0 0.0
      %1476 = vmatprep.subr.mxu0 0.0
      %1477 = vmatpush1.msra.mxu0 0.0
      %1478 = vmatprep.subr.mxu0 0.0
      %1479 = vmatpush1.msra.mxu0 0.0
      %1480 = vmatprep.subr.mxu0 0.0
      %1481 = vmatpush1.msra.mxu0 0.0
      %1482 = vmatprep.subr.mxu0 0.0
      %1483 = vmatpush1.msra.mxu0 0.0
      %1484 = vmatprep.subr.mxu0 0.0
      %1485 = vmatpush1.msra.mxu0 0.0
      %1486 = vmatprep.subr.mxu0 0.0
      %1487 = vmatpush1.msra.mxu0 0.0
      %1488 = vmatprep.subr.mxu0 0.0
      %1489 = vmatpush1.msra.mxu0 0.0
      %1490 = vmatprep.subr.mxu0 0.0
      %1491 = vmatpush1.msra.mxu0 0.0
      %1492 = vmatprep.subr.mxu0 0.0
      %1493 = vmatpush1.msra.mxu0 0.0
      %1494 = vmatprep.subr.mxu0 0.0
      %1495 = vmatpush1.msra.mxu0 0.0
      %1496 = vmatprep.subr.mxu0 0.0
      %1497 = vmatpush1.msra.mxu0 0.0
      %1498 = vmatprep.subr.mxu0 0.0
      %1499 = vmatpush1.msra.mxu0 0.0
      %1500 = vmatprep.subr.mxu0 0.0
      %1501 = vmatpush1.msra.mxu0 0.0
      %1502 = vmatprep.subr.mxu0 0.0
      %1503 = vmatpush1.msra.mxu0 0.0
      %1504 = vmatprep.subr.mxu0 0.0
      %1505 = vmatpush1.msra.mxu0 0.0
      %1506 = vmatprep.subr.mxu0 0.0
      %1507 = vmatpush1.msra.mxu0 0.0
      %1508 = vmatprep.subr.mxu0 0.0
      %1509 = vmatpush1.msra.mxu0 0.0
      %1510 = vmatprep.subr.mxu0 0.0
      %1511 = vmatpush1.msra.mxu0 0.0
      %1512 = vmatprep.subr.mxu0 0.0
      %1513 = vmatpush1.msra.mxu0 0.0
      %1514 = vmatprep.subr.mxu0 0.0
      %1515 = vmatpush1.msra.mxu0 0.0
      %1516 = vmatprep.subr.mxu0 0.0
      %1517 = vmatpush1.msra.mxu0 0.0
      %1518 = vmatprep.subr.mxu0 0.0
      %1519 = vmatpush1.msra.mxu0 0.0
      %1520 = vmatprep.subr.mxu0 0.0
      %1521 = vmatpush1.msra.mxu0 0.0
      %1522 = vmatprep.subr.mxu0 0.0
      %1523 = vmatpush1.msra.mxu0 0.0
      %1524 = vmatprep.subr.mxu0 0.0
      %1525 = vmatpush1.msra.mxu0 0.0
      %1526 = vmatprep.mubr.f32.mxu0 0.0
      %1527 = vmatmul.mubr.f32.gmra.mrb[0].mxu0 %v1457
      %v1528 = vpop.f32.mrb[0].mxu0
      %v1529 = vadd.f32 0.0, %v1528
      %v1530 = vpop.f32.mrb[0].mxu0
      %1531 = vmatprep.mubr.f32.mxu0 0.0
      %1532 = vmatmul.mubr.f32.gmra.mrb[0].mxu0 %v1460
      %v1533 = vpop.f32.mrb[0].mxu0
      %v1534 = vadd.f32 0.0, %v1533
      %v1535 = vpop.f32.mrb[0].mxu0
      %1536 = vdwg.mxu0
      %v1537 = vadd.f32 %v1439, %v1529
      %v1538 = vadd.f32 %v1440, %v1534
      %s1539 = scalar_lea.vmem %s4, 64
      %v1540 = vld [vmem:[%s1539] sm:$0xff]
      %v1541 = vld [vmem:[%s1539 + $0x8] sm:$0xff]
      %v1543 = vsel %vm286, %v1540, 0
      %v1546 = vsel %vm286, %v1541, 0
      %1548 = vmatprep.subr.mxu0 0.0
      %1549 = vmatpush1.msra.mxu0 %v1145
      %1550 = vmatprep.subr.mxu0 0.0
      %1551 = vmatpush1.msra.mxu0 %v1147
      %1552 = vmatprep.subr.mxu0 0.0
      %1553 = vmatpush1.msra.mxu0 0.0
      %1554 = vmatprep.subr.mxu0 0.0
      %1555 = vmatpush1.msra.mxu0 0.0
      %1556 = vmatprep.subr.mxu0 0.0
      %1557 = vmatpush1.msra.mxu0 0.0
      %1558 = vmatprep.subr.mxu0 0.0
      %1559 = vmatpush1.msra.mxu0 0.0
      %1560 = vmatprep.subr.mxu0 0.0
      %1561 = vmatpush1.msra.mxu0 0.0
      %1562 = vmatprep.subr.mxu0 0.0
      %1563 = vmatpush1.msra.mxu0 0.0
      %1564 = vmatprep.subr.mxu0 0.0
      %1565 = vmatpush1.msra.mxu0 0.0
      %1566 = vmatprep.subr.mxu0 0.0
      %1567 = vmatpush1.msra.mxu0 0.0
      %1568 = vmatprep.subr.mxu0 0.0
      %1569 = vmatpush1.msra.mxu0 0.0
      %1570 = vmatprep.subr.mxu0 0.0
      %1571 = vmatpush1.msra.mxu0 0.0
      %1572 = vmatprep.subr.mxu0 0.0
      %1573 = vmatpush1.msra.mxu0 0.0
      %1574 = vmatprep.subr.mxu0 0.0
      %1575 = vmatpush1.msra.mxu0 0.0
      %1576 = vmatprep.subr.mxu0 0.0
      %1577 = vmatpush1.msra.mxu0 0.0
      %1578 = vmatprep.subr.mxu0 0.0
      %1579 = vmatpush1.msra.mxu0 0.0
      %1580 = vmatprep.subr.mxu0 0.0
      %1581 = vmatpush1.msra.mxu0 0.0
      %1582 = vmatprep.subr.mxu0 0.0
      %1583 = vmatpush1.msra.mxu0 0.0
      %1584 = vmatprep.subr.mxu0 0.0
      %1585 = vmatpush1.msra.mxu0 0.0
      %1586 = vmatprep.subr.mxu0 0.0
      %1587 = vmatpush1.msra.mxu0 0.0
      %1588 = vmatprep.subr.mxu0 0.0
      %1589 = vmatpush1.msra.mxu0 0.0
      %1590 = vmatprep.subr.mxu0 0.0
      %1591 = vmatpush1.msra.mxu0 0.0
      %1592 = vmatprep.subr.mxu0 0.0
      %1593 = vmatpush1.msra.mxu0 0.0
      %1594 = vmatprep.subr.mxu0 0.0
      %1595 = vmatpush1.msra.mxu0 0.0
      %1596 = vmatprep.subr.mxu0 0.0
      %1597 = vmatpush1.msra.mxu0 0.0
      %1598 = vmatprep.subr.mxu0 0.0
      %1599 = vmatpush1.msra.mxu0 0.0
      %1600 = vmatprep.subr.mxu0 0.0
      %1601 = vmatpush1.msra.mxu0 0.0
      %1602 = vmatprep.subr.mxu0 0.0
      %1603 = vmatpush1.msra.mxu0 0.0
      %1604 = vmatprep.subr.mxu0 0.0
      %1605 = vmatpush1.msra.mxu0 0.0
      %1606 = vmatprep.subr.mxu0 0.0
      %1607 = vmatpush1.msra.mxu0 0.0
      %1608 = vmatprep.subr.mxu0 0.0
      %1609 = vmatpush1.msra.mxu0 0.0
      %1610 = vmatprep.subr.mxu0 0.0
      %1611 = vmatpush1.msra.mxu0 0.0
      %1612 = vmatprep.mubr.f32.mxu0 0.0
      %1613 = vmatmul.mubr.f32.gmra.mrb[0].mxu0 %v1543
      %v1614 = vpop.f32.mrb[0].mxu0
      %v1615 = vadd.f32 0.0, %v1614
      %v1616 = vpop.f32.mrb[0].mxu0
      %1617 = vmatprep.mubr.f32.mxu0 0.0
      %1618 = vmatmul.mubr.f32.gmra.mrb[0].mxu0 %v1546
      %v1619 = vpop.f32.mrb[0].mxu0
      %v1620 = vadd.f32 0.0, %v1619
      %v1621 = vpop.f32.mrb[0].mxu0
      %1622 = vdwg.mxu0
      %v1623 = vadd.f32 %v1537, %v1615
      %v1624 = vadd.f32 %v1538, %v1620
      %s1625 = scalar_lea.vmem %s4, 80
      %v1626 = vld [vmem:[%s1625] sm:$0xff]
      %v1627 = vld [vmem:[%s1625 + $0x8] sm:$0xff]
      %1628 = vrot.lane.b32.xlu0 %v1145, 127
      %v1629 = vpop.permute.xlu0 %1628
      %1630 = vrot.lane.b32.xlu0 %v1147, 127
      %v1631 = vpop.permute.xlu0 %1630
      %v1635 = vsel %vm286, %v1626, 0
      %v1638 = vsel %vm286, %v1627, 0
      %1640 = vmatprep.subr.mxu0 0.0
      %1641 = vmatpush1.msra.mxu0 %v1629
      %1642 = vmatprep.subr.mxu0 0.0
      %1643 = vmatpush1.msra.mxu0 %v1631
      %1644 = vmatprep.subr.mxu0 0.0
      %1645 = vmatpush1.msra.mxu0 0.0
      %1646 = vmatprep.subr.mxu0 0.0
      %1647 = vmatpush1.msra.mxu0 0.0
      %1648 = vmatprep.subr.mxu0 0.0
      %1649 = vmatpush1.msra.mxu0 0.0
      %1650 = vmatprep.subr.mxu0 0.0
      %1651 = vmatpush1.msra.mxu0 0.0
      %1652 = vmatprep.subr.mxu0 0.0
      %1653 = vmatpush1.msra.mxu0 0.0
      %1654 = vmatprep.subr.mxu0 0.0
      %1655 = vmatpush1.msra.mxu0 0.0
      %1656 = vmatprep.subr.mxu0 0.0
      %1657 = vmatpush1.msra.mxu0 0.0
      %1658 = vmatprep.subr.mxu0 0.0
      %1659 = vmatpush1.msra.mxu0 0.0
      %1660 = vmatprep.subr.mxu0 0.0
      %1661 = vmatpush1.msra.mxu0 0.0
      %1662 = vmatprep.subr.mxu0 0.0
      %1663 = vmatpush1.msra.mxu0 0.0
      %1664 = vmatprep.subr.mxu0 0.0
      %1665 = vmatpush1.msra.mxu0 0.0
      %1666 = vmatprep.subr.mxu0 0.0
      %1667 = vmatpush1.msra.mxu0 0.0
      %1668 = vmatprep.subr.mxu0 0.0
      %1669 = vmatpush1.msra.mxu0 0.0
      %1670 = vmatprep.subr.mxu0 0.0
      %1671 = vmatpush1.msra.mxu0 0.0
      %1672 = vmatprep.subr.mxu0 0.0
      %1673 = vmatpush1.msra.mxu0 0.0
      %1674 = vmatprep.subr.mxu0 0.0
      %1675 = vmatpush1.msra.mxu0 0.0
      %1676 = vmatprep.subr.mxu0 0.0
      %1677 = vmatpush1.msra.mxu0 0.0
      %1678 = vmatprep.subr.mxu0 0.0
      %1679 = vmatpush1.msra.mxu0 0.0
      %1680 = vmatprep.subr.mxu0 0.0
      %1681 = vmatpush1.msra.mxu0 0.0
      %1682 = vmatprep.subr.mxu0 0.0
      %1683 = vmatpush1.msra.mxu0 0.0
      %1684 = vmatprep.subr.mxu0 0.0
      %1685 = vmatpush1.msra.mxu0 0.0
      %1686 = vmatprep.subr.mxu0 0.0
      %1687 = vmatpush1.msra.mxu0 0.0
      %1688 = vmatprep.subr.mxu0 0.0
      %1689 = vmatpush1.msra.mxu0 0.0
      %1690 = vmatprep.subr.mxu0 0.0
      %1691 = vmatpush1.msra.mxu0 0.0
      %1692 = vmatprep.subr.mxu0 0.0
      %1693 = vmatpush1.msra.mxu0 0.0
      %1694 = vmatprep.subr.mxu0 0.0
      %1695 = vmatpush1.msra.mxu0 0.0
      %1696 = vmatprep.subr.mxu0 0.0
      %1697 = vmatpush1.msra.mxu0 0.0
      %1698 = vmatprep.subr.mxu0 0.0
      %1699 = vmatpush1.msra.mxu0 0.0
      %1700 = vmatprep.subr.mxu0 0.0
      %1701 = vmatpush1.msra.mxu0 0.0
      %1702 = vmatprep.subr.mxu0 0.0
      %1703 = vmatpush1.msra.mxu0 0.0
      %1704 = vmatprep.mubr.f32.mxu0 0.0
      %1705 = vmatmul.mubr.f32.gmra.mrb[0].mxu0 %v1635
      %v1706 = vpop.f32.mrb[0].mxu0
      %v1707 = vadd.f32 0.0, %v1706
      %v1708 = vpop.f32.mrb[0].mxu0
      %1709 = vmatprep.mubr.f32.mxu0 0.0
      %1710 = vmatmul.mubr.f32.gmra.mrb[0].mxu0 %v1638
      %v1711 = vpop.f32.mrb[0].mxu0
      %v1712 = vadd.f32 0.0, %v1711
      %v1713 = vpop.f32.mrb[0].mxu0
      %1714 = vdwg.mxu0
      %v1715 = vadd.f32 %v1623, %v1707
      %v1716 = vadd.f32 %v1624, %v1712
      %s1717 = scalar_lea.vmem %s4, 96
      %v1718 = vld [vmem:[%s1717] sm:$0xff]
      %v1719 = vld [vmem:[%s1717 + $0x8] sm:$0xff]
      %1720 = vrot.lane.b32.xlu0 %v1145, 119
      %v1721 = vpop.permute.xlu0 %1720
      %1722 = vrot.lane.b32.xlu0 %v1147, 119
      %v1723 = vpop.permute.xlu0 %1722
      %v1727 = vsel %vm286, %v1718, 0
      %v1730 = vsel %vm286, %v1719, 0
      %1732 = vmatprep.subr.mxu0 0.0
      %1733 = vmatpush1.msra.mxu0 %v1721
      %1734 = vmatprep.subr.mxu0 0.0
      %1735 = vmatpush1.msra.mxu0 %v1723
      %1736 = vmatprep.subr.mxu0 0.0
      %1737 = vmatpush1.msra.mxu0 0.0
      %1738 = vmatprep.subr.mxu0 0.0
      %1739 = vmatpush1.msra.mxu0 0.0
      %1740 = vmatprep.subr.mxu0 0.0
      %1741 = vmatpush1.msra.mxu0 0.0
      %1742 = vmatprep.subr.mxu0 0.0
      %1743 = vmatpush1.msra.mxu0 0.0
      %1744 = vmatprep.subr.mxu0 0.0
      %1745 = vmatpush1.msra.mxu0 0.0
      %1746 = vmatprep.subr.mxu0 0.0
      %1747 = vmatpush1.msra.mxu0 0.0
      %1748 = vmatprep.subr.mxu0 0.0
      %1749 = vmatpush1.msra.mxu0 0.0
      %1750 = vmatprep.subr.mxu0 0.0
      %1751 = vmatpush1.msra.mxu0 0.0
      %1752 = vmatprep.subr.mxu0 0.0
      %1753 = vmatpush1.msra.mxu0 0.0
      %1754 = vmatprep.subr.mxu0 0.0
      %1755 = vmatpush1.msra.mxu0 0.0
      %1756 = vmatprep.subr.mxu0 0.0
      %1757 = vmatpush1.msra.mxu0 0.0
      %1758 = vmatprep.subr.mxu0 0.0
      %1759 = vmatpush1.msra.mxu0 0.0
      %1760 = vmatprep.subr.mxu0 0.0
      %1761 = vmatpush1.msra.mxu0 0.0
      %1762 = vmatprep.subr.mxu0 0.0
      %1763 = vmatpush1.msra.mxu0 0.0
      %1764 = vmatprep.subr.mxu0 0.0
      %1765 = vmatpush1.msra.mxu0 0.0
      %1766 = vmatprep.subr.mxu0 0.0
      %1767 = vmatpush1.msra.mxu0 0.0
      %1768 = vmatprep.subr.mxu0 0.0
      %1769 = vmatpush1.msra.mxu0 0.0
      %1770 = vmatprep.subr.mxu0 0.0
      %1771 = vmatpush1.msra.mxu0 0.0
      %1772 = vmatprep.subr.mxu0 0.0
      %1773 = vmatpush1.msra.mxu0 0.0
      %1774 = vmatprep.subr.mxu0 0.0
      %1775 = vmatpush1.msra.mxu0 0.0
      %1776 = vmatprep.subr.mxu0 0.0
      %1777 = vmatpush1.msra.mxu0 0.0
      %1778 = vmatprep.subr.mxu0 0.0
      %1779 = vmatpush1.msra.mxu0 0.0
      %1780 = vmatprep.subr.mxu0 0.0
      %1781 = vmatpush1.msra.mxu0 0.0
      %1782 = vmatprep.subr.mxu0 0.0
      %1783 = vmatpush1.msra.mxu0 0.0
      %1784 = vmatprep.subr.mxu0 0.0
      %1785 = vmatpush1.msra.mxu0 0.0
      %1786 = vmatprep.subr.mxu0 0.0
      %1787 = vmatpush1.msra.mxu0 0.0
      %1788 = vmatprep.subr.mxu0 0.0
      %1789 = vmatpush1.msra.mxu0 0.0
      %1790 = vmatprep.subr.mxu0 0.0
      %1791 = vmatpush1.msra.mxu0 0.0
      %1792 = vmatprep.subr.mxu0 0.0
      %1793 = vmatpush1.msra.mxu0 0.0
      %1794 = vmatprep.subr.mxu0 0.0
      %1795 = vmatpush1.msra.mxu0 0.0
      %1796 = vmatprep.mubr.f32.mxu0 0.0
      %1797 = vmatmul.mubr.f32.gmra.mrb[0].mxu0 %v1727
      %v1798 = vpop.f32.mrb[0].mxu0
      %v1799 = vadd.f32 0.0, %v1798
      %v1800 = vpop.f32.mrb[0].mxu0
      %1801 = vmatprep.mubr.f32.mxu0 0.0
      %1802 = vmatmul.mubr.f32.gmra.mrb[0].mxu0 %v1730
      %v1803 = vpop.f32.mrb[0].mxu0
      %v1804 = vadd.f32 0.0, %v1803
      %v1805 = vpop.f32.mrb[0].mxu0
      %1806 = vdwg.mxu0
      %v1807 = vadd.f32 %v1715, %v1799
      %v1808 = vadd.f32 %v1716, %v1804
      %s1809 = scalar_lea.vmem %s4, 112
      %v1810 = vld [vmem:[%s1809] sm:$0xff]
      %v1811 = vld [vmem:[%s1809 + $0x8] sm:$0xff]
      %1812 = vrot.lane.b32.xlu0 %v1145, 118
      %v1813 = vpop.permute.xlu0 %1812
      %1814 = vrot.lane.b32.xlu0 %v1147, 118
      %v1815 = vpop.permute.xlu0 %1814
      %v1819 = vsel %vm286, %v1810, 0
      %v1822 = vsel %vm286, %v1811, 0
      %1824 = vmatprep.subr.mxu0 0.0
      %1825 = vmatpush1.msra.mxu0 %v1813
      %1826 = vmatprep.subr.mxu0 0.0
      %1827 = vmatpush1.msra.mxu0 %v1815
      %1828 = vmatprep.subr.mxu0 0.0
      %1829 = vmatpush1.msra.mxu0 0.0
      %1830 = vmatprep.subr.mxu0 0.0
      %1831 = vmatpush1.msra.mxu0 0.0
      %1832 = vmatprep.subr.mxu0 0.0
      %1833 = vmatpush1.msra.mxu0 0.0
      %1834 = vmatprep.subr.mxu0 0.0
      %1835 = vmatpush1.msra.mxu0 0.0
      %1836 = vmatprep.subr.mxu0 0.0
      %1837 = vmatpush1.msra.mxu0 0.0
      %1838 = vmatprep.subr.mxu0 0.0
      %1839 = vmatpush1.msra.mxu0 0.0
      %1840 = vmatprep.subr.mxu0 0.0
      %1841 = vmatpush1.msra.mxu0 0.0
      %1842 = vmatprep.subr.mxu0 0.0
      %1843 = vmatpush1.msra.mxu0 0.0
      %1844 = vmatprep.subr.mxu0 0.0
      %1845 = vmatpush1.msra.mxu0 0.0
      %1846 = vmatprep.subr.mxu0 0.0
      %1847 = vmatpush1.msra.mxu0 0.0
      %1848 = vmatprep.subr.mxu0 0.0
      %1849 = vmatpush1.msra.mxu0 0.0
      %1850 = vmatprep.subr.mxu0 0.0
      %1851 = vmatpush1.msra.mxu0 0.0
      %1852 = vmatprep.subr.mxu0 0.0
      %1853 = vmatpush1.msra.mxu0 0.0
      %1854 = vmatprep.subr.mxu0 0.0
      %1855 = vmatpush1.msra.mxu0 0.0
      %1856 = vmatprep.subr.mxu0 0.0
      %1857 = vmatpush1.msra.mxu0 0.0
      %1858 = vmatprep.subr.mxu0 0.0
      %1859 = vmatpush1.msra.mxu0 0.0
      %1860 = vmatprep.subr.mxu0 0.0
      %1861 = vmatpush1.msra.mxu0 0.0
      %1862 = vmatprep.subr.mxu0 0.0
      %1863 = vmatpush1.msra.mxu0 0.0
      %1864 = vmatprep.subr.mxu0 0.0
      %1865 = vmatpush1.msra.mxu0 0.0
      %1866 = vmatprep.subr.mxu0 0.0
      %1867 = vmatpush1.msra.mxu0 0.0
      %1868 = vmatprep.subr.mxu0 0.0
      %1869 = vmatpush1.msra.mxu0 0.0
      %1870 = vmatprep.subr.mxu0 0.0
      %1871 = vmatpush1.msra.mxu0 0.0
      %1872 = vmatprep.subr.mxu0 0.0
      %1873 = vmatpush1.msra.mxu0 0.0
      %1874 = vmatprep.subr.mxu0 0.0
      %1875 = vmatpush1.msra.mxu0 0.0
      %1876 = vmatprep.subr.mxu0 0.0
      %1877 = vmatpush1.msra.mxu0 0.0
      %1878 = vmatprep.subr.mxu0 0.0
      %1879 = vmatpush1.msra.mxu0 0.0
      %1880 = vmatprep.subr.mxu0 0.0
      %1881 = vmatpush1.msra.mxu0 0.0
      %1882 = vmatprep.subr.mxu0 0.0
      %1883 = vmatpush1.msra.mxu0 0.0
      %1884 = vmatprep.subr.mxu0 0.0
      %1885 = vmatpush1.msra.mxu0 0.0
      %1886 = vmatprep.subr.mxu0 0.0
      %1887 = vmatpush1.msra.mxu0 0.0
      %1888 = vmatprep.mubr.f32.mxu0 0.0
      %1889 = vmatmul.mubr.f32.gmra.mrb[0].mxu0 %v1819
      %v1890 = vpop.f32.mrb[0].mxu0
      %v1891 = vadd.f32 0.0, %v1890
      %v1892 = vpop.f32.mrb[0].mxu0
      %1893 = vmatprep.mubr.f32.mxu0 0.0
      %1894 = vmatmul.mubr.f32.gmra.mrb[0].mxu0 %v1822
      %v1895 = vpop.f32.mrb[0].mxu0
      %v1896 = vadd.f32 0.0, %v1895
      %v1897 = vpop.f32.mrb[0].mxu0
      %1898 = vdwg.mxu0
      %v1899 = vadd.f32 %v1807, %v1891
      %v1900 = vadd.f32 %v1808, %v1896
      %s1901 = scalar_lea.vmem %s4, 128
      %v1902 = vld [vmem:[%s1901] sm:$0xff]
      %v1903 = vld [vmem:[%s1901 + $0x8] sm:$0xff]
      %1904 = vrot.lane.b32.xlu0 %v1145, 117
      %v1905 = vpop.permute.xlu0 %1904
      %1906 = vrot.lane.b32.xlu0 %v1147, 117
      %v1907 = vpop.permute.xlu0 %1906
      %v1911 = vsel %vm286, %v1902, 0
      %v1914 = vsel %vm286, %v1903, 0
      %1916 = vmatprep.subr.mxu0 0.0
      %1917 = vmatpush1.msra.mxu0 %v1905
      %1918 = vmatprep.subr.mxu0 0.0
      %1919 = vmatpush1.msra.mxu0 %v1907
      %1920 = vmatprep.subr.mxu0 0.0
      %1921 = vmatpush1.msra.mxu0 0.0
      %1922 = vmatprep.subr.mxu0 0.0
      %1923 = vmatpush1.msra.mxu0 0.0
      %1924 = vmatprep.subr.mxu0 0.0
      %1925 = vmatpush1.msra.mxu0 0.0
      %1926 = vmatprep.subr.mxu0 0.0
      %1927 = vmatpush1.msra.mxu0 0.0
      %1928 = vmatprep.subr.mxu0 0.0
      %1929 = vmatpush1.msra.mxu0 0.0
      %1930 = vmatprep.subr.mxu0 0.0
      %1931 = vmatpush1.msra.mxu0 0.0
      %1932 = vmatprep.subr.mxu0 0.0
      %1933 = vmatpush1.msra.mxu0 0.0
      %1934 = vmatprep.subr.mxu0 0.0
      %1935 = vmatpush1.msra.mxu0 0.0
      %1936 = vmatprep.subr.mxu0 0.0
      %1937 = vmatpush1.msra.mxu0 0.0
      %1938 = vmatprep.subr.mxu0 0.0
      %1939 = vmatpush1.msra.mxu0 0.0
      %1940 = vmatprep.subr.mxu0 0.0
      %1941 = vmatpush1.msra.mxu0 0.0
      %1942 = vmatprep.subr.mxu0 0.0
      %1943 = vmatpush1.msra.mxu0 0.0
      %1944 = vmatprep.subr.mxu0 0.0
      %1945 = vmatpush1.msra.mxu0 0.0
      %1946 = vmatprep.subr.mxu0 0.0
      %1947 = vmatpush1.msra.mxu0 0.0
      %1948 = vmatprep.subr.mxu0 0.0
      %1949 = vmatpush1.msra.mxu0 0.0
      %1950 = vmatprep.subr.mxu0 0.0
      %1951 = vmatpush1.msra.mxu0 0.0
      %1952 = vmatprep.subr.mxu0 0.0
      %1953 = vmatpush1.msra.mxu0 0.0
      %1954 = vmatprep.subr.mxu0 0.0
      %1955 = vmatpush1.msra.mxu0 0.0
      %1956 = vmatprep.subr.mxu0 0.0
      %1957 = vmatpush1.msra.mxu0 0.0
      %1958 = vmatprep.subr.mxu0 0.0
      %1959 = vmatpush1.msra.mxu0 0.0
      %1960 = vmatprep.subr.mxu0 0.0
      %1961 = vmatpush1.msra.mxu0 0.0
      %1962 = vmatprep.subr.mxu0 0.0
      %1963 = vmatpush1.msra.mxu0 0.0
      %1964 = vmatprep.subr.mxu0 0.0
      %1965 = vmatpush1.msra.mxu0 0.0
      %1966 = vmatprep.subr.mxu0 0.0
      %1967 = vmatpush1.msra.mxu0 0.0
      %1968 = vmatprep.subr.mxu0 0.0
      %1969 = vmatpush1.msra.mxu0 0.0
      %1970 = vmatprep.subr.mxu0 0.0
      %1971 = vmatpush1.msra.mxu0 0.0
      %1972 = vmatprep.subr.mxu0 0.0
      %1973 = vmatpush1.msra.mxu0 0.0
      %1974 = vmatprep.subr.mxu0 0.0
      %1975 = vmatpush1.msra.mxu0 0.0
      %1976 = vmatprep.subr.mxu0 0.0
      %1977 = vmatpush1.msra.mxu0 0.0
      %1978 = vmatprep.subr.mxu0 0.0
      %1979 = vmatpush1.msra.mxu0 0.0
      %1980 = vmatprep.mubr.f32.mxu0 0.0
      %1981 = vmatmul.mubr.f32.gmra.mrb[0].mxu0 %v1911
      %v1982 = vpop.f32.mrb[0].mxu0
      %v1983 = vadd.f32 0.0, %v1982
      %v1984 = vpop.f32.mrb[0].mxu0
      %1985 = vmatprep.mubr.f32.mxu0 0.0
      %1986 = vmatmul.mubr.f32.gmra.mrb[0].mxu0 %v1914
      %v1987 = vpop.f32.mrb[0].mxu0
      %v1988 = vadd.f32 0.0, %v1987
      %v1989 = vpop.f32.mrb[0].mxu0
      %1990 = vdwg.mxu0
      %v1991 = vadd.f32 %v1899, %v1983
      %v1992 = vadd.f32 %v1900, %v1988
      %v1993 = vld [vmem:[%s5] sm:$0xff]
      %v1994 = vld [vmem:[%s5 + $0x8] sm:$0xff]
      %1996 = vset.pattern.permute.xlu0 0
      %1997 = vperm.xlu0 %1996, %v1993
      %v1998 = vpop.permute.xlu0 %1997
      %2001 = vset.pattern.permute.xlu0 0
      %2002 = vperm.xlu0 %2001, %v1994
      %v2003 = vpop.permute.xlu0 %2002
      %v2005 = vadd.f32 %v1991, %v1998
      %v2006 = vadd.f32 %v1992, %v2003
      %v2007 = vmul.f32 %v2005, %v1138
      %v2008 = vmul.f32 %v2006, %v1138
      %2009 = vst.msk [vmem:[%s251] sm:$0xff] %vm255, %v2007
      %2010 = vst.msk [vmem:[%s251 + $0x8] sm:$0xff] %vm255, %v2008
      %p2011 = scmp.lt.s32.totalorder %s17, 1
      %s2012 = scalar_select %p2011, %s17, 1
      %s2013 = smul.addr %s2012, 2
      %s2014 = smul.addr %s2013, 8
      %s2015 = scalar_lea.vmem %s6, %s2014
      // Predicated region
      $region45: #{cnn_downsampling_forward.4} parent=43 // pred_check
        %p2016 = pneg %p166
      $region46: #{cnn_downsampling_forward.4} parent=43 // pred_check_branch
        %2018 = sbr.rel (%p2016) target = $region48
      $region47: #{cnn_downsampling_forward.4} parent=43 // pred_region
        _
      $region48: #{cnn_downsampling_forward.4} parent=43 // pred_fallthru
        _
    $region44: #{cnn_downsampling_forward.4} parent=5 // pred_fallthru
      _
    %p2019 = scmp.le.s32.totalorder 2, %s12
    // Predicated region
    $region49: #{cnn_downsampling_forward.4} parent=5 // pred_check
      %p2020 = pneg %p2019
    $region50: #{cnn_downsampling_forward.4} parent=5 // pred_check_branch
      %2022 = sbr.rel (%p2020) target = $region52
    $region51: #{cnn_downsampling_forward.4} parent=5 // pred_region
      %s2023 = ssub.s32 %s12, 2
      // Predicated region
      $region53: #{cnn_downsampling_forward.4} parent=51 // pred_check
        %p2024 = pneg %p172
      $region54: #{cnn_downsampling_forward.4} parent=51 // pred_check_branch
        %2026 = sbr.rel (%p2024) target = $region56
      $region55: #{cnn_downsampling_forward.4} parent=51 // pred_region
        %p2027 = scmp.lt.s32.totalorder %s18, 1
        %s2028 = scalar_select %p2027, %s18, 1
        %s2029 = smul.addr %s2028, 2
        %s2030 = smul.addr %s2029, 8
        %s2031 = scalar_lea.vmem %s6, %s2030
      $region56: #{cnn_downsampling_forward.4} parent=51 // pred_fallthru
        _
    $region52: #{cnn_downsampling_forward.4} parent=5 // pred_fallthru
      _
  $region6: #{cnn_downsampling_forward.4} parent=0 // loop_footer
    %s16 = sadd.s32 1, %s12
  $region7: #{cnn_downsampling_forward.4} parent=0 // loop_footer_branch
    %11 = sbr.rel target = $region3
  $region8: #{cnn_downsampling_forward.4} parent=0 // loop_exit
    _

// kernel: cnn_downsampling_forward.5
$region0: #{cnn_downsampling_forward.5}
  #allocation0 [shape = 'u32[]', space=smem, size = 0x4, offset = 0x4, fixed_abs, tag = 'smem constant byte address 0x4 - core index']
  #allocation1 [shape = 'u32[144,128]{1,0:T(1,128)}', space=vmem, size = 0x12000, scoped, tag = 'internal scratch']
  #allocation2 [shape = 'f32[16,292]{1,0:T(8,128)}', space=vmem, size = 0x6000, scoped, tag = 'scratch operand']
  %s0 = inlined_call_operand.vmem [shape: f32[2,16,292], index: 0, kind: input, shape index: {}]
  %s1 = inlined_call_operand.vmem [shape: f32[1,36], index: 1, kind: input, shape index: {}]
  %s2 = inlined_call_operand.vmem [shape: f32[9,16,16], index: 2, kind: input, shape index: {}]
  %s3 = inlined_call_operand.vmem [shape: f32[16,1], index: 3, kind: input, shape index: {}]
  %s4 = inlined_call_operand.vmem [shape: f32[9,16,16], index: 4, kind: input, shape index: {}]
  %s5 = inlined_call_operand.vmem [shape: f32[16,1], index: 5, kind: input, shape index: {}]
  %s6 = inlined_call_operand.vmem [shape: f32[2,16,36], index: 6, kind: output, shape index: {}]
  %s7 = sld [smem:[#allocation0]]
  $region57: #{cnn_downsampling_forward.5} parent=0
    _
  %s9 = ssub.s32 1, %s7
  %s10 = scalar_select 0, %s9, %s7
  loop: start=0, step=1, limit=4
  $region2: #{cnn_downsampling_forward.5} parent=0 // loop_pre_header
    _
  $region3: #{cnn_downsampling_forward.5} parent=0 // loop_header
    %s12 = sphi 0, %s16
    %p13 = scmp.ge.s32.totalorder %s12, 4
    %s22 = sphi 0, %s24
    %s25 = sphi 0, %s22
    %s26 = sphi 0, %s25
    %s42 = sphi 0, %s26
    %s46 = sphi 0, %s46
    %s48 = sphi 0, %s46
    %s49 = sphi 0, %s48
    %s63 = sphi 0, %s49
    %s67 = sphi 0, %s67
    %s69 = sphi 0, %s67
    %s70 = sphi 0, %s69
    %s84 = sphi 0, %s70
    %s88 = sphi 0, %s88
    %s90 = sphi 0, %s88
    %s91 = sphi 0, %s90
    %s105 = sphi 0, %s91
    %s109 = sphi 0, %s109
    %s111 = sphi 0, %s109
    %s112 = sphi 0, %s111
    %s126 = sphi 0, %s112
    %s130 = sphi 0, %s130
    %s132 = sphi 0, %s130
    %s133 = sphi 0, %s132
    %s147 = sphi 0, %s133
    %s153 = sphi 0, %s155
    %s156 = sphi 0, %s153
    %s157 = sphi 0, %s156
    %s173 = sphi 0, %s157
  $region4: #{cnn_downsampling_forward.5} parent=0 // loop_header_branch
    %15 = sbr.rel (%p13) target = $region8
  $region5: #{cnn_downsampling_forward.5} parent=0 // loop_body
    %s17 = ssub.s32 %s12, 1
    %s18 = ssub.s32 %s12, 2
    %s19 = sadd.s32 %s12, 1
    %s20 = ssub.s32 %s12, %s19
    %p21 = scmp.eq.s32.totalorder %s20, 0
    %s23 = sadd.s32 %s22, 1
    %s24 = scalar_select %p21, %s22, %s23
    %p27 = pneg %p21
    %p28 = scmp.eq.s32.totalorder %s12, 1
    %p29 = por %p27, %p28
    %p30 = scmp.ne.s32.totalorder %s22, %s25
    %p31 = scmp.eq.s32.totalorder %s12, 0
    %p32 = por %p30, %p31
    %p33 = scmp.ne.s32.totalorder %s22, %s25
    %p34 = scmp.eq.s32.totalorder %s17, 1
    %p35 = por %p33, %p34
    %p36 = scmp.ne.s32.totalorder %s25, %s26
    %p37 = scmp.eq.s32.totalorder %s17, 0
    %p38 = por %p36, %p37
    %p39 = scmp.ne.s32.totalorder %s25, %s26
    %p40 = scmp.eq.s32.totalorder %s18, 1
    %p41 = por %p39, %p40
    %p43 = scmp.ne.s32.totalorder %s26, %s42
    %p44 = scmp.eq.s32.totalorder %s18, 0
    %p45 = por %p43, %p44
    %s47 = sadd.s32 %s46, 1
    %p50 = scmp.eq.s32.totalorder %s12, 1
    %p51 = scmp.ne.s32.totalorder %s46, %s48
    %p52 = scmp.eq.s32.totalorder %s12, 0
    %p53 = por %p51, %p52
    %p54 = scmp.ne.s32.totalorder %s46, %s48
    %p55 = scmp.eq.s32.totalorder %s17, 1
    %p56 = por %p54, %p55
    %p57 = scmp.ne.s32.totalorder %s48, %s49
    %p58 = scmp.eq.s32.totalorder %s17, 0
    %p59 = por %p57, %p58
    %p60 = scmp.ne.s32.totalorder %s48, %s49
    %p61 = scmp.eq.s32.totalorder %s18, 1
    %p62 = por %p60, %p61
    %p64 = scmp.ne.s32.totalorder %s49, %s63
    %p65 = scmp.eq.s32.totalorder %s18, 0
    %p66 = por %p64, %p65
    %s68 = sadd.s32 %s67, 1
    %p71 = scmp.eq.s32.totalorder %s12, 1
    %p72 = scmp.ne.s32.totalorder %s67, %s69
    %p73 = scmp.eq.s32.totalorder %s12, 0
    %p74 = por %p72, %p73
    %p75 = scmp.ne.s32.totalorder %s67, %s69
    %p76 = scmp.eq.s32.totalorder %s17, 1
    %p77 = por %p75, %p76
    %p78 = scmp.ne.s32.totalorder %s69, %s70
    %p79 = scmp.eq.s32.totalorder %s17, 0
    %p80 = por %p78, %p79
    %p81 = scmp.ne.s32.totalorder %s69, %s70
    %p82 = scmp.eq.s32.totalorder %s18, 1
    %p83 = por %p81, %p82
    %p85 = scmp.ne.s32.totalorder %s70, %s84
    %p86 = scmp.eq.s32.totalorder %s18, 0
    %p87 = por %p85, %p86
    %s89 = sadd.s32 %s88, 1
    %p92 = scmp.eq.s32.totalorder %s12, 1
    %p93 = scmp.ne.s32.totalorder %s88, %s90
    %p94 = scmp.eq.s32.totalorder %s12, 0
    %p95 = por %p93, %p94
    %p96 = scmp.ne.s32.totalorder %s88, %s90
    %p97 = scmp.eq.s32.totalorder %s17, 1
    %p98 = por %p96, %p97
    %p99 = scmp.ne.s32.totalorder %s90, %s91
    %p100 = scmp.eq.s32.totalorder %s17, 0
    %p101 = por %p99, %p100
    %p102 = scmp.ne.s32.totalorder %s90, %s91
    %p103 = scmp.eq.s32.totalorder %s18, 1
    %p104 = por %p102, %p103
    %p106 = scmp.ne.s32.totalorder %s91, %s105
    %p107 = scmp.eq.s32.totalorder %s18, 0
    %p108 = por %p106, %p107
    %s110 = sadd.s32 %s109, 1
    %p113 = scmp.eq.s32.totalorder %s12, 1
    %p114 = scmp.ne.s32.totalorder %s109, %s111
    %p115 = scmp.eq.s32.totalorder %s12, 0
    %p116 = por %p114, %p115
    %p117 = scmp.ne.s32.totalorder %s109, %s111
    %p118 = scmp.eq.s32.totalorder %s17, 1
    %p119 = por %p117, %p118
    %p120 = scmp.ne.s32.totalorder %s111, %s112
    %p121 = scmp.eq.s32.totalorder %s17, 0
    %p122 = por %p120, %p121
    %p123 = scmp.ne.s32.totalorder %s111, %s112
    %p124 = scmp.eq.s32.totalorder %s18, 1
    %p125 = por %p123, %p124
    %p127 = scmp.ne.s32.totalorder %s112, %s126
    %p128 = scmp.eq.s32.totalorder %s18, 0
    %p129 = por %p127, %p128
    %s131 = sadd.s32 %s130, 1
    %p134 = scmp.eq.s32.totalorder %s12, 1
    %p135 = scmp.ne.s32.totalorder %s130, %s132
    %p136 = scmp.eq.s32.totalorder %s12, 0
    %p137 = por %p135, %p136
    %p138 = scmp.ne.s32.totalorder %s130, %s132
    %p139 = scmp.eq.s32.totalorder %s17, 1
    %p140 = por %p138, %p139
    %p141 = scmp.ne.s32.totalorder %s132, %s133
    %p142 = scmp.eq.s32.totalorder %s17, 0
    %p143 = por %p141, %p142
    %p144 = scmp.ne.s32.totalorder %s132, %s133
    %p145 = scmp.eq.s32.totalorder %s18, 1
    %p146 = por %p144, %p145
    %p148 = scmp.ne.s32.totalorder %s133, %s147
    %p149 = scmp.eq.s32.totalorder %s18, 0
    %p150 = por %p148, %p149
    %s151 = ssub.s32 %s12, %s19
    %p152 = scmp.eq.s32.totalorder %s151, 0
    %s154 = sadd.s32 %s153, 1
    %s155 = scalar_select %p152, %s153, %s154
    %p158 = pneg %p152
    %p159 = scmp.eq.s32.totalorder %s12, 1
    %p160 = por %p158, %p159
    %p161 = scmp.ne.s32.totalorder %s153, %s156
    %p162 = scmp.eq.s32.totalorder %s12, 0
    %p163 = por %p161, %p162
    %p164 = scmp.ne.s32.totalorder %s153, %s156
    %p165 = scmp.eq.s32.totalorder %s17, 1
    %p166 = por %p164, %p165
    %p167 = scmp.ne.s32.totalorder %s156, %s157
    %p168 = scmp.eq.s32.totalorder %s17, 0
    %p169 = por %p167, %p168
    %p170 = scmp.ne.s32.totalorder %s156, %s157
    %p171 = scmp.eq.s32.totalorder %s18, 1
    %p172 = por %p170, %p171
    %p174 = scmp.ne.s32.totalorder %s157, %s173
    %p175 = scmp.eq.s32.totalorder %s18, 0
    %p176 = por %p174, %p175
    %p177 = scmp.le.s32.totalorder 1, %s12
    %p178 = scmp.lt.s32.totalorder %s12, 3
    %p179 = pnand %p177, %p178
    %p180 = pneg %p179
    // Predicated region
    $region9: #{cnn_downsampling_forward.5} parent=5 // pred_check
      _
    $region10: #{cnn_downsampling_forward.5} parent=5 // pred_check_branch
      %182 = sbr.rel (%p179) target = $region12
    $region11: #{cnn_downsampling_forward.5} parent=5 // pred_region
      %s183 = ssub.s32 %s12, 1
      // Predicated region
      $region13: #{cnn_downsampling_forward.5} parent=11 // pred_check
        %p184 = pneg %p59
      $region14: #{cnn_downsampling_forward.5} parent=11 // pred_check_branch
        %186 = sbr.rel (%p184) target = $region16
      $region15: #{cnn_downsampling_forward.5} parent=11 // pred_region
        _
      $region16: #{cnn_downsampling_forward.5} parent=11 // pred_fallthru
        _
      // Predicated region
      $region17: #{cnn_downsampling_forward.5} parent=11 // pred_check
        %p187 = pneg %p80
      $region18: #{cnn_downsampling_forward.5} parent=11 // pred_check_branch
        %189 = sbr.rel (%p187) target = $region20
      $region19: #{cnn_downsampling_forward.5} parent=11 // pred_region
        _
      $region20: #{cnn_downsampling_forward.5} parent=11 // pred_fallthru
        _
      // Predicated region
      $region21: #{cnn_downsampling_forward.5} parent=11 // pred_check
        %p190 = pneg %p101
      $region22: #{cnn_downsampling_forward.5} parent=11 // pred_check_branch
        %192 = sbr.rel (%p190) target = $region24
      $region23: #{cnn_downsampling_forward.5} parent=11 // pred_region
        _
      $region24: #{cnn_downsampling_forward.5} parent=11 // pred_fallthru
        _
      // Predicated region
      $region25: #{cnn_downsampling_forward.5} parent=11 // pred_check
        %p193 = pneg %p122
      $region26: #{cnn_downsampling_forward.5} parent=11 // pred_check_branch
        %195 = sbr.rel (%p193) target = $region28
      $region27: #{cnn_downsampling_forward.5} parent=11 // pred_region
        _
      $region28: #{cnn_downsampling_forward.5} parent=11 // pred_fallthru
        _
      // Predicated region
      $region29: #{cnn_downsampling_forward.5} parent=11 // pred_check
        %p196 = pneg %p143
      $region30: #{cnn_downsampling_forward.5} parent=11 // pred_check_branch
        %198 = sbr.rel (%p196) target = $region32
      $region31: #{cnn_downsampling_forward.5} parent=11 // pred_region
        _
      $region32: #{cnn_downsampling_forward.5} parent=11 // pred_fallthru
        _
    $region12: #{cnn_downsampling_forward.5} parent=5 // pred_fallthru
      _
    %p199 = scmp.lt.s32.totalorder %s12, 2
    // Predicated region
    $region33: #{cnn_downsampling_forward.5} parent=5 // pred_check
      %p200 = pneg %p199
    $region34: #{cnn_downsampling_forward.5} parent=5 // pred_check_branch
      %202 = sbr.rel (%p200) target = $region36
    $region35: #{cnn_downsampling_forward.5} parent=5 // pred_region
      // Predicated region
      $region37: #{cnn_downsampling_forward.5} parent=35 // pred_check
        %p203 = pneg %p32
      $region38: #{cnn_downsampling_forward.5} parent=35 // pred_check_branch
        %205 = sbr.rel (%p203) target = $region40
      $region39: #{cnn_downsampling_forward.5} parent=35 // pred_region
        %p206 = scmp.lt.s32.totalorder %s12, 1
        %s207 = scalar_select %p206, %s12, 1
        %s208 = smul.addr %s207, 6
        %s209 = smul.addr %s208, 8
        %s210 = scalar_lea.vmem %s0, %s209
      $region40: #{cnn_downsampling_forward.5} parent=35 // pred_fallthru
        _
    $region36: #{cnn_downsampling_forward.5} parent=5 // pred_fallthru
      _
    %p211 = scmp.le.s32.totalorder 1, %s12
    %p212 = scmp.lt.s32.totalorder %s12, 3
    %p213 = pnand %p211, %p212
    %p214 = pneg %p213
    // Predicated region
    $region41: #{cnn_downsampling_forward.5} parent=5 // pred_check
      _
    $region42: #{cnn_downsampling_forward.5} parent=5 // pred_check_branch
      %216 = sbr.rel (%p213) target = $region44
    $region43: #{cnn_downsampling_forward.5} parent=5 // pred_region
      %s217 = ssub.s32 %s12, 1
      %p218 = scmp.lt.s32.totalorder %s17, 1
      %s219 = scalar_select %p218, %s17, 1
      %s220 = smul.addr %s219, 6
      %s221 = smul.addr %s220, 8
      %s222 = scalar_lea.vmem %s0, %s221
      %p223 = pneg %p38
      %p224 = pneg %p35
      %p225 = pneg %p59
      %p226 = pneg %p56
      %p227 = pneg %p80
      %p228 = pneg %p77
      %p229 = pneg %p101
      %p230 = pneg %p98
      %p231 = pneg %p122
      %p232 = pneg %p119
      %p233 = pneg %p143
      %p234 = pneg %p140
      %p235 = pneg %p169
      %p236 = pneg %p166
      %p237 = scmp.lt.s32.totalorder %s17, 1
      %s238 = scalar_select %p237, %s17, 1
      %s239 = smul.addr %s238, 2
      %s240 = smul.addr %s239, 8
      %s241 = scalar_lea.vmem %s6, %s240
      %p242 = scmp.lt.s32.totalorder %s17, 1
      %s243 = scalar_select %p242, %s17, 1
      %s244 = smul.addr %s243, 6
      %s245 = smul.addr %s244, 8
      %s246 = scalar_lea.vmem %s0, %s245
      %p247 = scmp.lt.s32.totalorder %s17, 1
      %s248 = scalar_select %p247, %s17, 1
      %s249 = smul.addr %s248, 2
      %s250 = smul.addr %s249, 8
      %s251 = scalar_lea.vmem %s6, %s250
      %v252 = vld [vmem:[%s1] sm:$0x1]
      %253 = vst [vmem:[#allocation2] sm:$0xff] 0.0
      %254 = vst [vmem:[#allocation2 + $0x8] sm:$0xff] 0.0
      %vm255 = vcmask 293888
      %256 = vst.msk [vmem:[#allocation2 + $0x10] sm:$0xff] %vm255, 0.0
      %257 = vst [vmem:[#allocation2 + $0x18] sm:$0xff] 0.0
      %258 = vst [vmem:[#allocation2 + $0x20] sm:$0xff] 0.0
      %259 = vst.msk [vmem:[#allocation2 + $0x28] sm:$0xff] %vm255, 0.0
      %v260 = vld [vmem:[%s246] sm:$0xff]
      %v261 = vld [vmem:[%s246 + $0x8] sm:$0xff]
      %v262 = vld [vmem:[%s246 + $0x18] sm:$0xff]
      %v263 = vld [vmem:[%s246 + $0x20] sm:$0xff]
      %v264 = vld [vmem:[%s2] sm:$0xff]
      %v265 = vld [vmem:[%s2 + $0x8] sm:$0xff]
      %s266 = scalar_lea.vmem %s2, 16
      %v267 = vld [vmem:[%s266] sm:$0xff]
      %v268 = vld [vmem:[%s266 + $0x8] sm:$0xff]
      %273 = vrot.lane.b32.xlu0 %v260, 6
      %v274 = vpop.permute.xlu0 %273
      %275 = vrot.lane.b32.xlu0 %v261, 6
      %v276 = vpop.permute.xlu0 %275
      %277 = vrot.lane.b32.xlu0 %v262, 6
      %v278 = vpop.permute.xlu0 %277
      %279 = vrot.lane.b32.xlu0 %v263, 6
      %v280 = vpop.permute.xlu0 %279
      %vm281 = vcmask 48128
      %v282 = vsel %vm281, %v274, %v276
      %v283 = vsel %vm281, %v278, %v280
      %vm286 = vcmask 130048
      %v288 = vsel %vm286, %v267, 0
      %v291 = vsel %vm286, %v268, 0
      %293 = vmatprep.subr.mxu0 0.0
      %294 = vmatpush1.msra.mxu0 %v282
      %295 = vmatprep.subr.mxu0 0.0
      %296 = vmatpush1.msra.mxu0 %v283
      %297 = vmatprep.subr.mxu0 0.0
      %298 = vmatpush1.msra.mxu0 0.0
      %299 = vmatprep.subr.mxu0 0.0
      %300 = vmatpush1.msra.mxu0 0.0
      %301 = vmatprep.subr.mxu0 0.0
      %302 = vmatpush1.msra.mxu0 0.0
      %303 = vmatprep.subr.mxu0 0.0
      %304 = vmatpush1.msra.mxu0 0.0
      %305 = vmatprep.subr.mxu0 0.0
      %306 = vmatpush1.msra.mxu0 0.0
      %307 = vmatprep.subr.mxu0 0.0
      %308 = vmatpush1.msra.mxu0 0.0
      %309 = vmatprep.subr.mxu0 0.0
      %310 = vmatpush1.msra.mxu0 0.0
      %311 = vmatprep.subr.mxu0 0.0
      %312 = vmatpush1.msra.mxu0 0.0
      %313 = vmatprep.subr.mxu0 0.0
      %314 = vmatpush1.msra.mxu0 0.0
      %315 = vmatprep.subr.mxu0 0.0
      %316 = vmatpush1.msra.mxu0 0.0
      %317 = vmatprep.subr.mxu0 0.0
      %318 = vmatpush1.msra.mxu0 0.0
      %319 = vmatprep.subr.mxu0 0.0
      %320 = vmatpush1.msra.mxu0 0.0
      %321 = vmatprep.subr.mxu0 0.0
      %322 = vmatpush1.msra.mxu0 0.0
      %323 = vmatprep.subr.mxu0 0.0
      %324 = vmatpush1.msra.mxu0 0.0
      %325 = vmatprep.subr.mxu0 0.0
      %326 = vmatpush1.msra.mxu0 0.0
      %327 = vmatprep.subr.mxu0 0.0
      %328 = vmatpush1.msra.mxu0 0.0
      %329 = vmatprep.subr.mxu0 0.0
      %330 = vmatpush1.msra.mxu0 0.0
      %331 = vmatprep.subr.mxu0 0.0
      %332 = vmatpush1.msra.mxu0 0.0
      %333 = vmatprep.subr.mxu0 0.0
      %334 = vmatpush1.msra.mxu0 0.0
      %335 = vmatprep.subr.mxu0 0.0
      %336 = vmatpush1.msra.mxu0 0.0
      %337 = vmatprep.subr.mxu0 0.0
      %338 = vmatpush1.msra.mxu0 0.0
      %339 = vmatprep.subr.mxu0 0.0
      %340 = vmatpush1.msra.mxu0 0.0
      %341 = vmatprep.subr.mxu0 0.0
      %342 = vmatpush1.msra.mxu0 0.0
      %343 = vmatprep.subr.mxu0 0.0
      %344 = vmatpush1.msra.mxu0 0.0
      %345 = vmatprep.subr.mxu0 0.0
      %346 = vmatpush1.msra.mxu0 0.0
      %347 = vmatprep.subr.mxu0 0.0
      %348 = vmatpush1.msra.mxu0 0.0
      %349 = vmatprep.subr.mxu0 0.0
      %350 = vmatpush1.msra.mxu0 0.0
      %351 = vmatprep.subr.mxu0 0.0
      %352 = vmatpush1.msra.mxu0 0.0
      %353 = vmatprep.subr.mxu0 0.0
      %354 = vmatpush1.msra.mxu0 0.0
      %355 = vmatprep.subr.mxu0 0.0
      %356 = vmatpush1.msra.mxu0 0.0
      %357 = vmatprep.mubr.f32.mxu0 0.0
      %358 = vmatmul.mubr.f32.gmra.mrb[0].mxu0 %v288
      %v359 = vpop.f32.mrb[0].mxu0
      %v360 = vadd.f32 0.0, %v359
      %v361 = vpop.f32.mrb[0].mxu0
      %362 = vmatprep.mubr.f32.mxu0 0.0
      %363 = vmatmul.mubr.f32.gmra.mrb[0].mxu0 %v291
      %v364 = vpop.f32.mrb[0].mxu0
      %v365 = vadd.f32 0.0, %v364
      %v366 = vpop.f32.mrb[0].mxu0
      %367 = vdwg.mxu0
      %368 = vrot.lane.b32.xlu0 %v260, 7
      %v369 = vpop.permute.xlu0 %368
      %370 = vrot.lane.b32.xlu0 %v261, 7
      %v371 = vpop.permute.xlu0 %370
      %372 = vrot.lane.b32.xlu0 %v262, 7
      %v373 = vpop.permute.xlu0 %372
      %374 = vrot.lane.b32.xlu0 %v263, 7
      %v375 = vpop.permute.xlu0 %374
      %vm376 = vcmask 56320
      %v377 = vsel %vm376, %v369, %v371
      %v378 = vsel %vm376, %v373, %v375
      %v382 = vsel %vm286, %v264, 0
      %v385 = vsel %vm286, %v265, 0
      %387 = vmatprep.subr.mxu0 0.0
      %388 = vmatpush1.msra.mxu0 %v377
      %389 = vmatprep.subr.mxu0 0.0
      %390 = vmatpush1.msra.mxu0 %v378
      %391 = vmatprep.subr.mxu0 0.0
      %392 = vmatpush1.msra.mxu0 0.0
      %393 = vmatprep.subr.mxu0 0.0
      %394 = vmatpush1.msra.mxu0 0.0
      %395 = vmatprep.subr.mxu0 0.0
      %396 = vmatpush1.msra.mxu0 0.0
      %397 = vmatprep.subr.mxu0 0.0
      %398 = vmatpush1.msra.mxu0 0.0
      %399 = vmatprep.subr.mxu0 0.0
      %400 = vmatpush1.msra.mxu0 0.0
      %401 = vmatprep.subr.mxu0 0.0
      %402 = vmatpush1.msra.mxu0 0.0
      %403 = vmatprep.subr.mxu0 0.0
      %404 = vmatpush1.msra.mxu0 0.0
      %405 = vmatprep.subr.mxu0 0.0
      %406 = vmatpush1.msra.mxu0 0.0
      %407 = vmatprep.subr.mxu0 0.0
      %408 = vmatpush1.msra.mxu0 0.0
      %409 = vmatprep.subr.mxu0 0.0
      %410 = vmatpush1.msra.mxu0 0.0
      %411 = vmatprep.subr.mxu0 0.0
      %412 = vmatpush1.msra.mxu0 0.0
      %413 = vmatprep.subr.mxu0 0.0
      %414 = vmatpush1.msra.mxu0 0.0
      %415 = vmatprep.subr.mxu0 0.0
      %416 = vmatpush1.msra.mxu0 0.0
      %417 = vmatprep.subr.mxu0 0.0
      %418 = vmatpush1.msra.mxu0 0.0
      %419 = vmatprep.subr.mxu0 0.0
      %420 = vmatpush1.msra.mxu0 0.0
      %421 = vmatprep.subr.mxu0 0.0
      %422 = vmatpush1.msra.mxu0 0.0
      %423 = vmatprep.subr.mxu0 0.0
      %424 = vmatpush1.msra.mxu0 0.0
      %425 = vmatprep.subr.mxu0 0.0
      %426 = vmatpush1.msra.mxu0 0.0
      %427 = vmatprep.subr.mxu0 0.0
      %428 = vmatpush1.msra.mxu0 0.0
      %429 = vmatprep.subr.mxu0 0.0
      %430 = vmatpush1.msra.mxu0 0.0
      %431 = vmatprep.subr.mxu0 0.0
      %432 = vmatpush1.msra.mxu0 0.0
      %433 = vmatprep.subr.mxu0 0.0
      %434 = vmatpush1.msra.mxu0 0.0
      %435 = vmatprep.subr.mxu0 0.0
      %436 = vmatpush1.msra.mxu0 0.0
      %437 = vmatprep.subr.mxu0 0.0
      %438 = vmatpush1.msra.mxu0 0.0
      %439 = vmatprep.subr.mxu0 0.0
      %440 = vmatpush1.msra.mxu0 0.0
      %441 = vmatprep.subr.mxu0 0.0
      %442 = vmatpush1.msra.mxu0 0.0
      %443 = vmatprep.subr.mxu0 0.0
      %444 = vmatpush1.msra.mxu0 0.0
      %445 = vmatprep.subr.mxu0 0.0
      %446 = vmatpush1.msra.mxu0 0.0
      %447 = vmatprep.subr.mxu0 0.0
      %448 = vmatpush1.msra.mxu0 0.0
      %449 = vmatprep.subr.mxu0 0.0
      %450 = vmatpush1.msra.mxu0 0.0
      %451 = vmatprep.mubr.f32.mxu0 0.0
      %452 = vmatmul.mubr.f32.gmra.mrb[0].mxu0 %v382
      %v453 = vpop.f32.mrb[0].mxu0
      %v454 = vadd.f32 %v360, %v453
      %v455 = vpop.f32.mrb[0].mxu0
      %456 = vmatprep.mubr.f32.mxu0 0.0
      %457 = vmatmul.mubr.f32.gmra.mrb[0].mxu0 %v385
      %v458 = vpop.f32.mrb[0].mxu0
      %v459 = vadd.f32 %v365, %v458
      %v460 = vpop.f32.mrb[0].mxu0
      %461 = vdwg.mxu0
      %s462 = scalar_lea.vmem %s2, 32
      %v463 = vld [vmem:[%s462] sm:$0xff]
      %v464 = vld [vmem:[%s462 + $0x8] sm:$0xff]
      %465 = vrot.lane.b32.xlu0 %v260, 5
      %v466 = vpop.permute.xlu0 %465
      %467 = vrot.lane.b32.xlu0 %v261, 5
      %v468 = vpop.permute.xlu0 %467
      %469 = vrot.lane.b32.xlu0 %v262, 5
      %v470 = vpop.permute.xlu0 %469
      %471 = vrot.lane.b32.xlu0 %v263, 5
      %v472 = vpop.permute.xlu0 %471
      %vm473 = vcmask 39936
      %v474 = vsel %vm473, %v466, %v468
      %v475 = vsel %vm473, %v470, %v472
      %v479 = vsel %vm286, %v463, 0
      %v482 = vsel %vm286, %v464, 0
      %484 = vmatprep.subr.mxu0 0.0
      %485 = vmatpush1.msra.mxu0 %v474
      %486 = vmatprep.subr.mxu0 0.0
      %487 = vmatpush1.msra.mxu0 %v475
      %488 = vmatprep.subr.mxu0 0.0
      %489 = vmatpush1.msra.mxu0 0.0
      %490 = vmatprep.subr.mxu0 0.0
      %491 = vmatpush1.msra.mxu0 0.0
      %492 = vmatprep.subr.mxu0 0.0
      %493 = vmatpush1.msra.mxu0 0.0
      %494 = vmatprep.subr.mxu0 0.0
      %495 = vmatpush1.msra.mxu0 0.0
      %496 = vmatprep.subr.mxu0 0.0
      %497 = vmatpush1.msra.mxu0 0.0
      %498 = vmatprep.subr.mxu0 0.0
      %499 = vmatpush1.msra.mxu0 0.0
      %500 = vmatprep.subr.mxu0 0.0
      %501 = vmatpush1.msra.mxu0 0.0
      %502 = vmatprep.subr.mxu0 0.0
      %503 = vmatpush1.msra.mxu0 0.0
      %504 = vmatprep.subr.mxu0 0.0
      %505 = vmatpush1.msra.mxu0 0.0
      %506 = vmatprep.subr.mxu0 0.0
      %507 = vmatpush1.msra.mxu0 0.0
      %508 = vmatprep.subr.mxu0 0.0
      %509 = vmatpush1.msra.mxu0 0.0
      %510 = vmatprep.subr.mxu0 0.0
      %511 = vmatpush1.msra.mxu0 0.0
      %512 = vmatprep.subr.mxu0 0.0
      %513 = vmatpush1.msra.mxu0 0.0
      %514 = vmatprep.subr.mxu0 0.0
      %515 = vmatpush1.msra.mxu0 0.0
      %516 = vmatprep.subr.mxu0 0.0
      %517 = vmatpush1.msra.mxu0 0.0
      %518 = vmatprep.subr.mxu0 0.0
      %519 = vmatpush1.msra.mxu0 0.0
      %520 = vmatprep.subr.mxu0 0.0
      %521 = vmatpush1.msra.mxu0 0.0
      %522 = vmatprep.subr.mxu0 0.0
      %523 = vmatpush1.msra.mxu0 0.0
      %524 = vmatprep.subr.mxu0 0.0
      %525 = vmatpush1.msra.mxu0 0.0
      %526 = vmatprep.subr.mxu0 0.0
      %527 = vmatpush1.msra.mxu0 0.0
      %528 = vmatprep.subr.mxu0 0.0
      %529 = vmatpush1.msra.mxu0 0.0
      %530 = vmatprep.subr.mxu0 0.0
      %531 = vmatpush1.msra.mxu0 0.0
      %532 = vmatprep.subr.mxu0 0.0
      %533 = vmatpush1.msra.mxu0 0.0
      %534 = vmatprep.subr.mxu0 0.0
      %535 = vmatpush1.msra.mxu0 0.0
      %536 = vmatprep.subr.mxu0 0.0
      %537 = vmatpush1.msra.mxu0 0.0
      %538 = vmatprep.subr.mxu0 0.0
      %539 = vmatpush1.msra.mxu0 0.0
      %540 = vmatprep.subr.mxu0 0.0
      %541 = vmatpush1.msra.mxu0 0.0
      %542 = vmatprep.subr.mxu0 0.0
      %543 = vmatpush1.msra.mxu0 0.0
      %544 = vmatprep.subr.mxu0 0.0
      %545 = vmatpush1.msra.mxu0 0.0
      %546 = vmatprep.subr.mxu0 0.0
      %547 = vmatpush1.msra.mxu0 0.0
      %548 = vmatprep.mubr.f32.mxu0 0.0
      %549 = vmatmul.mubr.f32.gmra.mrb[0].mxu0 %v479
      %v550 = vpop.f32.mrb[0].mxu0
      %v551 = vadd.f32 0.0, %v550
      %v552 = vpop.f32.mrb[0].mxu0
      %553 = vmatprep.mubr.f32.mxu0 0.0
      %554 = vmatmul.mubr.f32.gmra.mrb[0].mxu0 %v482
      %v555 = vpop.f32.mrb[0].mxu0
      %v556 = vadd.f32 0.0, %v555
      %v557 = vpop.f32.mrb[0].mxu0
      %558 = vdwg.mxu0
      %v559 = vadd.f32 %v454, %v551
      %v560 = vadd.f32 %v459, %v556
      %s561 = scalar_lea.vmem %s2, 48
      %v562 = vld [vmem:[%s561] sm:$0xff]
      %v563 = vld [vmem:[%s561 + $0x8] sm:$0xff]
      %564 = vrot.lane.b32.xlu0 %v260, 1
      %v565 = vpop.permute.xlu0 %564
      %566 = vrot.lane.b32.xlu0 %v261, 1
      %v567 = vpop.permute.xlu0 %566
      %568 = vrot.lane.b32.xlu0 %v262, 1
      %v569 = vpop.permute.xlu0 %568
      %570 = vrot.lane.b32.xlu0 %v263, 1
      %v571 = vpop.permute.xlu0 %570
      %vm572 = vcmask 7168
      %v573 = vsel %vm572, %v565, %v567
      %v574 = vsel %vm572, %v569, %v571
      %v578 = vsel %vm286, %v562, 0
      %v581 = vsel %vm286, %v563, 0
      %583 = vmatprep.subr.mxu0 0.0
      %584 = vmatpush1.msra.mxu0 %v573
      %585 = vmatprep.subr.mxu0 0.0
      %586 = vmatpush1.msra.mxu0 %v574
      %587 = vmatprep.subr.mxu0 0.0
      %588 = vmatpush1.msra.mxu0 0.0
      %589 = vmatprep.subr.mxu0 0.0
      %590 = vmatpush1.msra.mxu0 0.0
      %591 = vmatprep.subr.mxu0 0.0
      %592 = vmatpush1.msra.mxu0 0.0
      %593 = vmatprep.subr.mxu0 0.0
      %594 = vmatpush1.msra.mxu0 0.0
      %595 = vmatprep.subr.mxu0 0.0
      %596 = vmatpush1.msra.mxu0 0.0
      %597 = vmatprep.subr.mxu0 0.0
      %598 = vmatpush1.msra.mxu0 0.0
      %599 = vmatprep.subr.mxu0 0.0
      %600 = vmatpush1.msra.mxu0 0.0
      %601 = vmatprep.subr.mxu0 0.0
      %602 = vmatpush1.msra.mxu0 0.0
      %603 = vmatprep.subr.mxu0 0.0
      %604 = vmatpush1.msra.mxu0 0.0
      %605 = vmatprep.subr.mxu0 0.0
      %606 = vmatpush1.msra.mxu0 0.0
      %607 = vmatprep.subr.mxu0 0.0
      %608 = vmatpush1.msra.mxu0 0.0
      %609 = vmatprep.subr.mxu0 0.0
      %610 = vmatpush1.msra.mxu0 0.0
      %611 = vmatprep.subr.mxu0 0.0
      %612 = vmatpush1.msra.mxu0 0.0
      %613 = vmatprep.subr.mxu0 0.0
      %614 = vmatpush1.msra.mxu0 0.0
      %615 = vmatprep.subr.mxu0 0.0
      %616 = vmatpush1.msra.mxu0 0.0
      %617 = vmatprep.subr.mxu0 0.0
      %618 = vmatpush1.msra.mxu0 0.0
      %619 = vmatprep.subr.mxu0 0.0
      %620 = vmatpush1.msra.mxu0 0.0
      %621 = vmatprep.subr.mxu0 0.0
      %622 = vmatpush1.msra.mxu0 0.0
      %623 = vmatprep.subr.mxu0 0.0
      %624 = vmatpush1.msra.mxu0 0.0
      %625 = vmatprep.subr.mxu0 0.0
      %626 = vmatpush1.msra.mxu0 0.0
      %627 = vmatprep.subr.mxu0 0.0
      %628 = vmatpush1.msra.mxu0 0.0
      %629 = vmatprep.subr.mxu0 0.0
      %630 = vmatpush1.msra.mxu0 0.0
      %631 = vmatprep.subr.mxu0 0.0
      %632 = vmatpush1.msra.mxu0 0.0
      %633 = vmatprep.subr.mxu0 0.0
      %634 = vmatpush1.msra.mxu0 0.0
      %635 = vmatprep.subr.mxu0 0.0
      %636 = vmatpush1.msra.mxu0 0.0
      %637 = vmatprep.subr.mxu0 0.0
      %638 = vmatpush1.msra.mxu0 0.0
      %639 = vmatprep.subr.mxu0 0.0
      %640 = vmatpush1.msra.mxu0 0.0
      %641 = vmatprep.subr.mxu0 0.0
      %642 = vmatpush1.msra.mxu0 0.0
      %643 = vmatprep.subr.mxu0 0.0
      %644 = vmatpush1.msra.mxu0 0.0
      %645 = vmatprep.subr.mxu0 0.0
      %646 = vmatpush1.msra.mxu0 0.0
      %647 = vmatprep.mubr.f32.mxu0 0.0
      %648 = vmatmul.mubr.f32.gmra.mrb[0].mxu0 %v578
      %v649 = vpop.f32.mrb[0].mxu0
      %v650 = vadd.f32 0.0, %v649
      %v651 = vpop.f32.mrb[0].mxu0
      %652 = vmatprep.mubr.f32.mxu0 0.0
      %653 = vmatmul.mubr.f32.gmra.mrb[0].mxu0 %v581
      %v654 = vpop.f32.mrb[0].mxu0
      %v655 = vadd.f32 0.0, %v654
      %v656 = vpop.f32.mrb[0].mxu0
      %657 = vdwg.mxu0
      %v658 = vadd.f32 %v559, %v650
      %v659 = vadd.f32 %v560, %v655
      %s660 = scalar_lea.vmem %s2, 64
      %v661 = vld [vmem:[%s660] sm:$0xff]
      %v662 = vld [vmem:[%s660 + $0x8] sm:$0xff]
      %v664 = vsel %vm286, %v661, 0
      %v667 = vsel %vm286, %v662, 0
      %669 = vmatprep.subr.mxu0 0.0
      %670 = vmatpush1.msra.mxu0 %v261
      %671 = vmatprep.subr.mxu0 0.0
      %672 = vmatpush1.msra.mxu0 %v263
      %673 = vmatprep.subr.mxu0 0.0
      %674 = vmatpush1.msra.mxu0 0.0
      %675 = vmatprep.subr.mxu0 0.0
      %676 = vmatpush1.msra.mxu0 0.0
      %677 = vmatprep.subr.mxu0 0.0
      %678 = vmatpush1.msra.mxu0 0.0
      %679 = vmatprep.subr.mxu0 0.0
      %680 = vmatpush1.msra.mxu0 0.0
      %681 = vmatprep.subr.mxu0 0.0
      %682 = vmatpush1.msra.mxu0 0.0
      %683 = vmatprep.subr.mxu0 0.0
      %684 = vmatpush1.msra.mxu0 0.0
      %685 = vmatprep.subr.mxu0 0.0
      %686 = vmatpush1.msra.mxu0 0.0
      %687 = vmatprep.subr.mxu0 0.0
      %688 = vmatpush1.msra.mxu0 0.0
      %689 = vmatprep.subr.mxu0 0.0
      %690 = vmatpush1.msra.mxu0 0.0
      %691 = vmatprep.subr.mxu0 0.0
      %692 = vmatpush1.msra.mxu0 0.0
      %693 = vmatprep.subr.mxu0 0.0
      %694 = vmatpush1.msra.mxu0 0.0
      %695 = vmatprep.subr.mxu0 0.0
      %696 = vmatpush1.msra.mxu0 0.0
      %697 = vmatprep.subr.mxu0 0.0
      %698 = vmatpush1.msra.mxu0 0.0
      %699 = vmatprep.subr.mxu0 0.0
      %700 = vmatpush1.msra.mxu0 0.0
      %701 = vmatprep.subr.mxu0 0.0
      %702 = vmatpush1.msra.mxu0 0.0
      %703 = vmatprep.subr.mxu0 0.0
      %704 = vmatpush1.msra.mxu0 0.0
      %705 = vmatprep.subr.mxu0 0.0
      %706 = vmatpush1.msra.mxu0 0.0
      %707 = vmatprep.subr.mxu0 0.0
      %708 = vmatpush1.msra.mxu0 0.0
      %709 = vmatprep.subr.mxu0 0.0
      %710 = vmatpush1.msra.mxu0 0.0
      %711 = vmatprep.subr.mxu0 0.0
      %712 = vmatpush1.msra.mxu0 0.0
      %713 = vmatprep.subr.mxu0 0.0
      %714 = vmatpush1.msra.mxu0 0.0
      %715 = vmatprep.subr.mxu0 0.0
      %716 = vmatpush1.msra.mxu0 0.0
      %717 = vmatprep.subr.mxu0 0.0
      %718 = vmatpush1.msra.mxu0 0.0
      %719 = vmatprep.subr.mxu0 0.0
      %720 = vmatpush1.msra.mxu0 0.0
      %721 = vmatprep.subr.mxu0 0.0
      %722 = vmatpush1.msra.mxu0 0.0
      %723 = vmatprep.subr.mxu0 0.0
      %724 = vmatpush1.msra.mxu0 0.0
      %725 = vmatprep.subr.mxu0 0.0
      %726 = vmatpush1.msra.mxu0 0.0
      %727 = vmatprep.subr.mxu0 0.0
      %728 = vmatpush1.msra.mxu0 0.0
      %729 = vmatprep.subr.mxu0 0.0
      %730 = vmatpush1.msra.mxu0 0.0
      %731 = vmatprep.subr.mxu0 0.0
      %732 = vmatpush1.msra.mxu0 0.0
      %733 = vmatprep.mubr.f32.mxu0 0.0
      %734 = vmatmul.mubr.f32.gmra.mrb[0].mxu0 %v664
      %v735 = vpop.f32.mrb[0].mxu0
      %v736 = vadd.f32 0.0, %v735
      %v737 = vpop.f32.mrb[0].mxu0
      %738 = vmatprep.mubr.f32.mxu0 0.0
      %739 = vmatmul.mubr.f32.gmra.mrb[0].mxu0 %v667
      %v740 = vpop.f32.mrb[0].mxu0
      %v741 = vadd.f32 0.0, %v740
      %v742 = vpop.f32.mrb[0].mxu0
      %743 = vdwg.mxu0
      %v744 = vadd.f32 %v658, %v736
      %v745 = vadd.f32 %v659, %v741
      %s746 = scalar_lea.vmem %s2, 80
      %v747 = vld [vmem:[%s746] sm:$0xff]
      %v748 = vld [vmem:[%s746 + $0x8] sm:$0xff]
      %749 = vrot.lane.b32.xlu0 %v261, 127
      %v750 = vpop.permute.xlu0 %749
      %751 = vrot.lane.b32.xlu0 %v263, 127
      %v752 = vpop.permute.xlu0 %751
      %v756 = vsel %vm286, %v747, 0
      %v759 = vsel %vm286, %v748, 0
      %761 = vmatprep.subr.mxu0 0.0
      %762 = vmatpush1.msra.mxu0 %v750
      %763 = vmatprep.subr.mxu0 0.0
      %764 = vmatpush1.msra.mxu0 %v752
      %765 = vmatprep.subr.mxu0 0.0
      %766 = vmatpush1.msra.mxu0 0.0
      %767 = vmatprep.subr.mxu0 0.0
      %768 = vmatpush1.msra.mxu0 0.0
      %769 = vmatprep.subr.mxu0 0.0
      %770 = vmatpush1.msra.mxu0 0.0
      %771 = vmatprep.subr.mxu0 0.0
      %772 = vmatpush1.msra.mxu0 0.0
      %773 = vmatprep.subr.mxu0 0.0
      %774 = vmatpush1.msra.mxu0 0.0
      %775 = vmatprep.subr.mxu0 0.0
      %776 = vmatpush1.msra.mxu0 0.0
      %777 = vmatprep.subr.mxu0 0.0
      %778 = vmatpush1.msra.mxu0 0.0
      %779 = vmatprep.subr.mxu0 0.0
      %780 = vmatpush1.msra.mxu0 0.0
      %781 = vmatprep.subr.mxu0 0.0
      %782 = vmatpush1.msra.mxu0 0.0
      %783 = vmatprep.subr.mxu0 0.0
      %784 = vmatpush1.msra.mxu0 0.0
      %785 = vmatprep.subr.mxu0 0.0
      %786 = vmatpush1.msra.mxu0 0.0
      %787 = vmatprep.subr.mxu0 0.0
      %788 = vmatpush1.msra.mxu0 0.0
      %789 = vmatprep.subr.mxu0 0.0
      %790 = vmatpush1.msra.mxu0 0.0
      %791 = vmatprep.subr.mxu0 0.0
      %792 = vmatpush1.msra.mxu0 0.0
      %793 = vmatprep.subr.mxu0 0.0
      %794 = vmatpush1.msra.mxu0 0.0
      %795 = vmatprep.subr.mxu0 0.0
      %796 = vmatpush1.msra.mxu0 0.0
      %797 = vmatprep.subr.mxu0 0.0
      %798 = vmatpush1.msra.mxu0 0.0
      %799 = vmatprep.subr.mxu0 0.0
      %800 = vmatpush1.msra.mxu0 0.0
      %801 = vmatprep.subr.mxu0 0.0
      %802 = vmatpush1.msra.mxu0 0.0
      %803 = vmatprep.subr.mxu0 0.0
      %804 = vmatpush1.msra.mxu0 0.0
      %805 = vmatprep.subr.mxu0 0.0
      %806 = vmatpush1.msra.mxu0 0.0
      %807 = vmatprep.subr.mxu0 0.0
      %808 = vmatpush1.msra.mxu0 0.0
      %809 = vmatprep.subr.mxu0 0.0
      %810 = vmatpush1.msra.mxu0 0.0
      %811 = vmatprep.subr.mxu0 0.0
      %812 = vmatpush1.msra.mxu0 0.0
      %813 = vmatprep.subr.mxu0 0.0
      %814 = vmatpush1.msra.mxu0 0.0
      %815 = vmatprep.subr.mxu0 0.0
      %816 = vmatpush1.msra.mxu0 0.0
      %817 = vmatprep.subr.mxu0 0.0
      %818 = vmatpush1.msra.mxu0 0.0
      %819 = vmatprep.subr.mxu0 0.0
      %820 = vmatpush1.msra.mxu0 0.0
      %821 = vmatprep.subr.mxu0 0.0
      %822 = vmatpush1.msra.mxu0 0.0
      %823 = vmatprep.subr.mxu0 0.0
      %824 = vmatpush1.msra.mxu0 0.0
      %825 = vmatprep.mubr.f32.mxu0 0.0
      %826 = vmatmul.mubr.f32.gmra.mrb[0].mxu0 %v756
      %v827 = vpop.f32.mrb[0].mxu0
      %v828 = vadd.f32 0.0, %v827
      %v829 = vpop.f32.mrb[0].mxu0
      %830 = vmatprep.mubr.f32.mxu0 0.0
      %831 = vmatmul.mubr.f32.gmra.mrb[0].mxu0 %v759
      %v832 = vpop.f32.mrb[0].mxu0
      %v833 = vadd.f32 0.0, %v832
      %v834 = vpop.f32.mrb[0].mxu0
      %835 = vdwg.mxu0
      %v836 = vadd.f32 %v744, %v828
      %v837 = vadd.f32 %v745, %v833
      %s838 = scalar_lea.vmem %s2, 96
      %v839 = vld [vmem:[%s838] sm:$0xff]
      %v840 = vld [vmem:[%s838 + $0x8] sm:$0xff]
      %841 = vrot.lane.b32.xlu0 %v261, 123
      %v842 = vpop.permute.xlu0 %841
      %843 = vrot.lane.b32.xlu0 %v263, 123
      %v844 = vpop.permute.xlu0 %843
      %v848 = vsel %vm286, %v839, 0
      %v851 = vsel %vm286, %v840, 0
      %853 = vmatprep.subr.mxu0 0.0
      %854 = vmatpush1.msra.mxu0 %v842
      %855 = vmatprep.subr.mxu0 0.0
      %856 = vmatpush1.msra.mxu0 %v844
      %857 = vmatprep.subr.mxu0 0.0
      %858 = vmatpush1.msra.mxu0 0.0
      %859 = vmatprep.subr.mxu0 0.0
      %860 = vmatpush1.msra.mxu0 0.0
      %861 = vmatprep.subr.mxu0 0.0
      %862 = vmatpush1.msra.mxu0 0.0
      %863 = vmatprep.subr.mxu0 0.0
      %864 = vmatpush1.msra.mxu0 0.0
      %865 = vmatprep.subr.mxu0 0.0
      %866 = vmatpush1.msra.mxu0 0.0
      %867 = vmatprep.subr.mxu0 0.0
      %868 = vmatpush1.msra.mxu0 0.0
      %869 = vmatprep.subr.mxu0 0.0
      %870 = vmatpush1.msra.mxu0 0.0
      %871 = vmatprep.subr.mxu0 0.0
      %872 = vmatpush1.msra.mxu0 0.0
      %873 = vmatprep.subr.mxu0 0.0
      %874 = vmatpush1.msra.mxu0 0.0
      %875 = vmatprep.subr.mxu0 0.0
      %876 = vmatpush1.msra.mxu0 0.0
      %877 = vmatprep.subr.mxu0 0.0
      %878 = vmatpush1.msra.mxu0 0.0
      %879 = vmatprep.subr.mxu0 0.0
      %880 = vmatpush1.msra.mxu0 0.0
      %881 = vmatprep.subr.mxu0 0.0
      %882 = vmatpush1.msra.mxu0 0.0
      %883 = vmatprep.subr.mxu0 0.0
      %884 = vmatpush1.msra.mxu0 0.0
      %885 = vmatprep.subr.mxu0 0.0
      %886 = vmatpush1.msra.mxu0 0.0
      %887 = vmatprep.subr.mxu0 0.0
      %888 = vmatpush1.msra.mxu0 0.0
      %889 = vmatprep.subr.mxu0 0.0
      %890 = vmatpush1.msra.mxu0 0.0
      %891 = vmatprep.subr.mxu0 0.0
      %892 = vmatpush1.msra.mxu0 0.0
      %893 = vmatprep.subr.mxu0 0.0
      %894 = vmatpush1.msra.mxu0 0.0
      %895 = vmatprep.subr.mxu0 0.0
      %896 = vmatpush1.msra.mxu0 0.0
      %897 = vmatprep.subr.mxu0 0.0
      %898 = vmatpush1.msra.mxu0 0.0
      %899 = vmatprep.subr.mxu0 0.0
      %900 = vmatpush1.msra.mxu0 0.0
      %901 = vmatprep.subr.mxu0 0.0
      %902 = vmatpush1.msra.mxu0 0.0
      %903 = vmatprep.subr.mxu0 0.0
      %904 = vmatpush1.msra.mxu0 0.0
      %905 = vmatprep.subr.mxu0 0.0
      %906 = vmatpush1.msra.mxu0 0.0
      %907 = vmatprep.subr.mxu0 0.0
      %908 = vmatpush1.msra.mxu0 0.0
      %909 = vmatprep.subr.mxu0 0.0
      %910 = vmatpush1.msra.mxu0 0.0
      %911 = vmatprep.subr.mxu0 0.0
      %912 = vmatpush1.msra.mxu0 0.0
      %913 = vmatprep.subr.mxu0 0.0
      %914 = vmatpush1.msra.mxu0 0.0
      %915 = vmatprep.subr.mxu0 0.0
      %916 = vmatpush1.msra.mxu0 0.0
      %917 = vmatprep.mubr.f32.mxu0 0.0
      %918 = vmatmul.mubr.f32.gmra.mrb[0].mxu0 %v848
      %v919 = vpop.f32.mrb[0].mxu0
      %v920 = vadd.f32 0.0, %v919
      %v921 = vpop.f32.mrb[0].mxu0
      %922 = vmatprep.mubr.f32.mxu0 0.0
      %923 = vmatmul.mubr.f32.gmra.mrb[0].mxu0 %v851
      %v924 = vpop.f32.mrb[0].mxu0
      %v925 = vadd.f32 0.0, %v924
      %v926 = vpop.f32.mrb[0].mxu0
      %927 = vdwg.mxu0
      %v928 = vadd.f32 %v836, %v920
      %v929 = vadd.f32 %v837, %v925
      %s930 = scalar_lea.vmem %s2, 112
      %v931 = vld [vmem:[%s930] sm:$0xff]
      %v932 = vld [vmem:[%s930 + $0x8] sm:$0xff]
      %933 = vrot.lane.b32.xlu0 %v261, 122
      %v934 = vpop.permute.xlu0 %933
      %935 = vrot.lane.b32.xlu0 %v263, 122
      %v936 = vpop.permute.xlu0 %935
      %v940 = vsel %vm286, %v931, 0
      %v943 = vsel %vm286, %v932, 0
      %945 = vmatprep.subr.mxu0 0.0
      %946 = vmatpush1.msra.mxu0 %v934
      %947 = vmatprep.subr.mxu0 0.0
      %948 = vmatpush1.msra.mxu0 %v936
      %949 = vmatprep.subr.mxu0 0.0
      %950 = vmatpush1.msra.mxu0 0.0
      %951 = vmatprep.subr.mxu0 0.0
      %952 = vmatpush1.msra.mxu0 0.0
      %953 = vmatprep.subr.mxu0 0.0
      %954 = vmatpush1.msra.mxu0 0.0
      %955 = vmatprep.subr.mxu0 0.0
      %956 = vmatpush1.msra.mxu0 0.0
      %957 = vmatprep.subr.mxu0 0.0
      %958 = vmatpush1.msra.mxu0 0.0
      %959 = vmatprep.subr.mxu0 0.0
      %960 = vmatpush1.msra.mxu0 0.0
      %961 = vmatprep.subr.mxu0 0.0
      %962 = vmatpush1.msra.mxu0 0.0
      %963 = vmatprep.subr.mxu0 0.0
      %964 = vmatpush1.msra.mxu0 0.0
      %965 = vmatprep.subr.mxu0 0.0
      %966 = vmatpush1.msra.mxu0 0.0
      %967 = vmatprep.subr.mxu0 0.0
      %968 = vmatpush1.msra.mxu0 0.0
      %969 = vmatprep.subr.mxu0 0.0
      %970 = vmatpush1.msra.mxu0 0.0
      %971 = vmatprep.subr.mxu0 0.0
      %972 = vmatpush1.msra.mxu0 0.0
      %973 = vmatprep.subr.mxu0 0.0
      %974 = vmatpush1.msra.mxu0 0.0
      %975 = vmatprep.subr.mxu0 0.0
      %976 = vmatpush1.msra.mxu0 0.0
      %977 = vmatprep.subr.mxu0 0.0
      %978 = vmatpush1.msra.mxu0 0.0
      %979 = vmatprep.subr.mxu0 0.0
      %980 = vmatpush1.msra.mxu0 0.0
      %981 = vmatprep.subr.mxu0 0.0
      %982 = vmatpush1.msra.mxu0 0.0
      %983 = vmatprep.subr.mxu0 0.0
      %984 = vmatpush1.msra.mxu0 0.0
      %985 = vmatprep.subr.mxu0 0.0
      %986 = vmatpush1.msra.mxu0 0.0
      %987 = vmatprep.subr.mxu0 0.0
      %988 = vmatpush1.msra.mxu0 0.0
      %989 = vmatprep.subr.mxu0 0.0
      %990 = vmatpush1.msra.mxu0 0.0
      %991 = vmatprep.subr.mxu0 0.0
      %992 = vmatpush1.msra.mxu0 0.0
      %993 = vmatprep.subr.mxu0 0.0
      %994 = vmatpush1.msra.mxu0 0.0
      %995 = vmatprep.subr.mxu0 0.0
      %996 = vmatpush1.msra.mxu0 0.0
      %997 = vmatprep.subr.mxu0 0.0
      %998 = vmatpush1.msra.mxu0 0.0
      %999 = vmatprep.subr.mxu0 0.0
      %1000 = vmatpush1.msra.mxu0 0.0
      %1001 = vmatprep.subr.mxu0 0.0
      %1002 = vmatpush1.msra.mxu0 0.0
      %1003 = vmatprep.subr.mxu0 0.0
      %1004 = vmatpush1.msra.mxu0 0.0
      %1005 = vmatprep.subr.mxu0 0.0
      %1006 = vmatpush1.msra.mxu0 0.0
      %1007 = vmatprep.subr.mxu0 0.0
      %1008 = vmatpush1.msra.mxu0 0.0
      %1009 = vmatprep.mubr.f32.mxu0 0.0
      %1010 = vmatmul.mubr.f32.gmra.mrb[0].mxu0 %v940
      %v1011 = vpop.f32.mrb[0].mxu0
      %v1012 = vadd.f32 0.0, %v1011
      %v1013 = vpop.f32.mrb[0].mxu0
      %1014 = vmatprep.mubr.f32.mxu0 0.0
      %1015 = vmatmul.mubr.f32.gmra.mrb[0].mxu0 %v943
      %v1016 = vpop.f32.mrb[0].mxu0
      %v1017 = vadd.f32 0.0, %v1016
      %v1018 = vpop.f32.mrb[0].mxu0
      %1019 = vdwg.mxu0
      %v1020 = vadd.f32 %v928, %v1012
      %v1021 = vadd.f32 %v929, %v1017
      %s1022 = scalar_lea.vmem %s2, 128
      %v1023 = vld [vmem:[%s1022] sm:$0xff]
      %v1024 = vld [vmem:[%s1022 + $0x8] sm:$0xff]
      %1025 = vrot.lane.b32.xlu0 %v261, 121
      %v1026 = vpop.permute.xlu0 %1025
      %1027 = vrot.lane.b32.xlu0 %v263, 121
      %v1028 = vpop.permute.xlu0 %1027
      %v1032 = vsel %vm286, %v1023, 0
      %v1035 = vsel %vm286, %v1024, 0
      %1037 = vmatprep.subr.mxu0 0.0
      %1038 = vmatpush1.msra.mxu0 %v1026
      %1039 = vmatprep.subr.mxu0 0.0
      %1040 = vmatpush1.msra.mxu0 %v1028
      %1041 = vmatprep.subr.mxu0 0.0
      %1042 = vmatpush1.msra.mxu0 0.0
      %1043 = vmatprep.subr.mxu0 0.0
      %1044 = vmatpush1.msra.mxu0 0.0
      %1045 = vmatprep.subr.mxu0 0.0
      %1046 = vmatpush1.msra.mxu0 0.0
      %1047 = vmatprep.subr.mxu0 0.0
      %1048 = vmatpush1.msra.mxu0 0.0
      %1049 = vmatprep.subr.mxu0 0.0
      %1050 = vmatpush1.msra.mxu0 0.0
      %1051 = vmatprep.subr.mxu0 0.0
      %1052 = vmatpush1.msra.mxu0 0.0
      %1053 = vmatprep.subr.mxu0 0.0
      %1054 = vmatpush1.msra.mxu0 0.0
      %1055 = vmatprep.subr.mxu0 0.0
      %1056 = vmatpush1.msra.mxu0 0.0
      %1057 = vmatprep.subr.mxu0 0.0
      %1058 = vmatpush1.msra.mxu0 0.0
      %1059 = vmatprep.subr.mxu0 0.0
      %1060 = vmatpush1.msra.mxu0 0.0
      %1061 = vmatprep.subr.mxu0 0.0
      %1062 = vmatpush1.msra.mxu0 0.0
      %1063 = vmatprep.subr.mxu0 0.0
      %1064 = vmatpush1.msra.mxu0 0.0
      %1065 = vmatprep.subr.mxu0 0.0
      %1066 = vmatpush1.msra.mxu0 0.0
      %1067 = vmatprep.subr.mxu0 0.0
      %1068 = vmatpush1.msra.mxu0 0.0
      %1069 = vmatprep.subr.mxu0 0.0
      %1070 = vmatpush1.msra.mxu0 0.0
      %1071 = vmatprep.subr.mxu0 0.0
      %1072 = vmatpush1.msra.mxu0 0.0
      %1073 = vmatprep.subr.mxu0 0.0
      %1074 = vmatpush1.msra.mxu0 0.0
      %1075 = vmatprep.subr.mxu0 0.0
      %1076 = vmatpush1.msra.mxu0 0.0
      %1077 = vmatprep.subr.mxu0 0.0
      %1078 = vmatpush1.msra.mxu0 0.0
      %1079 = vmatprep.subr.mxu0 0.0
      %1080 = vmatpush1.msra.mxu0 0.0
      %1081 = vmatprep.subr.mxu0 0.0
      %1082 = vmatpush1.msra.mxu0 0.0
      %1083 = vmatprep.subr.mxu0 0.0
      %1084 = vmatpush1.msra.mxu0 0.0
      %1085 = vmatprep.subr.mxu0 0.0
      %1086 = vmatpush1.msra.mxu0 0.0
      %1087 = vmatprep.subr.mxu0 0.0
      %1088 = vmatpush1.msra.mxu0 0.0
      %1089 = vmatprep.subr.mxu0 0.0
      %1090 = vmatpush1.msra.mxu0 0.0
      %1091 = vmatprep.subr.mxu0 0.0
      %1092 = vmatpush1.msra.mxu0 0.0
      %1093 = vmatprep.subr.mxu0 0.0
      %1094 = vmatpush1.msra.mxu0 0.0
      %1095 = vmatprep.subr.mxu0 0.0
      %1096 = vmatpush1.msra.mxu0 0.0
      %1097 = vmatprep.subr.mxu0 0.0
      %1098 = vmatpush1.msra.mxu0 0.0
      %1099 = vmatprep.subr.mxu0 0.0
      %1100 = vmatpush1.msra.mxu0 0.0
      %1101 = vmatprep.mubr.f32.mxu0 0.0
      %1102 = vmatmul.mubr.f32.gmra.mrb[0].mxu0 %v1032
      %v1103 = vpop.f32.mrb[0].mxu0
      %v1104 = vadd.f32 0.0, %v1103
      %v1105 = vpop.f32.mrb[0].mxu0
      %1106 = vmatprep.mubr.f32.mxu0 0.0
      %1107 = vmatmul.mubr.f32.gmra.mrb[0].mxu0 %v1035
      %v1108 = vpop.f32.mrb[0].mxu0
      %v1109 = vadd.f32 0.0, %v1108
      %v1110 = vpop.f32.mrb[0].mxu0
      %1111 = vdwg.mxu0
      %v1112 = vadd.f32 %v1020, %v1104
      %v1113 = vadd.f32 %v1021, %v1109
      %v1114 = vld [vmem:[%s3] sm:$0xff]
      %v1115 = vld [vmem:[%s3 + $0x8] sm:$0xff]
      %1117 = vset.pattern.permute.xlu0 0
      %1118 = vperm.xlu0 %1117, %v1114
      %v1119 = vpop.permute.xlu0 %1118
      %1122 = vset.pattern.permute.xlu0 0
      %1123 = vperm.xlu0 %1122, %v1115
      %v1124 = vpop.permute.xlu0 %1123
      %v1126 = vadd.f32 %v1112, %v1119
      %v1127 = vadd.f32 %v1113, %v1124
      %vm1128 = vcmp.ge.f32.partialorder %v1126, 0.0
      %vm1129 = vcmp.ge.f32.partialorder %v1127, 0.0
      %v1130 = vmul.f32 %v1126, 0.1
      %v1131 = vmul.f32 %v1127, 0.1
      %v1132 = vsel %vm1128, %v1126, %v1130
      %v1133 = vsel %vm1129, %v1127, %v1131
      %v1135 = vlaneseq
      %v1136 = vshrl.u32 %v1135, 7
      %v1137 = vsub.s32 0, %v1136
      %v1138 = vrot.slane %v252, %v1137
      %v1140 = vmul.f32 %v1132, %v1138
      %v1141 = vmul.f32 %v1133, %v1138
      %1142 = vst.msk [vmem:[#allocation2 + $0x8] sm:$0xff] %vm255, %v1140
      %1143 = vst.msk [vmem:[#allocation2 + $0x20] sm:$0xff] %vm255, %v1141
      %v1144 = vld [vmem:[#allocation2] sm:$0xff]
      %v1145 = vld [vmem:[#allocation2 + $0x8] sm:$0xff]
      %v1146 = vld [vmem:[#allocation2 + $0x18] sm:$0xff]
      %v1147 = vld [vmem:[#allocation2 + $0x20] sm:$0xff]
      %v1148 = vld [vmem:[%s4] sm:$0xff]
      %v1149 = vld [vmem:[%s4 + $0x8] sm:$0xff]
      %s1150 = scalar_lea.vmem %s4, 16
      %v1151 = vld [vmem:[%s1150] sm:$0xff]
      %v1152 = vld [vmem:[%s1150 + $0x8] sm:$0xff]
      %1157 = vrot.lane.b32.xlu0 %v1144, 6
      %v1158 = vpop.permute.xlu0 %1157
      %1159 = vrot.lane.b32.xlu0 %v1145, 6
      %v1160 = vpop.permute.xlu0 %1159
      %1161 = vrot.lane.b32.xlu0 %v1146, 6
      %v1162 = vpop.permute.xlu0 %1161
      %1163 = vrot.lane.b32.xlu0 %v1147, 6
      %v1164 = vpop.permute.xlu0 %1163
      %v1165 = vsel %vm281, %v1158, %v1160
      %v1166 = vsel %vm281, %v1162, %v1164
      %v1170 = vsel %vm286, %v1151, 0
      %v1173 = vsel %vm286, %v1152, 0
      %1175 = vmatprep.subr.mxu0 0.0
      %1176 = vmatpush1.msra.mxu0 %v1165
      %1177 = vmatprep.subr.mxu0 0.0
      %1178 = vmatpush1.msra.mxu0 %v1166
      %1179 = vmatprep.subr.mxu0 0.0
      %1180 = vmatpush1.msra.mxu0 0.0
      %1181 = vmatprep.subr.mxu0 0.0
      %1182 = vmatpush1.msra.mxu0 0.0
      %1183 = vmatprep.subr.mxu0 0.0
      %1184 = vmatpush1.msra.mxu0 0.0
      %1185 = vmatprep.subr.mxu0 0.0
      %1186 = vmatpush1.msra.mxu0 0.0
      %1187 = vmatprep.subr.mxu0 0.0
      %1188 = vmatpush1.msra.mxu0 0.0
      %1189 = vmatprep.subr.mxu0 0.0
      %1190 = vmatpush1.msra.mxu0 0.0
      %1191 = vmatprep.subr.mxu0 0.0
      %1192 = vmatpush1.msra.mxu0 0.0
      %1193 = vmatprep.subr.mxu0 0.0
      %1194 = vmatpush1.msra.mxu0 0.0
      %1195 = vmatprep.subr.mxu0 0.0
      %1196 = vmatpush1.msra.mxu0 0.0
      %1197 = vmatprep.subr.mxu0 0.0
      %1198 = vmatpush1.msra.mxu0 0.0
      %1199 = vmatprep.subr.mxu0 0.0
      %1200 = vmatpush1.msra.mxu0 0.0
      %1201 = vmatprep.subr.mxu0 0.0
      %1202 = vmatpush1.msra.mxu0 0.0
      %1203 = vmatprep.subr.mxu0 0.0
      %1204 = vmatpush1.msra.mxu0 0.0
      %1205 = vmatprep.subr.mxu0 0.0
      %1206 = vmatpush1.msra.mxu0 0.0
      %1207 = vmatprep.subr.mxu0 0.0
      %1208 = vmatpush1.msra.mxu0 0.0
      %1209 = vmatprep.subr.mxu0 0.0
      %1210 = vmatpush1.msra.mxu0 0.0
      %1211 = vmatprep.subr.mxu0 0.0
      %1212 = vmatpush1.msra.mxu0 0.0
      %1213 = vmatprep.subr.mxu0 0.0
      %1214 = vmatpush1.msra.mxu0 0.0
      %1215 = vmatprep.subr.mxu0 0.0
      %1216 = vmatpush1.msra.mxu0 0.0
      %1217 = vmatprep.subr.mxu0 0.0
      %1218 = vmatpush1.msra.mxu0 0.0
      %1219 = vmatprep.subr.mxu0 0.0
      %1220 = vmatpush1.msra.mxu0 0.0
      %1221 = vmatprep.subr.mxu0 0.0
      %1222 = vmatpush1.msra.mxu0 0.0
      %1223 = vmatprep.subr.mxu0 0.0
      %1224 = vmatpush1.msra.mxu0 0.0
      %1225 = vmatprep.subr.mxu0 0.0
      %1226 = vmatpush1.msra.mxu0 0.0
      %1227 = vmatprep.subr.mxu0 0.0
      %1228 = vmatpush1.msra.mxu0 0.0
      %1229 = vmatprep.subr.mxu0 0.0
      %1230 = vmatpush1.msra.mxu0 0.0
      %1231 = vmatprep.subr.mxu0 0.0
      %1232 = vmatpush1.msra.mxu0 0.0
      %1233 = vmatprep.subr.mxu0 0.0
      %1234 = vmatpush1.msra.mxu0 0.0
      %1235 = vmatprep.subr.mxu0 0.0
      %1236 = vmatpush1.msra.mxu0 0.0
      %1237 = vmatprep.subr.mxu0 0.0
      %1238 = vmatpush1.msra.mxu0 0.0
      %1239 = vmatprep.mubr.f32.mxu0 0.0
      %1240 = vmatmul.mubr.f32.gmra.mrb[0].mxu0 %v1170
      %v1241 = vpop.f32.mrb[0].mxu0
      %v1242 = vadd.f32 0.0, %v1241
      %v1243 = vpop.f32.mrb[0].mxu0
      %1244 = vmatprep.mubr.f32.mxu0 0.0
      %1245 = vmatmul.mubr.f32.gmra.mrb[0].mxu0 %v1173
      %v1246 = vpop.f32.mrb[0].mxu0
      %v1247 = vadd.f32 0.0, %v1246
      %v1248 = vpop.f32.mrb[0].mxu0
      %1249 = vdwg.mxu0
      %1250 = vrot.lane.b32.xlu0 %v1144, 7
      %v1251 = vpop.permute.xlu0 %1250
      %1252 = vrot.lane.b32.xlu0 %v1145, 7
      %v1253 = vpop.permute.xlu0 %1252
      %1254 = vrot.lane.b32.xlu0 %v1146, 7
      %v1255 = vpop.permute.xlu0 %1254
      %1256 = vrot.lane.b32.xlu0 %v1147, 7
      %v1257 = vpop.permute.xlu0 %1256
      %v1258 = vsel %vm376, %v1251, %v1253
      %v1259 = vsel %vm376, %v1255, %v1257
      %v1263 = vsel %vm286, %v1148, 0
      %v1266 = vsel %vm286, %v1149, 0
      %1268 = vmatprep.subr.mxu0 0.0
      %1269 = vmatpush1.msra.mxu0 %v1258
      %1270 = vmatprep.subr.mxu0 0.0
      %1271 = vmatpush1.msra.mxu0 %v1259
      %1272 = vmatprep.subr.mxu0 0.0
      %1273 = vmatpush1.msra.mxu0 0.0
      %1274 = vmatprep.subr.mxu0 0.0
      %1275 = vmatpush1.msra.mxu0 0.0
      %1276 = vmatprep.subr.mxu0 0.0
      %1277 = vmatpush1.msra.mxu0 0.0
      %1278 = vmatprep.subr.mxu0 0.0
      %1279 = vmatpush1.msra.mxu0 0.0
      %1280 = vmatprep.subr.mxu0 0.0
      %1281 = vmatpush1.msra.mxu0 0.0
      %1282 = vmatprep.subr.mxu0 0.0
      %1283 = vmatpush1.msra.mxu0 0.0
      %1284 = vmatprep.subr.mxu0 0.0
      %1285 = vmatpush1.msra.mxu0 0.0
      %1286 = vmatprep.subr.mxu0 0.0
      %1287 = vmatpush1.msra.mxu0 0.0
      %1288 = vmatprep.subr.mxu0 0.0
      %1289 = vmatpush1.msra.mxu0 0.0
      %1290 = vmatprep.subr.mxu0 0.0
      %1291 = vmatpush1.msra.mxu0 0.0
      %1292 = vmatprep.subr.mxu0 0.0
      %1293 = vmatpush1.msra.mxu0 0.0
      %1294 = vmatprep.subr.mxu0 0.0
      %1295 = vmatpush1.msra.mxu0 0.0
      %1296 = vmatprep.subr.mxu0 0.0
      %1297 = vmatpush1.msra.mxu0 0.0
      %1298 = vmatprep.subr.mxu0 0.0
      %1299 = vmatpush1.msra.mxu0 0.0
      %1300 = vmatprep.subr.mxu0 0.0
      %1301 = vmatpush1.msra.mxu0 0.0
      %1302 = vmatprep.subr.mxu0 0.0
      %1303 = vmatpush1.msra.mxu0 0.0
      %1304 = vmatprep.subr.mxu0 0.0
      %1305 = vmatpush1.msra.mxu0 0.0
      %1306 = vmatprep.subr.mxu0 0.0
      %1307 = vmatpush1.msra.mxu0 0.0
      %1308 = vmatprep.subr.mxu0 0.0
      %1309 = vmatpush1.msra.mxu0 0.0
      %1310 = vmatprep.subr.mxu0 0.0
      %1311 = vmatpush1.msra.mxu0 0.0
      %1312 = vmatprep.subr.mxu0 0.0
      %1313 = vmatpush1.msra.mxu0 0.0
      %1314 = vmatprep.subr.mxu0 0.0
      %1315 = vmatpush1.msra.mxu0 0.0
      %1316 = vmatprep.subr.mxu0 0.0
      %1317 = vmatpush1.msra.mxu0 0.0
      %1318 = vmatprep.subr.mxu0 0.0
      %1319 = vmatpush1.msra.mxu0 0.0
      %1320 = vmatprep.subr.mxu0 0.0
      %1321 = vmatpush1.msra.mxu0 0.0
      %1322 = vmatprep.subr.mxu0 0.0
      %1323 = vmatpush1.msra.mxu0 0.0
      %1324 = vmatprep.subr.mxu0 0.0
      %1325 = vmatpush1.msra.mxu0 0.0
      %1326 = vmatprep.subr.mxu0 0.0
      %1327 = vmatpush1.msra.mxu0 0.0
      %1328 = vmatprep.subr.mxu0 0.0
      %1329 = vmatpush1.msra.mxu0 0.0
      %1330 = vmatprep.subr.mxu0 0.0
      %1331 = vmatpush1.msra.mxu0 0.0
      %1332 = vmatprep.mubr.f32.mxu0 0.0
      %1333 = vmatmul.mubr.f32.gmra.mrb[0].mxu0 %v1263
      %v1334 = vpop.f32.mrb[0].mxu0
      %v1335 = vadd.f32 %v1242, %v1334
      %v1336 = vpop.f32.mrb[0].mxu0
      %1337 = vmatprep.mubr.f32.mxu0 0.0
      %1338 = vmatmul.mubr.f32.gmra.mrb[0].mxu0 %v1266
      %v1339 = vpop.f32.mrb[0].mxu0
      %v1340 = vadd.f32 %v1247, %v1339
      %v1341 = vpop.f32.mrb[0].mxu0
      %1342 = vdwg.mxu0
      %s1343 = scalar_lea.vmem %s4, 32
      %v1344 = vld [vmem:[%s1343] sm:$0xff]
      %v1345 = vld [vmem:[%s1343 + $0x8] sm:$0xff]
      %1346 = vrot.lane.b32.xlu0 %v1144, 5
      %v1347 = vpop.permute.xlu0 %1346
      %1348 = vrot.lane.b32.xlu0 %v1145, 5
      %v1349 = vpop.permute.xlu0 %1348
      %1350 = vrot.lane.b32.xlu0 %v1146, 5
      %v1351 = vpop.permute.xlu0 %1350
      %1352 = vrot.lane.b32.xlu0 %v1147, 5
      %v1353 = vpop.permute.xlu0 %1352
      %v1354 = vsel %vm473, %v1347, %v1349
      %v1355 = vsel %vm473, %v1351, %v1353
      %v1359 = vsel %vm286, %v1344, 0
      %v1362 = vsel %vm286, %v1345, 0
      %1364 = vmatprep.subr.mxu0 0.0
      %1365 = vmatpush1.msra.mxu0 %v1354
      %1366 = vmatprep.subr.mxu0 0.0
      %1367 = vmatpush1.msra.mxu0 %v1355
      %1368 = vmatprep.subr.mxu0 0.0
      %1369 = vmatpush1.msra.mxu0 0.0
      %1370 = vmatprep.subr.mxu0 0.0
      %1371 = vmatpush1.msra.mxu0 0.0
      %1372 = vmatprep.subr.mxu0 0.0
      %1373 = vmatpush1.msra.mxu0 0.0
      %1374 = vmatprep.subr.mxu0 0.0
      %1375 = vmatpush1.msra.mxu0 0.0
      %1376 = vmatprep.subr.mxu0 0.0
      %1377 = vmatpush1.msra.mxu0 0.0
      %1378 = vmatprep.subr.mxu0 0.0
      %1379 = vmatpush1.msra.mxu0 0.0
      %1380 = vmatprep.subr.mxu0 0.0
      %1381 = vmatpush1.msra.mxu0 0.0
      %1382 = vmatprep.subr.mxu0 0.0
      %1383 = vmatpush1.msra.mxu0 0.0
      %1384 = vmatprep.subr.mxu0 0.0
      %1385 = vmatpush1.msra.mxu0 0.0
      %1386 = vmatprep.subr.mxu0 0.0
      %1387 = vmatpush1.msra.mxu0 0.0
      %1388 = vmatprep.subr.mxu0 0.0
      %1389 = vmatpush1.msra.mxu0 0.0
      %1390 = vmatprep.subr.mxu0 0.0
      %1391 = vmatpush1.msra.mxu0 0.0
      %1392 = vmatprep.subr.mxu0 0.0
      %1393 = vmatpush1.msra.mxu0 0.0
      %1394 = vmatprep.subr.mxu0 0.0
      %1395 = vmatpush1.msra.mxu0 0.0
      %1396 = vmatprep.subr.mxu0 0.0
      %1397 = vmatpush1.msra.mxu0 0.0
      %1398 = vmatprep.subr.mxu0 0.0
      %1399 = vmatpush1.msra.mxu0 0.0
      %1400 = vmatprep.subr.mxu0 0.0
      %1401 = vmatpush1.msra.mxu0 0.0
      %1402 = vmatprep.subr.mxu0 0.0
      %1403 = vmatpush1.msra.mxu0 0.0
      %1404 = vmatprep.subr.mxu0 0.0
      %1405 = vmatpush1.msra.mxu0 0.0
      %1406 = vmatprep.subr.mxu0 0.0
      %1407 = vmatpush1.msra.mxu0 0.0
      %1408 = vmatprep.subr.mxu0 0.0
      %1409 = vmatpush1.msra.mxu0 0.0
      %1410 = vmatprep.subr.mxu0 0.0
      %1411 = vmatpush1.msra.mxu0 0.0
      %1412 = vmatprep.subr.mxu0 0.0
      %1413 = vmatpush1.msra.mxu0 0.0
      %1414 = vmatprep.subr.mxu0 0.0
      %1415 = vmatpush1.msra.mxu0 0.0
      %1416 = vmatprep.subr.mxu0 0.0
      %1417 = vmatpush1.msra.mxu0 0.0
      %1418 = vmatprep.subr.mxu0 0.0
      %1419 = vmatpush1.msra.mxu0 0.0
      %1420 = vmatprep.subr.mxu0 0.0
      %1421 = vmatpush1.msra.mxu0 0.0
      %1422 = vmatprep.subr.mxu0 0.0
      %1423 = vmatpush1.msra.mxu0 0.0
      %1424 = vmatprep.subr.mxu0 0.0
      %1425 = vmatpush1.msra.mxu0 0.0
      %1426 = vmatprep.subr.mxu0 0.0
      %1427 = vmatpush1.msra.mxu0 0.0
      %1428 = vmatprep.mubr.f32.mxu0 0.0
      %1429 = vmatmul.mubr.f32.gmra.mrb[0].mxu0 %v1359
      %v1430 = vpop.f32.mrb[0].mxu0
      %v1431 = vadd.f32 0.0, %v1430
      %v1432 = vpop.f32.mrb[0].mxu0
      %1433 = vmatprep.mubr.f32.mxu0 0.0
      %1434 = vmatmul.mubr.f32.gmra.mrb[0].mxu0 %v1362
      %v1435 = vpop.f32.mrb[0].mxu0
      %v1436 = vadd.f32 0.0, %v1435
      %v1437 = vpop.f32.mrb[0].mxu0
      %1438 = vdwg.mxu0
      %v1439 = vadd.f32 %v1335, %v1431
      %v1440 = vadd.f32 %v1340, %v1436
      %s1441 = scalar_lea.vmem %s4, 48
      %v1442 = vld [vmem:[%s1441] sm:$0xff]
      %v1443 = vld [vmem:[%s1441 + $0x8] sm:$0xff]
      %1444 = vrot.lane.b32.xlu0 %v1144, 1
      %v1445 = vpop.permute.xlu0 %1444
      %1446 = vrot.lane.b32.xlu0 %v1145, 1
      %v1447 = vpop.permute.xlu0 %1446
      %1448 = vrot.lane.b32.xlu0 %v1146, 1
      %v1449 = vpop.permute.xlu0 %1448
      %1450 = vrot.lane.b32.xlu0 %v1147, 1
      %v1451 = vpop.permute.xlu0 %1450
      %v1452 = vsel %vm572, %v1445, %v1447
      %v1453 = vsel %vm572, %v1449, %v1451
      %v1457 = vsel %vm286, %v1442, 0
      %v1460 = vsel %vm286, %v1443, 0
      %1462 = vmatprep.subr.mxu0 0.0
      %1463 = vmatpush1.msra.mxu0 %v1452
      %1464 = vmatprep.subr.mxu0 0.0
      %1465 = vmatpush1.msra.mxu0 %v1453
      %1466 = vmatprep.subr.mxu0 0.0
      %1467 = vmatpush1.msra.mxu0 0.0
      %1468 = vmatprep.subr.mxu0 0.0
      %1469 = vmatpush1.msra.mxu0 0.0
      %1470 = vmatprep.subr.mxu0 0.0
      %1471 = vmatpush1.msra.mxu0 0.0
      %1472 = vmatprep.subr.mxu0 0.0
      %1473 = vmatpush1.msra.mxu0 0.0
      %1474 = vmatprep.subr.mxu0 0.0
      %1475 = vmatpush1.msra.mxu0 0.0
      %1476 = vmatprep.subr.mxu0 0.0
      %1477 = vmatpush1.msra.mxu0 0.0
      %1478 = vmatprep.subr.mxu0 0.0
      %1479 = vmatpush1.msra.mxu0 0.0
      %1480 = vmatprep.subr.mxu0 0.0
      %1481 = vmatpush1.msra.mxu0 0.0
      %1482 = vmatprep.subr.mxu0 0.0
      %1483 = vmatpush1.msra.mxu0 0.0
      %1484 = vmatprep.subr.mxu0 0.0
      %1485 = vmatpush1.msra.mxu0 0.0
      %1486 = vmatprep.subr.mxu0 0.0
      %1487 = vmatpush1.msra.mxu0 0.0
      %1488 = vmatprep.subr.mxu0 0.0
      %1489 = vmatpush1.msra.mxu0 0.0
      %1490 = vmatprep.subr.mxu0 0.0
      %1491 = vmatpush1.msra.mxu0 0.0
      %1492 = vmatprep.subr.mxu0 0.0
      %1493 = vmatpush1.msra.mxu0 0.0
      %1494 = vmatprep.subr.mxu0 0.0
      %1495 = vmatpush1.msra.mxu0 0.0
      %1496 = vmatprep.subr.mxu0 0.0
      %1497 = vmatpush1.msra.mxu0 0.0
      %1498 = vmatprep.subr.mxu0 0.0
      %1499 = vmatpush1.msra.mxu0 0.0
      %1500 = vmatprep.subr.mxu0 0.0
      %1501 = vmatpush1.msra.mxu0 0.0
      %1502 = vmatprep.subr.mxu0 0.0
      %1503 = vmatpush1.msra.mxu0 0.0
      %1504 = vmatprep.subr.mxu0 0.0
      %1505 = vmatpush1.msra.mxu0 0.0
      %1506 = vmatprep.subr.mxu0 0.0
      %1507 = vmatpush1.msra.mxu0 0.0
      %1508 = vmatprep.subr.mxu0 0.0
      %1509 = vmatpush1.msra.mxu0 0.0
      %1510 = vmatprep.subr.mxu0 0.0
      %1511 = vmatpush1.msra.mxu0 0.0
      %1512 = vmatprep.subr.mxu0 0.0
      %1513 = vmatpush1.msra.mxu0 0.0
      %1514 = vmatprep.subr.mxu0 0.0
      %1515 = vmatpush1.msra.mxu0 0.0
      %1516 = vmatprep.subr.mxu0 0.0
      %1517 = vmatpush1.msra.mxu0 0.0
      %1518 = vmatprep.subr.mxu0 0.0
      %1519 = vmatpush1.msra.mxu0 0.0
      %1520 = vmatprep.subr.mxu0 0.0
      %1521 = vmatpush1.msra.mxu0 0.0
      %1522 = vmatprep.subr.mxu0 0.0
      %1523 = vmatpush1.msra.mxu0 0.0
      %1524 = vmatprep.subr.mxu0 0.0
      %1525 = vmatpush1.msra.mxu0 0.0
      %1526 = vmatprep.mubr.f32.mxu0 0.0
      %1527 = vmatmul.mubr.f32.gmra.mrb[0].mxu0 %v1457
      %v1528 = vpop.f32.mrb[0].mxu0
      %v1529 = vadd.f32 0.0, %v1528
      %v1530 = vpop.f32.mrb[0].mxu0
      %1531 = vmatprep.mubr.f32.mxu0 0.0
      %1532 = vmatmul.mubr.f32.gmra.mrb[0].mxu0 %v1460
      %v1533 = vpop.f32.mrb[0].mxu0
      %v1534 = vadd.f32 0.0, %v1533
      %v1535 = vpop.f32.mrb[0].mxu0
      %1536 = vdwg.mxu0
      %v1537 = vadd.f32 %v1439, %v1529
      %v1538 = vadd.f32 %v1440, %v1534
      %s1539 = scalar_lea.vmem %s4, 64
      %v1540 = vld [vmem:[%s1539] sm:$0xff]
      %v1541 = vld [vmem:[%s1539 + $0x8] sm:$0xff]
      %v1543 = vsel %vm286, %v1540, 0
      %v1546 = vsel %vm286, %v1541, 0
      %1548 = vmatprep.subr.mxu0 0.0
      %1549 = vmatpush1.msra.mxu0 %v1145
      %1550 = vmatprep.subr.mxu0 0.0
      %1551 = vmatpush1.msra.mxu0 %v1147
      %1552 = vmatprep.subr.mxu0 0.0
      %1553 = vmatpush1.msra.mxu0 0.0
      %1554 = vmatprep.subr.mxu0 0.0
      %1555 = vmatpush1.msra.mxu0 0.0
      %1556 = vmatprep.subr.mxu0 0.0
      %1557 = vmatpush1.msra.mxu0 0.0
      %1558 = vmatprep.subr.mxu0 0.0
      %1559 = vmatpush1.msra.mxu0 0.0
      %1560 = vmatprep.subr.mxu0 0.0
      %1561 = vmatpush1.msra.mxu0 0.0
      %1562 = vmatprep.subr.mxu0 0.0
      %1563 = vmatpush1.msra.mxu0 0.0
      %1564 = vmatprep.subr.mxu0 0.0
      %1565 = vmatpush1.msra.mxu0 0.0
      %1566 = vmatprep.subr.mxu0 0.0
      %1567 = vmatpush1.msra.mxu0 0.0
      %1568 = vmatprep.subr.mxu0 0.0
      %1569 = vmatpush1.msra.mxu0 0.0
      %1570 = vmatprep.subr.mxu0 0.0
      %1571 = vmatpush1.msra.mxu0 0.0
      %1572 = vmatprep.subr.mxu0 0.0
      %1573 = vmatpush1.msra.mxu0 0.0
      %1574 = vmatprep.subr.mxu0 0.0
      %1575 = vmatpush1.msra.mxu0 0.0
      %1576 = vmatprep.subr.mxu0 0.0
      %1577 = vmatpush1.msra.mxu0 0.0
      %1578 = vmatprep.subr.mxu0 0.0
      %1579 = vmatpush1.msra.mxu0 0.0
      %1580 = vmatprep.subr.mxu0 0.0
      %1581 = vmatpush1.msra.mxu0 0.0
      %1582 = vmatprep.subr.mxu0 0.0
      %1583 = vmatpush1.msra.mxu0 0.0
      %1584 = vmatprep.subr.mxu0 0.0
      %1585 = vmatpush1.msra.mxu0 0.0
      %1586 = vmatprep.subr.mxu0 0.0
      %1587 = vmatpush1.msra.mxu0 0.0
      %1588 = vmatprep.subr.mxu0 0.0
      %1589 = vmatpush1.msra.mxu0 0.0
      %1590 = vmatprep.subr.mxu0 0.0
      %1591 = vmatpush1.msra.mxu0 0.0
      %1592 = vmatprep.subr.mxu0 0.0
      %1593 = vmatpush1.msra.mxu0 0.0
      %1594 = vmatprep.subr.mxu0 0.0
      %1595 = vmatpush1.msra.mxu0 0.0
      %1596 = vmatprep.subr.mxu0 0.0
      %1597 = vmatpush1.msra.mxu0 0.0
      %1598 = vmatprep.subr.mxu0 0.0
      %1599 = vmatpush1.msra.mxu0 0.0
      %1600 = vmatprep.subr.mxu0 0.0
      %1601 = vmatpush1.msra.mxu0 0.0
      %1602 = vmatprep.subr.mxu0 0.0
      %1603 = vmatpush1.msra.mxu0 0.0
      %1604 = vmatprep.subr.mxu0 0.0
      %1605 = vmatpush1.msra.mxu0 0.0
      %1606 = vmatprep.subr.mxu0 0.0
      %1607 = vmatpush1.msra.mxu0 0.0
      %1608 = vmatprep.subr.mxu0 0.0
      %1609 = vmatpush1.msra.mxu0 0.0
      %1610 = vmatprep.subr.mxu0 0.0
      %1611 = vmatpush1.msra.mxu0 0.0
      %1612 = vmatprep.mubr.f32.mxu0 0.0
      %1613 = vmatmul.mubr.f32.gmra.mrb[0].mxu0 %v1543
      %v1614 = vpop.f32.mrb[0].mxu0
      %v1615 = vadd.f32 0.0, %v1614
      %v1616 = vpop.f32.mrb[0].mxu0
      %1617 = vmatprep.mubr.f32.mxu0 0.0
      %1618 = vmatmul.mubr.f32.gmra.mrb[0].mxu0 %v1546
      %v1619 = vpop.f32.mrb[0].mxu0
      %v1620 = vadd.f32 0.0, %v1619
      %v1621 = vpop.f32.mrb[0].mxu0
      %1622 = vdwg.mxu0
      %v1623 = vadd.f32 %v1537, %v1615
      %v1624 = vadd.f32 %v1538, %v1620
      %s1625 = scalar_lea.vmem %s4, 80
      %v1626 = vld [vmem:[%s1625] sm:$0xff]
      %v1627 = vld [vmem:[%s1625 + $0x8] sm:$0xff]
      %1628 = vrot.lane.b32.xlu0 %v1145, 127
      %v1629 = vpop.permute.xlu0 %1628
      %1630 = vrot.lane.b32.xlu0 %v1147, 127
      %v1631 = vpop.permute.xlu0 %1630
      %v1635 = vsel %vm286, %v1626, 0
      %v1638 = vsel %vm286, %v1627, 0
      %1640 = vmatprep.subr.mxu0 0.0
      %1641 = vmatpush1.msra.mxu0 %v1629
      %1642 = vmatprep.subr.mxu0 0.0
      %1643 = vmatpush1.msra.mxu0 %v1631
      %1644 = vmatprep.subr.mxu0 0.0
      %1645 = vmatpush1.msra.mxu0 0.0
      %1646 = vmatprep.subr.mxu0 0.0
      %1647 = vmatpush1.msra.mxu0 0.0
      %1648 = vmatprep.subr.mxu0 0.0
      %1649 = vmatpush1.msra.mxu0 0.0
      %1650 = vmatprep.subr.mxu0 0.0
      %1651 = vmatpush1.msra.mxu0 0.0
      %1652 = vmatprep.subr.mxu0 0.0
      %1653 = vmatpush1.msra.mxu0 0.0
      %1654 = vmatprep.subr.mxu0 0.0
      %1655 = vmatpush1.msra.mxu0 0.0
      %1656 = vmatprep.subr.mxu0 0.0
      %1657 = vmatpush1.msra.mxu0 0.0
      %1658 = vmatprep.subr.mxu0 0.0
      %1659 = vmatpush1.msra.mxu0 0.0
      %1660 = vmatprep.subr.mxu0 0.0
      %1661 = vmatpush1.msra.mxu0 0.0
      %1662 = vmatprep.subr.mxu0 0.0
      %1663 = vmatpush1.msra.mxu0 0.0
      %1664 = vmatprep.subr.mxu0 0.0
      %1665 = vmatpush1.msra.mxu0 0.0
      %1666 = vmatprep.subr.mxu0 0.0
      %1667 = vmatpush1.msra.mxu0 0.0
      %1668 = vmatprep.subr.mxu0 0.0
      %1669 = vmatpush1.msra.mxu0 0.0
      %1670 = vmatprep.subr.mxu0 0.0
      %1671 = vmatpush1.msra.mxu0 0.0
      %1672 = vmatprep.subr.mxu0 0.0
      %1673 = vmatpush1.msra.mxu0 0.0
      %1674 = vmatprep.subr.mxu0 0.0
      %1675 = vmatpush1.msra.mxu0 0.0
      %1676 = vmatprep.subr.mxu0 0.0
      %1677 = vmatpush1.msra.mxu0 0.0
      %1678 = vmatprep.subr.mxu0 0.0
      %1679 = vmatpush1.msra.mxu0 0.0
      %1680 = vmatprep.subr.mxu0 0.0
      %1681 = vmatpush1.msra.mxu0 0.0
      %1682 = vmatprep.subr.mxu0 0.0
      %1683 = vmatpush1.msra.mxu0 0.0
      %1684 = vmatprep.subr.mxu0 0.0
      %1685 = vmatpush1.msra.mxu0 0.0
      %1686 = vmatprep.subr.mxu0 0.0
      %1687 = vmatpush1.msra.mxu0 0.0
      %1688 = vmatprep.subr.mxu0 0.0
      %1689 = vmatpush1.msra.mxu0 0.0
      %1690 = vmatprep.subr.mxu0 0.0
      %1691 = vmatpush1.msra.mxu0 0.0
      %1692 = vmatprep.subr.mxu0 0.0
      %1693 = vmatpush1.msra.mxu0 0.0
      %1694 = vmatprep.subr.mxu0 0.0
      %1695 = vmatpush1.msra.mxu0 0.0
      %1696 = vmatprep.subr.mxu0 0.0
      %1697 = vmatpush1.msra.mxu0 0.0
      %1698 = vmatprep.subr.mxu0 0.0
      %1699 = vmatpush1.msra.mxu0 0.0
      %1700 = vmatprep.subr.mxu0 0.0
      %1701 = vmatpush1.msra.mxu0 0.0
      %1702 = vmatprep.subr.mxu0 0.0
      %1703 = vmatpush1.msra.mxu0 0.0
      %1704 = vmatprep.mubr.f32.mxu0 0.0
      %1705 = vmatmul.mubr.f32.gmra.mrb[0].mxu0 %v1635
      %v1706 = vpop.f32.mrb[0].mxu0
      %v1707 = vadd.f32 0.0, %v1706
      %v1708 = vpop.f32.mrb[0].mxu0
      %1709 = vmatprep.mubr.f32.mxu0 0.0
      %1710 = vmatmul.mubr.f32.gmra.mrb[0].mxu0 %v1638
      %v1711 = vpop.f32.mrb[0].mxu0
      %v1712 = vadd.f32 0.0, %v1711
      %v1713 = vpop.f32.mrb[0].mxu0
      %1714 = vdwg.mxu0
      %v1715 = vadd.f32 %v1623, %v1707
      %v1716 = vadd.f32 %v1624, %v1712
      %s1717 = scalar_lea.vmem %s4, 96
      %v1718 = vld [vmem:[%s1717] sm:$0xff]
      %v1719 = vld [vmem:[%s1717 + $0x8] sm:$0xff]
      %1720 = vrot.lane.b32.xlu0 %v1145, 123
      %v1721 = vpop.permute.xlu0 %1720
      %1722 = vrot.lane.b32.xlu0 %v1147, 123
      %v1723 = vpop.permute.xlu0 %1722
      %v1727 = vsel %vm286, %v1718, 0
      %v1730 = vsel %vm286, %v1719, 0
      %1732 = vmatprep.subr.mxu0 0.0
      %1733 = vmatpush1.msra.mxu0 %v1721
      %1734 = vmatprep.subr.mxu0 0.0
      %1735 = vmatpush1.msra.mxu0 %v1723
      %1736 = vmatprep.subr.mxu0 0.0
      %1737 = vmatpush1.msra.mxu0 0.0
      %1738 = vmatprep.subr.mxu0 0.0
      %1739 = vmatpush1.msra.mxu0 0.0
      %1740 = vmatprep.subr.mxu0 0.0
      %1741 = vmatpush1.msra.mxu0 0.0
      %1742 = vmatprep.subr.mxu0 0.0
      %1743 = vmatpush1.msra.mxu0 0.0
      %1744 = vmatprep.subr.mxu0 0.0
      %1745 = vmatpush1.msra.mxu0 0.0
      %1746 = vmatprep.subr.mxu0 0.0
      %1747 = vmatpush1.msra.mxu0 0.0
      %1748 = vmatprep.subr.mxu0 0.0
      %1749 = vmatpush1.msra.mxu0 0.0
      %1750 = vmatprep.subr.mxu0 0.0
      %1751 = vmatpush1.msra.mxu0 0.0
      %1752 = vmatprep.subr.mxu0 0.0
      %1753 = vmatpush1.msra.mxu0 0.0
      %1754 = vmatprep.subr.mxu0 0.0
      %1755 = vmatpush1.msra.mxu0 0.0
      %1756 = vmatprep.subr.mxu0 0.0
      %1757 = vmatpush1.msra.mxu0 0.0
      %1758 = vmatprep.subr.mxu0 0.0
      %1759 = vmatpush1.msra.mxu0 0.0
      %1760 = vmatprep.subr.mxu0 0.0
      %1761 = vmatpush1.msra.mxu0 0.0
      %1762 = vmatprep.subr.mxu0 0.0
      %1763 = vmatpush1.msra.mxu0 0.0
      %1764 = vmatprep.subr.mxu0 0.0
      %1765 = vmatpush1.msra.mxu0 0.0
      %1766 = vmatprep.subr.mxu0 0.0
      %1767 = vmatpush1.msra.mxu0 0.0
      %1768 = vmatprep.subr.mxu0 0.0
      %1769 = vmatpush1.msra.mxu0 0.0
      %1770 = vmatprep.subr.mxu0 0.0
      %1771 = vmatpush1.msra.mxu0 0.0
      %1772 = vmatprep.subr.mxu0 0.0
      %1773 = vmatpush1.msra.mxu0 0.0
      %1774 = vmatprep.subr.mxu0 0.0
      %1775 = vmatpush1.msra.mxu0 0.0
      %1776 = vmatprep.subr.mxu0 0.0
      %1777 = vmatpush1.msra.mxu0 0.0
      %1778 = vmatprep.subr.mxu0 0.0
      %1779 = vmatpush1.msra.mxu0 0.0
      %1780 = vmatprep.subr.mxu0 0.0
      %1781 = vmatpush1.msra.mxu0 0.0
      %1782 = vmatprep.subr.mxu0 0.0
      %1783 = vmatpush1.msra.mxu0 0.0
      %1784 = vmatprep.subr.mxu0 0.0
      %1785 = vmatpush1.msra.mxu0 0.0
      %1786 = vmatprep.subr.mxu0 0.0
      %1787 = vmatpush1.msra.mxu0 0.0
      %1788 = vmatprep.subr.mxu0 0.0
      %1789 = vmatpush1.msra.mxu0 0.0
      %1790 = vmatprep.subr.mxu0 0.0
      %1791 = vmatpush1.msra.mxu0 0.0
      %1792 = vmatprep.subr.mxu0 0.0
      %1793 = vmatpush1.msra.mxu0 0.0
      %1794 = vmatprep.subr.mxu0 0.0
      %1795 = vmatpush1.msra.mxu0 0.0
      %1796 = vmatprep.mubr.f32.mxu0 0.0
      %1797 = vmatmul.mubr.f32.gmra.mrb[0].mxu0 %v1727
      %v1798 = vpop.f32.mrb[0].mxu0
      %v1799 = vadd.f32 0.0, %v1798
      %v1800 = vpop.f32.mrb[0].mxu0
      %1801 = vmatprep.mubr.f32.mxu0 0.0
      %1802 = vmatmul.mubr.f32.gmra.mrb[0].mxu0 %v1730
      %v1803 = vpop.f32.mrb[0].mxu0
      %v1804 = vadd.f32 0.0, %v1803
      %v1805 = vpop.f32.mrb[0].mxu0
      %1806 = vdwg.mxu0
      %v1807 = vadd.f32 %v1715, %v1799
      %v1808 = vadd.f32 %v1716, %v1804
      %s1809 = scalar_lea.vmem %s4, 112
      %v1810 = vld [vmem:[%s1809] sm:$0xff]
      %v1811 = vld [vmem:[%s1809 + $0x8] sm:$0xff]
      %1812 = vrot.lane.b32.xlu0 %v1145, 122
      %v1813 = vpop.permute.xlu0 %1812
      %1814 = vrot.lane.b32.xlu0 %v1147, 122
      %v1815 = vpop.permute.xlu0 %1814
      %v1819 = vsel %vm286, %v1810, 0
      %v1822 = vsel %vm286, %v1811, 0
      %1824 = vmatprep.subr.mxu0 0.0
      %1825 = vmatpush1.msra.mxu0 %v1813
      %1826 = vmatprep.subr.mxu0 0.0
      %1827 = vmatpush1.msra.mxu0 %v1815
      %1828 = vmatprep.subr.mxu0 0.0
      %1829 = vmatpush1.msra.mxu0 0.0
      %1830 = vmatprep.subr.mxu0 0.0
      %1831 = vmatpush1.msra.mxu0 0.0
      %1832 = vmatprep.subr.mxu0 0.0
      %1833 = vmatpush1.msra.mxu0 0.0
      %1834 = vmatprep.subr.mxu0 0.0
      %1835 = vmatpush1.msra.mxu0 0.0
      %1836 = vmatprep.subr.mxu0 0.0
      %1837 = vmatpush1.msra.mxu0 0.0
      %1838 = vmatprep.subr.mxu0 0.0
      %1839 = vmatpush1.msra.mxu0 0.0
      %1840 = vmatprep.subr.mxu0 0.0
      %1841 = vmatpush1.msra.mxu0 0.0
      %1842 = vmatprep.subr.mxu0 0.0
      %1843 = vmatpush1.msra.mxu0 0.0
      %1844 = vmatprep.subr.mxu0 0.0
      %1845 = vmatpush1.msra.mxu0 0.0
      %1846 = vmatprep.subr.mxu0 0.0
      %1847 = vmatpush1.msra.mxu0 0.0
      %1848 = vmatprep.subr.mxu0 0.0
      %1849 = vmatpush1.msra.mxu0 0.0
      %1850 = vmatprep.subr.mxu0 0.0
      %1851 = vmatpush1.msra.mxu0 0.0
      %1852 = vmatprep.subr.mxu0 0.0
      %1853 = vmatpush1.msra.mxu0 0.0
      %1854 = vmatprep.subr.mxu0 0.0
      %1855 = vmatpush1.msra.mxu0 0.0
      %1856 = vmatprep.subr.mxu0 0.0
      %1857 = vmatpush1.msra.mxu0 0.0
      %1858 = vmatprep.subr.mxu0 0.0
      %1859 = vmatpush1.msra.mxu0 0.0
      %1860 = vmatprep.subr.mxu0 0.0
      %1861 = vmatpush1.msra.mxu0 0.0
      %1862 = vmatprep.subr.mxu0 0.0
      %1863 = vmatpush1.msra.mxu0 0.0
      %1864 = vmatprep.subr.mxu0 0.0
      %1865 = vmatpush1.msra.mxu0 0.0
      %1866 = vmatprep.subr.mxu0 0.0
      %1867 = vmatpush1.msra.mxu0 0.0
      %1868 = vmatprep.subr.mxu0 0.0
      %1869 = vmatpush1.msra.mxu0 0.0
      %1870 = vmatprep.subr.mxu0 0.0
      %1871 = vmatpush1.msra.mxu0 0.0
      %1872 = vmatprep.subr.mxu0 0.0
      %1873 = vmatpush1.msra.mxu0 0.0
      %1874 = vmatprep.subr.mxu0 0.0
      %1875 = vmatpush1.msra.mxu0 0.0
      %1876 = vmatprep.subr.mxu0 0.0
      %1877 = vmatpush1.msra.mxu0 0.0
      %1878 = vmatprep.subr.mxu0 0.0
      %1879 = vmatpush1.msra.mxu0 0.0
      %1880 = vmatprep.subr.mxu0 0.0
      %1881 = vmatpush1.msra.mxu0 0.0
      %1882 = vmatprep.subr.mxu0 0.0
      %1883 = vmatpush1.msra.mxu0 0.0
      %1884 = vmatprep.subr.mxu0 0.0
      %1885 = vmatpush1.msra.mxu0 0.0
      %1886 = vmatprep.subr.mxu0 0.0
      %1887 = vmatpush1.msra.mxu0 0.0
      %1888 = vmatprep.mubr.f32.mxu0 0.0
      %1889 = vmatmul.mubr.f32.gmra.mrb[0].mxu0 %v1819
      %v1890 = vpop.f32.mrb[0].mxu0
      %v1891 = vadd.f32 0.0, %v1890
      %v1892 = vpop.f32.mrb[0].mxu0
      %1893 = vmatprep.mubr.f32.mxu0 0.0
      %1894 = vmatmul.mubr.f32.gmra.mrb[0].mxu0 %v1822
      %v1895 = vpop.f32.mrb[0].mxu0
      %v1896 = vadd.f32 0.0, %v1895
      %v1897 = vpop.f32.mrb[0].mxu0
      %1898 = vdwg.mxu0
      %v1899 = vadd.f32 %v1807, %v1891
      %v1900 = vadd.f32 %v1808, %v1896
      %s1901 = scalar_lea.vmem %s4, 128
      %v1902 = vld [vmem:[%s1901] sm:$0xff]
      %v1903 = vld [vmem:[%s1901 + $0x8] sm:$0xff]
      %1904 = vrot.lane.b32.xlu0 %v1145, 121
      %v1905 = vpop.permute.xlu0 %1904
      %1906 = vrot.lane.b32.xlu0 %v1147, 121
      %v1907 = vpop.permute.xlu0 %1906
      %v1911 = vsel %vm286, %v1902, 0
      %v1914 = vsel %vm286, %v1903, 0
      %1916 = vmatprep.subr.mxu0 0.0
      %1917 = vmatpush1.msra.mxu0 %v1905
      %1918 = vmatprep.subr.mxu0 0.0
      %1919 = vmatpush1.msra.mxu0 %v1907
      %1920 = vmatprep.subr.mxu0 0.0
      %1921 = vmatpush1.msra.mxu0 0.0
      %1922 = vmatprep.subr.mxu0 0.0
      %1923 = vmatpush1.msra.mxu0 0.0
      %1924 = vmatprep.subr.mxu0 0.0
      %1925 = vmatpush1.msra.mxu0 0.0
      %1926 = vmatprep.subr.mxu0 0.0
      %1927 = vmatpush1.msra.mxu0 0.0
      %1928 = vmatprep.subr.mxu0 0.0
      %1929 = vmatpush1.msra.mxu0 0.0
      %1930 = vmatprep.subr.mxu0 0.0
      %1931 = vmatpush1.msra.mxu0 0.0
      %1932 = vmatprep.subr.mxu0 0.0
      %1933 = vmatpush1.msra.mxu0 0.0
      %1934 = vmatprep.subr.mxu0 0.0
      %1935 = vmatpush1.msra.mxu0 0.0
      %1936 = vmatprep.subr.mxu0 0.0
      %1937 = vmatpush1.msra.mxu0 0.0
      %1938 = vmatprep.subr.mxu0 0.0
      %1939 = vmatpush1.msra.mxu0 0.0
      %1940 = vmatprep.subr.mxu0 0.0
      %1941 = vmatpush1.msra.mxu0 0.0
      %1942 = vmatprep.subr.mxu0 0.0
      %1943 = vmatpush1.msra.mxu0 0.0
      %1944 = vmatprep.subr.mxu0 0.0
      %1945 = vmatpush1.msra.mxu0 0.0
      %1946 = vmatprep.subr.mxu0 0.0
      %1947 = vmatpush1.msra.mxu0 0.0
      %1948 = vmatprep.subr.mxu0 0.0
      %1949 = vmatpush1.msra.mxu0 0.0
      %1950 = vmatprep.subr.mxu0 0.0
      %1951 = vmatpush1.msra.mxu0 0.0
      %1952 = vmatprep.subr.mxu0 0.0
      %1953 = vmatpush1.msra.mxu0 0.0
      %1954 = vmatprep.subr.mxu0 0.0
      %1955 = vmatpush1.msra.mxu0 0.0
      %1956 = vmatprep.subr.mxu0 0.0
      %1957 = vmatpush1.msra.mxu0 0.0
      %1958 = vmatprep.subr.mxu0 0.0
      %1959 = vmatpush1.msra.mxu0 0.0
      %1960 = vmatprep.subr.mxu0 0.0
      %1961 = vmatpush1.msra.mxu0 0.0
      %1962 = vmatprep.subr.mxu0 0.0
      %1963 = vmatpush1.msra.mxu0 0.0
      %1964 = vmatprep.subr.mxu0 0.0
      %1965 = vmatpush1.msra.mxu0 0.0
      %1966 = vmatprep.subr.mxu0 0.0
      %1967 = vmatpush1.msra.mxu0 0.0
      %1968 = vmatprep.subr.mxu0 0.0
      %1969 = vmatpush1.msra.mxu0 0.0
      %1970 = vmatprep.subr.mxu0 0.0
      %1971 = vmatpush1.msra.mxu0 0.0
      %1972 = vmatprep.subr.mxu0 0.0
      %1973 = vmatpush1.msra.mxu0 0.0
      %1974 = vmatprep.subr.mxu0 0.0
      %1975 = vmatpush1.msra.mxu0 0.0
      %1976 = vmatprep.subr.mxu0 0.0
      %1977 = vmatpush1.msra.mxu0 0.0
      %1978 = vmatprep.subr.mxu0 0.0
      %1979 = vmatpush1.msra.mxu0 0.0
      %1980 = vmatprep.mubr.f32.mxu0 0.0
      %1981 = vmatmul.mubr.f32.gmra.mrb[0].mxu0 %v1911
      %v1982 = vpop.f32.mrb[0].mxu0
      %v1983 = vadd.f32 0.0, %v1982
      %v1984 = vpop.f32.mrb[0].mxu0
      %1985 = vmatprep.mubr.f32.mxu0 0.0
      %1986 = vmatmul.mubr.f32.gmra.mrb[0].mxu0 %v1914
      %v1987 = vpop.f32.mrb[0].mxu0
      %v1988 = vadd.f32 0.0, %v1987
      %v1989 = vpop.f32.mrb[0].mxu0
      %1990 = vdwg.mxu0
      %v1991 = vadd.f32 %v1899, %v1983
      %v1992 = vadd.f32 %v1900, %v1988
      %v1993 = vld [vmem:[%s5] sm:$0xff]
      %v1994 = vld [vmem:[%s5 + $0x8] sm:$0xff]
      %1996 = vset.pattern.permute.xlu0 0
      %1997 = vperm.xlu0 %1996, %v1993
      %v1998 = vpop.permute.xlu0 %1997
      %2001 = vset.pattern.permute.xlu0 0
      %2002 = vperm.xlu0 %2001, %v1994
      %v2003 = vpop.permute.xlu0 %2002
      %v2005 = vadd.f32 %v1991, %v1998
      %v2006 = vadd.f32 %v1992, %v2003
      %v2007 = vmul.f32 %v2005, %v1138
      %v2008 = vmul.f32 %v2006, %v1138
      %v2009 = vsel %vm255, %v2007, 0.0
      %2010 = vadd.xlane.f32.xlu0 %v2009
      %v2011 = vpop.xlane.xlu0 %2010
      %v2012 = vsel %vm255, %v2008, 0.0
      %2013 = vadd.xlane.f32.xlu0 %v2012
      %v2014 = vpop.xlane.xlu0 %2013
      %v2015 = vmul.f32 %v2011, 0.0625
      %v2016 = vmul.f32 %v2014, 0.0625
      %v2017 = vsub.f32 %v2007, %v2015
      %v2018 = vsub.f32 %v2008, %v2016
      %v2019 = vmul.f32 %v2017, %v1138
      %v2020 = vmul.f32 %v2018, %v1138
      %v2021 = vmul.f32 %v2019, %v2019
      %v2022 = vmul.f32 %v2020, %v2020
      %v2023 = vsel %vm255, %v2021, 0.0
      %2024 = vadd.xlane.f32.xlu0 %v2023
      %v2025 = vpop.xlane.xlu0 %2024
      %v2026 = vsel %vm255, %v2022, 0.0
      %2027 = vadd.xlane.f32.xlu0 %v2026
      %v2028 = vpop.xlane.xlu0 %2027
      %v2029 = vmul.f32 %v2025, 0.0625
      %v2030 = vmul.f32 %v2028, 0.0625
      %v2031 = vadd.f32 %v2029, 1e-05
      %v2032 = vadd.f32 %v2030, 1e-05
      %v2033 = vrsqrt.pop %v2031
      %v2034 = vrsqrt.pop %v2032
      %v2035 = vmul.f32 %v2019, %v2033
      %v2036 = vmul.f32 %v2020, %v2034
      %2037 = vst.msk [vmem:[%s251] sm:$0xff] %vm255, %v2035
      %2038 = vst.msk [vmem:[%s251 + $0x8] sm:$0xff] %vm255, %v2036
      %p2039 = scmp.lt.s32.totalorder %s17, 1
      %s2040 = scalar_select %p2039, %s17, 1
      %s2041 = smul.addr %s2040, 2
      %s2042 = smul.addr %s2041, 8
      %s2043 = scalar_lea.vmem %s6, %s2042
      // Predicated region
      $region45: #{cnn_downsampling_forward.5} parent=43 // pred_check
        %p2044 = pneg %p166
      $region46: #{cnn_downsampling_forward.5} parent=43 // pred_check_branch
        %2046 = sbr.rel (%p2044) target = $region48
      $region47: #{cnn_downsampling_forward.5} parent=43 // pred_region
        _
      $region48: #{cnn_downsampling_forward.5} parent=43 // pred_fallthru
        _
    $region44: #{cnn_downsampling_forward.5} parent=5 // pred_fallthru
      _
    %p2047 = scmp.le.s32.totalorder 2, %s12
    // Predicated region
    $region49: #{cnn_downsampling_forward.5} parent=5 // pred_check
      %p2048 = pneg %p2047
    $region50: #{cnn_downsampling_forward.5} parent=5 // pred_check_branch
      %2050 = sbr.rel (%p2048) target = $region52
    $region51: #{cnn_downsampling_forward.5} parent=5 // pred_region
      %s2051 = ssub.s32 %s12, 2
      // Predicated region
      $region53: #{cnn_downsampling_forward.5} parent=51 // pred_check
        %p2052 = pneg %p172
      $region54: #{cnn_downsampling_forward.5} parent=51 // pred_check_branch
        %2054 = sbr.rel (%p2052) target = $region56
      $region55: #{cnn_downsampling_forward.5} parent=51 // pred_region
        %p2055 = scmp.lt.s32.totalorder %s18, 1
        %s2056 = scalar_select %p2055, %s18, 1
        %s2057 = smul.addr %s2056, 2
        %s2058 = smul.addr %s2057, 8
        %s2059 = scalar_lea.vmem %s6, %s2058
      $region56: #{cnn_downsampling_forward.5} parent=51 // pred_fallthru
        _
    $region52: #{cnn_downsampling_forward.5} parent=5 // pred_fallthru
      _
  $region6: #{cnn_downsampling_forward.5} parent=0 // loop_footer
    %s16 = sadd.s32 1, %s12
  $region7: #{cnn_downsampling_forward.5} parent=0 // loop_footer_branch
    %11 = sbr.rel target = $region3
  $region8: #{cnn_downsampling_forward.5} parent=0 // loop_exit
    _

</llo_original>
